<compile_context>
chip_gen: v6e
topology: v6e:2x2x1
jax: 0.10.0
libtpu: 0.0.40
codegen_flags: <defaults>
</compile_context>

<pallas_src>
import functools
from types import SimpleNamespace

import numpy as np
import jax
import jax.numpy as jnp
from jax.experimental import pallas as pl
from jax.experimental.pallas import tpu as pltpu

LEAKY_SLOPE = 0.2  # TODO(synk): Conv3dCustom source not provided; LeakyReLU(0.2) assumed.


# ---------------------------------------------------------------------------
# Pallas kernels
# ---------------------------------------------------------------------------
def _matmul_bias_act_kernel(a_ref, w_ref, b_ref, o_ref, acc_ref, *,
                            negative_slope, post_scale):
    """K-tiled matmul with f32 accumulator; bias + LeakyReLU (+ BN scale) epilogue."""
    @pl.when(pl.program_id(1) == 0)
    def _init():
        acc_ref[...] = jnp.zeros_like(acc_ref)

    acc_ref[...] += jnp.dot(a_ref[...], w_ref[...],
                            preferred_element_type=jnp.float32)

    @pl.when(pl.program_id(1) == pl.num_programs(1) - 1)
    def _finalize():
        r = acc_ref[...] + b_ref[...]
        if negative_slope is not None:
            r = jnp.where(r >= 0.0, r, r * negative_slope)
        if post_scale is not None:
            r = r * post_scale
        o_ref[...] = r.astype(o_ref.dtype)


def matmul_bias_act(a, w, b, *, negative_slope=None, post_scale=None,
                    tile_m=512, tile_k=512):
    """(M, K) @ (K, N) + b[N], optional LeakyReLU and post-scale.

    bf16 MXU operands / f32 accumulation; M and K tiled; reduction axis last.
    """
    M, K = a.shape
    K2, N = w.shape
    assert K == K2 and b.shape == (N,)

    a = a.astype(jnp.bfloat16)
    w = w.astype(jnp.bfloat16)
    b2 = b.astype(jnp.float32).reshape(1, N)

    # ---- K tiling (single full-K block when it already fits a tile) ----
    if K <= tile_k:
        tk, nk = K, 1
    else:
        tk = tile_k                                   # multiple of 128
        kpad = (-K) % tk
        if kpad:                                      # zero-pad K: exact result
            a = jnp.pad(a, ((0, 0), (0, kpad)))
            w = jnp.pad(w, ((0, kpad), (0, 0)))
        nk = (K + kpad) // tk

    # ---- M tiling (16-aligned for bf16 sublane packing) ----
    tm = min(tile_m, M)
    tm = max(16, (tm // 16) * 16)
    nm = pl.cdiv(M, tm)
    mpad = nm * tm - M
    if mpad:                                          # never triggers at demo shapes
        a = jnp.pad(a, ((0, mpad), (0, 0)))

    out = pl.pallas_call(
        functools.partial(_matmul_bias_act_kernel,
                          negative_slope=negative_slope, post_scale=post_scale),
        out_shape=jax.ShapeDtypeStruct((M + mpad, N), jnp.float32),
        grid_spec=pltpu.PrefetchScalarGridSpec(
            num_scalar_prefetch=0,
            grid=(nm, nk),
            in_specs=[
                pl.BlockSpec((tm, tk), lambda i, k: (i, k)),
                pl.BlockSpec((tk, N), lambda i, k: (k, 0)),
                pl.BlockSpec((1, N), lambda i, k: (0, 0)),
            ],
            out_specs=pl.BlockSpec((tm, N), lambda i, k: (i, 0)),
            scratch_shapes=[pltpu.VMEM((tm, N), jnp.float32)],
        ),
        compiler_params=pltpu.CompilerParams(
            dimension_semantics=("parallel", "arbitrary"),
            vmem_limit_bytes=32 * 1024 * 1024,
        ),
    )(a, w, b2)
    return out[:M] if mpad else out


def _scaled_add_kernel(a_ref, b_ref, o_ref, *, scale_a, scale_b):
    o_ref[...] = a_ref[...] * scale_a + b_ref[...] * scale_b


def scaled_add(a, b, scale_a, scale_b):
    """Fused eval-mode BatchNorm3d(1) scales + JointModel add.

    Lane-dense (rows, 128) layout with a parallel grid over row tiles.
    """
    assert a.shape == b.shape
    shape = a.shape
    total = a.size
    lane = 128
    tile_r = 512 if total >= 512 * lane else 8
    chunk = tile_r * lane
    pad = (-total) % chunk
    af = a.reshape(-1)
    bf = b.reshape(-1)
    if pad:
        af = jnp.pad(af, (0, pad))
        bf = jnp.pad(bf, (0, pad))
    rows = (total + pad) // lane
    a2 = af.reshape(rows, lane)
    b2 = bf.reshape(rows, lane)

    out = pl.pallas_call(
        functools.partial(_scaled_add_kernel,
                          scale_a=float(scale_a), scale_b=float(scale_b)),
        out_shape=jax.ShapeDtypeStruct((rows, lane), jnp.float32),
        grid=(rows // tile_r,),
        in_specs=[pl.BlockSpec((tile_r, lane), lambda i: (i, 0)),
                  pl.BlockSpec((tile_r, lane), lambda i: (i, 0))],
        out_specs=pl.BlockSpec((tile_r, lane), lambda i: (i, 0)),
        compiler_params=pltpu.CompilerParams(
            dimension_semantics=("parallel",),
            vmem_limit_bytes=32 * 1024 * 1024,
        ),
    )(a2, b2)
    out = out.reshape(-1)
    if pad:
        out = out[:total]
    return out.reshape(shape)


# ---------------------------------------------------------------------------
# Conv via im2col + the Pallas matmul (channel-last activations)
# ---------------------------------------------------------------------------
def conv3d_valid_cl(x_cl, w, b, slope, post_scale=None):
    """Valid 3-D conv; x_cl: (N, D, H, W, Ci); w: (Co, Ci, k, k, k)."""
    # TODO(synk): at production sizes (k=7, Ci=128) the im2col patches should be
    # built implicitly inside the kernel (tap-indexed reduction grid / manual
    # DMA of shifted slabs) instead of being materialized in HBM.
    co, ci, k = w.shape[0], w.shape[1], w.shape[-1]
    n, d, h, ww, c = x_cl.shape
    assert c == ci
    do, ho, wo = d - k + 1, h - k + 1, ww - k + 1
    cols = []
    for kd in range(k):
        for kh in range(k):
            for kw_ in range(k):
                cols.append(x_cl[:, kd:kd + do, kh:kh + ho, kw_:kw_ + wo, :])
    patches = jnp.concatenate(cols, axis=-1)          # (n, do, ho, wo, k^3*ci)
    a2d = patches.reshape(n * do * ho * wo, k ** 3 * ci)
    w2d = jnp.transpose(w, (2, 3, 4, 1, 0)).reshape(k ** 3 * ci, co)
    out = matmul_bias_act(a2d, w2d, b, negative_slope=slope, post_scale=post_scale)
    return out.reshape(n, do, ho, wo, co)


def conv3d_custom_apply(spec, p, x_cl, post_scale=None):
    """Conv3dCustom: Conv3d or ConvTranspose3d (stride=1, pad=0) + LeakyReLU."""
    k = spec.kernel
    if spec.transpose:
        # ConvTranspose3d(stride=1, padding=0) == full-padded conv, flipped kernel.
        xp = jnp.pad(x_cl, ((0, 0), (k - 1, k - 1), (k - 1, k - 1), (k - 1, k - 1), (0, 0)))
        w = jnp.flip(p['w'], axis=(2, 3, 4)).transpose(1, 0, 2, 3, 4)
        return conv3d_valid_cl(xp, w, p['b'], LEAKY_SLOPE, post_scale)
    return conv3d_valid_cl(x_cl, p['w'], p['b'], LEAKY_SLOPE, post_scale)


# ---------------------------------------------------------------------------
# Separable pooling / trilinear resize + FFT helpers
# ---------------------------------------------------------------------------
def adaptive_avg_pool_matrix(in_len, out_len):
    m = np.zeros((in_len, out_len), np.float32)
    for o in range(out_len):
        start = (o * in_len) // out_len
        end = -((-(o + 1) * in_len) // out_len)       # ceil
        m[start:end, o] = 1.0 / (end - start)
    return jnp.asarray(m)


def trilinear_matrix(in_len, out_len):
    # torch.nn.Upsample(mode='trilinear', align_corners=False)
    m = np.zeros((in_len, out_len), np.float32)
    scale = in_len / out_len
    for o in range(out_len):
        src = max((o + 0.5) * scale - 0.5, 0.0)
        i0 = min(int(np.floor(src)), in_len - 1)
        i1 = min(i0 + 1, in_len - 1)
        lam = src - i0
        m[i0, o] += 1.0 - lam
        m[i1, o] += lam
    return jnp.asarray(m)


def apply_matrix_last_axis(x, mat):
    lead = x.shape[:-1]
    flat = x.reshape(-1, x.shape[-1])
    zero_b = jnp.zeros((mat.shape[1],), jnp.float32)
    out = matmul_bias_act(flat, mat, zero_b, negative_slope=None)
    return out.reshape(*lead, mat.shape[1])


def apply_separable(x, mat):
    # TODO(synk): at production sizes fuse the three per-axis applications into
    # one Pallas kernel (in-VMEM contractions) to avoid the moveaxis round trips.
    for ax in (-1, -2, -3):
        xm = jnp.moveaxis(x, ax, -1)
        xm = apply_matrix_last_axis(xm, mat)
        x = jnp.moveaxis(xm, -1, ax)
    return x


def fftn_all(x):
    # torch.fft.fftn(inputs) transforms over ALL dims; XLA FFT is rank<=3, so
    # decompose: 3-D FFT over spatial dims, then 1-D FFTs over C and N.
    y = jnp.fft.fftn(x, axes=(-3, -2, -1))
    y = jnp.fft.fft(y, axis=1)
    y = jnp.fft.fft(y, axis=0)
    return y


# ---------------------------------------------------------------------------
# Static layer structure + parameter init (params contain arrays ONLY)
# ---------------------------------------------------------------------------
def conv_block_specs(feat, kernel):
    return (
        SimpleNamespace(in_feat=1, out_feat=feat, kernel=kernel, transpose=False),
        SimpleNamespace(in_feat=feat, out_feat=1, kernel=kernel, transpose=True),
        SimpleNamespace(in_feat=1, out_feat=feat, kernel=kernel, transpose=False),
        SimpleNamespace(in_feat=feat, out_feat=1, kernel=kernel, transpose=True),
    )


def init_conv3d_custom(key, spec):
    kw, kb = jax.random.split(key)
    k = spec.kernel
    bound = 1.0 / np.sqrt(spec.in_feat * k ** 3)
    if spec.transpose:
        w_shape = (spec.in_feat, spec.out_feat, k, k, k)   # ConvTranspose3d layout
    else:
        w_shape = (spec.out_feat, spec.in_feat, k, k, k)
    w = jax.random.uniform(kw, w_shape, jnp.float32, -bound, bound)
    b = jax.random.uniform(kb, (spec.out_feat,), jnp.float32, -bound, bound)
    return dict(w=w, b=b)


def init_conv_block(key, specs):
    keys = jax.random.split(key, len(specs))
    return [init_conv3d_custom(k, s) for k, s in zip(keys, specs)]


# ---------------------------------------------------------------------------
# Model forward passes
# ---------------------------------------------------------------------------
def left_model_apply(specs, params, x, pool_mat, inv_std):
    # TODO(synk): LeftModel source not provided; inferred as spatial-domain
    # AdaptiveAvgPool3d + the same Conv3dCustom stack + eval BatchNorm3d(1)
    # whose scale is fused into the last conv's epilogue (post_scale).
    t = apply_separable(x, pool_mat)                  # NCDHW, C == 1
    t = jnp.transpose(t, (0, 2, 3, 4, 1))             # -> channel-last (C==1: cheap)
    for i, (spec, p) in enumerate(zip(specs, params)):
        ps = inv_std if i == len(specs) - 1 else None
        t = conv3d_custom_apply(spec, p, t, post_scale=ps)
    return jnp.transpose(t, (0, 4, 1, 2, 3))          # back to NCDHW


def right_model_apply(specs, params, x, pool_mat, up_mat):
    ff = fftn_all(x)                                  # Fourier3dCustom(split=True)
    r, i = jnp.real(ff), jnp.imag(ff)

    def branch(t):
        t = apply_separable(t, pool_mat)              # AdaptiveAvgPool3d
        t = jnp.transpose(t, (0, 2, 3, 4, 1))         # channel-last conv path
        for spec, p in zip(specs, params):            # Conv3dCustom x4
            t = conv3d_custom_apply(spec, p, t)
        t = jnp.transpose(t, (0, 4, 1, 2, 3))
        # Dropout: deterministic eval-mode -> identity
        t = apply_separable(t, up_mat)                # Upsample(trilinear, pad_size)
        return t

    r, i = branch(r), branch(i)
    merged = jnp.fft.ifftn(r + 1j * i, axes=(-3, -2, -1)).real  # Fourier3dCustom(split=False).real
    return merged   # eval BatchNorm3d(1) scale applied in the joint add epilogue


def joint_model_apply(params, x, cfg):
    specs = conv_block_specs(cfg.feat, cfg.kernel)
    pool_mat = adaptive_avg_pool_matrix(cfg.pad_size, cfg.down_size)
    up_mat = trilinear_matrix(cfg.down_size, cfg.pad_size)
    inv_std = float(1.0 / np.sqrt(1.0 + 1e-5))  # eval BN3d(1): running (0,1), affine (1,0)

    out1 = left_model_apply(specs, params['left'], x, pool_mat, inv_std)
    out2 = right_model_apply(specs, params['right'], x, pool_mat, up_mat)

    l2, l1 = out2.shape[-1], out1.shape[-1]
    pad, is_odd = divmod(l2 - l1, 2)
    p1 = pad
    p2 = l2 - (pad + 1 if is_odd else pad)            # absolute end; robust for pad == 0
    out2c = out2[..., p1:p2, p1:p2, p1:p2]
    # out1 already carries its BN scale; fold the right-branch BN scale into the add.
    return scaled_add(out1, out2c, 1.0, inv_std)


# ---------------------------------------------------------------------------
if __name__ == "__main__":
    cfg = SimpleNamespace(
        dropout=0.0,
        pad_size=16,   # opt.pad_size (input spatial size / Upsample target)
        down_size=8,   # production AdaptiveAvgPool3d(64), scaled down
        feat=8,        # production 128 feature maps, scaled down
        kernel=3,      # production kernel 7, scaled down
    )
    key = jax.random.PRNGKey(0)
    k_in, k_left, k_right = jax.random.split(key, 3)
    specs = conv_block_specs(cfg.feat, cfg.kernel)
    params = dict(
        left=dict(),
        right=dict(),
    )
    params['left'] = init_conv_block(k_left, specs)
    params['right'] = init_conv_block(k_right, specs)
    x = jax.random.normal(k_in, (2, 1, cfg.pad_size, cfg.pad_size, cfg.pad_size), jnp.float32)

    fwd = jax.jit(functools.partial(joint_model_apply, cfg=cfg))
    out = fwd(params, x)
    jax.block_until_ready(out)
    assert out.shape == (2, 1, cfg.down_size, cfg.down_size, cfg.down_size)
    assert out.dtype == jnp.float32
    print("KERNEL_OK")
</pallas_src>

<mosaic_0001>
module attributes {stable_mosaic.version = 11 : i64} {
  func.func @_matmul_bias_act_kernel(%arg0: i32, %arg1: i32, %arg2: memref<512x16xbf16, #tpu.memory_space<vmem>>, %arg3: memref<16x8xbf16, #tpu.memory_space<vmem>>, %arg4: memref<1x8xf32, #tpu.memory_space<vmem>>, %arg5: memref<512x8xf32, #tpu.memory_space<vmem>>, %arg6: memref<512x8xf32, #tpu.memory_space<vmem>>) attributes {dimension_semantics = [#tpu.dimension_semantics<parallel>, #tpu.dimension_semantics<arbitrary>], iteration_bounds = array<i64: 1, 1>, scalar_prefetch = 0 : i64, scratch_operands = 1 : i64, tpu.core_type = #tpu.core_type<tc>, window_params = [{transform_indices = @transform_0, window_bounds = array<i64: 512, 16>}, {transform_indices = @transform_1, window_bounds = array<i64: 16, 8>}, {pipeline_mode = #tpu.pipeline_mode<synchronous>, transform_indices = @transform_2, window_bounds = array<i64: 1, 8>}, {transform_indices = @transform_3, window_bounds = array<i64: 512, 8>}]} {
    %c0_i32 = arith.constant 0 : i32
    %0 = arith.cmpi eq, %arg1, %c0_i32 : i32
    %1 = arith.extui %0 : i1 to i32
    %c0_i32_0 = arith.constant 0 : i32
    %2 = arith.cmpi ne, %1, %c0_i32_0 : i32
    scf.if %2 {
      %cst_10 = arith.constant 0.000000e+00 : f32
      %12 = vector.broadcast %cst_10 : f32 to vector<512x8xf32>
      %c0_11 = arith.constant 0 : index
      %c0_12 = arith.constant 0 : index
      %13 = vector.load %arg6[%c0_11, %c0_12] : memref<512x8xf32, #tpu.memory_space<vmem>>, vector<512x8xf32>
      tpu.vector_store %arg6[%c0_11, %c0_12], %12 {strides = array<i32>} : memref<512x8xf32, #tpu.memory_space<vmem>>, vector<512x8xf32>,
    } else {
    }
    %c0 = arith.constant 0 : index
    %c0_1 = arith.constant 0 : index
    %3 = vector.load %arg6[%c0, %c0_1] : memref<512x8xf32, #tpu.memory_space<vmem>>, vector<512x8xf32>
    %c0_2 = arith.constant 0 : index
    %c0_3 = arith.constant 0 : index
    %4 = vector.load %arg2[%c0_2, %c0_3] : memref<512x16xbf16, #tpu.memory_space<vmem>>, vector<512x16xbf16>
    %c0_4 = arith.constant 0 : index
    %c0_5 = arith.constant 0 : index
    %5 = vector.load %arg3[%c0_4, %c0_5] : memref<16x8xbf16, #tpu.memory_space<vmem>>, vector<16x8xbf16>
    %cst = arith.constant dense<0.000000e+00> : vector<512x8xf32>
    %6 = tpu.matmul %4, %5, %cst {dimension_numbers = #tpu.dot_dimension_numbers<[1], [0], [0], [1], [0, 0, 1, 1], [], []>} : vector<512x16xbf16>, vector<16x8xbf16>, vector<512x8xf32> -> vector<512x8xf32>
    %7 = arith.addf %3, %6 : vector<512x8xf32>
    %c0_6 = arith.constant 0 : index
    %c0_7 = arith.constant 0 : index
    %8 = vector.load %arg6[%c0_6, %c0_7] : memref<512x8xf32, #tpu.memory_space<vmem>>, vector<512x8xf32>
    tpu.vector_store %arg6[%c0_6, %c0_7], %7 {strides = array<i32>} : memref<512x8xf32, #tpu.memory_space<vmem>>, vector<512x8xf32>,
    %c0_i32_8 = arith.constant 0 : i32
    %9 = arith.cmpi eq, %arg1, %c0_i32_8 : i32
    %10 = arith.extui %9 : i1 to i32
    %c0_i32_9 = arith.constant 0 : i32
    %11 = arith.cmpi ne, %10, %c0_i32_9 : i32
    scf.if %11 {
      %c0_10 = arith.constant 0 : index
      %c0_11 = arith.constant 0 : index
      %12 = vector.load %arg6[%c0_10, %c0_11] : memref<512x8xf32, #tpu.memory_space<vmem>>, vector<512x8xf32>
      %c0_12 = arith.constant 0 : index
      %c0_13 = arith.constant 0 : index
      %13 = vector.load %arg4[%c0_12, %c0_13] : memref<1x8xf32, #tpu.memory_space<vmem>>, vector<1x8xf32>
      %14 = vector.broadcast %13 : vector<1x8xf32> to vector<512x8xf32>
      %15 = arith.addf %12, %14 : vector<512x8xf32>
      %c0_14 = arith.constant 0 : index
      %c0_15 = arith.constant 0 : index
      %16 = vector.load %arg5[%c0_14, %c0_15] : memref<512x8xf32, #tpu.memory_space<vmem>>, vector<512x8xf32>
      tpu.vector_store %arg5[%c0_14, %c0_15], %15 {strides = array<i32>} : memref<512x8xf32, #tpu.memory_space<vmem>>, vector<512x8xf32>,
    } else {
    }
    return
  }
  func.func @transform_0(%arg0: i32, %arg1: i32) -> (i32, i32) {
    %c0_i32 = arith.constant 0 : i32
    return %arg0, %arg1 : i32, i32
  }
  func.func @transform_1(%arg0: i32, %arg1: i32) -> (i32, i32) {
    %c0_i32 = arith.constant 0 : i32
    %c0_i32_0 = arith.constant 0 : i32
    return %arg1, %c0_i32 : i32, i32
  }
  func.func @transform_2(%arg0: i32, %arg1: i32) -> (i32, i32) {
    %c0_i32 = arith.constant 0 : i32
    %c0_i32_0 = arith.constant 0 : i32
    %c0_i32_1 = arith.constant 0 : i32
    return %c0_i32, %c0_i32_0 : i32, i32
  }
  func.func @transform_3(%arg0: i32, %arg1: i32) -> (i32, i32) {
    %c0_i32 = arith.constant 0 : i32
    %c0_i32_0 = arith.constant 0 : i32
    return %arg0, %c0_i32 : i32, i32
  }
}

module attributes {stable_mosaic.version = 11 : i64} {
  func.func @_matmul_bias_act_kernel(%arg0: i32, %arg1: i32, %arg2: memref<256x16xbf16, #tpu.memory_space<vmem>>, %arg3: memref<16x8xbf16, #tpu.memory_space<vmem>>, %arg4: memref<1x8xf32, #tpu.memory_space<vmem>>, %arg5: memref<256x8xf32, #tpu.memory_space<vmem>>, %arg6: memref<256x8xf32, #tpu.memory_space<vmem>>) attributes {dimension_semantics = [#tpu.dimension_semantics<parallel>, #tpu.dimension_semantics<arbitrary>], iteration_bounds = array<i64: 1, 1>, scalar_prefetch = 0 : i64, scratch_operands = 1 : i64, tpu.core_type = #tpu.core_type<tc>, window_params = [{transform_indices = @transform_0, window_bounds = array<i64: 256, 16>}, {transform_indices = @transform_1, window_bounds = array<i64: 16, 8>}, {pipeline_mode = #tpu.pipeline_mode<synchronous>, transform_indices = @transform_2, window_bounds = array<i64: 1, 8>}, {transform_indices = @transform_3, window_bounds = array<i64: 256, 8>}]} {
    %c0_i32 = arith.constant 0 : i32
    %0 = arith.cmpi eq, %arg1, %c0_i32 : i32
    %1 = arith.extui %0 : i1 to i32
    %c0_i32_0 = arith.constant 0 : i32
    %2 = arith.cmpi ne, %1, %c0_i32_0 : i32
    scf.if %2 {
      %cst_10 = arith.constant 0.000000e+00 : f32
      %12 = vector.broadcast %cst_10 : f32 to vector<256x8xf32>
      %c0_11 = arith.constant 0 : index
      %c0_12 = arith.constant 0 : index
      %13 = vector.load %arg6[%c0_11, %c0_12] : memref<256x8xf32, #tpu.memory_space<vmem>>, vector<256x8xf32>
      tpu.vector_store %arg6[%c0_11, %c0_12], %12 {strides = array<i32>} : memref<256x8xf32, #tpu.memory_space<vmem>>, vector<256x8xf32>,
    } else {
    }
    %c0 = arith.constant 0 : index
    %c0_1 = arith.constant 0 : index
    %3 = vector.load %arg6[%c0, %c0_1] : memref<256x8xf32, #tpu.memory_space<vmem>>, vector<256x8xf32>
    %c0_2 = arith.constant 0 : index
    %c0_3 = arith.constant 0 : index
    %4 = vector.load %arg2[%c0_2, %c0_3] : memref<256x16xbf16, #tpu.memory_space<vmem>>, vector<256x16xbf16>
    %c0_4 = arith.constant 0 : index
    %c0_5 = arith.constant 0 : index
    %5 = vector.load %arg3[%c0_4, %c0_5] : memref<16x8xbf16, #tpu.memory_space<vmem>>, vector<16x8xbf16>
    %cst = arith.constant dense<0.000000e+00> : vector<256x8xf32>
    %6 = tpu.matmul %4, %5, %cst {dimension_numbers = #tpu.dot_dimension_numbers<[1], [0], [0], [1], [0, 0, 1, 1], [], []>} : vector<256x16xbf16>, vector<16x8xbf16>, vector<256x8xf32> -> vector<256x8xf32>
    %7 = arith.addf %3, %6 : vector<256x8xf32>
    %c0_6 = arith.constant 0 : index
    %c0_7 = arith.constant 0 : index
    %8 = vector.load %arg6[%c0_6, %c0_7] : memref<256x8xf32, #tpu.memory_space<vmem>>, vector<256x8xf32>
    tpu.vector_store %arg6[%c0_6, %c0_7], %7 {strides = array<i32>} : memref<256x8xf32, #tpu.memory_space<vmem>>, vector<256x8xf32>,
    %c0_i32_8 = arith.constant 0 : i32
    %9 = arith.cmpi eq, %arg1, %c0_i32_8 : i32
    %10 = arith.extui %9 : i1 to i32
    %c0_i32_9 = arith.constant 0 : i32
    %11 = arith.cmpi ne, %10, %c0_i32_9 : i32
    scf.if %11 {
      %c0_10 = arith.constant 0 : index
      %c0_11 = arith.constant 0 : index
      %12 = vector.load %arg6[%c0_10, %c0_11] : memref<256x8xf32, #tpu.memory_space<vmem>>, vector<256x8xf32>
      %c0_12 = arith.constant 0 : index
      %c0_13 = arith.constant 0 : index
      %13 = vector.load %arg4[%c0_12, %c0_13] : memref<1x8xf32, #tpu.memory_space<vmem>>, vector<1x8xf32>
      %14 = vector.broadcast %13 : vector<1x8xf32> to vector<256x8xf32>
      %15 = arith.addf %12, %14 : vector<256x8xf32>
      %c0_14 = arith.constant 0 : index
      %c0_15 = arith.constant 0 : index
      %16 = vector.load %arg5[%c0_14, %c0_15] : memref<256x8xf32, #tpu.memory_space<vmem>>, vector<256x8xf32>
      tpu.vector_store %arg5[%c0_14, %c0_15], %15 {strides = array<i32>} : memref<256x8xf32, #tpu.memory_space<vmem>>, vector<256x8xf32>,
    } else {
    }
    return
  }
  func.func @transform_0(%arg0: i32, %arg1: i32) -> (i32, i32) {
    %c0_i32 = arith.constant 0 : i32
    return %arg0, %arg1 : i32, i32
  }
  func.func @transform_1(%arg0: i32, %arg1: i32) -> (i32, i32) {
    %c0_i32 = arith.constant 0 : i32
    %c0_i32_0 = arith.constant 0 : i32
    return %arg1, %c0_i32 : i32, i32
  }
  func.func @transform_2(%arg0: i32, %arg1: i32) -> (i32, i32) {
    %c0_i32 = arith.constant 0 : i32
    %c0_i32_0 = arith.constant 0 : i32
    %c0_i32_1 = arith.constant 0 : i32
    return %c0_i32, %c0_i32_0 : i32, i32
  }
  func.func @transform_3(%arg0: i32, %arg1: i32) -> (i32, i32) {
    %c0_i32 = arith.constant 0 : i32
    %c0_i32_0 = arith.constant 0 : i32
    return %arg0, %c0_i32 : i32, i32
  }
}

module attributes {stable_mosaic.version = 11 : i64} {
  func.func @_matmul_bias_act_kernel(%arg0: i32, %arg1: i32, %arg2: memref<128x16xbf16, #tpu.memory_space<vmem>>, %arg3: memref<16x8xbf16, #tpu.memory_space<vmem>>, %arg4: memref<1x8xf32, #tpu.memory_space<vmem>>, %arg5: memref<128x8xf32, #tpu.memory_space<vmem>>, %arg6: memref<128x8xf32, #tpu.memory_space<vmem>>) attributes {dimension_semantics = [#tpu.dimension_semantics<parallel>, #tpu.dimension_semantics<arbitrary>], iteration_bounds = array<i64: 1, 1>, scalar_prefetch = 0 : i64, scratch_operands = 1 : i64, tpu.core_type = #tpu.core_type<tc>, window_params = [{transform_indices = @transform_0, window_bounds = array<i64: 128, 16>}, {transform_indices = @transform_1, window_bounds = array<i64: 16, 8>}, {pipeline_mode = #tpu.pipeline_mode<synchronous>, transform_indices = @transform_2, window_bounds = array<i64: 1, 8>}, {transform_indices = @transform_3, window_bounds = array<i64: 128, 8>}]} {
    %c0_i32 = arith.constant 0 : i32
    %0 = arith.cmpi eq, %arg1, %c0_i32 : i32
    %1 = arith.extui %0 : i1 to i32
    %c0_i32_0 = arith.constant 0 : i32
    %2 = arith.cmpi ne, %1, %c0_i32_0 : i32
    scf.if %2 {
      %cst_10 = arith.constant 0.000000e+00 : f32
      %12 = vector.broadcast %cst_10 : f32 to vector<128x8xf32>
      %c0_11 = arith.constant 0 : index
      %c0_12 = arith.constant 0 : index
      %13 = vector.load %arg6[%c0_11, %c0_12] : memref<128x8xf32, #tpu.memory_space<vmem>>, vector<128x8xf32>
      tpu.vector_store %arg6[%c0_11, %c0_12], %12 {strides = array<i32>} : memref<128x8xf32, #tpu.memory_space<vmem>>, vector<128x8xf32>,
    } else {
    }
    %c0 = arith.constant 0 : index
    %c0_1 = arith.constant 0 : index
    %3 = vector.load %arg6[%c0, %c0_1] : memref<128x8xf32, #tpu.memory_space<vmem>>, vector<128x8xf32>
    %c0_2 = arith.constant 0 : index
    %c0_3 = arith.constant 0 : index
    %4 = vector.load %arg2[%c0_2, %c0_3] : memref<128x16xbf16, #tpu.memory_space<vmem>>, vector<128x16xbf16>
    %c0_4 = arith.constant 0 : index
    %c0_5 = arith.constant 0 : index
    %5 = vector.load %arg3[%c0_4, %c0_5] : memref<16x8xbf16, #tpu.memory_space<vmem>>, vector<16x8xbf16>
    %cst = arith.constant dense<0.000000e+00> : vector<128x8xf32>
    %6 = tpu.matmul %4, %5, %cst {dimension_numbers = #tpu.dot_dimension_numbers<[1], [0], [0], [1], [0, 0, 1, 1], [], []>} : vector<128x16xbf16>, vector<16x8xbf16>, vector<128x8xf32> -> vector<128x8xf32>
    %7 = arith.addf %3, %6 : vector<128x8xf32>
    %c0_6 = arith.constant 0 : index
    %c0_7 = arith.constant 0 : index
    %8 = vector.load %arg6[%c0_6, %c0_7] : memref<128x8xf32, #tpu.memory_space<vmem>>, vector<128x8xf32>
    tpu.vector_store %arg6[%c0_6, %c0_7], %7 {strides = array<i32>} : memref<128x8xf32, #tpu.memory_space<vmem>>, vector<128x8xf32>,
    %c0_i32_8 = arith.constant 0 : i32
    %9 = arith.cmpi eq, %arg1, %c0_i32_8 : i32
    %10 = arith.extui %9 : i1 to i32
    %c0_i32_9 = arith.constant 0 : i32
    %11 = arith.cmpi ne, %10, %c0_i32_9 : i32
    scf.if %11 {
      %c0_10 = arith.constant 0 : index
      %c0_11 = arith.constant 0 : index
      %12 = vector.load %arg6[%c0_10, %c0_11] : memref<128x8xf32, #tpu.memory_space<vmem>>, vector<128x8xf32>
      %c0_12 = arith.constant 0 : index
      %c0_13 = arith.constant 0 : index
      %13 = vector.load %arg4[%c0_12, %c0_13] : memref<1x8xf32, #tpu.memory_space<vmem>>, vector<1x8xf32>
      %14 = vector.broadcast %13 : vector<1x8xf32> to vector<128x8xf32>
      %15 = arith.addf %12, %14 : vector<128x8xf32>
      %c0_14 = arith.constant 0 : index
      %c0_15 = arith.constant 0 : index
      %16 = vector.load %arg5[%c0_14, %c0_15] : memref<128x8xf32, #tpu.memory_space<vmem>>, vector<128x8xf32>
      tpu.vector_store %arg5[%c0_14, %c0_15], %15 {strides = array<i32>} : memref<128x8xf32, #tpu.memory_space<vmem>>, vector<128x8xf32>,
    } else {
    }
    return
  }
  func.func @transform_0(%arg0: i32, %arg1: i32) -> (i32, i32) {
    %c0_i32 = arith.constant 0 : i32
    return %arg0, %arg1 : i32, i32
  }
  func.func @transform_1(%arg0: i32, %arg1: i32) -> (i32, i32) {
    %c0_i32 = arith.constant 0 : i32
    %c0_i32_0 = arith.constant 0 : i32
    return %arg1, %c0_i32 : i32, i32
  }
  func.func @transform_2(%arg0: i32, %arg1: i32) -> (i32, i32) {
    %c0_i32 = arith.constant 0 : i32
    %c0_i32_0 = arith.constant 0 : i32
    %c0_i32_1 = arith.constant 0 : i32
    return %c0_i32, %c0_i32_0 : i32, i32
  }
  func.func @transform_3(%arg0: i32, %arg1: i32) -> (i32, i32) {
    %c0_i32 = arith.constant 0 : i32
    %c0_i32_0 = arith.constant 0 : i32
    return %arg0, %c0_i32 : i32, i32
  }
}

module attributes {stable_mosaic.version = 11 : i64} {
  func.func @_matmul_bias_act_kernel(%arg0: i32, %arg1: i32, %arg2: memref<432x27xbf16, #tpu.memory_space<vmem>>, %arg3: memref<27x8xbf16, #tpu.memory_space<vmem>>, %arg4: memref<1x8xf32, #tpu.memory_space<vmem>>, %arg5: memref<432x8xf32, #tpu.memory_space<vmem>>, %arg6: memref<432x8xf32, #tpu.memory_space<vmem>>) attributes {dimension_semantics = [#tpu.dimension_semantics<parallel>, #tpu.dimension_semantics<arbitrary>], iteration_bounds = array<i64: 1, 1>, scalar_prefetch = 0 : i64, scratch_operands = 1 : i64, tpu.core_type = #tpu.core_type<tc>, window_params = [{transform_indices = @transform_0, window_bounds = array<i64: 432, 27>}, {transform_indices = @transform_1, window_bounds = array<i64: 27, 8>}, {pipeline_mode = #tpu.pipeline_mode<synchronous>, transform_indices = @transform_2, window_bounds = array<i64: 1, 8>}, {transform_indices = @transform_3, window_bounds = array<i64: 432, 8>}]} {
    %c0_i32 = arith.constant 0 : i32
    %0 = arith.cmpi eq, %arg1, %c0_i32 : i32
    %1 = arith.extui %0 : i1 to i32
    %c0_i32_0 = arith.constant 0 : i32
    %2 = arith.cmpi ne, %1, %c0_i32_0 : i32
    scf.if %2 {
      %cst_10 = arith.constant 0.000000e+00 : f32
      %12 = vector.broadcast %cst_10 : f32 to vector<432x8xf32>
      %c0_11 = arith.constant 0 : index
      %c0_12 = arith.constant 0 : index
      %13 = vector.load %arg6[%c0_11, %c0_12] : memref<432x8xf32, #tpu.memory_space<vmem>>, vector<432x8xf32>
      tpu.vector_store %arg6[%c0_11, %c0_12], %12 {strides = array<i32>} : memref<432x8xf32, #tpu.memory_space<vmem>>, vector<432x8xf32>,
    } else {
    }
    %c0 = arith.constant 0 : index
    %c0_1 = arith.constant 0 : index
    %3 = vector.load %arg6[%c0, %c0_1] : memref<432x8xf32, #tpu.memory_space<vmem>>, vector<432x8xf32>
    %c0_2 = arith.constant 0 : index
    %c0_3 = arith.constant 0 : index
    %4 = vector.load %arg2[%c0_2, %c0_3] : memref<432x27xbf16, #tpu.memory_space<vmem>>, vector<432x27xbf16>
    %c0_4 = arith.constant 0 : index
    %c0_5 = arith.constant 0 : index
    %5 = vector.load %arg3[%c0_4, %c0_5] : memref<27x8xbf16, #tpu.memory_space<vmem>>, vector<27x8xbf16>
    %cst = arith.constant dense<0.000000e+00> : vector<432x8xf32>
    %6 = tpu.matmul %4, %5, %cst {dimension_numbers = #tpu.dot_dimension_numbers<[1], [0], [0], [1], [0, 0, 1, 1], [], []>} : vector<432x27xbf16>, vector<27x8xbf16>, vector<432x8xf32> -> vector<432x8xf32>
    %7 = arith.addf %3, %6 : vector<432x8xf32>
    %c0_6 = arith.constant 0 : index
    %c0_7 = arith.constant 0 : index
    %8 = vector.load %arg6[%c0_6, %c0_7] : memref<432x8xf32, #tpu.memory_space<vmem>>, vector<432x8xf32>
    tpu.vector_store %arg6[%c0_6, %c0_7], %7 {strides = array<i32>} : memref<432x8xf32, #tpu.memory_space<vmem>>, vector<432x8xf32>,
    %c0_i32_8 = arith.constant 0 : i32
    %9 = arith.cmpi eq, %arg1, %c0_i32_8 : i32
    %10 = arith.extui %9 : i1 to i32
    %c0_i32_9 = arith.constant 0 : i32
    %11 = arith.cmpi ne, %10, %c0_i32_9 : i32
    scf.if %11 {
      %c0_10 = arith.constant 0 : index
      %c0_11 = arith.constant 0 : index
      %12 = vector.load %arg6[%c0_10, %c0_11] : memref<432x8xf32, #tpu.memory_space<vmem>>, vector<432x8xf32>
      %c0_12 = arith.constant 0 : index
      %c0_13 = arith.constant 0 : index
      %13 = vector.load %arg4[%c0_12, %c0_13] : memref<1x8xf32, #tpu.memory_space<vmem>>, vector<1x8xf32>
      %14 = vector.broadcast %13 : vector<1x8xf32> to vector<432x8xf32>
      %15 = arith.addf %12, %14 : vector<432x8xf32>
      %cst_14 = arith.constant 0.000000e+00 : f32
      %16 = vector.broadcast %cst_14 : f32 to vector<432x8xf32>
      %17 = arith.cmpf oge, %15, %16 : vector<432x8xf32>
      %cst_15 = arith.constant 2.000000e-01 : f32
      %18 = vector.broadcast %cst_15 : f32 to vector<432x8xf32>
      %19 = arith.mulf %15, %18 : vector<432x8xf32>
      %20 = arith.select %17, %15, %19 : vector<432x8xi1>, vector<432x8xf32>
      %c0_16 = arith.constant 0 : index
      %c0_17 = arith.constant 0 : index
      %21 = vector.load %arg5[%c0_16, %c0_17] : memref<432x8xf32, #tpu.memory_space<vmem>>, vector<432x8xf32>
      tpu.vector_store %arg5[%c0_16, %c0_17], %20 {strides = array<i32>} : memref<432x8xf32, #tpu.memory_space<vmem>>, vector<432x8xf32>,
    } else {
    }
    return
  }
  func.func @transform_0(%arg0: i32, %arg1: i32) -> (i32, i32) {
    %c0_i32 = arith.constant 0 : i32
    return %arg0, %arg1 : i32, i32
  }
  func.func @transform_1(%arg0: i32, %arg1: i32) -> (i32, i32) {
    %c0_i32 = arith.constant 0 : i32
    %c0_i32_0 = arith.constant 0 : i32
    return %arg1, %c0_i32 : i32, i32
  }
  func.func @transform_2(%arg0: i32, %arg1: i32) -> (i32, i32) {
    %c0_i32 = arith.constant 0 : i32
    %c0_i32_0 = arith.constant 0 : i32
    %c0_i32_1 = arith.constant 0 : i32
    return %c0_i32, %c0_i32_0 : i32, i32
  }
  func.func @transform_3(%arg0: i32, %arg1: i32) -> (i32, i32) {
    %c0_i32 = arith.constant 0 : i32
    %c0_i32_0 = arith.constant 0 : i32
    return %arg0, %c0_i32 : i32, i32
  }
}

module attributes {stable_mosaic.version = 11 : i64} {
  func.func @_matmul_bias_act_kernel(%arg0: i32, %arg1: i32, %arg2: memref<512x216xbf16, #tpu.memory_space<vmem>>, %arg3: memref<216x1xbf16, #tpu.memory_space<vmem>>, %arg4: memref<1x1xf32, #tpu.memory_space<vmem>>, %arg5: memref<512x1xf32, #tpu.memory_space<vmem>>, %arg6: memref<512x1xf32, #tpu.memory_space<vmem>>) attributes {dimension_semantics = [#tpu.dimension_semantics<parallel>, #tpu.dimension_semantics<arbitrary>], iteration_bounds = array<i64: 2, 1>, scalar_prefetch = 0 : i64, scratch_operands = 1 : i64, tpu.core_type = #tpu.core_type<tc>, window_params = [{transform_indices = @transform_0, window_bounds = array<i64: 512, 216>}, {transform_indices = @transform_1, window_bounds = array<i64: 216, 1>}, {pipeline_mode = #tpu.pipeline_mode<synchronous>, transform_indices = @transform_2, window_bounds = array<i64: 1, 1>}, {transform_indices = @transform_3, window_bounds = array<i64: 512, 1>}]} {
    %c0_i32 = arith.constant 0 : i32
    %0 = arith.cmpi eq, %arg1, %c0_i32 : i32
    %1 = arith.extui %0 : i1 to i32
    %c0_i32_0 = arith.constant 0 : i32
    %2 = arith.cmpi ne, %1, %c0_i32_0 : i32
    scf.if %2 {
      %cst_10 = arith.constant 0.000000e+00 : f32
      %12 = vector.broadcast %cst_10 : f32 to vector<512x1xf32>
      %c0_11 = arith.constant 0 : index
      %c0_12 = arith.constant 0 : index
      %13 = vector.load %arg6[%c0_11, %c0_12] : memref<512x1xf32, #tpu.memory_space<vmem>>, vector<512x1xf32>
      tpu.vector_store %arg6[%c0_11, %c0_12], %12 {strides = array<i32>} : memref<512x1xf32, #tpu.memory_space<vmem>>, vector<512x1xf32>,
    } else {
    }
    %c0 = arith.constant 0 : index
    %c0_1 = arith.constant 0 : index
    %3 = vector.load %arg6[%c0, %c0_1] : memref<512x1xf32, #tpu.memory_space<vmem>>, vector<512x1xf32>
    %c0_2 = arith.constant 0 : index
    %c0_3 = arith.constant 0 : index
    %4 = vector.load %arg2[%c0_2, %c0_3] : memref<512x216xbf16, #tpu.memory_space<vmem>>, vector<512x216xbf16>
    %c0_4 = arith.constant 0 : index
    %c0_5 = arith.constant 0 : index
    %5 = vector.load %arg3[%c0_4, %c0_5] : memref<216x1xbf16, #tpu.memory_space<vmem>>, vector<216x1xbf16>
    %cst = arith.constant dense<0.000000e+00> : vector<512x1xf32>
    %6 = tpu.matmul %4, %5, %cst {dimension_numbers = #tpu.dot_dimension_numbers<[1], [0], [0], [1], [0, 0, 1, 1], [], []>} : vector<512x216xbf16>, vector<216x1xbf16>, vector<512x1xf32> -> vector<512x1xf32>
    %7 = arith.addf %3, %6 : vector<512x1xf32>
    %c0_6 = arith.constant 0 : index
    %c0_7 = arith.constant 0 : index
    %8 = vector.load %arg6[%c0_6, %c0_7] : memref<512x1xf32, #tpu.memory_space<vmem>>, vector<512x1xf32>
    tpu.vector_store %arg6[%c0_6, %c0_7], %7 {strides = array<i32>} : memref<512x1xf32, #tpu.memory_space<vmem>>, vector<512x1xf32>,
    %c0_i32_8 = arith.constant 0 : i32
    %9 = arith.cmpi eq, %arg1, %c0_i32_8 : i32
    %10 = arith.extui %9 : i1 to i32
    %c0_i32_9 = arith.constant 0 : i32
    %11 = arith.cmpi ne, %10, %c0_i32_9 : i32
    scf.if %11 {
      %c0_10 = arith.constant 0 : index
      %c0_11 = arith.constant 0 : index
      %12 = vector.load %arg6[%c0_10, %c0_11] : memref<512x1xf32, #tpu.memory_space<vmem>>, vector<512x1xf32>
      %c0_12 = arith.constant 0 : index
      %c0_13 = arith.constant 0 : index
      %13 = vector.load %arg4[%c0_12, %c0_13] : memref<1x1xf32, #tpu.memory_space<vmem>>, vector<1x1xf32>
      %14 = vector.broadcast %13 : vector<1x1xf32> to vector<512x1xf32>
      %15 = arith.addf %12, %14 : vector<512x1xf32>
      %cst_14 = arith.constant 0.000000e+00 : f32
      %16 = vector.broadcast %cst_14 : f32 to vector<512x1xf32>
      %17 = arith.cmpf oge, %15, %16 : vector<512x1xf32>
      %cst_15 = arith.constant 2.000000e-01 : f32
      %18 = vector.broadcast %cst_15 : f32 to vector<512x1xf32>
      %19 = arith.mulf %15, %18 : vector<512x1xf32>
      %20 = arith.select %17, %15, %19 : vector<512x1xi1>, vector<512x1xf32>
      %c0_16 = arith.constant 0 : index
      %c0_17 = arith.constant 0 : index
      %21 = vector.load %arg5[%c0_16, %c0_17] : memref<512x1xf32, #tpu.memory_space<vmem>>, vector<512x1xf32>
      tpu.vector_store %arg5[%c0_16, %c0_17], %20 {strides = array<i32>} : memref<512x1xf32, #tpu.memory_space<vmem>>, vector<512x1xf32>,
    } else {
    }
    return
  }
  func.func @transform_0(%arg0: i32, %arg1: i32) -> (i32, i32) {
    %c0_i32 = arith.constant 0 : i32
    return %arg0, %arg1 : i32, i32
  }
  func.func @transform_1(%arg0: i32, %arg1: i32) -> (i32, i32) {
    %c0_i32 = arith.constant 0 : i32
    %c0_i32_0 = arith.constant 0 : i32
    return %arg1, %c0_i32 : i32, i32
  }
  func.func @transform_2(%arg0: i32, %arg1: i32) -> (i32, i32) {
    %c0_i32 = arith.constant 0 : i32
    %c0_i32_0 = arith.constant 0 : i32
    %c0_i32_1 = arith.constant 0 : i32
    return %c0_i32, %c0_i32_0 : i32, i32
  }
  func.func @transform_3(%arg0: i32, %arg1: i32) -> (i32, i32) {
    %c0_i32 = arith.constant 0 : i32
    %c0_i32_0 = arith.constant 0 : i32
    return %arg0, %c0_i32 : i32, i32
  }
}

module attributes {stable_mosaic.version = 11 : i64} {
  func.func @_matmul_bias_act_kernel(%arg0: i32, %arg1: i32, %arg2: memref<128x8xbf16, #tpu.memory_space<vmem>>, %arg3: memref<8x16xbf16, #tpu.memory_space<vmem>>, %arg4: memref<1x16xf32, #tpu.memory_space<vmem>>, %arg5: memref<128x16xf32, #tpu.memory_space<vmem>>, %arg6: memref<128x16xf32, #tpu.memory_space<vmem>>) attributes {dimension_semantics = [#tpu.dimension_semantics<parallel>, #tpu.dimension_semantics<arbitrary>], iteration_bounds = array<i64: 1, 1>, scalar_prefetch = 0 : i64, scratch_operands = 1 : i64, tpu.core_type = #tpu.core_type<tc>, window_params = [{transform_indices = @transform_0, window_bounds = array<i64: 128, 8>}, {transform_indices = @transform_1, window_bounds = array<i64: 8, 16>}, {pipeline_mode = #tpu.pipeline_mode<synchronous>, transform_indices = @transform_2, window_bounds = array<i64: 1, 16>}, {transform_indices = @transform_3, window_bounds = array<i64: 128, 16>}]} {
    %c0_i32 = arith.constant 0 : i32
    %0 = arith.cmpi eq, %arg1, %c0_i32 : i32
    %1 = arith.extui %0 : i1 to i32
    %c0_i32_0 = arith.constant 0 : i32
    %2 = arith.cmpi ne, %1, %c0_i32_0 : i32
    scf.if %2 {
      %cst_10 = arith.constant 0.000000e+00 : f32
      %12 = vector.broadcast %cst_10 : f32 to vector<128x16xf32>
      %c0_11 = arith.constant 0 : index
      %c0_12 = arith.constant 0 : index
      %13 = vector.load %arg6[%c0_11, %c0_12] : memref<128x16xf32, #tpu.memory_space<vmem>>, vector<128x16xf32>
      tpu.vector_store %arg6[%c0_11, %c0_12], %12 {strides = array<i32>} : memref<128x16xf32, #tpu.memory_space<vmem>>, vector<128x16xf32>,
    } else {
    }
    %c0 = arith.constant 0 : index
    %c0_1 = arith.constant 0 : index
    %3 = vector.load %arg6[%c0, %c0_1] : memref<128x16xf32, #tpu.memory_space<vmem>>, vector<128x16xf32>
    %c0_2 = arith.constant 0 : index
    %c0_3 = arith.constant 0 : index
    %4 = vector.load %arg2[%c0_2, %c0_3] : memref<128x8xbf16, #tpu.memory_space<vmem>>, vector<128x8xbf16>
    %c0_4 = arith.constant 0 : index
    %c0_5 = arith.constant 0 : index
    %5 = vector.load %arg3[%c0_4, %c0_5] : memref<8x16xbf16, #tpu.memory_space<vmem>>, vector<8x16xbf16>
    %cst = arith.constant dense<0.000000e+00> : vector<128x16xf32>
    %6 = tpu.matmul %4, %5, %cst {dimension_numbers = #tpu.dot_dimension_numbers<[1], [0], [0], [1], [0, 0, 1, 1], [], []>} : vector<128x8xbf16>, vector<8x16xbf16>, vector<128x16xf32> -> vector<128x16xf32>
    %7 = arith.addf %3, %6 : vector<128x16xf32>
    %c0_6 = arith.constant 0 : index
    %c0_7 = arith.constant 0 : index
    %8 = vector.load %arg6[%c0_6, %c0_7] : memref<128x16xf32, #tpu.memory_space<vmem>>, vector<128x16xf32>
    tpu.vector_store %arg6[%c0_6, %c0_7], %7 {strides = array<i32>} : memref<128x16xf32, #tpu.memory_space<vmem>>, vector<128x16xf32>,
    %c0_i32_8 = arith.constant 0 : i32
    %9 = arith.cmpi eq, %arg1, %c0_i32_8 : i32
    %10 = arith.extui %9 : i1 to i32
    %c0_i32_9 = arith.constant 0 : i32
    %11 = arith.cmpi ne, %10, %c0_i32_9 : i32
    scf.if %11 {
      %c0_10 = arith.constant 0 : index
      %c0_11 = arith.constant 0 : index
      %12 = vector.load %arg6[%c0_10, %c0_11] : memref<128x16xf32, #tpu.memory_space<vmem>>, vector<128x16xf32>
      %c0_12 = arith.constant 0 : index
      %c0_13 = arith.constant 0 : index
      %13 = vector.load %arg4[%c0_12, %c0_13] : memref<1x16xf32, #tpu.memory_space<vmem>>, vector<1x16xf32>
      %14 = vector.broadcast %13 : vector<1x16xf32> to vector<128x16xf32>
      %15 = arith.addf %12, %14 : vector<128x16xf32>
      %c0_14 = arith.constant 0 : index
      %c0_15 = arith.constant 0 : index
      %16 = vector.load %arg5[%c0_14, %c0_15] : memref<128x16xf32, #tpu.memory_space<vmem>>, vector<128x16xf32>
      tpu.vector_store %arg5[%c0_14, %c0_15], %15 {strides = array<i32>} : memref<128x16xf32, #tpu.memory_space<vmem>>, vector<128x16xf32>,
    } else {
    }
    return
  }
  func.func @transform_0(%arg0: i32, %arg1: i32) -> (i32, i32) {
    %c0_i32 = arith.constant 0 : i32
    return %arg0, %arg1 : i32, i32
  }
  func.func @transform_1(%arg0: i32, %arg1: i32) -> (i32, i32) {
    %c0_i32 = arith.constant 0 : i32
    %c0_i32_0 = arith.constant 0 : i32
    return %arg1, %c0_i32 : i32, i32
  }
  func.func @transform_2(%arg0: i32, %arg1: i32) -> (i32, i32) {
    %c0_i32 = arith.constant 0 : i32
    %c0_i32_0 = arith.constant 0 : i32
    %c0_i32_1 = arith.constant 0 : i32
    return %c0_i32, %c0_i32_0 : i32, i32
  }
  func.func @transform_3(%arg0: i32, %arg1: i32) -> (i32, i32) {
    %c0_i32 = arith.constant 0 : i32
    %c0_i32_0 = arith.constant 0 : i32
    return %arg0, %c0_i32 : i32, i32
  }
}

module attributes {stable_mosaic.version = 11 : i64} {
  func.func @_matmul_bias_act_kernel(%arg0: i32, %arg1: i32, %arg2: memref<256x8xbf16, #tpu.memory_space<vmem>>, %arg3: memref<8x16xbf16, #tpu.memory_space<vmem>>, %arg4: memref<1x16xf32, #tpu.memory_space<vmem>>, %arg5: memref<256x16xf32, #tpu.memory_space<vmem>>, %arg6: memref<256x16xf32, #tpu.memory_space<vmem>>) attributes {dimension_semantics = [#tpu.dimension_semantics<parallel>, #tpu.dimension_semantics<arbitrary>], iteration_bounds = array<i64: 1, 1>, scalar_prefetch = 0 : i64, scratch_operands = 1 : i64, tpu.core_type = #tpu.core_type<tc>, window_params = [{transform_indices = @transform_0, window_bounds = array<i64: 256, 8>}, {transform_indices = @transform_1, window_bounds = array<i64: 8, 16>}, {pipeline_mode = #tpu.pipeline_mode<synchronous>, transform_indices = @transform_2, window_bounds = array<i64: 1, 16>}, {transform_indices = @transform_3, window_bounds = array<i64: 256, 16>}]} {
    %c0_i32 = arith.constant 0 : i32
    %0 = arith.cmpi eq, %arg1, %c0_i32 : i32
    %1 = arith.extui %0 : i1 to i32
    %c0_i32_0 = arith.constant 0 : i32
    %2 = arith.cmpi ne, %1, %c0_i32_0 : i32
    scf.if %2 {
      %cst_10 = arith.constant 0.000000e+00 : f32
      %12 = vector.broadcast %cst_10 : f32 to vector<256x16xf32>
      %c0_11 = arith.constant 0 : index
      %c0_12 = arith.constant 0 : index
      %13 = vector.load %arg6[%c0_11, %c0_12] : memref<256x16xf32, #tpu.memory_space<vmem>>, vector<256x16xf32>
      tpu.vector_store %arg6[%c0_11, %c0_12], %12 {strides = array<i32>} : memref<256x16xf32, #tpu.memory_space<vmem>>, vector<256x16xf32>,
    } else {
    }
    %c0 = arith.constant 0 : index
    %c0_1 = arith.constant 0 : index
    %3 = vector.load %arg6[%c0, %c0_1] : memref<256x16xf32, #tpu.memory_space<vmem>>, vector<256x16xf32>
    %c0_2 = arith.constant 0 : index
    %c0_3 = arith.constant 0 : index
    %4 = vector.load %arg2[%c0_2, %c0_3] : memref<256x8xbf16, #tpu.memory_space<vmem>>, vector<256x8xbf16>
    %c0_4 = arith.constant 0 : index
    %c0_5 = arith.constant 0 : index
    %5 = vector.load %arg3[%c0_4, %c0_5] : memref<8x16xbf16, #tpu.memory_space<vmem>>, vector<8x16xbf16>
    %cst = arith.constant dense<0.000000e+00> : vector<256x16xf32>
    %6 = tpu.matmul %4, %5, %cst {dimension_numbers = #tpu.dot_dimension_numbers<[1], [0], [0], [1], [0, 0, 1, 1], [], []>} : vector<256x8xbf16>, vector<8x16xbf16>, vector<256x16xf32> -> vector<256x16xf32>
    %7 = arith.addf %3, %6 : vector<256x16xf32>
    %c0_6 = arith.constant 0 : index
    %c0_7 = arith.constant 0 : index
    %8 = vector.load %arg6[%c0_6, %c0_7] : memref<256x16xf32, #tpu.memory_space<vmem>>, vector<256x16xf32>
    tpu.vector_store %arg6[%c0_6, %c0_7], %7 {strides = array<i32>} : memref<256x16xf32, #tpu.memory_space<vmem>>, vector<256x16xf32>,
    %c0_i32_8 = arith.constant 0 : i32
    %9 = arith.cmpi eq, %arg1, %c0_i32_8 : i32
    %10 = arith.extui %9 : i1 to i32
    %c0_i32_9 = arith.constant 0 : i32
    %11 = arith.cmpi ne, %10, %c0_i32_9 : i32
    scf.if %11 {
      %c0_10 = arith.constant 0 : index
      %c0_11 = arith.constant 0 : index
      %12 = vector.load %arg6[%c0_10, %c0_11] : memref<256x16xf32, #tpu.memory_space<vmem>>, vector<256x16xf32>
      %c0_12 = arith.constant 0 : index
      %c0_13 = arith.constant 0 : index
      %13 = vector.load %arg4[%c0_12, %c0_13] : memref<1x16xf32, #tpu.memory_space<vmem>>, vector<1x16xf32>
      %14 = vector.broadcast %13 : vector<1x16xf32> to vector<256x16xf32>
      %15 = arith.addf %12, %14 : vector<256x16xf32>
      %c0_14 = arith.constant 0 : index
      %c0_15 = arith.constant 0 : index
      %16 = vector.load %arg5[%c0_14, %c0_15] : memref<256x16xf32, #tpu.memory_space<vmem>>, vector<256x16xf32>
      tpu.vector_store %arg5[%c0_14, %c0_15], %15 {strides = array<i32>} : memref<256x16xf32, #tpu.memory_space<vmem>>, vector<256x16xf32>,
    } else {
    }
    return
  }
  func.func @transform_0(%arg0: i32, %arg1: i32) -> (i32, i32) {
    %c0_i32 = arith.constant 0 : i32
    return %arg0, %arg1 : i32, i32
  }
  func.func @transform_1(%arg0: i32, %arg1: i32) -> (i32, i32) {
    %c0_i32 = arith.constant 0 : i32
    %c0_i32_0 = arith.constant 0 : i32
    return %arg1, %c0_i32 : i32, i32
  }
  func.func @transform_2(%arg0: i32, %arg1: i32) -> (i32, i32) {
    %c0_i32 = arith.constant 0 : i32
    %c0_i32_0 = arith.constant 0 : i32
    %c0_i32_1 = arith.constant 0 : i32
    return %c0_i32, %c0_i32_0 : i32, i32
  }
  func.func @transform_3(%arg0: i32, %arg1: i32) -> (i32, i32) {
    %c0_i32 = arith.constant 0 : i32
    %c0_i32_0 = arith.constant 0 : i32
    return %arg0, %c0_i32 : i32, i32
  }
}

module attributes {stable_mosaic.version = 11 : i64} {
  func.func @_matmul_bias_act_kernel(%arg0: i32, %arg1: i32, %arg2: memref<512x8xbf16, #tpu.memory_space<vmem>>, %arg3: memref<8x16xbf16, #tpu.memory_space<vmem>>, %arg4: memref<1x16xf32, #tpu.memory_space<vmem>>, %arg5: memref<512x16xf32, #tpu.memory_space<vmem>>, %arg6: memref<512x16xf32, #tpu.memory_space<vmem>>) attributes {dimension_semantics = [#tpu.dimension_semantics<parallel>, #tpu.dimension_semantics<arbitrary>], iteration_bounds = array<i64: 1, 1>, scalar_prefetch = 0 : i64, scratch_operands = 1 : i64, tpu.core_type = #tpu.core_type<tc>, window_params = [{transform_indices = @transform_0, window_bounds = array<i64: 512, 8>}, {transform_indices = @transform_1, window_bounds = array<i64: 8, 16>}, {pipeline_mode = #tpu.pipeline_mode<synchronous>, transform_indices = @transform_2, window_bounds = array<i64: 1, 16>}, {transform_indices = @transform_3, window_bounds = array<i64: 512, 16>}]} {
    %c0_i32 = arith.constant 0 : i32
    %0 = arith.cmpi eq, %arg1, %c0_i32 : i32
    %1 = arith.extui %0 : i1 to i32
    %c0_i32_0 = arith.constant 0 : i32
    %2 = arith.cmpi ne, %1, %c0_i32_0 : i32
    scf.if %2 {
      %cst_10 = arith.constant 0.000000e+00 : f32
      %12 = vector.broadcast %cst_10 : f32 to vector<512x16xf32>
      %c0_11 = arith.constant 0 : index
      %c0_12 = arith.constant 0 : index
      %13 = vector.load %arg6[%c0_11, %c0_12] : memref<512x16xf32, #tpu.memory_space<vmem>>, vector<512x16xf32>
      tpu.vector_store %arg6[%c0_11, %c0_12], %12 {strides = array<i32>} : memref<512x16xf32, #tpu.memory_space<vmem>>, vector<512x16xf32>,
    } else {
    }
    %c0 = arith.constant 0 : index
    %c0_1 = arith.constant 0 : index
    %3 = vector.load %arg6[%c0, %c0_1] : memref<512x16xf32, #tpu.memory_space<vmem>>, vector<512x16xf32>
    %c0_2 = arith.constant 0 : index
    %c0_3 = arith.constant 0 : index
    %4 = vector.load %arg2[%c0_2, %c0_3] : memref<512x8xbf16, #tpu.memory_space<vmem>>, vector<512x8xbf16>
    %c0_4 = arith.constant 0 : index
    %c0_5 = arith.constant 0 : index
    %5 = vector.load %arg3[%c0_4, %c0_5] : memref<8x16xbf16, #tpu.memory_space<vmem>>, vector<8x16xbf16>
    %cst = arith.constant dense<0.000000e+00> : vector<512x16xf32>
    %6 = tpu.matmul %4, %5, %cst {dimension_numbers = #tpu.dot_dimension_numbers<[1], [0], [0], [1], [0, 0, 1, 1], [], []>} : vector<512x8xbf16>, vector<8x16xbf16>, vector<512x16xf32> -> vector<512x16xf32>
    %7 = arith.addf %3, %6 : vector<512x16xf32>
    %c0_6 = arith.constant 0 : index
    %c0_7 = arith.constant 0 : index
    %8 = vector.load %arg6[%c0_6, %c0_7] : memref<512x16xf32, #tpu.memory_space<vmem>>, vector<512x16xf32>
    tpu.vector_store %arg6[%c0_6, %c0_7], %7 {strides = array<i32>} : memref<512x16xf32, #tpu.memory_space<vmem>>, vector<512x16xf32>,
    %c0_i32_8 = arith.constant 0 : i32
    %9 = arith.cmpi eq, %arg1, %c0_i32_8 : i32
    %10 = arith.extui %9 : i1 to i32
    %c0_i32_9 = arith.constant 0 : i32
    %11 = arith.cmpi ne, %10, %c0_i32_9 : i32
    scf.if %11 {
      %c0_10 = arith.constant 0 : index
      %c0_11 = arith.constant 0 : index
      %12 = vector.load %arg6[%c0_10, %c0_11] : memref<512x16xf32, #tpu.memory_space<vmem>>, vector<512x16xf32>
      %c0_12 = arith.constant 0 : index
      %c0_13 = arith.constant 0 : index
      %13 = vector.load %arg4[%c0_12, %c0_13] : memref<1x16xf32, #tpu.memory_space<vmem>>, vector<1x16xf32>
      %14 = vector.broadcast %13 : vector<1x16xf32> to vector<512x16xf32>
      %15 = arith.addf %12, %14 : vector<512x16xf32>
      %c0_14 = arith.constant 0 : index
      %c0_15 = arith.constant 0 : index
      %16 = vector.load %arg5[%c0_14, %c0_15] : memref<512x16xf32, #tpu.memory_space<vmem>>, vector<512x16xf32>
      tpu.vector_store %arg5[%c0_14, %c0_15], %15 {strides = array<i32>} : memref<512x16xf32, #tpu.memory_space<vmem>>, vector<512x16xf32>,
    } else {
    }
    return
  }
  func.func @transform_0(%arg0: i32, %arg1: i32) -> (i32, i32) {
    %c0_i32 = arith.constant 0 : i32
    return %arg0, %arg1 : i32, i32
  }
  func.func @transform_1(%arg0: i32, %arg1: i32) -> (i32, i32) {
    %c0_i32 = arith.constant 0 : i32
    %c0_i32_0 = arith.constant 0 : i32
    return %arg1, %c0_i32 : i32, i32
  }
  func.func @transform_2(%arg0: i32, %arg1: i32) -> (i32, i32) {
    %c0_i32 = arith.constant 0 : i32
    %c0_i32_0 = arith.constant 0 : i32
    %c0_i32_1 = arith.constant 0 : i32
    return %c0_i32, %c0_i32_0 : i32, i32
  }
  func.func @transform_3(%arg0: i32, %arg1: i32) -> (i32, i32) {
    %c0_i32 = arith.constant 0 : i32
    %c0_i32_0 = arith.constant 0 : i32
    return %arg0, %c0_i32 : i32, i32
  }
}

module attributes {stable_mosaic.version = 11 : i64} {
  func.func @_matmul_bias_act_kernel(%arg0: i32, %arg1: i32, %arg2: memref<512x216xbf16, #tpu.memory_space<vmem>>, %arg3: memref<216x1xbf16, #tpu.memory_space<vmem>>, %arg4: memref<1x1xf32, #tpu.memory_space<vmem>>, %arg5: memref<512x1xf32, #tpu.memory_space<vmem>>, %arg6: memref<512x1xf32, #tpu.memory_space<vmem>>) attributes {dimension_semantics = [#tpu.dimension_semantics<parallel>, #tpu.dimension_semantics<arbitrary>], iteration_bounds = array<i64: 2, 1>, scalar_prefetch = 0 : i64, scratch_operands = 1 : i64, tpu.core_type = #tpu.core_type<tc>, window_params = [{transform_indices = @transform_0, window_bounds = array<i64: 512, 216>}, {transform_indices = @transform_1, window_bounds = array<i64: 216, 1>}, {pipeline_mode = #tpu.pipeline_mode<synchronous>, transform_indices = @transform_2, window_bounds = array<i64: 1, 1>}, {transform_indices = @transform_3, window_bounds = array<i64: 512, 1>}]} {
    %c0_i32 = arith.constant 0 : i32
    %0 = arith.cmpi eq, %arg1, %c0_i32 : i32
    %1 = arith.extui %0 : i1 to i32
    %c0_i32_0 = arith.constant 0 : i32
    %2 = arith.cmpi ne, %1, %c0_i32_0 : i32
    scf.if %2 {
      %cst_10 = arith.constant 0.000000e+00 : f32
      %12 = vector.broadcast %cst_10 : f32 to vector<512x1xf32>
      %c0_11 = arith.constant 0 : index
      %c0_12 = arith.constant 0 : index
      %13 = vector.load %arg6[%c0_11, %c0_12] : memref<512x1xf32, #tpu.memory_space<vmem>>, vector<512x1xf32>
      tpu.vector_store %arg6[%c0_11, %c0_12], %12 {strides = array<i32>} : memref<512x1xf32, #tpu.memory_space<vmem>>, vector<512x1xf32>,
    } else {
    }
    %c0 = arith.constant 0 : index
    %c0_1 = arith.constant 0 : index
    %3 = vector.load %arg6[%c0, %c0_1] : memref<512x1xf32, #tpu.memory_space<vmem>>, vector<512x1xf32>
    %c0_2 = arith.constant 0 : index
    %c0_3 = arith.constant 0 : index
    %4 = vector.load %arg2[%c0_2, %c0_3] : memref<512x216xbf16, #tpu.memory_space<vmem>>, vector<512x216xbf16>
    %c0_4 = arith.constant 0 : index
    %c0_5 = arith.constant 0 : index
    %5 = vector.load %arg3[%c0_4, %c0_5] : memref<216x1xbf16, #tpu.memory_space<vmem>>, vector<216x1xbf16>
    %cst = arith.constant dense<0.000000e+00> : vector<512x1xf32>
    %6 = tpu.matmul %4, %5, %cst {dimension_numbers = #tpu.dot_dimension_numbers<[1], [0], [0], [1], [0, 0, 1, 1], [], []>} : vector<512x216xbf16>, vector<216x1xbf16>, vector<512x1xf32> -> vector<512x1xf32>
    %7 = arith.addf %3, %6 : vector<512x1xf32>
    %c0_6 = arith.constant 0 : index
    %c0_7 = arith.constant 0 : index
    %8 = vector.load %arg6[%c0_6, %c0_7] : memref<512x1xf32, #tpu.memory_space<vmem>>, vector<512x1xf32>
    tpu.vector_store %arg6[%c0_6, %c0_7], %7 {strides = array<i32>} : memref<512x1xf32, #tpu.memory_space<vmem>>, vector<512x1xf32>,
    %c0_i32_8 = arith.constant 0 : i32
    %9 = arith.cmpi eq, %arg1, %c0_i32_8 : i32
    %10 = arith.extui %9 : i1 to i32
    %c0_i32_9 = arith.constant 0 : i32
    %11 = arith.cmpi ne, %10, %c0_i32_9 : i32
    scf.if %11 {
      %c0_10 = arith.constant 0 : index
      %c0_11 = arith.constant 0 : index
      %12 = vector.load %arg6[%c0_10, %c0_11] : memref<512x1xf32, #tpu.memory_space<vmem>>, vector<512x1xf32>
      %c0_12 = arith.constant 0 : index
      %c0_13 = arith.constant 0 : index
      %13 = vector.load %arg4[%c0_12, %c0_13] : memref<1x1xf32, #tpu.memory_space<vmem>>, vector<1x1xf32>
      %14 = vector.broadcast %13 : vector<1x1xf32> to vector<512x1xf32>
      %15 = arith.addf %12, %14 : vector<512x1xf32>
      %cst_14 = arith.constant 0.000000e+00 : f32
      %16 = vector.broadcast %cst_14 : f32 to vector<512x1xf32>
      %17 = arith.cmpf oge, %15, %16 : vector<512x1xf32>
      %cst_15 = arith.constant 2.000000e-01 : f32
      %18 = vector.broadcast %cst_15 : f32 to vector<512x1xf32>
      %19 = arith.mulf %15, %18 : vector<512x1xf32>
      %20 = arith.select %17, %15, %19 : vector<512x1xi1>, vector<512x1xf32>
      %cst_16 = arith.constant 0.999994993 : f32
      %21 = vector.broadcast %cst_16 : f32 to vector<512x1xf32>
      %22 = arith.mulf %20, %21 : vector<512x1xf32>
      %c0_17 = arith.constant 0 : index
      %c0_18 = arith.constant 0 : index
      %23 = vector.load %arg5[%c0_17, %c0_18] : memref<512x1xf32, #tpu.memory_space<vmem>>, vector<512x1xf32>
      tpu.vector_store %arg5[%c0_17, %c0_18], %22 {strides = array<i32>} : memref<512x1xf32, #tpu.memory_space<vmem>>, vector<512x1xf32>,
    } else {
    }
    return
  }
  func.func @transform_0(%arg0: i32, %arg1: i32) -> (i32, i32) {
    %c0_i32 = arith.constant 0 : i32
    return %arg0, %arg1 : i32, i32
  }
  func.func @transform_1(%arg0: i32, %arg1: i32) -> (i32, i32) {
    %c0_i32 = arith.constant 0 : i32
    %c0_i32_0 = arith.constant 0 : i32
    return %arg1, %c0_i32 : i32, i32
  }
  func.func @transform_2(%arg0: i32, %arg1: i32) -> (i32, i32) {
    %c0_i32 = arith.constant 0 : i32
    %c0_i32_0 = arith.constant 0 : i32
    %c0_i32_1 = arith.constant 0 : i32
    return %c0_i32, %c0_i32_0 : i32, i32
  }
  func.func @transform_3(%arg0: i32, %arg1: i32) -> (i32, i32) {
    %c0_i32 = arith.constant 0 : i32
    %c0_i32_0 = arith.constant 0 : i32
    return %arg0, %c0_i32 : i32, i32
  }
}

module attributes {stable_mosaic.version = 11 : i64} {
  func.func @_scaled_add_kernel(%arg0: i32, %arg1: memref<8x128xf32, #tpu.memory_space<vmem>>, %arg2: memref<8x128xf32, #tpu.memory_space<vmem>>, %arg3: memref<8x128xf32, #tpu.memory_space<vmem>>) attributes {dimension_semantics = [#tpu.dimension_semantics<parallel>], iteration_bounds = array<i64: 1>, scalar_prefetch = 0 : i64, scratch_operands = 0 : i64, tpu.core_type = #tpu.core_type<tc>, window_params = [{transform_indices = @transform_0, window_bounds = array<i64: 8, 128>}, {transform_indices = @transform_1, window_bounds = array<i64: 8, 128>}, {transform_indices = @transform_2, window_bounds = array<i64: 8, 128>}]} {
    %c0 = arith.constant 0 : index
    %c0_0 = arith.constant 0 : index
    %0 = vector.load %arg1[%c0, %c0_0] : memref<8x128xf32, #tpu.memory_space<vmem>>, vector<8x128xf32>
    %cst = arith.constant 1.000000e+00 : f32
    %1 = vector.broadcast %cst : f32 to vector<8x128xf32>
    %2 = arith.mulf %0, %1 : vector<8x128xf32>
    %c0_1 = arith.constant 0 : index
    %c0_2 = arith.constant 0 : index
    %3 = vector.load %arg2[%c0_1, %c0_2] : memref<8x128xf32, #tpu.memory_space<vmem>>, vector<8x128xf32>
    %cst_3 = arith.constant 0.999994993 : f32
    %4 = vector.broadcast %cst_3 : f32 to vector<8x128xf32>
    %5 = arith.mulf %3, %4 : vector<8x128xf32>
    %6 = arith.addf %2, %5 : vector<8x128xf32>
    %c0_4 = arith.constant 0 : index
    %c0_5 = arith.constant 0 : index
    %7 = vector.load %arg3[%c0_4, %c0_5] : memref<8x128xf32, #tpu.memory_space<vmem>>, vector<8x128xf32>
    tpu.vector_store %arg3[%c0_4, %c0_5], %6 {strides = array<i32>} : memref<8x128xf32, #tpu.memory_space<vmem>>, vector<8x128xf32>,
    return
  }
  func.func @transform_0(%arg0: i32) -> (i32, i32) {
    %c0_i32 = arith.constant 0 : i32
    %c0_i32_0 = arith.constant 0 : i32
    return %arg0, %c0_i32 : i32, i32
  }
  func.func @transform_1(%arg0: i32) -> (i32, i32) {
    %c0_i32 = arith.constant 0 : i32
    %c0_i32_0 = arith.constant 0 : i32
    return %arg0, %c0_i32 : i32, i32
  }
  func.func @transform_2(%arg0: i32) -> (i32, i32) {
    %c0_i32 = arith.constant 0 : i32
    %c0_i32_0 = arith.constant 0 : i32
    return %arg0, %c0_i32 : i32, i32
  }
}

</mosaic_0001>

<llo_original>
// kernel: joint_model_apply.35
$region0: #{joint_model_apply.35}
  #allocation0 [shape = 'u32[]', space=smem, size = 0x4, offset = 0x4, fixed_abs, tag = 'smem constant byte address 0x4 - core index']
  #allocation1 [shape = 'u32[144,128]{1,0:T(1,128)}', space=vmem, size = 0x12000, scoped, tag = 'internal scratch']
  #allocation2 [shape = 'f32[512,8]{1,0:T(8,128)}', space=vmem, size = 0x40000, scoped, tag = 'scratch operand']
  %s0 = inlined_call_operand.vmem [shape: bf16[512,16], index: 0, kind: input, shape index: {}]
  %s1 = inlined_call_operand.vmem [shape: bf16[16,8], index: 1, kind: input, shape index: {}]
  %s2 = inlined_call_operand.vmem [shape: f32[1,8], index: 2, kind: input, shape index: {}]
  %s3 = inlined_call_operand.vmem [shape: f32[512,8], index: 3, kind: output, shape index: {}]
  %s4 = sld [smem:[#allocation0]]
  $region30: #{joint_model_apply.35} parent=0
    _
  %s6 = ssub.s32 1, %s4
  %s7 = scalar_select 0, %s6, %s4
  // Predicated region
  $region2: #{joint_model_apply.35} parent=0 // pred_check
    _
  $region3: #{joint_model_apply.35} parent=0 // pred_check_branch
    %9 = sbr.rel (0) target = $region5
  $region4: #{joint_model_apply.35} parent=0 // pred_region
    _
  $region5: #{joint_model_apply.35} parent=0 // pred_fallthru
    _
  // Predicated region
  $region6: #{joint_model_apply.35} parent=0 // pred_check
    _
  $region7: #{joint_model_apply.35} parent=0 // pred_check_branch
    %11 = sbr.rel (0) target = $region9
  $region8: #{joint_model_apply.35} parent=0 // pred_region
    _
  $region9: #{joint_model_apply.35} parent=0 // pred_fallthru
    _
  // Predicated region
  $region10: #{joint_model_apply.35} parent=0 // pred_check
    _
  $region11: #{joint_model_apply.35} parent=0 // pred_check_branch
    %13 = sbr.rel (0) target = $region13
  $region12: #{joint_model_apply.35} parent=0 // pred_region
    _
  $region13: #{joint_model_apply.35} parent=0 // pred_fallthru
    _
  %p15 = scmp.eq.s32.totalorder 0, 0
  // Predicated region
  $region14: #{joint_model_apply.35} parent=0 // pred_check
    %p16 = pneg %p15
  $region15: #{joint_model_apply.35} parent=0 // pred_check_branch
    %18 = sbr.rel (%p16) target = $region17
  $region16: #{joint_model_apply.35} parent=0 // pred_region
    %vm19 = vcmask 64512
    %20 = vst.msk [vmem:[#allocation2] sm:$0xff] %vm19, 0.0
    %21 = vst.msk [vmem:[#allocation2 + $0x8] sm:$0xff] %vm19, 0.0
    %22 = vst.msk [vmem:[#allocation2 + $0x10] sm:$0xff] %vm19, 0.0
    %23 = vst.msk [vmem:[#allocation2 + $0x18] sm:$0xff] %vm19, 0.0
    %24 = vst.msk [vmem:[#allocation2 + $0x20] sm:$0xff] %vm19, 0.0
    %25 = vst.msk [vmem:[#allocation2 + $0x28] sm:$0xff] %vm19, 0.0
    %26 = vst.msk [vmem:[#allocation2 + $0x30] sm:$0xff] %vm19, 0.0
    %27 = vst.msk [vmem:[#allocation2 + $0x38] sm:$0xff] %vm19, 0.0
    %28 = vst.msk [vmem:[#allocation2 + $0x40] sm:$0xff] %vm19, 0.0
    %29 = vst.msk [vmem:[#allocation2 + $0x48] sm:$0xff] %vm19, 0.0
    %30 = vst.msk [vmem:[#allocation2 + $0x50] sm:$0xff] %vm19, 0.0
    %31 = vst.msk [vmem:[#allocation2 + $0x58] sm:$0xff] %vm19, 0.0
    %32 = vst.msk [vmem:[#allocation2 + $0x60] sm:$0xff] %vm19, 0.0
    %33 = vst.msk [vmem:[#allocation2 + $0x68] sm:$0xff] %vm19, 0.0
    %34 = vst.msk [vmem:[#allocation2 + $0x70] sm:$0xff] %vm19, 0.0
    %35 = vst.msk [vmem:[#allocation2 + $0x78] sm:$0xff] %vm19, 0.0
    %36 = vst.msk [vmem:[#allocation2 + $0x80] sm:$0xff] %vm19, 0.0
    %37 = vst.msk [vmem:[#allocation2 + $0x88] sm:$0xff] %vm19, 0.0
    %38 = vst.msk [vmem:[#allocation2 + $0x90] sm:$0xff] %vm19, 0.0
    %39 = vst.msk [vmem:[#allocation2 + $0x98] sm:$0xff] %vm19, 0.0
    %40 = vst.msk [vmem:[#allocation2 + $0xa0] sm:$0xff] %vm19, 0.0
    %41 = vst.msk [vmem:[#allocation2 + $0xa8] sm:$0xff] %vm19, 0.0
    %42 = vst.msk [vmem:[#allocation2 + $0xb0] sm:$0xff] %vm19, 0.0
    %43 = vst.msk [vmem:[#allocation2 + $0xb8] sm:$0xff] %vm19, 0.0
    %44 = vst.msk [vmem:[#allocation2 + $0xc0] sm:$0xff] %vm19, 0.0
    %45 = vst.msk [vmem:[#allocation2 + $0xc8] sm:$0xff] %vm19, 0.0
    %46 = vst.msk [vmem:[#allocation2 + $0xd0] sm:$0xff] %vm19, 0.0
    %47 = vst.msk [vmem:[#allocation2 + $0xd8] sm:$0xff] %vm19, 0.0
    %48 = vst.msk [vmem:[#allocation2 + $0xe0] sm:$0xff] %vm19, 0.0
    %49 = vst.msk [vmem:[#allocation2 + $0xe8] sm:$0xff] %vm19, 0.0
    %50 = vst.msk [vmem:[#allocation2 + $0xf0] sm:$0xff] %vm19, 0.0
    %51 = vst.msk [vmem:[#allocation2 + $0xf8] sm:$0xff] %vm19, 0.0
    %52 = vst.msk [vmem:[#allocation2 + $0x100] sm:$0xff] %vm19, 0.0
    %53 = vst.msk [vmem:[#allocation2 + $0x108] sm:$0xff] %vm19, 0.0
    %54 = vst.msk [vmem:[#allocation2 + $0x110] sm:$0xff] %vm19, 0.0
    %55 = vst.msk [vmem:[#allocation2 + $0x118] sm:$0xff] %vm19, 0.0
    %56 = vst.msk [vmem:[#allocation2 + $0x120] sm:$0xff] %vm19, 0.0
    %57 = vst.msk [vmem:[#allocation2 + $0x128] sm:$0xff] %vm19, 0.0
    %58 = vst.msk [vmem:[#allocation2 + $0x130] sm:$0xff] %vm19, 0.0
    %59 = vst.msk [vmem:[#allocation2 + $0x138] sm:$0xff] %vm19, 0.0
    %60 = vst.msk [vmem:[#allocation2 + $0x140] sm:$0xff] %vm19, 0.0
    %61 = vst.msk [vmem:[#allocation2 + $0x148] sm:$0xff] %vm19, 0.0
    %62 = vst.msk [vmem:[#allocation2 + $0x150] sm:$0xff] %vm19, 0.0
    %63 = vst.msk [vmem:[#allocation2 + $0x158] sm:$0xff] %vm19, 0.0
    %64 = vst.msk [vmem:[#allocation2 + $0x160] sm:$0xff] %vm19, 0.0
    %65 = vst.msk [vmem:[#allocation2 + $0x168] sm:$0xff] %vm19, 0.0
    %66 = vst.msk [vmem:[#allocation2 + $0x170] sm:$0xff] %vm19, 0.0
    %67 = vst.msk [vmem:[#allocation2 + $0x178] sm:$0xff] %vm19, 0.0
    %68 = vst.msk [vmem:[#allocation2 + $0x180] sm:$0xff] %vm19, 0.0
    %69 = vst.msk [vmem:[#allocation2 + $0x188] sm:$0xff] %vm19, 0.0
    %70 = vst.msk [vmem:[#allocation2 + $0x190] sm:$0xff] %vm19, 0.0
    %71 = vst.msk [vmem:[#allocation2 + $0x198] sm:$0xff] %vm19, 0.0
    %72 = vst.msk [vmem:[#allocation2 + $0x1a0] sm:$0xff] %vm19, 0.0
    %73 = vst.msk [vmem:[#allocation2 + $0x1a8] sm:$0xff] %vm19, 0.0
    %74 = vst.msk [vmem:[#allocation2 + $0x1b0] sm:$0xff] %vm19, 0.0
    %75 = vst.msk [vmem:[#allocation2 + $0x1b8] sm:$0xff] %vm19, 0.0
    %76 = vst.msk [vmem:[#allocation2 + $0x1c0] sm:$0xff] %vm19, 0.0
    %77 = vst.msk [vmem:[#allocation2 + $0x1c8] sm:$0xff] %vm19, 0.0
    %78 = vst.msk [vmem:[#allocation2 + $0x1d0] sm:$0xff] %vm19, 0.0
    %79 = vst.msk [vmem:[#allocation2 + $0x1d8] sm:$0xff] %vm19, 0.0
    %80 = vst.msk [vmem:[#allocation2 + $0x1e0] sm:$0xff] %vm19, 0.0
    %81 = vst.msk [vmem:[#allocation2 + $0x1e8] sm:$0xff] %vm19, 0.0
    %82 = vst.msk [vmem:[#allocation2 + $0x1f0] sm:$0xff] %vm19, 0.0
    %83 = vst.msk [vmem:[#allocation2 + $0x1f8] sm:$0xff] %vm19, 0.0
  $region17: #{joint_model_apply.35} parent=0 // pred_fallthru
    _
  %v84 = vld [vmem:[#allocation2] sm:$0xff]
  %v85 = vld [vmem:[#allocation2 + $0x8] sm:$0xff]
  %v86 = vld [vmem:[#allocation2 + $0x10] sm:$0xff]
  %v87 = vld [vmem:[#allocation2 + $0x18] sm:$0xff]
  %v88 = vld [vmem:[#allocation2 + $0x20] sm:$0xff]
  %v89 = vld [vmem:[#allocation2 + $0x28] sm:$0xff]
  %v90 = vld [vmem:[#allocation2 + $0x30] sm:$0xff]
  %v91 = vld [vmem:[#allocation2 + $0x38] sm:$0xff]
  %v92 = vld [vmem:[#allocation2 + $0x40] sm:$0xff]
  %v93 = vld [vmem:[#allocation2 + $0x48] sm:$0xff]
  %v94 = vld [vmem:[#allocation2 + $0x50] sm:$0xff]
  %v95 = vld [vmem:[#allocation2 + $0x58] sm:$0xff]
  %v96 = vld [vmem:[#allocation2 + $0x60] sm:$0xff]
  %v97 = vld [vmem:[#allocation2 + $0x68] sm:$0xff]
  %v98 = vld [vmem:[#allocation2 + $0x70] sm:$0xff]
  %v99 = vld [vmem:[#allocation2 + $0x78] sm:$0xff]
  %v100 = vld [vmem:[#allocation2 + $0x80] sm:$0xff]
  %v101 = vld [vmem:[#allocation2 + $0x88] sm:$0xff]
  %v102 = vld [vmem:[#allocation2 + $0x90] sm:$0xff]
  %v103 = vld [vmem:[#allocation2 + $0x98] sm:$0xff]
  %v104 = vld [vmem:[#allocation2 + $0xa0] sm:$0xff]
  %v105 = vld [vmem:[#allocation2 + $0xa8] sm:$0xff]
  %v106 = vld [vmem:[#allocation2 + $0xb0] sm:$0xff]
  %v107 = vld [vmem:[#allocation2 + $0xb8] sm:$0xff]
  %v108 = vld [vmem:[#allocation2 + $0xc0] sm:$0xff]
  %v109 = vld [vmem:[#allocation2 + $0xc8] sm:$0xff]
  %v110 = vld [vmem:[#allocation2 + $0xd0] sm:$0xff]
  %v111 = vld [vmem:[#allocation2 + $0xd8] sm:$0xff]
  %v112 = vld [vmem:[#allocation2 + $0xe0] sm:$0xff]
  %v113 = vld [vmem:[#allocation2 + $0xe8] sm:$0xff]
  %v114 = vld [vmem:[#allocation2 + $0xf0] sm:$0xff]
  %v115 = vld [vmem:[#allocation2 + $0xf8] sm:$0xff]
  %v116 = vld [vmem:[#allocation2 + $0x100] sm:$0xff]
  %v117 = vld [vmem:[#allocation2 + $0x108] sm:$0xff]
  %v118 = vld [vmem:[#allocation2 + $0x110] sm:$0xff]
  %v119 = vld [vmem:[#allocation2 + $0x118] sm:$0xff]
  %v120 = vld [vmem:[#allocation2 + $0x120] sm:$0xff]
  %v121 = vld [vmem:[#allocation2 + $0x128] sm:$0xff]
  %v122 = vld [vmem:[#allocation2 + $0x130] sm:$0xff]
  %v123 = vld [vmem:[#allocation2 + $0x138] sm:$0xff]
  %v124 = vld [vmem:[#allocation2 + $0x140] sm:$0xff]
  %v125 = vld [vmem:[#allocation2 + $0x148] sm:$0xff]
  %v126 = vld [vmem:[#allocation2 + $0x150] sm:$0xff]
  %v127 = vld [vmem:[#allocation2 + $0x158] sm:$0xff]
  %v128 = vld [vmem:[#allocation2 + $0x160] sm:$0xff]
  %v129 = vld [vmem:[#allocation2 + $0x168] sm:$0xff]
  %v130 = vld [vmem:[#allocation2 + $0x170] sm:$0xff]
  %v131 = vld [vmem:[#allocation2 + $0x178] sm:$0xff]
  %v132 = vld [vmem:[#allocation2 + $0x180] sm:$0xff]
  %v133 = vld [vmem:[#allocation2 + $0x188] sm:$0xff]
  %v134 = vld [vmem:[#allocation2 + $0x190] sm:$0xff]
  %v135 = vld [vmem:[#allocation2 + $0x198] sm:$0xff]
  %v136 = vld [vmem:[#allocation2 + $0x1a0] sm:$0xff]
  %v137 = vld [vmem:[#allocation2 + $0x1a8] sm:$0xff]
  %v138 = vld [vmem:[#allocation2 + $0x1b0] sm:$0xff]
  %v139 = vld [vmem:[#allocation2 + $0x1b8] sm:$0xff]
  %v140 = vld [vmem:[#allocation2 + $0x1c0] sm:$0xff]
  %v141 = vld [vmem:[#allocation2 + $0x1c8] sm:$0xff]
  %v142 = vld [vmem:[#allocation2 + $0x1d0] sm:$0xff]
  %v143 = vld [vmem:[#allocation2 + $0x1d8] sm:$0xff]
  %v144 = vld [vmem:[#allocation2 + $0x1e0] sm:$0xff]
  %v145 = vld [vmem:[#allocation2 + $0x1e8] sm:$0xff]
  %v146 = vld [vmem:[#allocation2 + $0x1f0] sm:$0xff]
  %v147 = vld [vmem:[#allocation2 + $0x1f8] sm:$0xff]
  %v148 = vld [vmem:[%s0] sm:$0xf]
  %v149 = vld [vmem:[%s0 + $0x4] sm:$0xf]
  %v150 = vld [vmem:[%s0 + $0x8] sm:$0xf]
  %v151 = vld [vmem:[%s0 + $0xc] sm:$0xf]
  %v152 = vld [vmem:[%s0 + $0x10] sm:$0xf]
  %v153 = vld [vmem:[%s0 + $0x14] sm:$0xf]
  %v154 = vld [vmem:[%s0 + $0x18] sm:$0xf]
  %v155 = vld [vmem:[%s0 + $0x1c] sm:$0xf]
  %v156 = vld [vmem:[%s0 + $0x20] sm:$0xf]
  %v157 = vld [vmem:[%s0 + $0x24] sm:$0xf]
  %v158 = vld [vmem:[%s0 + $0x28] sm:$0xf]
  %v159 = vld [vmem:[%s0 + $0x2c] sm:$0xf]
  %v160 = vld [vmem:[%s0 + $0x30] sm:$0xf]
  %v161 = vld [vmem:[%s0 + $0x34] sm:$0xf]
  %v162 = vld [vmem:[%s0 + $0x38] sm:$0xf]
  %v163 = vld [vmem:[%s0 + $0x3c] sm:$0xf]
  %v164 = vld [vmem:[%s0 + $0x40] sm:$0xf]
  %v165 = vld [vmem:[%s0 + $0x44] sm:$0xf]
  %v166 = vld [vmem:[%s0 + $0x48] sm:$0xf]
  %v167 = vld [vmem:[%s0 + $0x4c] sm:$0xf]
  %v168 = vld [vmem:[%s0 + $0x50] sm:$0xf]
  %v169 = vld [vmem:[%s0 + $0x54] sm:$0xf]
  %v170 = vld [vmem:[%s0 + $0x58] sm:$0xf]
  %v171 = vld [vmem:[%s0 + $0x5c] sm:$0xf]
  %v172 = vld [vmem:[%s0 + $0x60] sm:$0xf]
  %v173 = vld [vmem:[%s0 + $0x64] sm:$0xf]
  %v174 = vld [vmem:[%s0 + $0x68] sm:$0xf]
  %v175 = vld [vmem:[%s0 + $0x6c] sm:$0xf]
  %v176 = vld [vmem:[%s0 + $0x70] sm:$0xf]
  %v177 = vld [vmem:[%s0 + $0x74] sm:$0xf]
  %v178 = vld [vmem:[%s0 + $0x78] sm:$0xf]
  %v179 = vld [vmem:[%s0 + $0x7c] sm:$0xf]
  %v180 = vld [vmem:[%s0 + $0x80] sm:$0xf]
  %v181 = vld [vmem:[%s0 + $0x84] sm:$0xf]
  %v182 = vld [vmem:[%s0 + $0x88] sm:$0xf]
  %v183 = vld [vmem:[%s0 + $0x8c] sm:$0xf]
  %v184 = vld [vmem:[%s0 + $0x90] sm:$0xf]
  %v185 = vld [vmem:[%s0 + $0x94] sm:$0xf]
  %v186 = vld [vmem:[%s0 + $0x98] sm:$0xf]
  %v187 = vld [vmem:[%s0 + $0x9c] sm:$0xf]
  %v188 = vld [vmem:[%s0 + $0xa0] sm:$0xf]
  %v189 = vld [vmem:[%s0 + $0xa4] sm:$0xf]
  %v190 = vld [vmem:[%s0 + $0xa8] sm:$0xf]
  %v191 = vld [vmem:[%s0 + $0xac] sm:$0xf]
  %v192 = vld [vmem:[%s0 + $0xb0] sm:$0xf]
  %v193 = vld [vmem:[%s0 + $0xb4] sm:$0xf]
  %v194 = vld [vmem:[%s0 + $0xb8] sm:$0xf]
  %v195 = vld [vmem:[%s0 + $0xbc] sm:$0xf]
  %v196 = vld [vmem:[%s0 + $0xc0] sm:$0xf]
  %v197 = vld [vmem:[%s0 + $0xc4] sm:$0xf]
  %v198 = vld [vmem:[%s0 + $0xc8] sm:$0xf]
  %v199 = vld [vmem:[%s0 + $0xcc] sm:$0xf]
  %v200 = vld [vmem:[%s0 + $0xd0] sm:$0xf]
  %v201 = vld [vmem:[%s0 + $0xd4] sm:$0xf]
  %v202 = vld [vmem:[%s0 + $0xd8] sm:$0xf]
  %v203 = vld [vmem:[%s0 + $0xdc] sm:$0xf]
  %v204 = vld [vmem:[%s0 + $0xe0] sm:$0xf]
  %v205 = vld [vmem:[%s0 + $0xe4] sm:$0xf]
  %v206 = vld [vmem:[%s0 + $0xe8] sm:$0xf]
  %v207 = vld [vmem:[%s0 + $0xec] sm:$0xf]
  %v208 = vld [vmem:[%s0 + $0xf0] sm:$0xf]
  %v209 = vld [vmem:[%s0 + $0xf4] sm:$0xf]
  %v210 = vld [vmem:[%s0 + $0xf8] sm:$0xf]
  %v211 = vld [vmem:[%s0 + $0xfc] sm:$0xf]
  %v212 = vld [vmem:[%s1] sm:$0xf]
  %v213 = vld [vmem:[%s1 + $0x4] sm:$0xf]
  %v278 = vunpack.c.l.b16 %v148
  %v279 = vunpack.c.l.b16 %v149
  %v280 = vunpack.c.l.b16 %v150
  %v281 = vunpack.c.l.b16 %v151
  %v282 = vunpack.c.l.b16 %v152
  %v283 = vunpack.c.l.b16 %v153
  %v284 = vunpack.c.l.b16 %v154
  %v285 = vunpack.c.l.b16 %v155
  %v286 = vunpack.c.l.b16 %v156
  %v287 = vunpack.c.l.b16 %v157
  %v288 = vunpack.c.l.b16 %v158
  %v289 = vunpack.c.l.b16 %v159
  %v290 = vunpack.c.l.b16 %v160
  %v291 = vunpack.c.l.b16 %v161
  %v292 = vunpack.c.l.b16 %v162
  %v293 = vunpack.c.l.b16 %v163
  %v294 = vunpack.c.l.b16 %v164
  %v295 = vunpack.c.l.b16 %v165
  %v296 = vunpack.c.l.b16 %v166
  %v297 = vunpack.c.l.b16 %v167
  %v298 = vunpack.c.l.b16 %v168
  %v299 = vunpack.c.l.b16 %v169
  %v300 = vunpack.c.l.b16 %v170
  %v301 = vunpack.c.l.b16 %v171
  %v302 = vunpack.c.l.b16 %v172
  %v303 = vunpack.c.l.b16 %v173
  %v304 = vunpack.c.l.b16 %v174
  %v305 = vunpack.c.l.b16 %v175
  %v306 = vunpack.c.l.b16 %v176
  %v307 = vunpack.c.l.b16 %v177
  %v308 = vunpack.c.l.b16 %v178
  %v309 = vunpack.c.l.b16 %v179
  %v310 = vunpack.c.l.b16 %v180
  %v311 = vunpack.c.l.b16 %v181
  %v312 = vunpack.c.l.b16 %v182
  %v313 = vunpack.c.l.b16 %v183
  %v314 = vunpack.c.l.b16 %v184
  %v315 = vunpack.c.l.b16 %v185
  %v316 = vunpack.c.l.b16 %v186
  %v317 = vunpack.c.l.b16 %v187
  %v318 = vunpack.c.l.b16 %v188
  %v319 = vunpack.c.l.b16 %v189
  %v320 = vunpack.c.l.b16 %v190
  %v321 = vunpack.c.l.b16 %v191
  %v322 = vunpack.c.l.b16 %v192
  %v323 = vunpack.c.l.b16 %v193
  %v324 = vunpack.c.l.b16 %v194
  %v325 = vunpack.c.l.b16 %v195
  %v326 = vunpack.c.l.b16 %v196
  %v327 = vunpack.c.l.b16 %v197
  %v328 = vunpack.c.l.b16 %v198
  %v329 = vunpack.c.l.b16 %v199
  %v330 = vunpack.c.l.b16 %v200
  %v331 = vunpack.c.l.b16 %v201
  %v332 = vunpack.c.l.b16 %v202
  %v333 = vunpack.c.l.b16 %v203
  %v334 = vunpack.c.l.b16 %v204
  %v335 = vunpack.c.l.b16 %v205
  %v336 = vunpack.c.l.b16 %v206
  %v337 = vunpack.c.l.b16 %v207
  %v338 = vunpack.c.l.b16 %v208
  %v339 = vunpack.c.l.b16 %v209
  %v340 = vunpack.c.l.b16 %v210
  %v341 = vunpack.c.l.b16 %v211
  %v342 = vpack.c.b16 %v279, %v278
  %v343 = vpack.c.b16 %v281, %v280
  %v344 = vpack.c.b16 %v283, %v282
  %v345 = vpack.c.b16 %v285, %v284
  %v346 = vpack.c.b16 %v287, %v286
  %v347 = vpack.c.b16 %v289, %v288
  %v348 = vpack.c.b16 %v291, %v290
  %v349 = vpack.c.b16 %v293, %v292
  %v350 = vpack.c.b16 %v295, %v294
  %v351 = vpack.c.b16 %v297, %v296
  %v352 = vpack.c.b16 %v299, %v298
  %v353 = vpack.c.b16 %v301, %v300
  %v354 = vpack.c.b16 %v303, %v302
  %v355 = vpack.c.b16 %v305, %v304
  %v356 = vpack.c.b16 %v307, %v306
  %v357 = vpack.c.b16 %v309, %v308
  %v358 = vpack.c.b16 %v311, %v310
  %v359 = vpack.c.b16 %v313, %v312
  %v360 = vpack.c.b16 %v315, %v314
  %v361 = vpack.c.b16 %v317, %v316
  %v362 = vpack.c.b16 %v319, %v318
  %v363 = vpack.c.b16 %v321, %v320
  %v364 = vpack.c.b16 %v323, %v322
  %v365 = vpack.c.b16 %v325, %v324
  %v366 = vpack.c.b16 %v327, %v326
  %v367 = vpack.c.b16 %v329, %v328
  %v368 = vpack.c.b16 %v331, %v330
  %v369 = vpack.c.b16 %v333, %v332
  %v370 = vpack.c.b16 %v335, %v334
  %v371 = vpack.c.b16 %v337, %v336
  %v372 = vpack.c.b16 %v339, %v338
  %v373 = vpack.c.b16 %v341, %v340
  %v376 = vunpack.c.l.b16 %v212
  %v377 = vunpack.c.l.b16 %v213
  %v378 = vpack.c.b16 %v377, %v376
  %vm380 = vcmask 130048
  %v382 = vsel %vm380, %v342, 0
  %v385 = vsel %vm380, %v343, 0
  %v388 = vsel %vm380, %v344, 0
  %v391 = vsel %vm380, %v345, 0
  %v394 = vsel %vm380, %v346, 0
  %v397 = vsel %vm380, %v347, 0
  %v400 = vsel %vm380, %v348, 0
  %v403 = vsel %vm380, %v349, 0
  %v406 = vsel %vm380, %v350, 0
  %v409 = vsel %vm380, %v351, 0
  %v412 = vsel %vm380, %v352, 0
  %v415 = vsel %vm380, %v353, 0
  %v418 = vsel %vm380, %v354, 0
  %v421 = vsel %vm380, %v355, 0
  %v424 = vsel %vm380, %v356, 0
  %v427 = vsel %vm380, %v357, 0
  %v430 = vsel %vm380, %v358, 0
  %v433 = vsel %vm380, %v359, 0
  %v436 = vsel %vm380, %v360, 0
  %v439 = vsel %vm380, %v361, 0
  %v442 = vsel %vm380, %v362, 0
  %v445 = vsel %vm380, %v363, 0
  %v448 = vsel %vm380, %v364, 0
  %v451 = vsel %vm380, %v365, 0
  %v454 = vsel %vm380, %v366, 0
  %v457 = vsel %vm380, %v367, 0
  %v460 = vsel %vm380, %v368, 0
  %v463 = vsel %vm380, %v369, 0
  %v466 = vsel %vm380, %v370, 0
  %v469 = vsel %vm380, %v371, 0
  %v472 = vsel %vm380, %v372, 0
  %v475 = vsel %vm380, %v373, 0
  %477 = vmatprep.subr.bf16.mxu0 0
  %478 = vmatpush1.bf16.msra.mxu0 0
  %479 = vmatprep.subr.bf16.mxu0 0
  %480 = vmatpush1.bf16.msra.mxu0 0
  %481 = vmatprep.subr.bf16.mxu0 0
  %482 = vmatpush1.bf16.msra.mxu0 0
  %483 = vmatprep.subr.bf16.mxu0 0
  %484 = vmatpush1.bf16.msra.mxu0 0
  %485 = vmatprep.subr.bf16.mxu0 0
  %486 = vmatpush1.bf16.msra.mxu0 0
  %487 = vmatprep.subr.bf16.mxu0 0
  %488 = vmatpush1.bf16.msra.mxu0 0
  %489 = vmatprep.subr.bf16.mxu0 0
  %490 = vmatpush1.bf16.msra.mxu0 0
  %491 = vmatprep.subr.bf16.mxu0 0
  %492 = vmatpush1.bf16.msra.mxu0 %v378
  %493 = vmatprep.subr.bf16.mxu0 0
  %494 = vmatpush2.bf16.msra.mxu0 0
  %495 = vmatprep.subr.bf16.mxu0 0
  %496 = vmatpush2.bf16.msra.mxu0 0
  %497 = vmatprep.subr.bf16.mxu0 0
  %498 = vmatpush2.bf16.msra.mxu0 0
  %499 = vmatprep.subr.bf16.mxu0 0
  %500 = vmatpush2.bf16.msra.mxu0 0
  %501 = vmatprep.subr.bf16.mxu0 0
  %502 = vmatpush2.bf16.msra.mxu0 0
  %503 = vmatprep.subr.bf16.mxu0 0
  %504 = vmatpush2.bf16.msra.mxu0 0
  %505 = vmatprep.subr.bf16.mxu0 0
  %506 = vmatpush2.bf16.msra.mxu0 0
  %507 = vmatprep.subr.bf16.mxu0 0
  %508 = vmatpush2.bf16.msra.mxu0 0
  %509 = vmatprep.mubr.bf16.mxu0 0
  %510 = vmatmul.mubr.bf16.gmra.mxu0 %v382
  %v511 = vpop.f32.mrf.mxu0
  %v512 = vadd.f32 0.0, %v511
  %v513 = vpop.f32.mrf.mxu0
  %v514 = vpop.f32.mrf.mxu0
  %v515 = vadd.f32 0.0, %v514
  %v516 = vpop.f32.mrf.mxu0
  %517 = vmatprep.mubr.bf16.mxu0 0
  %518 = vmatmul.mubr.bf16.gmra.mxu0 %v385
  %v519 = vpop.f32.mrf.mxu0
  %v520 = vadd.f32 0.0, %v519
  %v521 = vpop.f32.mrf.mxu0
  %v522 = vpop.f32.mrf.mxu0
  %v523 = vadd.f32 0.0, %v522
  %v524 = vpop.f32.mrf.mxu0
  %525 = vmatprep.mubr.bf16.mxu0 0
  %526 = vmatmul.mubr.bf16.gmra.mxu0 %v388
  %v527 = vpop.f32.mrf.mxu0
  %v528 = vadd.f32 0.0, %v527
  %v529 = vpop.f32.mrf.mxu0
  %v530 = vpop.f32.mrf.mxu0
  %v531 = vadd.f32 0.0, %v530
  %v532 = vpop.f32.mrf.mxu0
  %533 = vmatprep.mubr.bf16.mxu0 0
  %534 = vmatmul.mubr.bf16.gmra.mxu0 %v391
  %v535 = vpop.f32.mrf.mxu0
  %v536 = vadd.f32 0.0, %v535
  %v537 = vpop.f32.mrf.mxu0
  %v538 = vpop.f32.mrf.mxu0
  %v539 = vadd.f32 0.0, %v538
  %v540 = vpop.f32.mrf.mxu0
  %541 = vmatprep.mubr.bf16.mxu0 0
  %542 = vmatmul.mubr.bf16.gmra.mxu0 %v394
  %v543 = vpop.f32.mrf.mxu0
  %v544 = vadd.f32 0.0, %v543
  %v545 = vpop.f32.mrf.mxu0
  %v546 = vpop.f32.mrf.mxu0
  %v547 = vadd.f32 0.0, %v546
  %v548 = vpop.f32.mrf.mxu0
  %549 = vmatprep.mubr.bf16.mxu0 0
  %550 = vmatmul.mubr.bf16.gmra.mxu0 %v397
  %v551 = vpop.f32.mrf.mxu0
  %v552 = vadd.f32 0.0, %v551
  %v553 = vpop.f32.mrf.mxu0
  %v554 = vpop.f32.mrf.mxu0
  %v555 = vadd.f32 0.0, %v554
  %v556 = vpop.f32.mrf.mxu0
  %557 = vmatprep.mubr.bf16.mxu0 0
  %558 = vmatmul.mubr.bf16.gmra.mxu0 %v400
  %v559 = vpop.f32.mrf.mxu0
  %v560 = vadd.f32 0.0, %v559
  %v561 = vpop.f32.mrf.mxu0
  %v562 = vpop.f32.mrf.mxu0
  %v563 = vadd.f32 0.0, %v562
  %v564 = vpop.f32.mrf.mxu0
  %565 = vmatprep.mubr.bf16.mxu0 0
  %566 = vmatmul.mubr.bf16.gmra.mxu0 %v403
  %v567 = vpop.f32.mrf.mxu0
  %v568 = vadd.f32 0.0, %v567
  %v569 = vpop.f32.mrf.mxu0
  %v570 = vpop.f32.mrf.mxu0
  %v571 = vadd.f32 0.0, %v570
  %v572 = vpop.f32.mrf.mxu0
  %573 = vmatprep.mubr.bf16.mxu0 0
  %574 = vmatmul.mubr.bf16.gmra.mxu0 %v406
  %v575 = vpop.f32.mrf.mxu0
  %v576 = vadd.f32 0.0, %v575
  %v577 = vpop.f32.mrf.mxu0
  %v578 = vpop.f32.mrf.mxu0
  %v579 = vadd.f32 0.0, %v578
  %v580 = vpop.f32.mrf.mxu0
  %581 = vmatprep.mubr.bf16.mxu0 0
  %582 = vmatmul.mubr.bf16.gmra.mxu0 %v409
  %v583 = vpop.f32.mrf.mxu0
  %v584 = vadd.f32 0.0, %v583
  %v585 = vpop.f32.mrf.mxu0
  %v586 = vpop.f32.mrf.mxu0
  %v587 = vadd.f32 0.0, %v586
  %v588 = vpop.f32.mrf.mxu0
  %589 = vmatprep.mubr.bf16.mxu0 0
  %590 = vmatmul.mubr.bf16.gmra.mxu0 %v412
  %v591 = vpop.f32.mrf.mxu0
  %v592 = vadd.f32 0.0, %v591
  %v593 = vpop.f32.mrf.mxu0
  %v594 = vpop.f32.mrf.mxu0
  %v595 = vadd.f32 0.0, %v594
  %v596 = vpop.f32.mrf.mxu0
  %597 = vmatprep.mubr.bf16.mxu0 0
  %598 = vmatmul.mubr.bf16.gmra.mxu0 %v415
  %v599 = vpop.f32.mrf.mxu0
  %v600 = vadd.f32 0.0, %v599
  %v601 = vpop.f32.mrf.mxu0
  %v602 = vpop.f32.mrf.mxu0
  %v603 = vadd.f32 0.0, %v602
  %v604 = vpop.f32.mrf.mxu0
  %605 = vmatprep.mubr.bf16.mxu0 0
  %606 = vmatmul.mubr.bf16.gmra.mxu0 %v418
  %v607 = vpop.f32.mrf.mxu0
  %v608 = vadd.f32 0.0, %v607
  %v609 = vpop.f32.mrf.mxu0
  %v610 = vpop.f32.mrf.mxu0
  %v611 = vadd.f32 0.0, %v610
  %v612 = vpop.f32.mrf.mxu0
  %613 = vmatprep.mubr.bf16.mxu0 0
  %614 = vmatmul.mubr.bf16.gmra.mxu0 %v421
  %v615 = vpop.f32.mrf.mxu0
  %v616 = vadd.f32 0.0, %v615
  %v617 = vpop.f32.mrf.mxu0
  %v618 = vpop.f32.mrf.mxu0
  %v619 = vadd.f32 0.0, %v618
  %v620 = vpop.f32.mrf.mxu0
  %621 = vmatprep.mubr.bf16.mxu0 0
  %622 = vmatmul.mubr.bf16.gmra.mxu0 %v424
  %v623 = vpop.f32.mrf.mxu0
  %v624 = vadd.f32 0.0, %v623
  %v625 = vpop.f32.mrf.mxu0
  %v626 = vpop.f32.mrf.mxu0
  %v627 = vadd.f32 0.0, %v626
  %v628 = vpop.f32.mrf.mxu0
  %629 = vmatprep.mubr.bf16.mxu0 0
  %630 = vmatmul.mubr.bf16.gmra.mxu0 %v427
  %v631 = vpop.f32.mrf.mxu0
  %v632 = vadd.f32 0.0, %v631
  %v633 = vpop.f32.mrf.mxu0
  %v634 = vpop.f32.mrf.mxu0
  %v635 = vadd.f32 0.0, %v634
  %v636 = vpop.f32.mrf.mxu0
  %637 = vmatprep.mubr.bf16.mxu0 0
  %638 = vmatmul.mubr.bf16.gmra.mxu0 %v430
  %v639 = vpop.f32.mrf.mxu0
  %v640 = vadd.f32 0.0, %v639
  %v641 = vpop.f32.mrf.mxu0
  %v642 = vpop.f32.mrf.mxu0
  %v643 = vadd.f32 0.0, %v642
  %v644 = vpop.f32.mrf.mxu0
  %645 = vmatprep.mubr.bf16.mxu0 0
  %646 = vmatmul.mubr.bf16.gmra.mxu0 %v433
  %v647 = vpop.f32.mrf.mxu0
  %v648 = vadd.f32 0.0, %v647
  %v649 = vpop.f32.mrf.mxu0
  %v650 = vpop.f32.mrf.mxu0
  %v651 = vadd.f32 0.0, %v650
  %v652 = vpop.f32.mrf.mxu0
  %653 = vmatprep.mubr.bf16.mxu0 0
  %654 = vmatmul.mubr.bf16.gmra.mxu0 %v436
  %v655 = vpop.f32.mrf.mxu0
  %v656 = vadd.f32 0.0, %v655
  %v657 = vpop.f32.mrf.mxu0
  %v658 = vpop.f32.mrf.mxu0
  %v659 = vadd.f32 0.0, %v658
  %v660 = vpop.f32.mrf.mxu0
  %661 = vmatprep.mubr.bf16.mxu0 0
  %662 = vmatmul.mubr.bf16.gmra.mxu0 %v439
  %v663 = vpop.f32.mrf.mxu0
  %v664 = vadd.f32 0.0, %v663
  %v665 = vpop.f32.mrf.mxu0
  %v666 = vpop.f32.mrf.mxu0
  %v667 = vadd.f32 0.0, %v666
  %v668 = vpop.f32.mrf.mxu0
  %669 = vmatprep.mubr.bf16.mxu0 0
  %670 = vmatmul.mubr.bf16.gmra.mxu0 %v442
  %v671 = vpop.f32.mrf.mxu0
  %v672 = vadd.f32 0.0, %v671
  %v673 = vpop.f32.mrf.mxu0
  %v674 = vpop.f32.mrf.mxu0
  %v675 = vadd.f32 0.0, %v674
  %v676 = vpop.f32.mrf.mxu0
  %677 = vmatprep.mubr.bf16.mxu0 0
  %678 = vmatmul.mubr.bf16.gmra.mxu0 %v445
  %v679 = vpop.f32.mrf.mxu0
  %v680 = vadd.f32 0.0, %v679
  %v681 = vpop.f32.mrf.mxu0
  %v682 = vpop.f32.mrf.mxu0
  %v683 = vadd.f32 0.0, %v682
  %v684 = vpop.f32.mrf.mxu0
  %685 = vmatprep.mubr.bf16.mxu0 0
  %686 = vmatmul.mubr.bf16.gmra.mxu0 %v448
  %v687 = vpop.f32.mrf.mxu0
  %v688 = vadd.f32 0.0, %v687
  %v689 = vpop.f32.mrf.mxu0
  %v690 = vpop.f32.mrf.mxu0
  %v691 = vadd.f32 0.0, %v690
  %v692 = vpop.f32.mrf.mxu0
  %693 = vmatprep.mubr.bf16.mxu0 0
  %694 = vmatmul.mubr.bf16.gmra.mxu0 %v451
  %v695 = vpop.f32.mrf.mxu0
  %v696 = vadd.f32 0.0, %v695
  %v697 = vpop.f32.mrf.mxu0
  %v698 = vpop.f32.mrf.mxu0
  %v699 = vadd.f32 0.0, %v698
  %v700 = vpop.f32.mrf.mxu0
  %701 = vmatprep.mubr.bf16.mxu0 0
  %702 = vmatmul.mubr.bf16.gmra.mxu0 %v454
  %v703 = vpop.f32.mrf.mxu0
  %v704 = vadd.f32 0.0, %v703
  %v705 = vpop.f32.mrf.mxu0
  %v706 = vpop.f32.mrf.mxu0
  %v707 = vadd.f32 0.0, %v706
  %v708 = vpop.f32.mrf.mxu0
  %709 = vmatprep.mubr.bf16.mxu0 0
  %710 = vmatmul.mubr.bf16.gmra.mxu0 %v457
  %v711 = vpop.f32.mrf.mxu0
  %v712 = vadd.f32 0.0, %v711
  %v713 = vpop.f32.mrf.mxu0
  %v714 = vpop.f32.mrf.mxu0
  %v715 = vadd.f32 0.0, %v714
  %v716 = vpop.f32.mrf.mxu0
  %717 = vmatprep.mubr.bf16.mxu0 0
  %718 = vmatmul.mubr.bf16.gmra.mxu0 %v460
  %v719 = vpop.f32.mrf.mxu0
  %v720 = vadd.f32 0.0, %v719
  %v721 = vpop.f32.mrf.mxu0
  %v722 = vpop.f32.mrf.mxu0
  %v723 = vadd.f32 0.0, %v722
  %v724 = vpop.f32.mrf.mxu0
  %725 = vmatprep.mubr.bf16.mxu0 0
  %726 = vmatmul.mubr.bf16.gmra.mxu0 %v463
  %v727 = vpop.f32.mrf.mxu0
  %v728 = vadd.f32 0.0, %v727
  %v729 = vpop.f32.mrf.mxu0
  %v730 = vpop.f32.mrf.mxu0
  %v731 = vadd.f32 0.0, %v730
  %v732 = vpop.f32.mrf.mxu0
  %733 = vmatprep.mubr.bf16.mxu0 0
  %734 = vmatmul.mubr.bf16.gmra.mxu0 %v466
  %v735 = vpop.f32.mrf.mxu0
  %v736 = vadd.f32 0.0, %v735
  %v737 = vpop.f32.mrf.mxu0
  %v738 = vpop.f32.mrf.mxu0
  %v739 = vadd.f32 0.0, %v738
  %v740 = vpop.f32.mrf.mxu0
  %741 = vmatprep.mubr.bf16.mxu0 0
  %742 = vmatmul.mubr.bf16.gmra.mxu0 %v469
  %v743 = vpop.f32.mrf.mxu0
  %v744 = vadd.f32 0.0, %v743
  %v745 = vpop.f32.mrf.mxu0
  %v746 = vpop.f32.mrf.mxu0
  %v747 = vadd.f32 0.0, %v746
  %v748 = vpop.f32.mrf.mxu0
  %749 = vmatprep.mubr.bf16.mxu0 0
  %750 = vmatmul.mubr.bf16.gmra.mxu0 %v472
  %v751 = vpop.f32.mrf.mxu0
  %v752 = vadd.f32 0.0, %v751
  %v753 = vpop.f32.mrf.mxu0
  %v754 = vpop.f32.mrf.mxu0
  %v755 = vadd.f32 0.0, %v754
  %v756 = vpop.f32.mrf.mxu0
  %757 = vmatprep.mubr.bf16.mxu0 0
  %758 = vmatmul.mubr.bf16.gmra.mxu0 %v475
  %v759 = vpop.f32.mrf.mxu0
  %v760 = vadd.f32 0.0, %v759
  %v761 = vpop.f32.mrf.mxu0
  %v762 = vpop.f32.mrf.mxu0
  %v763 = vadd.f32 0.0, %v762
  %v764 = vpop.f32.mrf.mxu0
  %765 = vdwg.mxu0
  %v766 = vadd.f32 %v84, %v512
  %v767 = vadd.f32 %v85, %v515
  %v768 = vadd.f32 %v86, %v520
  %v769 = vadd.f32 %v87, %v523
  %v770 = vadd.f32 %v88, %v528
  %v771 = vadd.f32 %v89, %v531
  %v772 = vadd.f32 %v90, %v536
  %v773 = vadd.f32 %v91, %v539
  %v774 = vadd.f32 %v92, %v544
  %v775 = vadd.f32 %v93, %v547
  %v776 = vadd.f32 %v94, %v552
  %v777 = vadd.f32 %v95, %v555
  %v778 = vadd.f32 %v96, %v560
  %v779 = vadd.f32 %v97, %v563
  %v780 = vadd.f32 %v98, %v568
  %v781 = vadd.f32 %v99, %v571
  %v782 = vadd.f32 %v100, %v576
  %v783 = vadd.f32 %v101, %v579
  %v784 = vadd.f32 %v102, %v584
  %v785 = vadd.f32 %v103, %v587
  %v786 = vadd.f32 %v104, %v592
  %v787 = vadd.f32 %v105, %v595
  %v788 = vadd.f32 %v106, %v600
  %v789 = vadd.f32 %v107, %v603
  %v790 = vadd.f32 %v108, %v608
  %v791 = vadd.f32 %v109, %v611
  %v792 = vadd.f32 %v110, %v616
  %v793 = vadd.f32 %v111, %v619
  %v794 = vadd.f32 %v112, %v624
  %v795 = vadd.f32 %v113, %v627
  %v796 = vadd.f32 %v114, %v632
  %v797 = vadd.f32 %v115, %v635
  %v798 = vadd.f32 %v116, %v640
  %v799 = vadd.f32 %v117, %v643
  %v800 = vadd.f32 %v118, %v648
  %v801 = vadd.f32 %v119, %v651
  %v802 = vadd.f32 %v120, %v656
  %v803 = vadd.f32 %v121, %v659
  %v804 = vadd.f32 %v122, %v664
  %v805 = vadd.f32 %v123, %v667
  %v806 = vadd.f32 %v124, %v672
  %v807 = vadd.f32 %v125, %v675
  %v808 = vadd.f32 %v126, %v680
  %v809 = vadd.f32 %v127, %v683
  %v810 = vadd.f32 %v128, %v688
  %v811 = vadd.f32 %v129, %v691
  %v812 = vadd.f32 %v130, %v696
  %v813 = vadd.f32 %v131, %v699
  %v814 = vadd.f32 %v132, %v704
  %v815 = vadd.f32 %v133, %v707
  %v816 = vadd.f32 %v134, %v712
  %v817 = vadd.f32 %v135, %v715
  %v818 = vadd.f32 %v136, %v720
  %v819 = vadd.f32 %v137, %v723
  %v820 = vadd.f32 %v138, %v728
  %v821 = vadd.f32 %v139, %v731
  %v822 = vadd.f32 %v140, %v736
  %v823 = vadd.f32 %v141, %v739
  %v824 = vadd.f32 %v142, %v744
  %v825 = vadd.f32 %v143, %v747
  %v826 = vadd.f32 %v144, %v752
  %v827 = vadd.f32 %v145, %v755
  %v828 = vadd.f32 %v146, %v760
  %v829 = vadd.f32 %v147, %v763
  %vm830 = vcmask 64512
  %831 = vst.msk [vmem:[#allocation2] sm:$0xff] %vm830, %v766
  %832 = vst.msk [vmem:[#allocation2 + $0x8] sm:$0xff] %vm830, %v767
  %833 = vst.msk [vmem:[#allocation2 + $0x10] sm:$0xff] %vm830, %v768
  %834 = vst.msk [vmem:[#allocation2 + $0x18] sm:$0xff] %vm830, %v769
  %835 = vst.msk [vmem:[#allocation2 + $0x20] sm:$0xff] %vm830, %v770
  %836 = vst.msk [vmem:[#allocation2 + $0x28] sm:$0xff] %vm830, %v771
  %837 = vst.msk [vmem:[#allocation2 + $0x30] sm:$0xff] %vm830, %v772
  %838 = vst.msk [vmem:[#allocation2 + $0x38] sm:$0xff] %vm830, %v773
  %839 = vst.msk [vmem:[#allocation2 + $0x40] sm:$0xff] %vm830, %v774
  %840 = vst.msk [vmem:[#allocation2 + $0x48] sm:$0xff] %vm830, %v775
  %841 = vst.msk [vmem:[#allocation2 + $0x50] sm:$0xff] %vm830, %v776
  %842 = vst.msk [vmem:[#allocation2 + $0x58] sm:$0xff] %vm830, %v777
  %843 = vst.msk [vmem:[#allocation2 + $0x60] sm:$0xff] %vm830, %v778
  %844 = vst.msk [vmem:[#allocation2 + $0x68] sm:$0xff] %vm830, %v779
  %845 = vst.msk [vmem:[#allocation2 + $0x70] sm:$0xff] %vm830, %v780
  %846 = vst.msk [vmem:[#allocation2 + $0x78] sm:$0xff] %vm830, %v781
  %847 = vst.msk [vmem:[#allocation2 + $0x80] sm:$0xff] %vm830, %v782
  %848 = vst.msk [vmem:[#allocation2 + $0x88] sm:$0xff] %vm830, %v783
  %849 = vst.msk [vmem:[#allocation2 + $0x90] sm:$0xff] %vm830, %v784
  %850 = vst.msk [vmem:[#allocation2 + $0x98] sm:$0xff] %vm830, %v785
  %851 = vst.msk [vmem:[#allocation2 + $0xa0] sm:$0xff] %vm830, %v786
  %852 = vst.msk [vmem:[#allocation2 + $0xa8] sm:$0xff] %vm830, %v787
  %853 = vst.msk [vmem:[#allocation2 + $0xb0] sm:$0xff] %vm830, %v788
  %854 = vst.msk [vmem:[#allocation2 + $0xb8] sm:$0xff] %vm830, %v789
  %855 = vst.msk [vmem:[#allocation2 + $0xc0] sm:$0xff] %vm830, %v790
  %856 = vst.msk [vmem:[#allocation2 + $0xc8] sm:$0xff] %vm830, %v791
  %857 = vst.msk [vmem:[#allocation2 + $0xd0] sm:$0xff] %vm830, %v792
  %858 = vst.msk [vmem:[#allocation2 + $0xd8] sm:$0xff] %vm830, %v793
  %859 = vst.msk [vmem:[#allocation2 + $0xe0] sm:$0xff] %vm830, %v794
  %860 = vst.msk [vmem:[#allocation2 + $0xe8] sm:$0xff] %vm830, %v795
  %861 = vst.msk [vmem:[#allocation2 + $0xf0] sm:$0xff] %vm830, %v796
  %862 = vst.msk [vmem:[#allocation2 + $0xf8] sm:$0xff] %vm830, %v797
  %863 = vst.msk [vmem:[#allocation2 + $0x100] sm:$0xff] %vm830, %v798
  %864 = vst.msk [vmem:[#allocation2 + $0x108] sm:$0xff] %vm830, %v799
  %865 = vst.msk [vmem:[#allocation2 + $0x110] sm:$0xff] %vm830, %v800
  %866 = vst.msk [vmem:[#allocation2 + $0x118] sm:$0xff] %vm830, %v801
  %867 = vst.msk [vmem:[#allocation2 + $0x120] sm:$0xff] %vm830, %v802
  %868 = vst.msk [vmem:[#allocation2 + $0x128] sm:$0xff] %vm830, %v803
  %869 = vst.msk [vmem:[#allocation2 + $0x130] sm:$0xff] %vm830, %v804
  %870 = vst.msk [vmem:[#allocation2 + $0x138] sm:$0xff] %vm830, %v805
  %871 = vst.msk [vmem:[#allocation2 + $0x140] sm:$0xff] %vm830, %v806
  %872 = vst.msk [vmem:[#allocation2 + $0x148] sm:$0xff] %vm830, %v807
  %873 = vst.msk [vmem:[#allocation2 + $0x150] sm:$0xff] %vm830, %v808
  %874 = vst.msk [vmem:[#allocation2 + $0x158] sm:$0xff] %vm830, %v809
  %875 = vst.msk [vmem:[#allocation2 + $0x160] sm:$0xff] %vm830, %v810
  %876 = vst.msk [vmem:[#allocation2 + $0x168] sm:$0xff] %vm830, %v811
  %877 = vst.msk [vmem:[#allocation2 + $0x170] sm:$0xff] %vm830, %v812
  %878 = vst.msk [vmem:[#allocation2 + $0x178] sm:$0xff] %vm830, %v813
  %879 = vst.msk [vmem:[#allocation2 + $0x180] sm:$0xff] %vm830, %v814
  %880 = vst.msk [vmem:[#allocation2 + $0x188] sm:$0xff] %vm830, %v815
  %881 = vst.msk [vmem:[#allocation2 + $0x190] sm:$0xff] %vm830, %v816
  %882 = vst.msk [vmem:[#allocation2 + $0x198] sm:$0xff] %vm830, %v817
  %883 = vst.msk [vmem:[#allocation2 + $0x1a0] sm:$0xff] %vm830, %v818
  %884 = vst.msk [vmem:[#allocation2 + $0x1a8] sm:$0xff] %vm830, %v819
  %885 = vst.msk [vmem:[#allocation2 + $0x1b0] sm:$0xff] %vm830, %v820
  %886 = vst.msk [vmem:[#allocation2 + $0x1b8] sm:$0xff] %vm830, %v821
  %887 = vst.msk [vmem:[#allocation2 + $0x1c0] sm:$0xff] %vm830, %v822
  %888 = vst.msk [vmem:[#allocation2 + $0x1c8] sm:$0xff] %vm830, %v823
  %889 = vst.msk [vmem:[#allocation2 + $0x1d0] sm:$0xff] %vm830, %v824
  %890 = vst.msk [vmem:[#allocation2 + $0x1d8] sm:$0xff] %vm830, %v825
  %891 = vst.msk [vmem:[#allocation2 + $0x1e0] sm:$0xff] %vm830, %v826
  %892 = vst.msk [vmem:[#allocation2 + $0x1e8] sm:$0xff] %vm830, %v827
  %893 = vst.msk [vmem:[#allocation2 + $0x1f0] sm:$0xff] %vm830, %v828
  %894 = vst.msk [vmem:[#allocation2 + $0x1f8] sm:$0xff] %vm830, %v829
  // Predicated region
  $region18: #{joint_model_apply.35} parent=0 // pred_check
    %p895 = pneg %p15
  $region19: #{joint_model_apply.35} parent=0 // pred_check_branch
    %897 = sbr.rel (%p895) target = $region21
  $region20: #{joint_model_apply.35} parent=0 // pred_region
    %v898 = vld [vmem:[#allocation2] sm:$0xff]
    %v899 = vld [vmem:[#allocation2 + $0x8] sm:$0xff]
    %v900 = vld [vmem:[#allocation2 + $0x10] sm:$0xff]
    %v901 = vld [vmem:[#allocation2 + $0x18] sm:$0xff]
    %v902 = vld [vmem:[#allocation2 + $0x20] sm:$0xff]
    %v903 = vld [vmem:[#allocation2 + $0x28] sm:$0xff]
    %v904 = vld [vmem:[#allocation2 + $0x30] sm:$0xff]
    %v905 = vld [vmem:[#allocation2 + $0x38] sm:$0xff]
    %v906 = vld [vmem:[#allocation2 + $0x40] sm:$0xff]
    %v907 = vld [vmem:[#allocation2 + $0x48] sm:$0xff]
    %v908 = vld [vmem:[#allocation2 + $0x50] sm:$0xff]
    %v909 = vld [vmem:[#allocation2 + $0x58] sm:$0xff]
    %v910 = vld [vmem:[#allocation2 + $0x60] sm:$0xff]
    %v911 = vld [vmem:[#allocation2 + $0x68] sm:$0xff]
    %v912 = vld [vmem:[#allocation2 + $0x70] sm:$0xff]
    %v913 = vld [vmem:[#allocation2 + $0x78] sm:$0xff]
    %v914 = vld [vmem:[#allocation2 + $0x80] sm:$0xff]
    %v915 = vld [vmem:[#allocation2 + $0x88] sm:$0xff]
    %v916 = vld [vmem:[#allocation2 + $0x90] sm:$0xff]
    %v917 = vld [vmem:[#allocation2 + $0x98] sm:$0xff]
    %v918 = vld [vmem:[#allocation2 + $0xa0] sm:$0xff]
    %v919 = vld [vmem:[#allocation2 + $0xa8] sm:$0xff]
    %v920 = vld [vmem:[#allocation2 + $0xb0] sm:$0xff]
    %v921 = vld [vmem:[#allocation2 + $0xb8] sm:$0xff]
    %v922 = vld [vmem:[#allocation2 + $0xc0] sm:$0xff]
    %v923 = vld [vmem:[#allocation2 + $0xc8] sm:$0xff]
    %v924 = vld [vmem:[#allocation2 + $0xd0] sm:$0xff]
    %v925 = vld [vmem:[#allocation2 + $0xd8] sm:$0xff]
    %v926 = vld [vmem:[#allocation2 + $0xe0] sm:$0xff]
    %v927 = vld [vmem:[#allocation2 + $0xe8] sm:$0xff]
    %v928 = vld [vmem:[#allocation2 + $0xf0] sm:$0xff]
    %v929 = vld [vmem:[#allocation2 + $0xf8] sm:$0xff]
    %v930 = vld [vmem:[#allocation2 + $0x100] sm:$0xff]
    %v931 = vld [vmem:[#allocation2 + $0x108] sm:$0xff]
    %v932 = vld [vmem:[#allocation2 + $0x110] sm:$0xff]
    %v933 = vld [vmem:[#allocation2 + $0x118] sm:$0xff]
    %v934 = vld [vmem:[#allocation2 + $0x120] sm:$0xff]
    %v935 = vld [vmem:[#allocation2 + $0x128] sm:$0xff]
    %v936 = vld [vmem:[#allocation2 + $0x130] sm:$0xff]
    %v937 = vld [vmem:[#allocation2 + $0x138] sm:$0xff]
    %v938 = vld [vmem:[#allocation2 + $0x140] sm:$0xff]
    %v939 = vld [vmem:[#allocation2 + $0x148] sm:$0xff]
    %v940 = vld [vmem:[#allocation2 + $0x150] sm:$0xff]
    %v941 = vld [vmem:[#allocation2 + $0x158] sm:$0xff]
    %v942 = vld [vmem:[#allocation2 + $0x160] sm:$0xff]
    %v943 = vld [vmem:[#allocation2 + $0x168] sm:$0xff]
    %v944 = vld [vmem:[#allocation2 + $0x170] sm:$0xff]
    %v945 = vld [vmem:[#allocation2 + $0x178] sm:$0xff]
    %v946 = vld [vmem:[#allocation2 + $0x180] sm:$0xff]
    %v947 = vld [vmem:[#allocation2 + $0x188] sm:$0xff]
    %v948 = vld [vmem:[#allocation2 + $0x190] sm:$0xff]
    %v949 = vld [vmem:[#allocation2 + $0x198] sm:$0xff]
    %v950 = vld [vmem:[#allocation2 + $0x1a0] sm:$0xff]
    %v951 = vld [vmem:[#allocation2 + $0x1a8] sm:$0xff]
    %v952 = vld [vmem:[#allocation2 + $0x1b0] sm:$0xff]
    %v953 = vld [vmem:[#allocation2 + $0x1b8] sm:$0xff]
    %v954 = vld [vmem:[#allocation2 + $0x1c0] sm:$0xff]
    %v955 = vld [vmem:[#allocation2 + $0x1c8] sm:$0xff]
    %v956 = vld [vmem:[#allocation2 + $0x1d0] sm:$0xff]
    %v957 = vld [vmem:[#allocation2 + $0x1d8] sm:$0xff]
    %v958 = vld [vmem:[#allocation2 + $0x1e0] sm:$0xff]
    %v959 = vld [vmem:[#allocation2 + $0x1e8] sm:$0xff]
    %v960 = vld [vmem:[#allocation2 + $0x1f0] sm:$0xff]
    %v961 = vld [vmem:[#allocation2 + $0x1f8] sm:$0xff]
    %v962 = vld [vmem:[%s2] sm:$0x1]
    %v964 = vlaneseq
    %v965 = vshrl.u32 %v964, 7
    %v966 = vsub.s32 0, %v965
    %v967 = vrot.slane %v962, %v966
    %v969 = vadd.f32 %v898, %v967
    %v970 = vadd.f32 %v899, %v967
    %v971 = vadd.f32 %v900, %v967
    %v972 = vadd.f32 %v901, %v967
    %v973 = vadd.f32 %v902, %v967
    %v974 = vadd.f32 %v903, %v967
    %v975 = vadd.f32 %v904, %v967
    %v976 = vadd.f32 %v905, %v967
    %v977 = vadd.f32 %v906, %v967
    %v978 = vadd.f32 %v907, %v967
    %v979 = vadd.f32 %v908, %v967
    %v980 = vadd.f32 %v909, %v967
    %v981 = vadd.f32 %v910, %v967
    %v982 = vadd.f32 %v911, %v967
    %v983 = vadd.f32 %v912, %v967
    %v984 = vadd.f32 %v913, %v967
    %v985 = vadd.f32 %v914, %v967
    %v986 = vadd.f32 %v915, %v967
    %v987 = vadd.f32 %v916, %v967
    %v988 = vadd.f32 %v917, %v967
    %v989 = vadd.f32 %v918, %v967
    %v990 = vadd.f32 %v919, %v967
    %v991 = vadd.f32 %v920, %v967
    %v992 = vadd.f32 %v921, %v967
    %v993 = vadd.f32 %v922, %v967
    %v994 = vadd.f32 %v923, %v967
    %v995 = vadd.f32 %v924, %v967
    %v996 = vadd.f32 %v925, %v967
    %v997 = vadd.f32 %v926, %v967
    %v998 = vadd.f32 %v927, %v967
    %v999 = vadd.f32 %v928, %v967
    %v1000 = vadd.f32 %v929, %v967
    %v1001 = vadd.f32 %v930, %v967
    %v1002 = vadd.f32 %v931, %v967
    %v1003 = vadd.f32 %v932, %v967
    %v1004 = vadd.f32 %v933, %v967
    %v1005 = vadd.f32 %v934, %v967
    %v1006 = vadd.f32 %v935, %v967
    %v1007 = vadd.f32 %v936, %v967
    %v1008 = vadd.f32 %v937, %v967
    %v1009 = vadd.f32 %v938, %v967
    %v1010 = vadd.f32 %v939, %v967
    %v1011 = vadd.f32 %v940, %v967
    %v1012 = vadd.f32 %v941, %v967
    %v1013 = vadd.f32 %v942, %v967
    %v1014 = vadd.f32 %v943, %v967
    %v1015 = vadd.f32 %v944, %v967
    %v1016 = vadd.f32 %v945, %v967
    %v1017 = vadd.f32 %v946, %v967
    %v1018 = vadd.f32 %v947, %v967
    %v1019 = vadd.f32 %v948, %v967
    %v1020 = vadd.f32 %v949, %v967
    %v1021 = vadd.f32 %v950, %v967
    %v1022 = vadd.f32 %v951, %v967
    %v1023 = vadd.f32 %v952, %v967
    %v1024 = vadd.f32 %v953, %v967
    %v1025 = vadd.f32 %v954, %v967
    %v1026 = vadd.f32 %v955, %v967
    %v1027 = vadd.f32 %v956, %v967
    %v1028 = vadd.f32 %v957, %v967
    %v1029 = vadd.f32 %v958, %v967
    %v1030 = vadd.f32 %v959, %v967
    %v1031 = vadd.f32 %v960, %v967
    %v1032 = vadd.f32 %v961, %v967
    %1033 = vst.msk [vmem:[%s3] sm:$0xff] %vm830, %v969
    %1034 = vst.msk [vmem:[%s3 + $0x8] sm:$0xff] %vm830, %v970
    %1035 = vst.msk [vmem:[%s3 + $0x10] sm:$0xff] %vm830, %v971
    %1036 = vst.msk [vmem:[%s3 + $0x18] sm:$0xff] %vm830, %v972
    %1037 = vst.msk [vmem:[%s3 + $0x20] sm:$0xff] %vm830, %v973
    %1038 = vst.msk [vmem:[%s3 + $0x28] sm:$0xff] %vm830, %v974
    %1039 = vst.msk [vmem:[%s3 + $0x30] sm:$0xff] %vm830, %v975
    %1040 = vst.msk [vmem:[%s3 + $0x38] sm:$0xff] %vm830, %v976
    %1041 = vst.msk [vmem:[%s3 + $0x40] sm:$0xff] %vm830, %v977
    %1042 = vst.msk [vmem:[%s3 + $0x48] sm:$0xff] %vm830, %v978
    %1043 = vst.msk [vmem:[%s3 + $0x50] sm:$0xff] %vm830, %v979
    %1044 = vst.msk [vmem:[%s3 + $0x58] sm:$0xff] %vm830, %v980
    %1045 = vst.msk [vmem:[%s3 + $0x60] sm:$0xff] %vm830, %v981
    %1046 = vst.msk [vmem:[%s3 + $0x68] sm:$0xff] %vm830, %v982
    %1047 = vst.msk [vmem:[%s3 + $0x70] sm:$0xff] %vm830, %v983
    %1048 = vst.msk [vmem:[%s3 + $0x78] sm:$0xff] %vm830, %v984
    %1049 = vst.msk [vmem:[%s3 + $0x80] sm:$0xff] %vm830, %v985
    %1050 = vst.msk [vmem:[%s3 + $0x88] sm:$0xff] %vm830, %v986
    %1051 = vst.msk [vmem:[%s3 + $0x90] sm:$0xff] %vm830, %v987
    %1052 = vst.msk [vmem:[%s3 + $0x98] sm:$0xff] %vm830, %v988
    %1053 = vst.msk [vmem:[%s3 + $0xa0] sm:$0xff] %vm830, %v989
    %1054 = vst.msk [vmem:[%s3 + $0xa8] sm:$0xff] %vm830, %v990
    %1055 = vst.msk [vmem:[%s3 + $0xb0] sm:$0xff] %vm830, %v991
    %1056 = vst.msk [vmem:[%s3 + $0xb8] sm:$0xff] %vm830, %v992
    %1057 = vst.msk [vmem:[%s3 + $0xc0] sm:$0xff] %vm830, %v993
    %1058 = vst.msk [vmem:[%s3 + $0xc8] sm:$0xff] %vm830, %v994
    %1059 = vst.msk [vmem:[%s3 + $0xd0] sm:$0xff] %vm830, %v995
    %1060 = vst.msk [vmem:[%s3 + $0xd8] sm:$0xff] %vm830, %v996
    %1061 = vst.msk [vmem:[%s3 + $0xe0] sm:$0xff] %vm830, %v997
    %1062 = vst.msk [vmem:[%s3 + $0xe8] sm:$0xff] %vm830, %v998
    %1063 = vst.msk [vmem:[%s3 + $0xf0] sm:$0xff] %vm830, %v999
    %1064 = vst.msk [vmem:[%s3 + $0xf8] sm:$0xff] %vm830, %v1000
    %1065 = vst.msk [vmem:[%s3 + $0x100] sm:$0xff] %vm830, %v1001
    %1066 = vst.msk [vmem:[%s3 + $0x108] sm:$0xff] %vm830, %v1002
    %1067 = vst.msk [vmem:[%s3 + $0x110] sm:$0xff] %vm830, %v1003
    %1068 = vst.msk [vmem:[%s3 + $0x118] sm:$0xff] %vm830, %v1004
    %1069 = vst.msk [vmem:[%s3 + $0x120] sm:$0xff] %vm830, %v1005
    %1070 = vst.msk [vmem:[%s3 + $0x128] sm:$0xff] %vm830, %v1006
    %1071 = vst.msk [vmem:[%s3 + $0x130] sm:$0xff] %vm830, %v1007
    %1072 = vst.msk [vmem:[%s3 + $0x138] sm:$0xff] %vm830, %v1008
    %1073 = vst.msk [vmem:[%s3 + $0x140] sm:$0xff] %vm830, %v1009
    %1074 = vst.msk [vmem:[%s3 + $0x148] sm:$0xff] %vm830, %v1010
    %1075 = vst.msk [vmem:[%s3 + $0x150] sm:$0xff] %vm830, %v1011
    %1076 = vst.msk [vmem:[%s3 + $0x158] sm:$0xff] %vm830, %v1012
    %1077 = vst.msk [vmem:[%s3 + $0x160] sm:$0xff] %vm830, %v1013
    %1078 = vst.msk [vmem:[%s3 + $0x168] sm:$0xff] %vm830, %v1014
    %1079 = vst.msk [vmem:[%s3 + $0x170] sm:$0xff] %vm830, %v1015
    %1080 = vst.msk [vmem:[%s3 + $0x178] sm:$0xff] %vm830, %v1016
    %1081 = vst.msk [vmem:[%s3 + $0x180] sm:$0xff] %vm830, %v1017
    %1082 = vst.msk [vmem:[%s3 + $0x188] sm:$0xff] %vm830, %v1018
    %1083 = vst.msk [vmem:[%s3 + $0x190] sm:$0xff] %vm830, %v1019
    %1084 = vst.msk [vmem:[%s3 + $0x198] sm:$0xff] %vm830, %v1020
    %1085 = vst.msk [vmem:[%s3 + $0x1a0] sm:$0xff] %vm830, %v1021
    %1086 = vst.msk [vmem:[%s3 + $0x1a8] sm:$0xff] %vm830, %v1022
    %1087 = vst.msk [vmem:[%s3 + $0x1b0] sm:$0xff] %vm830, %v1023
    %1088 = vst.msk [vmem:[%s3 + $0x1b8] sm:$0xff] %vm830, %v1024
    %1089 = vst.msk [vmem:[%s3 + $0x1c0] sm:$0xff] %vm830, %v1025
    %1090 = vst.msk [vmem:[%s3 + $0x1c8] sm:$0xff] %vm830, %v1026
    %1091 = vst.msk [vmem:[%s3 + $0x1d0] sm:$0xff] %vm830, %v1027
    %1092 = vst.msk [vmem:[%s3 + $0x1d8] sm:$0xff] %vm830, %v1028
    %1093 = vst.msk [vmem:[%s3 + $0x1e0] sm:$0xff] %vm830, %v1029
    %1094 = vst.msk [vmem:[%s3 + $0x1e8] sm:$0xff] %vm830, %v1030
    %1095 = vst.msk [vmem:[%s3 + $0x1f0] sm:$0xff] %vm830, %v1031
    %1096 = vst.msk [vmem:[%s3 + $0x1f8] sm:$0xff] %vm830, %v1032
  $region21: #{joint_model_apply.35} parent=0 // pred_fallthru
    _
  // Predicated region
  $region22: #{joint_model_apply.35} parent=0 // pred_check
    _
  $region23: #{joint_model_apply.35} parent=0 // pred_check_branch
    %1098 = sbr.rel (0) target = $region25
  $region24: #{joint_model_apply.35} parent=0 // pred_region
    _
  $region25: #{joint_model_apply.35} parent=0 // pred_fallthru
    _
  // Predicated region
  $region26: #{joint_model_apply.35} parent=0 // pred_check
    _
  $region27: #{joint_model_apply.35} parent=0 // pred_check_branch
    %1100 = sbr.rel (0) target = $region29
  $region28: #{joint_model_apply.35} parent=0 // pred_region
    _
  $region29: #{joint_model_apply.35} parent=0 // pred_fallthru
    _

// kernel: joint_model_apply.36
$region0: #{joint_model_apply.36}
  #allocation0 [shape = 'u32[]', space=smem, size = 0x4, offset = 0x4, fixed_abs, tag = 'smem constant byte address 0x4 - core index']
  #allocation1 [shape = 'u32[144,128]{1,0:T(1,128)}', space=vmem, size = 0x12000, scoped, tag = 'internal scratch']
  #allocation2 [shape = 'f32[256,8]{1,0:T(8,128)}', space=vmem, size = 0x20000, scoped, tag = 'scratch operand']
  %s0 = inlined_call_operand.vmem [shape: bf16[256,16], index: 0, kind: input, shape index: {}]
  %s1 = inlined_call_operand.vmem [shape: bf16[16,8], index: 1, kind: input, shape index: {}]
  %s2 = inlined_call_operand.vmem [shape: f32[1,8], index: 2, kind: input, shape index: {}]
  %s3 = inlined_call_operand.vmem [shape: f32[256,8], index: 3, kind: output, shape index: {}]
  %s4 = sld [smem:[#allocation0]]
  $region30: #{joint_model_apply.36} parent=0
    _
  %s6 = ssub.s32 1, %s4
  %s7 = scalar_select 0, %s6, %s4
  // Predicated region
  $region2: #{joint_model_apply.36} parent=0 // pred_check
    _
  $region3: #{joint_model_apply.36} parent=0 // pred_check_branch
    %9 = sbr.rel (0) target = $region5
  $region4: #{joint_model_apply.36} parent=0 // pred_region
    _
  $region5: #{joint_model_apply.36} parent=0 // pred_fallthru
    _
  // Predicated region
  $region6: #{joint_model_apply.36} parent=0 // pred_check
    _
  $region7: #{joint_model_apply.36} parent=0 // pred_check_branch
    %11 = sbr.rel (0) target = $region9
  $region8: #{joint_model_apply.36} parent=0 // pred_region
    _
  $region9: #{joint_model_apply.36} parent=0 // pred_fallthru
    _
  // Predicated region
  $region10: #{joint_model_apply.36} parent=0 // pred_check
    _
  $region11: #{joint_model_apply.36} parent=0 // pred_check_branch
    %13 = sbr.rel (0) target = $region13
  $region12: #{joint_model_apply.36} parent=0 // pred_region
    _
  $region13: #{joint_model_apply.36} parent=0 // pred_fallthru
    _
  %p15 = scmp.eq.s32.totalorder 0, 0
  // Predicated region
  $region14: #{joint_model_apply.36} parent=0 // pred_check
    %p16 = pneg %p15
  $region15: #{joint_model_apply.36} parent=0 // pred_check_branch
    %18 = sbr.rel (%p16) target = $region17
  $region16: #{joint_model_apply.36} parent=0 // pred_region
    %vm19 = vcmask 64512
    %20 = vst.msk [vmem:[#allocation2] sm:$0xff] %vm19, 0.0
    %21 = vst.msk [vmem:[#allocation2 + $0x8] sm:$0xff] %vm19, 0.0
    %22 = vst.msk [vmem:[#allocation2 + $0x10] sm:$0xff] %vm19, 0.0
    %23 = vst.msk [vmem:[#allocation2 + $0x18] sm:$0xff] %vm19, 0.0
    %24 = vst.msk [vmem:[#allocation2 + $0x20] sm:$0xff] %vm19, 0.0
    %25 = vst.msk [vmem:[#allocation2 + $0x28] sm:$0xff] %vm19, 0.0
    %26 = vst.msk [vmem:[#allocation2 + $0x30] sm:$0xff] %vm19, 0.0
    %27 = vst.msk [vmem:[#allocation2 + $0x38] sm:$0xff] %vm19, 0.0
    %28 = vst.msk [vmem:[#allocation2 + $0x40] sm:$0xff] %vm19, 0.0
    %29 = vst.msk [vmem:[#allocation2 + $0x48] sm:$0xff] %vm19, 0.0
    %30 = vst.msk [vmem:[#allocation2 + $0x50] sm:$0xff] %vm19, 0.0
    %31 = vst.msk [vmem:[#allocation2 + $0x58] sm:$0xff] %vm19, 0.0
    %32 = vst.msk [vmem:[#allocation2 + $0x60] sm:$0xff] %vm19, 0.0
    %33 = vst.msk [vmem:[#allocation2 + $0x68] sm:$0xff] %vm19, 0.0
    %34 = vst.msk [vmem:[#allocation2 + $0x70] sm:$0xff] %vm19, 0.0
    %35 = vst.msk [vmem:[#allocation2 + $0x78] sm:$0xff] %vm19, 0.0
    %36 = vst.msk [vmem:[#allocation2 + $0x80] sm:$0xff] %vm19, 0.0
    %37 = vst.msk [vmem:[#allocation2 + $0x88] sm:$0xff] %vm19, 0.0
    %38 = vst.msk [vmem:[#allocation2 + $0x90] sm:$0xff] %vm19, 0.0
    %39 = vst.msk [vmem:[#allocation2 + $0x98] sm:$0xff] %vm19, 0.0
    %40 = vst.msk [vmem:[#allocation2 + $0xa0] sm:$0xff] %vm19, 0.0
    %41 = vst.msk [vmem:[#allocation2 + $0xa8] sm:$0xff] %vm19, 0.0
    %42 = vst.msk [vmem:[#allocation2 + $0xb0] sm:$0xff] %vm19, 0.0
    %43 = vst.msk [vmem:[#allocation2 + $0xb8] sm:$0xff] %vm19, 0.0
    %44 = vst.msk [vmem:[#allocation2 + $0xc0] sm:$0xff] %vm19, 0.0
    %45 = vst.msk [vmem:[#allocation2 + $0xc8] sm:$0xff] %vm19, 0.0
    %46 = vst.msk [vmem:[#allocation2 + $0xd0] sm:$0xff] %vm19, 0.0
    %47 = vst.msk [vmem:[#allocation2 + $0xd8] sm:$0xff] %vm19, 0.0
    %48 = vst.msk [vmem:[#allocation2 + $0xe0] sm:$0xff] %vm19, 0.0
    %49 = vst.msk [vmem:[#allocation2 + $0xe8] sm:$0xff] %vm19, 0.0
    %50 = vst.msk [vmem:[#allocation2 + $0xf0] sm:$0xff] %vm19, 0.0
    %51 = vst.msk [vmem:[#allocation2 + $0xf8] sm:$0xff] %vm19, 0.0
  $region17: #{joint_model_apply.36} parent=0 // pred_fallthru
    _
  %v52 = vld [vmem:[#allocation2] sm:$0xff]
  %v53 = vld [vmem:[#allocation2 + $0x8] sm:$0xff]
  %v54 = vld [vmem:[#allocation2 + $0x10] sm:$0xff]
  %v55 = vld [vmem:[#allocation2 + $0x18] sm:$0xff]
  %v56 = vld [vmem:[#allocation2 + $0x20] sm:$0xff]
  %v57 = vld [vmem:[#allocation2 + $0x28] sm:$0xff]
  %v58 = vld [vmem:[#allocation2 + $0x30] sm:$0xff]
  %v59 = vld [vmem:[#allocation2 + $0x38] sm:$0xff]
  %v60 = vld [vmem:[#allocation2 + $0x40] sm:$0xff]
  %v61 = vld [vmem:[#allocation2 + $0x48] sm:$0xff]
  %v62 = vld [vmem:[#allocation2 + $0x50] sm:$0xff]
  %v63 = vld [vmem:[#allocation2 + $0x58] sm:$0xff]
  %v64 = vld [vmem:[#allocation2 + $0x60] sm:$0xff]
  %v65 = vld [vmem:[#allocation2 + $0x68] sm:$0xff]
  %v66 = vld [vmem:[#allocation2 + $0x70] sm:$0xff]
  %v67 = vld [vmem:[#allocation2 + $0x78] sm:$0xff]
  %v68 = vld [vmem:[#allocation2 + $0x80] sm:$0xff]
  %v69 = vld [vmem:[#allocation2 + $0x88] sm:$0xff]
  %v70 = vld [vmem:[#allocation2 + $0x90] sm:$0xff]
  %v71 = vld [vmem:[#allocation2 + $0x98] sm:$0xff]
  %v72 = vld [vmem:[#allocation2 + $0xa0] sm:$0xff]
  %v73 = vld [vmem:[#allocation2 + $0xa8] sm:$0xff]
  %v74 = vld [vmem:[#allocation2 + $0xb0] sm:$0xff]
  %v75 = vld [vmem:[#allocation2 + $0xb8] sm:$0xff]
  %v76 = vld [vmem:[#allocation2 + $0xc0] sm:$0xff]
  %v77 = vld [vmem:[#allocation2 + $0xc8] sm:$0xff]
  %v78 = vld [vmem:[#allocation2 + $0xd0] sm:$0xff]
  %v79 = vld [vmem:[#allocation2 + $0xd8] sm:$0xff]
  %v80 = vld [vmem:[#allocation2 + $0xe0] sm:$0xff]
  %v81 = vld [vmem:[#allocation2 + $0xe8] sm:$0xff]
  %v82 = vld [vmem:[#allocation2 + $0xf0] sm:$0xff]
  %v83 = vld [vmem:[#allocation2 + $0xf8] sm:$0xff]
  %v84 = vld [vmem:[%s0] sm:$0xf]
  %v85 = vld [vmem:[%s0 + $0x4] sm:$0xf]
  %v86 = vld [vmem:[%s0 + $0x8] sm:$0xf]
  %v87 = vld [vmem:[%s0 + $0xc] sm:$0xf]
  %v88 = vld [vmem:[%s0 + $0x10] sm:$0xf]
  %v89 = vld [vmem:[%s0 + $0x14] sm:$0xf]
  %v90 = vld [vmem:[%s0 + $0x18] sm:$0xf]
  %v91 = vld [vmem:[%s0 + $0x1c] sm:$0xf]
  %v92 = vld [vmem:[%s0 + $0x20] sm:$0xf]
  %v93 = vld [vmem:[%s0 + $0x24] sm:$0xf]
  %v94 = vld [vmem:[%s0 + $0x28] sm:$0xf]
  %v95 = vld [vmem:[%s0 + $0x2c] sm:$0xf]
  %v96 = vld [vmem:[%s0 + $0x30] sm:$0xf]
  %v97 = vld [vmem:[%s0 + $0x34] sm:$0xf]
  %v98 = vld [vmem:[%s0 + $0x38] sm:$0xf]
  %v99 = vld [vmem:[%s0 + $0x3c] sm:$0xf]
  %v100 = vld [vmem:[%s0 + $0x40] sm:$0xf]
  %v101 = vld [vmem:[%s0 + $0x44] sm:$0xf]
  %v102 = vld [vmem:[%s0 + $0x48] sm:$0xf]
  %v103 = vld [vmem:[%s0 + $0x4c] sm:$0xf]
  %v104 = vld [vmem:[%s0 + $0x50] sm:$0xf]
  %v105 = vld [vmem:[%s0 + $0x54] sm:$0xf]
  %v106 = vld [vmem:[%s0 + $0x58] sm:$0xf]
  %v107 = vld [vmem:[%s0 + $0x5c] sm:$0xf]
  %v108 = vld [vmem:[%s0 + $0x60] sm:$0xf]
  %v109 = vld [vmem:[%s0 + $0x64] sm:$0xf]
  %v110 = vld [vmem:[%s0 + $0x68] sm:$0xf]
  %v111 = vld [vmem:[%s0 + $0x6c] sm:$0xf]
  %v112 = vld [vmem:[%s0 + $0x70] sm:$0xf]
  %v113 = vld [vmem:[%s0 + $0x74] sm:$0xf]
  %v114 = vld [vmem:[%s0 + $0x78] sm:$0xf]
  %v115 = vld [vmem:[%s0 + $0x7c] sm:$0xf]
  %v116 = vld [vmem:[%s1] sm:$0xf]
  %v117 = vld [vmem:[%s1 + $0x4] sm:$0xf]
  %v150 = vunpack.c.l.b16 %v84
  %v151 = vunpack.c.l.b16 %v85
  %v152 = vunpack.c.l.b16 %v86
  %v153 = vunpack.c.l.b16 %v87
  %v154 = vunpack.c.l.b16 %v88
  %v155 = vunpack.c.l.b16 %v89
  %v156 = vunpack.c.l.b16 %v90
  %v157 = vunpack.c.l.b16 %v91
  %v158 = vunpack.c.l.b16 %v92
  %v159 = vunpack.c.l.b16 %v93
  %v160 = vunpack.c.l.b16 %v94
  %v161 = vunpack.c.l.b16 %v95
  %v162 = vunpack.c.l.b16 %v96
  %v163 = vunpack.c.l.b16 %v97
  %v164 = vunpack.c.l.b16 %v98
  %v165 = vunpack.c.l.b16 %v99
  %v166 = vunpack.c.l.b16 %v100
  %v167 = vunpack.c.l.b16 %v101
  %v168 = vunpack.c.l.b16 %v102
  %v169 = vunpack.c.l.b16 %v103
  %v170 = vunpack.c.l.b16 %v104
  %v171 = vunpack.c.l.b16 %v105
  %v172 = vunpack.c.l.b16 %v106
  %v173 = vunpack.c.l.b16 %v107
  %v174 = vunpack.c.l.b16 %v108
  %v175 = vunpack.c.l.b16 %v109
  %v176 = vunpack.c.l.b16 %v110
  %v177 = vunpack.c.l.b16 %v111
  %v178 = vunpack.c.l.b16 %v112
  %v179 = vunpack.c.l.b16 %v113
  %v180 = vunpack.c.l.b16 %v114
  %v181 = vunpack.c.l.b16 %v115
  %v182 = vpack.c.b16 %v151, %v150
  %v183 = vpack.c.b16 %v153, %v152
  %v184 = vpack.c.b16 %v155, %v154
  %v185 = vpack.c.b16 %v157, %v156
  %v186 = vpack.c.b16 %v159, %v158
  %v187 = vpack.c.b16 %v161, %v160
  %v188 = vpack.c.b16 %v163, %v162
  %v189 = vpack.c.b16 %v165, %v164
  %v190 = vpack.c.b16 %v167, %v166
  %v191 = vpack.c.b16 %v169, %v168
  %v192 = vpack.c.b16 %v171, %v170
  %v193 = vpack.c.b16 %v173, %v172
  %v194 = vpack.c.b16 %v175, %v174
  %v195 = vpack.c.b16 %v177, %v176
  %v196 = vpack.c.b16 %v179, %v178
  %v197 = vpack.c.b16 %v181, %v180
  %v200 = vunpack.c.l.b16 %v116
  %v201 = vunpack.c.l.b16 %v117
  %v202 = vpack.c.b16 %v201, %v200
  %vm204 = vcmask 130048
  %v206 = vsel %vm204, %v182, 0
  %v209 = vsel %vm204, %v183, 0
  %v212 = vsel %vm204, %v184, 0
  %v215 = vsel %vm204, %v185, 0
  %v218 = vsel %vm204, %v186, 0
  %v221 = vsel %vm204, %v187, 0
  %v224 = vsel %vm204, %v188, 0
  %v227 = vsel %vm204, %v189, 0
  %v230 = vsel %vm204, %v190, 0
  %v233 = vsel %vm204, %v191, 0
  %v236 = vsel %vm204, %v192, 0
  %v239 = vsel %vm204, %v193, 0
  %v242 = vsel %vm204, %v194, 0
  %v245 = vsel %vm204, %v195, 0
  %v248 = vsel %vm204, %v196, 0
  %v251 = vsel %vm204, %v197, 0
  %253 = vmatprep.subr.bf16.mxu0 0
  %254 = vmatpush1.bf16.msra.mxu0 0
  %255 = vmatprep.subr.bf16.mxu0 0
  %256 = vmatpush1.bf16.msra.mxu0 0
  %257 = vmatprep.subr.bf16.mxu0 0
  %258 = vmatpush1.bf16.msra.mxu0 0
  %259 = vmatprep.subr.bf16.mxu0 0
  %260 = vmatpush1.bf16.msra.mxu0 0
  %261 = vmatprep.subr.bf16.mxu0 0
  %262 = vmatpush1.bf16.msra.mxu0 0
  %263 = vmatprep.subr.bf16.mxu0 0
  %264 = vmatpush1.bf16.msra.mxu0 0
  %265 = vmatprep.subr.bf16.mxu0 0
  %266 = vmatpush1.bf16.msra.mxu0 0
  %267 = vmatprep.subr.bf16.mxu0 0
  %268 = vmatpush1.bf16.msra.mxu0 %v202
  %269 = vmatprep.subr.bf16.mxu0 0
  %270 = vmatpush2.bf16.msra.mxu0 0
  %271 = vmatprep.subr.bf16.mxu0 0
  %272 = vmatpush2.bf16.msra.mxu0 0
  %273 = vmatprep.subr.bf16.mxu0 0
  %274 = vmatpush2.bf16.msra.mxu0 0
  %275 = vmatprep.subr.bf16.mxu0 0
  %276 = vmatpush2.bf16.msra.mxu0 0
  %277 = vmatprep.subr.bf16.mxu0 0
  %278 = vmatpush2.bf16.msra.mxu0 0
  %279 = vmatprep.subr.bf16.mxu0 0
  %280 = vmatpush2.bf16.msra.mxu0 0
  %281 = vmatprep.subr.bf16.mxu0 0
  %282 = vmatpush2.bf16.msra.mxu0 0
  %283 = vmatprep.subr.bf16.mxu0 0
  %284 = vmatpush2.bf16.msra.mxu0 0
  %285 = vmatprep.mubr.bf16.mxu0 0
  %286 = vmatmul.mubr.bf16.gmra.mxu0 %v206
  %v287 = vpop.f32.mrf.mxu0
  %v288 = vadd.f32 0.0, %v287
  %v289 = vpop.f32.mrf.mxu0
  %v290 = vpop.f32.mrf.mxu0
  %v291 = vadd.f32 0.0, %v290
  %v292 = vpop.f32.mrf.mxu0
  %293 = vmatprep.mubr.bf16.mxu0 0
  %294 = vmatmul.mubr.bf16.gmra.mxu0 %v209
  %v295 = vpop.f32.mrf.mxu0
  %v296 = vadd.f32 0.0, %v295
  %v297 = vpop.f32.mrf.mxu0
  %v298 = vpop.f32.mrf.mxu0
  %v299 = vadd.f32 0.0, %v298
  %v300 = vpop.f32.mrf.mxu0
  %301 = vmatprep.mubr.bf16.mxu0 0
  %302 = vmatmul.mubr.bf16.gmra.mxu0 %v212
  %v303 = vpop.f32.mrf.mxu0
  %v304 = vadd.f32 0.0, %v303
  %v305 = vpop.f32.mrf.mxu0
  %v306 = vpop.f32.mrf.mxu0
  %v307 = vadd.f32 0.0, %v306
  %v308 = vpop.f32.mrf.mxu0
  %309 = vmatprep.mubr.bf16.mxu0 0
  %310 = vmatmul.mubr.bf16.gmra.mxu0 %v215
  %v311 = vpop.f32.mrf.mxu0
  %v312 = vadd.f32 0.0, %v311
  %v313 = vpop.f32.mrf.mxu0
  %v314 = vpop.f32.mrf.mxu0
  %v315 = vadd.f32 0.0, %v314
  %v316 = vpop.f32.mrf.mxu0
  %317 = vmatprep.mubr.bf16.mxu0 0
  %318 = vmatmul.mubr.bf16.gmra.mxu0 %v218
  %v319 = vpop.f32.mrf.mxu0
  %v320 = vadd.f32 0.0, %v319
  %v321 = vpop.f32.mrf.mxu0
  %v322 = vpop.f32.mrf.mxu0
  %v323 = vadd.f32 0.0, %v322
  %v324 = vpop.f32.mrf.mxu0
  %325 = vmatprep.mubr.bf16.mxu0 0
  %326 = vmatmul.mubr.bf16.gmra.mxu0 %v221
  %v327 = vpop.f32.mrf.mxu0
  %v328 = vadd.f32 0.0, %v327
  %v329 = vpop.f32.mrf.mxu0
  %v330 = vpop.f32.mrf.mxu0
  %v331 = vadd.f32 0.0, %v330
  %v332 = vpop.f32.mrf.mxu0
  %333 = vmatprep.mubr.bf16.mxu0 0
  %334 = vmatmul.mubr.bf16.gmra.mxu0 %v224
  %v335 = vpop.f32.mrf.mxu0
  %v336 = vadd.f32 0.0, %v335
  %v337 = vpop.f32.mrf.mxu0
  %v338 = vpop.f32.mrf.mxu0
  %v339 = vadd.f32 0.0, %v338
  %v340 = vpop.f32.mrf.mxu0
  %341 = vmatprep.mubr.bf16.mxu0 0
  %342 = vmatmul.mubr.bf16.gmra.mxu0 %v227
  %v343 = vpop.f32.mrf.mxu0
  %v344 = vadd.f32 0.0, %v343
  %v345 = vpop.f32.mrf.mxu0
  %v346 = vpop.f32.mrf.mxu0
  %v347 = vadd.f32 0.0, %v346
  %v348 = vpop.f32.mrf.mxu0
  %349 = vmatprep.mubr.bf16.mxu0 0
  %350 = vmatmul.mubr.bf16.gmra.mxu0 %v230
  %v351 = vpop.f32.mrf.mxu0
  %v352 = vadd.f32 0.0, %v351
  %v353 = vpop.f32.mrf.mxu0
  %v354 = vpop.f32.mrf.mxu0
  %v355 = vadd.f32 0.0, %v354
  %v356 = vpop.f32.mrf.mxu0
  %357 = vmatprep.mubr.bf16.mxu0 0
  %358 = vmatmul.mubr.bf16.gmra.mxu0 %v233
  %v359 = vpop.f32.mrf.mxu0
  %v360 = vadd.f32 0.0, %v359
  %v361 = vpop.f32.mrf.mxu0
  %v362 = vpop.f32.mrf.mxu0
  %v363 = vadd.f32 0.0, %v362
  %v364 = vpop.f32.mrf.mxu0
  %365 = vmatprep.mubr.bf16.mxu0 0
  %366 = vmatmul.mubr.bf16.gmra.mxu0 %v236
  %v367 = vpop.f32.mrf.mxu0
  %v368 = vadd.f32 0.0, %v367
  %v369 = vpop.f32.mrf.mxu0
  %v370 = vpop.f32.mrf.mxu0
  %v371 = vadd.f32 0.0, %v370
  %v372 = vpop.f32.mrf.mxu0
  %373 = vmatprep.mubr.bf16.mxu0 0
  %374 = vmatmul.mubr.bf16.gmra.mxu0 %v239
  %v375 = vpop.f32.mrf.mxu0
  %v376 = vadd.f32 0.0, %v375
  %v377 = vpop.f32.mrf.mxu0
  %v378 = vpop.f32.mrf.mxu0
  %v379 = vadd.f32 0.0, %v378
  %v380 = vpop.f32.mrf.mxu0
  %381 = vmatprep.mubr.bf16.mxu0 0
  %382 = vmatmul.mubr.bf16.gmra.mxu0 %v242
  %v383 = vpop.f32.mrf.mxu0
  %v384 = vadd.f32 0.0, %v383
  %v385 = vpop.f32.mrf.mxu0
  %v386 = vpop.f32.mrf.mxu0
  %v387 = vadd.f32 0.0, %v386
  %v388 = vpop.f32.mrf.mxu0
  %389 = vmatprep.mubr.bf16.mxu0 0
  %390 = vmatmul.mubr.bf16.gmra.mxu0 %v245
  %v391 = vpop.f32.mrf.mxu0
  %v392 = vadd.f32 0.0, %v391
  %v393 = vpop.f32.mrf.mxu0
  %v394 = vpop.f32.mrf.mxu0
  %v395 = vadd.f32 0.0, %v394
  %v396 = vpop.f32.mrf.mxu0
  %397 = vmatprep.mubr.bf16.mxu0 0
  %398 = vmatmul.mubr.bf16.gmra.mxu0 %v248
  %v399 = vpop.f32.mrf.mxu0
  %v400 = vadd.f32 0.0, %v399
  %v401 = vpop.f32.mrf.mxu0
  %v402 = vpop.f32.mrf.mxu0
  %v403 = vadd.f32 0.0, %v402
  %v404 = vpop.f32.mrf.mxu0
  %405 = vmatprep.mubr.bf16.mxu0 0
  %406 = vmatmul.mubr.bf16.gmra.mxu0 %v251
  %v407 = vpop.f32.mrf.mxu0
  %v408 = vadd.f32 0.0, %v407
  %v409 = vpop.f32.mrf.mxu0
  %v410 = vpop.f32.mrf.mxu0
  %v411 = vadd.f32 0.0, %v410
  %v412 = vpop.f32.mrf.mxu0
  %413 = vdwg.mxu0
  %v414 = vadd.f32 %v52, %v288
  %v415 = vadd.f32 %v53, %v291
  %v416 = vadd.f32 %v54, %v296
  %v417 = vadd.f32 %v55, %v299
  %v418 = vadd.f32 %v56, %v304
  %v419 = vadd.f32 %v57, %v307
  %v420 = vadd.f32 %v58, %v312
  %v421 = vadd.f32 %v59, %v315
  %v422 = vadd.f32 %v60, %v320
  %v423 = vadd.f32 %v61, %v323
  %v424 = vadd.f32 %v62, %v328
  %v425 = vadd.f32 %v63, %v331
  %v426 = vadd.f32 %v64, %v336
  %v427 = vadd.f32 %v65, %v339
  %v428 = vadd.f32 %v66, %v344
  %v429 = vadd.f32 %v67, %v347
  %v430 = vadd.f32 %v68, %v352
  %v431 = vadd.f32 %v69, %v355
  %v432 = vadd.f32 %v70, %v360
  %v433 = vadd.f32 %v71, %v363
  %v434 = vadd.f32 %v72, %v368
  %v435 = vadd.f32 %v73, %v371
  %v436 = vadd.f32 %v74, %v376
  %v437 = vadd.f32 %v75, %v379
  %v438 = vadd.f32 %v76, %v384
  %v439 = vadd.f32 %v77, %v387
  %v440 = vadd.f32 %v78, %v392
  %v441 = vadd.f32 %v79, %v395
  %v442 = vadd.f32 %v80, %v400
  %v443 = vadd.f32 %v81, %v403
  %v444 = vadd.f32 %v82, %v408
  %v445 = vadd.f32 %v83, %v411
  %vm446 = vcmask 64512
  %447 = vst.msk [vmem:[#allocation2] sm:$0xff] %vm446, %v414
  %448 = vst.msk [vmem:[#allocation2 + $0x8] sm:$0xff] %vm446, %v415
  %449 = vst.msk [vmem:[#allocation2 + $0x10] sm:$0xff] %vm446, %v416
  %450 = vst.msk [vmem:[#allocation2 + $0x18] sm:$0xff] %vm446, %v417
  %451 = vst.msk [vmem:[#allocation2 + $0x20] sm:$0xff] %vm446, %v418
  %452 = vst.msk [vmem:[#allocation2 + $0x28] sm:$0xff] %vm446, %v419
  %453 = vst.msk [vmem:[#allocation2 + $0x30] sm:$0xff] %vm446, %v420
  %454 = vst.msk [vmem:[#allocation2 + $0x38] sm:$0xff] %vm446, %v421
  %455 = vst.msk [vmem:[#allocation2 + $0x40] sm:$0xff] %vm446, %v422
  %456 = vst.msk [vmem:[#allocation2 + $0x48] sm:$0xff] %vm446, %v423
  %457 = vst.msk [vmem:[#allocation2 + $0x50] sm:$0xff] %vm446, %v424
  %458 = vst.msk [vmem:[#allocation2 + $0x58] sm:$0xff] %vm446, %v425
  %459 = vst.msk [vmem:[#allocation2 + $0x60] sm:$0xff] %vm446, %v426
  %460 = vst.msk [vmem:[#allocation2 + $0x68] sm:$0xff] %vm446, %v427
  %461 = vst.msk [vmem:[#allocation2 + $0x70] sm:$0xff] %vm446, %v428
  %462 = vst.msk [vmem:[#allocation2 + $0x78] sm:$0xff] %vm446, %v429
  %463 = vst.msk [vmem:[#allocation2 + $0x80] sm:$0xff] %vm446, %v430
  %464 = vst.msk [vmem:[#allocation2 + $0x88] sm:$0xff] %vm446, %v431
  %465 = vst.msk [vmem:[#allocation2 + $0x90] sm:$0xff] %vm446, %v432
  %466 = vst.msk [vmem:[#allocation2 + $0x98] sm:$0xff] %vm446, %v433
  %467 = vst.msk [vmem:[#allocation2 + $0xa0] sm:$0xff] %vm446, %v434
  %468 = vst.msk [vmem:[#allocation2 + $0xa8] sm:$0xff] %vm446, %v435
  %469 = vst.msk [vmem:[#allocation2 + $0xb0] sm:$0xff] %vm446, %v436
  %470 = vst.msk [vmem:[#allocation2 + $0xb8] sm:$0xff] %vm446, %v437
  %471 = vst.msk [vmem:[#allocation2 + $0xc0] sm:$0xff] %vm446, %v438
  %472 = vst.msk [vmem:[#allocation2 + $0xc8] sm:$0xff] %vm446, %v439
  %473 = vst.msk [vmem:[#allocation2 + $0xd0] sm:$0xff] %vm446, %v440
  %474 = vst.msk [vmem:[#allocation2 + $0xd8] sm:$0xff] %vm446, %v441
  %475 = vst.msk [vmem:[#allocation2 + $0xe0] sm:$0xff] %vm446, %v442
  %476 = vst.msk [vmem:[#allocation2 + $0xe8] sm:$0xff] %vm446, %v443
  %477 = vst.msk [vmem:[#allocation2 + $0xf0] sm:$0xff] %vm446, %v444
  %478 = vst.msk [vmem:[#allocation2 + $0xf8] sm:$0xff] %vm446, %v445
  // Predicated region
  $region18: #{joint_model_apply.36} parent=0 // pred_check
    %p479 = pneg %p15
  $region19: #{joint_model_apply.36} parent=0 // pred_check_branch
    %481 = sbr.rel (%p479) target = $region21
  $region20: #{joint_model_apply.36} parent=0 // pred_region
    %v482 = vld [vmem:[#allocation2] sm:$0xff]
    %v483 = vld [vmem:[#allocation2 + $0x8] sm:$0xff]
    %v484 = vld [vmem:[#allocation2 + $0x10] sm:$0xff]
    %v485 = vld [vmem:[#allocation2 + $0x18] sm:$0xff]
    %v486 = vld [vmem:[#allocation2 + $0x20] sm:$0xff]
    %v487 = vld [vmem:[#allocation2 + $0x28] sm:$0xff]
    %v488 = vld [vmem:[#allocation2 + $0x30] sm:$0xff]
    %v489 = vld [vmem:[#allocation2 + $0x38] sm:$0xff]
    %v490 = vld [vmem:[#allocation2 + $0x40] sm:$0xff]
    %v491 = vld [vmem:[#allocation2 + $0x48] sm:$0xff]
    %v492 = vld [vmem:[#allocation2 + $0x50] sm:$0xff]
    %v493 = vld [vmem:[#allocation2 + $0x58] sm:$0xff]
    %v494 = vld [vmem:[#allocation2 + $0x60] sm:$0xff]
    %v495 = vld [vmem:[#allocation2 + $0x68] sm:$0xff]
    %v496 = vld [vmem:[#allocation2 + $0x70] sm:$0xff]
    %v497 = vld [vmem:[#allocation2 + $0x78] sm:$0xff]
    %v498 = vld [vmem:[#allocation2 + $0x80] sm:$0xff]
    %v499 = vld [vmem:[#allocation2 + $0x88] sm:$0xff]
    %v500 = vld [vmem:[#allocation2 + $0x90] sm:$0xff]
    %v501 = vld [vmem:[#allocation2 + $0x98] sm:$0xff]
    %v502 = vld [vmem:[#allocation2 + $0xa0] sm:$0xff]
    %v503 = vld [vmem:[#allocation2 + $0xa8] sm:$0xff]
    %v504 = vld [vmem:[#allocation2 + $0xb0] sm:$0xff]
    %v505 = vld [vmem:[#allocation2 + $0xb8] sm:$0xff]
    %v506 = vld [vmem:[#allocation2 + $0xc0] sm:$0xff]
    %v507 = vld [vmem:[#allocation2 + $0xc8] sm:$0xff]
    %v508 = vld [vmem:[#allocation2 + $0xd0] sm:$0xff]
    %v509 = vld [vmem:[#allocation2 + $0xd8] sm:$0xff]
    %v510 = vld [vmem:[#allocation2 + $0xe0] sm:$0xff]
    %v511 = vld [vmem:[#allocation2 + $0xe8] sm:$0xff]
    %v512 = vld [vmem:[#allocation2 + $0xf0] sm:$0xff]
    %v513 = vld [vmem:[#allocation2 + $0xf8] sm:$0xff]
    %v514 = vld [vmem:[%s2] sm:$0x1]
    %v516 = vlaneseq
    %v517 = vshrl.u32 %v516, 7
    %v518 = vsub.s32 0, %v517
    %v519 = vrot.slane %v514, %v518
    %v521 = vadd.f32 %v482, %v519
    %v522 = vadd.f32 %v483, %v519
    %v523 = vadd.f32 %v484, %v519
    %v524 = vadd.f32 %v485, %v519
    %v525 = vadd.f32 %v486, %v519
    %v526 = vadd.f32 %v487, %v519
    %v527 = vadd.f32 %v488, %v519
    %v528 = vadd.f32 %v489, %v519
    %v529 = vadd.f32 %v490, %v519
    %v530 = vadd.f32 %v491, %v519
    %v531 = vadd.f32 %v492, %v519
    %v532 = vadd.f32 %v493, %v519
    %v533 = vadd.f32 %v494, %v519
    %v534 = vadd.f32 %v495, %v519
    %v535 = vadd.f32 %v496, %v519
    %v536 = vadd.f32 %v497, %v519
    %v537 = vadd.f32 %v498, %v519
    %v538 = vadd.f32 %v499, %v519
    %v539 = vadd.f32 %v500, %v519
    %v540 = vadd.f32 %v501, %v519
    %v541 = vadd.f32 %v502, %v519
    %v542 = vadd.f32 %v503, %v519
    %v543 = vadd.f32 %v504, %v519
    %v544 = vadd.f32 %v505, %v519
    %v545 = vadd.f32 %v506, %v519
    %v546 = vadd.f32 %v507, %v519
    %v547 = vadd.f32 %v508, %v519
    %v548 = vadd.f32 %v509, %v519
    %v549 = vadd.f32 %v510, %v519
    %v550 = vadd.f32 %v511, %v519
    %v551 = vadd.f32 %v512, %v519
    %v552 = vadd.f32 %v513, %v519
    %553 = vst.msk [vmem:[%s3] sm:$0xff] %vm446, %v521
    %554 = vst.msk [vmem:[%s3 + $0x8] sm:$0xff] %vm446, %v522
    %555 = vst.msk [vmem:[%s3 + $0x10] sm:$0xff] %vm446, %v523
    %556 = vst.msk [vmem:[%s3 + $0x18] sm:$0xff] %vm446, %v524
    %557 = vst.msk [vmem:[%s3 + $0x20] sm:$0xff] %vm446, %v525
    %558 = vst.msk [vmem:[%s3 + $0x28] sm:$0xff] %vm446, %v526
    %559 = vst.msk [vmem:[%s3 + $0x30] sm:$0xff] %vm446, %v527
    %560 = vst.msk [vmem:[%s3 + $0x38] sm:$0xff] %vm446, %v528
    %561 = vst.msk [vmem:[%s3 + $0x40] sm:$0xff] %vm446, %v529
    %562 = vst.msk [vmem:[%s3 + $0x48] sm:$0xff] %vm446, %v530
    %563 = vst.msk [vmem:[%s3 + $0x50] sm:$0xff] %vm446, %v531
    %564 = vst.msk [vmem:[%s3 + $0x58] sm:$0xff] %vm446, %v532
    %565 = vst.msk [vmem:[%s3 + $0x60] sm:$0xff] %vm446, %v533
    %566 = vst.msk [vmem:[%s3 + $0x68] sm:$0xff] %vm446, %v534
    %567 = vst.msk [vmem:[%s3 + $0x70] sm:$0xff] %vm446, %v535
    %568 = vst.msk [vmem:[%s3 + $0x78] sm:$0xff] %vm446, %v536
    %569 = vst.msk [vmem:[%s3 + $0x80] sm:$0xff] %vm446, %v537
    %570 = vst.msk [vmem:[%s3 + $0x88] sm:$0xff] %vm446, %v538
    %571 = vst.msk [vmem:[%s3 + $0x90] sm:$0xff] %vm446, %v539
    %572 = vst.msk [vmem:[%s3 + $0x98] sm:$0xff] %vm446, %v540
    %573 = vst.msk [vmem:[%s3 + $0xa0] sm:$0xff] %vm446, %v541
    %574 = vst.msk [vmem:[%s3 + $0xa8] sm:$0xff] %vm446, %v542
    %575 = vst.msk [vmem:[%s3 + $0xb0] sm:$0xff] %vm446, %v543
    %576 = vst.msk [vmem:[%s3 + $0xb8] sm:$0xff] %vm446, %v544
    %577 = vst.msk [vmem:[%s3 + $0xc0] sm:$0xff] %vm446, %v545
    %578 = vst.msk [vmem:[%s3 + $0xc8] sm:$0xff] %vm446, %v546
    %579 = vst.msk [vmem:[%s3 + $0xd0] sm:$0xff] %vm446, %v547
    %580 = vst.msk [vmem:[%s3 + $0xd8] sm:$0xff] %vm446, %v548
    %581 = vst.msk [vmem:[%s3 + $0xe0] sm:$0xff] %vm446, %v549
    %582 = vst.msk [vmem:[%s3 + $0xe8] sm:$0xff] %vm446, %v550
    %583 = vst.msk [vmem:[%s3 + $0xf0] sm:$0xff] %vm446, %v551
    %584 = vst.msk [vmem:[%s3 + $0xf8] sm:$0xff] %vm446, %v552
  $region21: #{joint_model_apply.36} parent=0 // pred_fallthru
    _
  // Predicated region
  $region22: #{joint_model_apply.36} parent=0 // pred_check
    _
  $region23: #{joint_model_apply.36} parent=0 // pred_check_branch
    %586 = sbr.rel (0) target = $region25
  $region24: #{joint_model_apply.36} parent=0 // pred_region
    _
  $region25: #{joint_model_apply.36} parent=0 // pred_fallthru
    _
  // Predicated region
  $region26: #{joint_model_apply.36} parent=0 // pred_check
    _
  $region27: #{joint_model_apply.36} parent=0 // pred_check_branch
    %588 = sbr.rel (0) target = $region29
  $region28: #{joint_model_apply.36} parent=0 // pred_region
    _
  $region29: #{joint_model_apply.36} parent=0 // pred_fallthru
    _

// kernel: joint_model_apply.37
$region0: #{joint_model_apply.37}
  #allocation0 [shape = 'u32[]', space=smem, size = 0x4, offset = 0x4, fixed_abs, tag = 'smem constant byte address 0x4 - core index']
  #allocation1 [shape = 'u32[144,128]{1,0:T(1,128)}', space=vmem, size = 0x12000, scoped, tag = 'internal scratch']
  #allocation2 [shape = 'f32[128,8]{1,0:T(8,128)}', space=vmem, size = 0x10000, scoped, tag = 'scratch operand']
  %s0 = inlined_call_operand.vmem [shape: bf16[128,16], index: 0, kind: input, shape index: {}]
  %s1 = inlined_call_operand.vmem [shape: bf16[16,8], index: 1, kind: input, shape index: {}]
  %s2 = inlined_call_operand.vmem [shape: f32[1,8], index: 2, kind: input, shape index: {}]
  %s3 = inlined_call_operand.vmem [shape: f32[128,8], index: 3, kind: output, shape index: {}]
  %s4 = sld [smem:[#allocation0]]
  $region30: #{joint_model_apply.37} parent=0
    _
  %s6 = ssub.s32 1, %s4
  %s7 = scalar_select 0, %s6, %s4
  // Predicated region
  $region2: #{joint_model_apply.37} parent=0 // pred_check
    _
  $region3: #{joint_model_apply.37} parent=0 // pred_check_branch
    %9 = sbr.rel (0) target = $region5
  $region4: #{joint_model_apply.37} parent=0 // pred_region
    _
  $region5: #{joint_model_apply.37} parent=0 // pred_fallthru
    _
  // Predicated region
  $region6: #{joint_model_apply.37} parent=0 // pred_check
    _
  $region7: #{joint_model_apply.37} parent=0 // pred_check_branch
    %11 = sbr.rel (0) target = $region9
  $region8: #{joint_model_apply.37} parent=0 // pred_region
    _
  $region9: #{joint_model_apply.37} parent=0 // pred_fallthru
    _
  // Predicated region
  $region10: #{joint_model_apply.37} parent=0 // pred_check
    _
  $region11: #{joint_model_apply.37} parent=0 // pred_check_branch
    %13 = sbr.rel (0) target = $region13
  $region12: #{joint_model_apply.37} parent=0 // pred_region
    _
  $region13: #{joint_model_apply.37} parent=0 // pred_fallthru
    _
  %p15 = scmp.eq.s32.totalorder 0, 0
  // Predicated region
  $region14: #{joint_model_apply.37} parent=0 // pred_check
    %p16 = pneg %p15
  $region15: #{joint_model_apply.37} parent=0 // pred_check_branch
    %18 = sbr.rel (%p16) target = $region17
  $region16: #{joint_model_apply.37} parent=0 // pred_region
    %vm19 = vcmask 64512
    %20 = vst.msk [vmem:[#allocation2] sm:$0xff] %vm19, 0.0
    %21 = vst.msk [vmem:[#allocation2 + $0x8] sm:$0xff] %vm19, 0.0
    %22 = vst.msk [vmem:[#allocation2 + $0x10] sm:$0xff] %vm19, 0.0
    %23 = vst.msk [vmem:[#allocation2 + $0x18] sm:$0xff] %vm19, 0.0
    %24 = vst.msk [vmem:[#allocation2 + $0x20] sm:$0xff] %vm19, 0.0
    %25 = vst.msk [vmem:[#allocation2 + $0x28] sm:$0xff] %vm19, 0.0
    %26 = vst.msk [vmem:[#allocation2 + $0x30] sm:$0xff] %vm19, 0.0
    %27 = vst.msk [vmem:[#allocation2 + $0x38] sm:$0xff] %vm19, 0.0
    %28 = vst.msk [vmem:[#allocation2 + $0x40] sm:$0xff] %vm19, 0.0
    %29 = vst.msk [vmem:[#allocation2 + $0x48] sm:$0xff] %vm19, 0.0
    %30 = vst.msk [vmem:[#allocation2 + $0x50] sm:$0xff] %vm19, 0.0
    %31 = vst.msk [vmem:[#allocation2 + $0x58] sm:$0xff] %vm19, 0.0
    %32 = vst.msk [vmem:[#allocation2 + $0x60] sm:$0xff] %vm19, 0.0
    %33 = vst.msk [vmem:[#allocation2 + $0x68] sm:$0xff] %vm19, 0.0
    %34 = vst.msk [vmem:[#allocation2 + $0x70] sm:$0xff] %vm19, 0.0
    %35 = vst.msk [vmem:[#allocation2 + $0x78] sm:$0xff] %vm19, 0.0
  $region17: #{joint_model_apply.37} parent=0 // pred_fallthru
    _
  %v36 = vld [vmem:[#allocation2] sm:$0xff]
  %v37 = vld [vmem:[#allocation2 + $0x8] sm:$0xff]
  %v38 = vld [vmem:[#allocation2 + $0x10] sm:$0xff]
  %v39 = vld [vmem:[#allocation2 + $0x18] sm:$0xff]
  %v40 = vld [vmem:[#allocation2 + $0x20] sm:$0xff]
  %v41 = vld [vmem:[#allocation2 + $0x28] sm:$0xff]
  %v42 = vld [vmem:[#allocation2 + $0x30] sm:$0xff]
  %v43 = vld [vmem:[#allocation2 + $0x38] sm:$0xff]
  %v44 = vld [vmem:[#allocation2 + $0x40] sm:$0xff]
  %v45 = vld [vmem:[#allocation2 + $0x48] sm:$0xff]
  %v46 = vld [vmem:[#allocation2 + $0x50] sm:$0xff]
  %v47 = vld [vmem:[#allocation2 + $0x58] sm:$0xff]
  %v48 = vld [vmem:[#allocation2 + $0x60] sm:$0xff]
  %v49 = vld [vmem:[#allocation2 + $0x68] sm:$0xff]
  %v50 = vld [vmem:[#allocation2 + $0x70] sm:$0xff]
  %v51 = vld [vmem:[#allocation2 + $0x78] sm:$0xff]
  %v52 = vld [vmem:[%s0] sm:$0xf]
  %v53 = vld [vmem:[%s0 + $0x4] sm:$0xf]
  %v54 = vld [vmem:[%s0 + $0x8] sm:$0xf]
  %v55 = vld [vmem:[%s0 + $0xc] sm:$0xf]
  %v56 = vld [vmem:[%s0 + $0x10] sm:$0xf]
  %v57 = vld [vmem:[%s0 + $0x14] sm:$0xf]
  %v58 = vld [vmem:[%s0 + $0x18] sm:$0xf]
  %v59 = vld [vmem:[%s0 + $0x1c] sm:$0xf]
  %v60 = vld [vmem:[%s0 + $0x20] sm:$0xf]
  %v61 = vld [vmem:[%s0 + $0x24] sm:$0xf]
  %v62 = vld [vmem:[%s0 + $0x28] sm:$0xf]
  %v63 = vld [vmem:[%s0 + $0x2c] sm:$0xf]
  %v64 = vld [vmem:[%s0 + $0x30] sm:$0xf]
  %v65 = vld [vmem:[%s0 + $0x34] sm:$0xf]
  %v66 = vld [vmem:[%s0 + $0x38] sm:$0xf]
  %v67 = vld [vmem:[%s0 + $0x3c] sm:$0xf]
  %v68 = vld [vmem:[%s1] sm:$0xf]
  %v69 = vld [vmem:[%s1 + $0x4] sm:$0xf]
  %v86 = vunpack.c.l.b16 %v52
  %v87 = vunpack.c.l.b16 %v53
  %v88 = vunpack.c.l.b16 %v54
  %v89 = vunpack.c.l.b16 %v55
  %v90 = vunpack.c.l.b16 %v56
  %v91 = vunpack.c.l.b16 %v57
  %v92 = vunpack.c.l.b16 %v58
  %v93 = vunpack.c.l.b16 %v59
  %v94 = vunpack.c.l.b16 %v60
  %v95 = vunpack.c.l.b16 %v61
  %v96 = vunpack.c.l.b16 %v62
  %v97 = vunpack.c.l.b16 %v63
  %v98 = vunpack.c.l.b16 %v64
  %v99 = vunpack.c.l.b16 %v65
  %v100 = vunpack.c.l.b16 %v66
  %v101 = vunpack.c.l.b16 %v67
  %v102 = vpack.c.b16 %v87, %v86
  %v103 = vpack.c.b16 %v89, %v88
  %v104 = vpack.c.b16 %v91, %v90
  %v105 = vpack.c.b16 %v93, %v92
  %v106 = vpack.c.b16 %v95, %v94
  %v107 = vpack.c.b16 %v97, %v96
  %v108 = vpack.c.b16 %v99, %v98
  %v109 = vpack.c.b16 %v101, %v100
  %v112 = vunpack.c.l.b16 %v68
  %v113 = vunpack.c.l.b16 %v69
  %v114 = vpack.c.b16 %v113, %v112
  %vm116 = vcmask 130048
  %v118 = vsel %vm116, %v102, 0
  %v121 = vsel %vm116, %v103, 0
  %v124 = vsel %vm116, %v104, 0
  %v127 = vsel %vm116, %v105, 0
  %v130 = vsel %vm116, %v106, 0
  %v133 = vsel %vm116, %v107, 0
  %v136 = vsel %vm116, %v108, 0
  %v139 = vsel %vm116, %v109, 0
  %141 = vmatprep.subr.bf16.mxu0 0
  %142 = vmatpush1.bf16.msra.mxu0 0
  %143 = vmatprep.subr.bf16.mxu0 0
  %144 = vmatpush1.bf16.msra.mxu0 0
  %145 = vmatprep.subr.bf16.mxu0 0
  %146 = vmatpush1.bf16.msra.mxu0 0
  %147 = vmatprep.subr.bf16.mxu0 0
  %148 = vmatpush1.bf16.msra.mxu0 0
  %149 = vmatprep.subr.bf16.mxu0 0
  %150 = vmatpush1.bf16.msra.mxu0 0
  %151 = vmatprep.subr.bf16.mxu0 0
  %152 = vmatpush1.bf16.msra.mxu0 0
  %153 = vmatprep.subr.bf16.mxu0 0
  %154 = vmatpush1.bf16.msra.mxu0 0
  %155 = vmatprep.subr.bf16.mxu0 0
  %156 = vmatpush1.bf16.msra.mxu0 %v114
  %157 = vmatprep.subr.bf16.mxu0 0
  %158 = vmatpush2.bf16.msra.mxu0 0
  %159 = vmatprep.subr.bf16.mxu0 0
  %160 = vmatpush2.bf16.msra.mxu0 0
  %161 = vmatprep.subr.bf16.mxu0 0
  %162 = vmatpush2.bf16.msra.mxu0 0
  %163 = vmatprep.subr.bf16.mxu0 0
  %164 = vmatpush2.bf16.msra.mxu0 0
  %165 = vmatprep.subr.bf16.mxu0 0
  %166 = vmatpush2.bf16.msra.mxu0 0
  %167 = vmatprep.subr.bf16.mxu0 0
  %168 = vmatpush2.bf16.msra.mxu0 0
  %169 = vmatprep.subr.bf16.mxu0 0
  %170 = vmatpush2.bf16.msra.mxu0 0
  %171 = vmatprep.subr.bf16.mxu0 0
  %172 = vmatpush2.bf16.msra.mxu0 0
  %173 = vmatprep.mubr.bf16.mxu0 0
  %174 = vmatmul.mubr.bf16.gmra.mxu0 %v118
  %v175 = vpop.f32.mrf.mxu0
  %v176 = vadd.f32 0.0, %v175
  %v177 = vpop.f32.mrf.mxu0
  %v178 = vpop.f32.mrf.mxu0
  %v179 = vadd.f32 0.0, %v178
  %v180 = vpop.f32.mrf.mxu0
  %181 = vmatprep.mubr.bf16.mxu0 0
  %182 = vmatmul.mubr.bf16.gmra.mxu0 %v121
  %v183 = vpop.f32.mrf.mxu0
  %v184 = vadd.f32 0.0, %v183
  %v185 = vpop.f32.mrf.mxu0
  %v186 = vpop.f32.mrf.mxu0
  %v187 = vadd.f32 0.0, %v186
  %v188 = vpop.f32.mrf.mxu0
  %189 = vmatprep.mubr.bf16.mxu0 0
  %190 = vmatmul.mubr.bf16.gmra.mxu0 %v124
  %v191 = vpop.f32.mrf.mxu0
  %v192 = vadd.f32 0.0, %v191
  %v193 = vpop.f32.mrf.mxu0
  %v194 = vpop.f32.mrf.mxu0
  %v195 = vadd.f32 0.0, %v194
  %v196 = vpop.f32.mrf.mxu0
  %197 = vmatprep.mubr.bf16.mxu0 0
  %198 = vmatmul.mubr.bf16.gmra.mxu0 %v127
  %v199 = vpop.f32.mrf.mxu0
  %v200 = vadd.f32 0.0, %v199
  %v201 = vpop.f32.mrf.mxu0
  %v202 = vpop.f32.mrf.mxu0
  %v203 = vadd.f32 0.0, %v202
  %v204 = vpop.f32.mrf.mxu0
  %205 = vmatprep.mubr.bf16.mxu0 0
  %206 = vmatmul.mubr.bf16.gmra.mxu0 %v130
  %v207 = vpop.f32.mrf.mxu0
  %v208 = vadd.f32 0.0, %v207
  %v209 = vpop.f32.mrf.mxu0
  %v210 = vpop.f32.mrf.mxu0
  %v211 = vadd.f32 0.0, %v210
  %v212 = vpop.f32.mrf.mxu0
  %213 = vmatprep.mubr.bf16.mxu0 0
  %214 = vmatmul.mubr.bf16.gmra.mxu0 %v133
  %v215 = vpop.f32.mrf.mxu0
  %v216 = vadd.f32 0.0, %v215
  %v217 = vpop.f32.mrf.mxu0
  %v218 = vpop.f32.mrf.mxu0
  %v219 = vadd.f32 0.0, %v218
  %v220 = vpop.f32.mrf.mxu0
  %221 = vmatprep.mubr.bf16.mxu0 0
  %222 = vmatmul.mubr.bf16.gmra.mxu0 %v136
  %v223 = vpop.f32.mrf.mxu0
  %v224 = vadd.f32 0.0, %v223
  %v225 = vpop.f32.mrf.mxu0
  %v226 = vpop.f32.mrf.mxu0
  %v227 = vadd.f32 0.0, %v226
  %v228 = vpop.f32.mrf.mxu0
  %229 = vmatprep.mubr.bf16.mxu0 0
  %230 = vmatmul.mubr.bf16.gmra.mxu0 %v139
  %v231 = vpop.f32.mrf.mxu0
  %v232 = vadd.f32 0.0, %v231
  %v233 = vpop.f32.mrf.mxu0
  %v234 = vpop.f32.mrf.mxu0
  %v235 = vadd.f32 0.0, %v234
  %v236 = vpop.f32.mrf.mxu0
  %237 = vdwg.mxu0
  %v238 = vadd.f32 %v36, %v176
  %v239 = vadd.f32 %v37, %v179
  %v240 = vadd.f32 %v38, %v184
  %v241 = vadd.f32 %v39, %v187
  %v242 = vadd.f32 %v40, %v192
  %v243 = vadd.f32 %v41, %v195
  %v244 = vadd.f32 %v42, %v200
  %v245 = vadd.f32 %v43, %v203
  %v246 = vadd.f32 %v44, %v208
  %v247 = vadd.f32 %v45, %v211
  %v248 = vadd.f32 %v46, %v216
  %v249 = vadd.f32 %v47, %v219
  %v250 = vadd.f32 %v48, %v224
  %v251 = vadd.f32 %v49, %v227
  %v252 = vadd.f32 %v50, %v232
  %v253 = vadd.f32 %v51, %v235
  %vm254 = vcmask 64512
  %255 = vst.msk [vmem:[#allocation2] sm:$0xff] %vm254, %v238
  %256 = vst.msk [vmem:[#allocation2 + $0x8] sm:$0xff] %vm254, %v239
  %257 = vst.msk [vmem:[#allocation2 + $0x10] sm:$0xff] %vm254, %v240
  %258 = vst.msk [vmem:[#allocation2 + $0x18] sm:$0xff] %vm254, %v241
  %259 = vst.msk [vmem:[#allocation2 + $0x20] sm:$0xff] %vm254, %v242
  %260 = vst.msk [vmem:[#allocation2 + $0x28] sm:$0xff] %vm254, %v243
  %261 = vst.msk [vmem:[#allocation2 + $0x30] sm:$0xff] %vm254, %v244
  %262 = vst.msk [vmem:[#allocation2 + $0x38] sm:$0xff] %vm254, %v245
  %263 = vst.msk [vmem:[#allocation2 + $0x40] sm:$0xff] %vm254, %v246
  %264 = vst.msk [vmem:[#allocation2 + $0x48] sm:$0xff] %vm254, %v247
  %265 = vst.msk [vmem:[#allocation2 + $0x50] sm:$0xff] %vm254, %v248
  %266 = vst.msk [vmem:[#allocation2 + $0x58] sm:$0xff] %vm254, %v249
  %267 = vst.msk [vmem:[#allocation2 + $0x60] sm:$0xff] %vm254, %v250
  %268 = vst.msk [vmem:[#allocation2 + $0x68] sm:$0xff] %vm254, %v251
  %269 = vst.msk [vmem:[#allocation2 + $0x70] sm:$0xff] %vm254, %v252
  %270 = vst.msk [vmem:[#allocation2 + $0x78] sm:$0xff] %vm254, %v253
  // Predicated region
  $region18: #{joint_model_apply.37} parent=0 // pred_check
    %p271 = pneg %p15
  $region19: #{joint_model_apply.37} parent=0 // pred_check_branch
    %273 = sbr.rel (%p271) target = $region21
  $region20: #{joint_model_apply.37} parent=0 // pred_region
    %v274 = vld [vmem:[#allocation2] sm:$0xff]
    %v275 = vld [vmem:[#allocation2 + $0x8] sm:$0xff]
    %v276 = vld [vmem:[#allocation2 + $0x10] sm:$0xff]
    %v277 = vld [vmem:[#allocation2 + $0x18] sm:$0xff]
    %v278 = vld [vmem:[#allocation2 + $0x20] sm:$0xff]
    %v279 = vld [vmem:[#allocation2 + $0x28] sm:$0xff]
    %v280 = vld [vmem:[#allocation2 + $0x30] sm:$0xff]
    %v281 = vld [vmem:[#allocation2 + $0x38] sm:$0xff]
    %v282 = vld [vmem:[#allocation2 + $0x40] sm:$0xff]
    %v283 = vld [vmem:[#allocation2 + $0x48] sm:$0xff]
    %v284 = vld [vmem:[#allocation2 + $0x50] sm:$0xff]
    %v285 = vld [vmem:[#allocation2 + $0x58] sm:$0xff]
    %v286 = vld [vmem:[#allocation2 + $0x60] sm:$0xff]
    %v287 = vld [vmem:[#allocation2 + $0x68] sm:$0xff]
    %v288 = vld [vmem:[#allocation2 + $0x70] sm:$0xff]
    %v289 = vld [vmem:[#allocation2 + $0x78] sm:$0xff]
    %v290 = vld [vmem:[%s2] sm:$0x1]
    %v292 = vlaneseq
    %v293 = vshrl.u32 %v292, 7
    %v294 = vsub.s32 0, %v293
    %v295 = vrot.slane %v290, %v294
    %v297 = vadd.f32 %v274, %v295
    %v298 = vadd.f32 %v275, %v295
    %v299 = vadd.f32 %v276, %v295
    %v300 = vadd.f32 %v277, %v295
    %v301 = vadd.f32 %v278, %v295
    %v302 = vadd.f32 %v279, %v295
    %v303 = vadd.f32 %v280, %v295
    %v304 = vadd.f32 %v281, %v295
    %v305 = vadd.f32 %v282, %v295
    %v306 = vadd.f32 %v283, %v295
    %v307 = vadd.f32 %v284, %v295
    %v308 = vadd.f32 %v285, %v295
    %v309 = vadd.f32 %v286, %v295
    %v310 = vadd.f32 %v287, %v295
    %v311 = vadd.f32 %v288, %v295
    %v312 = vadd.f32 %v289, %v295
    %313 = vst.msk [vmem:[%s3] sm:$0xff] %vm254, %v297
    %314 = vst.msk [vmem:[%s3 + $0x8] sm:$0xff] %vm254, %v298
    %315 = vst.msk [vmem:[%s3 + $0x10] sm:$0xff] %vm254, %v299
    %316 = vst.msk [vmem:[%s3 + $0x18] sm:$0xff] %vm254, %v300
    %317 = vst.msk [vmem:[%s3 + $0x20] sm:$0xff] %vm254, %v301
    %318 = vst.msk [vmem:[%s3 + $0x28] sm:$0xff] %vm254, %v302
    %319 = vst.msk [vmem:[%s3 + $0x30] sm:$0xff] %vm254, %v303
    %320 = vst.msk [vmem:[%s3 + $0x38] sm:$0xff] %vm254, %v304
    %321 = vst.msk [vmem:[%s3 + $0x40] sm:$0xff] %vm254, %v305
    %322 = vst.msk [vmem:[%s3 + $0x48] sm:$0xff] %vm254, %v306
    %323 = vst.msk [vmem:[%s3 + $0x50] sm:$0xff] %vm254, %v307
    %324 = vst.msk [vmem:[%s3 + $0x58] sm:$0xff] %vm254, %v308
    %325 = vst.msk [vmem:[%s3 + $0x60] sm:$0xff] %vm254, %v309
    %326 = vst.msk [vmem:[%s3 + $0x68] sm:$0xff] %vm254, %v310
    %327 = vst.msk [vmem:[%s3 + $0x70] sm:$0xff] %vm254, %v311
    %328 = vst.msk [vmem:[%s3 + $0x78] sm:$0xff] %vm254, %v312
  $region21: #{joint_model_apply.37} parent=0 // pred_fallthru
    _
  // Predicated region
  $region22: #{joint_model_apply.37} parent=0 // pred_check
    _
  $region23: #{joint_model_apply.37} parent=0 // pred_check_branch
    %330 = sbr.rel (0) target = $region25
  $region24: #{joint_model_apply.37} parent=0 // pred_region
    _
  $region25: #{joint_model_apply.37} parent=0 // pred_fallthru
    _
  // Predicated region
  $region26: #{joint_model_apply.37} parent=0 // pred_check
    _
  $region27: #{joint_model_apply.37} parent=0 // pred_check_branch
    %332 = sbr.rel (0) target = $region29
  $region28: #{joint_model_apply.37} parent=0 // pred_region
    _
  $region29: #{joint_model_apply.37} parent=0 // pred_fallthru
    _

// kernel: joint_model_apply.38
$region0: #{joint_model_apply.38}
  #allocation0 [shape = 'u32[]', space=smem, size = 0x4, offset = 0x4, fixed_abs, tag = 'smem constant byte address 0x4 - core index']
  #allocation1 [shape = 'u32[144,128]{1,0:T(1,128)}', space=vmem, size = 0x12000, scoped, tag = 'internal scratch']
  #allocation2 [shape = 'f32[432,8]{1,0:T(8,128)}', space=vmem, size = 0x36000, scoped, tag = 'scratch operand']
  %s0 = inlined_call_operand.vmem [shape: bf16[432,27], index: 0, kind: input, shape index: {}]
  %s1 = inlined_call_operand.vmem [shape: bf16[27,8], index: 1, kind: input, shape index: {}]
  %s2 = inlined_call_operand.vmem [shape: f32[1,8], index: 2, kind: input, shape index: {}]
  %s3 = inlined_call_operand.vmem [shape: f32[432,8], index: 3, kind: output, shape index: {}]
  %s4 = sld [smem:[#allocation0]]
  $region30: #{joint_model_apply.38} parent=0
    _
  %s6 = ssub.s32 1, %s4
  %s7 = scalar_select 0, %s6, %s4
  // Predicated region
  $region2: #{joint_model_apply.38} parent=0 // pred_check
    _
  $region3: #{joint_model_apply.38} parent=0 // pred_check_branch
    %9 = sbr.rel (0) target = $region5
  $region4: #{joint_model_apply.38} parent=0 // pred_region
    _
  $region5: #{joint_model_apply.38} parent=0 // pred_fallthru
    _
  // Predicated region
  $region6: #{joint_model_apply.38} parent=0 // pred_check
    _
  $region7: #{joint_model_apply.38} parent=0 // pred_check_branch
    %11 = sbr.rel (0) target = $region9
  $region8: #{joint_model_apply.38} parent=0 // pred_region
    _
  $region9: #{joint_model_apply.38} parent=0 // pred_fallthru
    _
  // Predicated region
  $region10: #{joint_model_apply.38} parent=0 // pred_check
    _
  $region11: #{joint_model_apply.38} parent=0 // pred_check_branch
    %13 = sbr.rel (0) target = $region13
  $region12: #{joint_model_apply.38} parent=0 // pred_region
    _
  $region13: #{joint_model_apply.38} parent=0 // pred_fallthru
    _
  %p15 = scmp.eq.s32.totalorder 0, 0
  // Predicated region
  $region14: #{joint_model_apply.38} parent=0 // pred_check
    %p16 = pneg %p15
  $region15: #{joint_model_apply.38} parent=0 // pred_check_branch
    %18 = sbr.rel (%p16) target = $region17
  $region16: #{joint_model_apply.38} parent=0 // pred_region
    %vm19 = vcmask 64512
    %20 = vst.msk [vmem:[#allocation2] sm:$0xff] %vm19, 0.0
    %21 = vst.msk [vmem:[#allocation2 + $0x8] sm:$0xff] %vm19, 0.0
    %22 = vst.msk [vmem:[#allocation2 + $0x10] sm:$0xff] %vm19, 0.0
    %23 = vst.msk [vmem:[#allocation2 + $0x18] sm:$0xff] %vm19, 0.0
    %24 = vst.msk [vmem:[#allocation2 + $0x20] sm:$0xff] %vm19, 0.0
    %25 = vst.msk [vmem:[#allocation2 + $0x28] sm:$0xff] %vm19, 0.0
    %26 = vst.msk [vmem:[#allocation2 + $0x30] sm:$0xff] %vm19, 0.0
    %27 = vst.msk [vmem:[#allocation2 + $0x38] sm:$0xff] %vm19, 0.0
    %28 = vst.msk [vmem:[#allocation2 + $0x40] sm:$0xff] %vm19, 0.0
    %29 = vst.msk [vmem:[#allocation2 + $0x48] sm:$0xff] %vm19, 0.0
    %30 = vst.msk [vmem:[#allocation2 + $0x50] sm:$0xff] %vm19, 0.0
    %31 = vst.msk [vmem:[#allocation2 + $0x58] sm:$0xff] %vm19, 0.0
    %32 = vst.msk [vmem:[#allocation2 + $0x60] sm:$0xff] %vm19, 0.0
    %33 = vst.msk [vmem:[#allocation2 + $0x68] sm:$0xff] %vm19, 0.0
    %34 = vst.msk [vmem:[#allocation2 + $0x70] sm:$0xff] %vm19, 0.0
    %35 = vst.msk [vmem:[#allocation2 + $0x78] sm:$0xff] %vm19, 0.0
    %36 = vst.msk [vmem:[#allocation2 + $0x80] sm:$0xff] %vm19, 0.0
    %37 = vst.msk [vmem:[#allocation2 + $0x88] sm:$0xff] %vm19, 0.0
    %38 = vst.msk [vmem:[#allocation2 + $0x90] sm:$0xff] %vm19, 0.0
    %39 = vst.msk [vmem:[#allocation2 + $0x98] sm:$0xff] %vm19, 0.0
    %40 = vst.msk [vmem:[#allocation2 + $0xa0] sm:$0xff] %vm19, 0.0
    %41 = vst.msk [vmem:[#allocation2 + $0xa8] sm:$0xff] %vm19, 0.0
    %42 = vst.msk [vmem:[#allocation2 + $0xb0] sm:$0xff] %vm19, 0.0
    %43 = vst.msk [vmem:[#allocation2 + $0xb8] sm:$0xff] %vm19, 0.0
    %44 = vst.msk [vmem:[#allocation2 + $0xc0] sm:$0xff] %vm19, 0.0
    %45 = vst.msk [vmem:[#allocation2 + $0xc8] sm:$0xff] %vm19, 0.0
    %46 = vst.msk [vmem:[#allocation2 + $0xd0] sm:$0xff] %vm19, 0.0
    %47 = vst.msk [vmem:[#allocation2 + $0xd8] sm:$0xff] %vm19, 0.0
    %48 = vst.msk [vmem:[#allocation2 + $0xe0] sm:$0xff] %vm19, 0.0
    %49 = vst.msk [vmem:[#allocation2 + $0xe8] sm:$0xff] %vm19, 0.0
    %50 = vst.msk [vmem:[#allocation2 + $0xf0] sm:$0xff] %vm19, 0.0
    %51 = vst.msk [vmem:[#allocation2 + $0xf8] sm:$0xff] %vm19, 0.0
    %52 = vst.msk [vmem:[#allocation2 + $0x100] sm:$0xff] %vm19, 0.0
    %53 = vst.msk [vmem:[#allocation2 + $0x108] sm:$0xff] %vm19, 0.0
    %54 = vst.msk [vmem:[#allocation2 + $0x110] sm:$0xff] %vm19, 0.0
    %55 = vst.msk [vmem:[#allocation2 + $0x118] sm:$0xff] %vm19, 0.0
    %56 = vst.msk [vmem:[#allocation2 + $0x120] sm:$0xff] %vm19, 0.0
    %57 = vst.msk [vmem:[#allocation2 + $0x128] sm:$0xff] %vm19, 0.0
    %58 = vst.msk [vmem:[#allocation2 + $0x130] sm:$0xff] %vm19, 0.0
    %59 = vst.msk [vmem:[#allocation2 + $0x138] sm:$0xff] %vm19, 0.0
    %60 = vst.msk [vmem:[#allocation2 + $0x140] sm:$0xff] %vm19, 0.0
    %61 = vst.msk [vmem:[#allocation2 + $0x148] sm:$0xff] %vm19, 0.0
    %62 = vst.msk [vmem:[#allocation2 + $0x150] sm:$0xff] %vm19, 0.0
    %63 = vst.msk [vmem:[#allocation2 + $0x158] sm:$0xff] %vm19, 0.0
    %64 = vst.msk [vmem:[#allocation2 + $0x160] sm:$0xff] %vm19, 0.0
    %65 = vst.msk [vmem:[#allocation2 + $0x168] sm:$0xff] %vm19, 0.0
    %66 = vst.msk [vmem:[#allocation2 + $0x170] sm:$0xff] %vm19, 0.0
    %67 = vst.msk [vmem:[#allocation2 + $0x178] sm:$0xff] %vm19, 0.0
    %68 = vst.msk [vmem:[#allocation2 + $0x180] sm:$0xff] %vm19, 0.0
    %69 = vst.msk [vmem:[#allocation2 + $0x188] sm:$0xff] %vm19, 0.0
    %70 = vst.msk [vmem:[#allocation2 + $0x190] sm:$0xff] %vm19, 0.0
    %71 = vst.msk [vmem:[#allocation2 + $0x198] sm:$0xff] %vm19, 0.0
    %72 = vst.msk [vmem:[#allocation2 + $0x1a0] sm:$0xff] %vm19, 0.0
    %73 = vst.msk [vmem:[#allocation2 + $0x1a8] sm:$0xff] %vm19, 0.0
  $region17: #{joint_model_apply.38} parent=0 // pred_fallthru
    _
  %v74 = vld [vmem:[#allocation2] sm:$0xff]
  %v75 = vld [vmem:[#allocation2 + $0x8] sm:$0xff]
  %v76 = vld [vmem:[#allocation2 + $0x10] sm:$0xff]
  %v77 = vld [vmem:[#allocation2 + $0x18] sm:$0xff]
  %v78 = vld [vmem:[#allocation2 + $0x20] sm:$0xff]
  %v79 = vld [vmem:[#allocation2 + $0x28] sm:$0xff]
  %v80 = vld [vmem:[#allocation2 + $0x30] sm:$0xff]
  %v81 = vld [vmem:[#allocation2 + $0x38] sm:$0xff]
  %v82 = vld [vmem:[#allocation2 + $0x40] sm:$0xff]
  %v83 = vld [vmem:[#allocation2 + $0x48] sm:$0xff]
  %v84 = vld [vmem:[#allocation2 + $0x50] sm:$0xff]
  %v85 = vld [vmem:[#allocation2 + $0x58] sm:$0xff]
  %v86 = vld [vmem:[#allocation2 + $0x60] sm:$0xff]
  %v87 = vld [vmem:[#allocation2 + $0x68] sm:$0xff]
  %v88 = vld [vmem:[#allocation2 + $0x70] sm:$0xff]
  %v89 = vld [vmem:[#allocation2 + $0x78] sm:$0xff]
  %v90 = vld [vmem:[#allocation2 + $0x80] sm:$0xff]
  %v91 = vld [vmem:[#allocation2 + $0x88] sm:$0xff]
  %v92 = vld [vmem:[#allocation2 + $0x90] sm:$0xff]
  %v93 = vld [vmem:[#allocation2 + $0x98] sm:$0xff]
  %v94 = vld [vmem:[#allocation2 + $0xa0] sm:$0xff]
  %v95 = vld [vmem:[#allocation2 + $0xa8] sm:$0xff]
  %v96 = vld [vmem:[#allocation2 + $0xb0] sm:$0xff]
  %v97 = vld [vmem:[#allocation2 + $0xb8] sm:$0xff]
  %v98 = vld [vmem:[#allocation2 + $0xc0] sm:$0xff]
  %v99 = vld [vmem:[#allocation2 + $0xc8] sm:$0xff]
  %v100 = vld [vmem:[#allocation2 + $0xd0] sm:$0xff]
  %v101 = vld [vmem:[#allocation2 + $0xd8] sm:$0xff]
  %v102 = vld [vmem:[#allocation2 + $0xe0] sm:$0xff]
  %v103 = vld [vmem:[#allocation2 + $0xe8] sm:$0xff]
  %v104 = vld [vmem:[#allocation2 + $0xf0] sm:$0xff]
  %v105 = vld [vmem:[#allocation2 + $0xf8] sm:$0xff]
  %v106 = vld [vmem:[#allocation2 + $0x100] sm:$0xff]
  %v107 = vld [vmem:[#allocation2 + $0x108] sm:$0xff]
  %v108 = vld [vmem:[#allocation2 + $0x110] sm:$0xff]
  %v109 = vld [vmem:[#allocation2 + $0x118] sm:$0xff]
  %v110 = vld [vmem:[#allocation2 + $0x120] sm:$0xff]
  %v111 = vld [vmem:[#allocation2 + $0x128] sm:$0xff]
  %v112 = vld [vmem:[#allocation2 + $0x130] sm:$0xff]
  %v113 = vld [vmem:[#allocation2 + $0x138] sm:$0xff]
  %v114 = vld [vmem:[#allocation2 + $0x140] sm:$0xff]
  %v115 = vld [vmem:[#allocation2 + $0x148] sm:$0xff]
  %v116 = vld [vmem:[#allocation2 + $0x150] sm:$0xff]
  %v117 = vld [vmem:[#allocation2 + $0x158] sm:$0xff]
  %v118 = vld [vmem:[#allocation2 + $0x160] sm:$0xff]
  %v119 = vld [vmem:[#allocation2 + $0x168] sm:$0xff]
  %v120 = vld [vmem:[#allocation2 + $0x170] sm:$0xff]
  %v121 = vld [vmem:[#allocation2 + $0x178] sm:$0xff]
  %v122 = vld [vmem:[#allocation2 + $0x180] sm:$0xff]
  %v123 = vld [vmem:[#allocation2 + $0x188] sm:$0xff]
  %v124 = vld [vmem:[#allocation2 + $0x190] sm:$0xff]
  %v125 = vld [vmem:[#allocation2 + $0x198] sm:$0xff]
  %v126 = vld [vmem:[#allocation2 + $0x1a0] sm:$0xff]
  %v127 = vld [vmem:[#allocation2 + $0x1a8] sm:$0xff]
  %v128 = vld [vmem:[%s0] sm:$0xf]
  %v129 = vld [vmem:[%s0 + $0x4] sm:$0xf]
  %v130 = vld [vmem:[%s0 + $0x8] sm:$0xf]
  %v131 = vld [vmem:[%s0 + $0xc] sm:$0xf]
  %v132 = vld [vmem:[%s0 + $0x10] sm:$0xf]
  %v133 = vld [vmem:[%s0 + $0x14] sm:$0xf]
  %v134 = vld [vmem:[%s0 + $0x18] sm:$0xf]
  %v135 = vld [vmem:[%s0 + $0x1c] sm:$0xf]
  %v136 = vld [vmem:[%s0 + $0x20] sm:$0xf]
  %v137 = vld [vmem:[%s0 + $0x24] sm:$0xf]
  %v138 = vld [vmem:[%s0 + $0x28] sm:$0xf]
  %v139 = vld [vmem:[%s0 + $0x2c] sm:$0xf]
  %v140 = vld [vmem:[%s0 + $0x30] sm:$0xf]
  %v141 = vld [vmem:[%s0 + $0x34] sm:$0xf]
  %v142 = vld [vmem:[%s0 + $0x38] sm:$0xf]
  %v143 = vld [vmem:[%s0 + $0x3c] sm:$0xf]
  %v144 = vld [vmem:[%s0 + $0x40] sm:$0xf]
  %v145 = vld [vmem:[%s0 + $0x44] sm:$0xf]
  %v146 = vld [vmem:[%s0 + $0x48] sm:$0xf]
  %v147 = vld [vmem:[%s0 + $0x4c] sm:$0xf]
  %v148 = vld [vmem:[%s0 + $0x50] sm:$0xf]
  %v149 = vld [vmem:[%s0 + $0x54] sm:$0xf]
  %v150 = vld [vmem:[%s0 + $0x58] sm:$0xf]
  %v151 = vld [vmem:[%s0 + $0x5c] sm:$0xf]
  %v152 = vld [vmem:[%s0 + $0x60] sm:$0xf]
  %v153 = vld [vmem:[%s0 + $0x64] sm:$0xf]
  %v154 = vld [vmem:[%s0 + $0x68] sm:$0xf]
  %v155 = vld [vmem:[%s0 + $0x6c] sm:$0xf]
  %v156 = vld [vmem:[%s0 + $0x70] sm:$0xf]
  %v157 = vld [vmem:[%s0 + $0x74] sm:$0xf]
  %v158 = vld [vmem:[%s0 + $0x78] sm:$0xf]
  %v159 = vld [vmem:[%s0 + $0x7c] sm:$0xf]
  %v160 = vld [vmem:[%s0 + $0x80] sm:$0xf]
  %v161 = vld [vmem:[%s0 + $0x84] sm:$0xf]
  %v162 = vld [vmem:[%s0 + $0x88] sm:$0xf]
  %v163 = vld [vmem:[%s0 + $0x8c] sm:$0xf]
  %v164 = vld [vmem:[%s0 + $0x90] sm:$0xf]
  %v165 = vld [vmem:[%s0 + $0x94] sm:$0xf]
  %v166 = vld [vmem:[%s0 + $0x98] sm:$0xf]
  %v167 = vld [vmem:[%s0 + $0x9c] sm:$0xf]
  %v168 = vld [vmem:[%s0 + $0xa0] sm:$0xf]
  %v169 = vld [vmem:[%s0 + $0xa4] sm:$0xf]
  %v170 = vld [vmem:[%s0 + $0xa8] sm:$0xf]
  %v171 = vld [vmem:[%s0 + $0xac] sm:$0xf]
  %v172 = vld [vmem:[%s0 + $0xb0] sm:$0xf]
  %v173 = vld [vmem:[%s0 + $0xb4] sm:$0xf]
  %v174 = vld [vmem:[%s0 + $0xb8] sm:$0xf]
  %v175 = vld [vmem:[%s0 + $0xbc] sm:$0xf]
  %v176 = vld [vmem:[%s0 + $0xc0] sm:$0xf]
  %v177 = vld [vmem:[%s0 + $0xc4] sm:$0xf]
  %v178 = vld [vmem:[%s0 + $0xc8] sm:$0xf]
  %v179 = vld [vmem:[%s0 + $0xcc] sm:$0xf]
  %v180 = vld [vmem:[%s0 + $0xd0] sm:$0xf]
  %v181 = vld [vmem:[%s0 + $0xd4] sm:$0xf]
  %v182 = vld [vmem:[%s1] sm:$0xf]
  %v183 = vld [vmem:[%s1 + $0x4] sm:$0xf]
  %v184 = vld [vmem:[%s1 + $0x8] sm:$0xf]
  %v185 = vld [vmem:[%s1 + $0xc] sm:$0x3]
  %v240 = vunpack.c.l.b16 %v128
  %v241 = vunpack.c.l.b16 %v129
  %v242 = vunpack.c.l.b16 %v130
  %v243 = vunpack.c.l.b16 %v131
  %v244 = vunpack.c.l.b16 %v132
  %v245 = vunpack.c.l.b16 %v133
  %v246 = vunpack.c.l.b16 %v134
  %v247 = vunpack.c.l.b16 %v135
  %v248 = vunpack.c.l.b16 %v136
  %v249 = vunpack.c.l.b16 %v137
  %v250 = vunpack.c.l.b16 %v138
  %v251 = vunpack.c.l.b16 %v139
  %v252 = vunpack.c.l.b16 %v140
  %v253 = vunpack.c.l.b16 %v141
  %v254 = vunpack.c.l.b16 %v142
  %v255 = vunpack.c.l.b16 %v143
  %v256 = vunpack.c.l.b16 %v144
  %v257 = vunpack.c.l.b16 %v145
  %v258 = vunpack.c.l.b16 %v146
  %v259 = vunpack.c.l.b16 %v147
  %v260 = vunpack.c.l.b16 %v148
  %v261 = vunpack.c.l.b16 %v149
  %v262 = vunpack.c.l.b16 %v150
  %v263 = vunpack.c.l.b16 %v151
  %v264 = vunpack.c.l.b16 %v152
  %v265 = vunpack.c.l.b16 %v153
  %v266 = vunpack.c.l.b16 %v154
  %v267 = vunpack.c.l.b16 %v155
  %v268 = vunpack.c.l.b16 %v156
  %v269 = vunpack.c.l.b16 %v157
  %v270 = vunpack.c.l.b16 %v158
  %v271 = vunpack.c.l.b16 %v159
  %v272 = vunpack.c.l.b16 %v160
  %v273 = vunpack.c.l.b16 %v161
  %v274 = vunpack.c.l.b16 %v162
  %v275 = vunpack.c.l.b16 %v163
  %v276 = vunpack.c.l.b16 %v164
  %v277 = vunpack.c.l.b16 %v165
  %v278 = vunpack.c.l.b16 %v166
  %v279 = vunpack.c.l.b16 %v167
  %v280 = vunpack.c.l.b16 %v168
  %v281 = vunpack.c.l.b16 %v169
  %v282 = vunpack.c.l.b16 %v170
  %v283 = vunpack.c.l.b16 %v171
  %v284 = vunpack.c.l.b16 %v172
  %v285 = vunpack.c.l.b16 %v173
  %v286 = vunpack.c.l.b16 %v174
  %v287 = vunpack.c.l.b16 %v175
  %v288 = vunpack.c.l.b16 %v176
  %v289 = vunpack.c.l.b16 %v177
  %v290 = vunpack.c.l.b16 %v178
  %v291 = vunpack.c.l.b16 %v179
  %v292 = vunpack.c.l.b16 %v180
  %v293 = vunpack.c.l.b16 %v181
  %v294 = vpack.c.b16 %v241, %v240
  %v295 = vpack.c.b16 %v243, %v242
  %v296 = vpack.c.b16 %v245, %v244
  %v297 = vpack.c.b16 %v247, %v246
  %v298 = vpack.c.b16 %v249, %v248
  %v299 = vpack.c.b16 %v251, %v250
  %v300 = vpack.c.b16 %v253, %v252
  %v301 = vpack.c.b16 %v255, %v254
  %v302 = vpack.c.b16 %v257, %v256
  %v303 = vpack.c.b16 %v259, %v258
  %v304 = vpack.c.b16 %v261, %v260
  %v305 = vpack.c.b16 %v263, %v262
  %v306 = vpack.c.b16 %v265, %v264
  %v307 = vpack.c.b16 %v267, %v266
  %v308 = vpack.c.b16 %v269, %v268
  %v309 = vpack.c.b16 %v271, %v270
  %v310 = vpack.c.b16 %v273, %v272
  %v311 = vpack.c.b16 %v275, %v274
  %v312 = vpack.c.b16 %v277, %v276
  %v313 = vpack.c.b16 %v279, %v278
  %v314 = vpack.c.b16 %v281, %v280
  %v315 = vpack.c.b16 %v283, %v282
  %v316 = vpack.c.b16 %v285, %v284
  %v317 = vpack.c.b16 %v287, %v286
  %v318 = vpack.c.b16 %v289, %v288
  %v319 = vpack.c.b16 %v291, %v290
  %v320 = vpack.c.b16 %v293, %v292
  %v325 = vunpack.c.l.b16 %v182
  %v326 = vunpack.c.l.b16 %v183
  %v327 = vunpack.c.l.b16 %v184
  %v328 = vunpack.c.l.b16 %v185
  %v329 = vpack.c.b16 %v326, %v325
  %v330 = vpack.c.b16 %v328, %v327
  %vm332 = vcmask 220160
  %v334 = vsel %vm332, %v294, 0
  %v337 = vsel %vm332, %v295, 0
  %v340 = vsel %vm332, %v296, 0
  %v343 = vsel %vm332, %v297, 0
  %v346 = vsel %vm332, %v298, 0
  %v349 = vsel %vm332, %v299, 0
  %v352 = vsel %vm332, %v300, 0
  %v355 = vsel %vm332, %v301, 0
  %v358 = vsel %vm332, %v302, 0
  %v361 = vsel %vm332, %v303, 0
  %v364 = vsel %vm332, %v304, 0
  %v367 = vsel %vm332, %v305, 0
  %v370 = vsel %vm332, %v306, 0
  %v373 = vsel %vm332, %v307, 0
  %v376 = vsel %vm332, %v308, 0
  %v379 = vsel %vm332, %v309, 0
  %v382 = vsel %vm332, %v310, 0
  %v385 = vsel %vm332, %v311, 0
  %v388 = vsel %vm332, %v312, 0
  %v391 = vsel %vm332, %v313, 0
  %v394 = vsel %vm332, %v314, 0
  %v397 = vsel %vm332, %v315, 0
  %v400 = vsel %vm332, %v316, 0
  %v403 = vsel %vm332, %v317, 0
  %v406 = vsel %vm332, %v318, 0
  %v409 = vsel %vm332, %v319, 0
  %v412 = vsel %vm332, %v320, 0
  %vm414 = vcmask 1044480
  %vm415 = vcmask 1045504
  %v416 = vsel %vm414, 4294967295, 65535
  %v417 = vsel %vm415, %v416, 0
  %v419 = vand.u32 %v330, %v417
  %421 = vmatprep.subr.bf16.mxu0 0
  %422 = vmatpush1.bf16.msra.mxu0 0
  %423 = vmatprep.subr.bf16.mxu0 0
  %424 = vmatpush1.bf16.msra.mxu0 0
  %425 = vmatprep.subr.bf16.mxu0 0
  %426 = vmatpush1.bf16.msra.mxu0 0
  %427 = vmatprep.subr.bf16.mxu0 0
  %428 = vmatpush1.bf16.msra.mxu0 0
  %429 = vmatprep.subr.bf16.mxu0 0
  %430 = vmatpush1.bf16.msra.mxu0 0
  %431 = vmatprep.subr.bf16.mxu0 0
  %432 = vmatpush1.bf16.msra.mxu0 0
  %433 = vmatprep.subr.bf16.mxu0 0
  %434 = vmatpush1.bf16.msra.mxu0 %v419
  %435 = vmatprep.subr.bf16.mxu0 0
  %436 = vmatpush1.bf16.msra.mxu0 %v329
  %437 = vmatprep.subr.bf16.mxu0 0
  %438 = vmatpush2.bf16.msra.mxu0 0
  %439 = vmatprep.subr.bf16.mxu0 0
  %440 = vmatpush2.bf16.msra.mxu0 0
  %441 = vmatprep.subr.bf16.mxu0 0
  %442 = vmatpush2.bf16.msra.mxu0 0
  %443 = vmatprep.subr.bf16.mxu0 0
  %444 = vmatpush2.bf16.msra.mxu0 0
  %445 = vmatprep.subr.bf16.mxu0 0
  %446 = vmatpush2.bf16.msra.mxu0 0
  %447 = vmatprep.subr.bf16.mxu0 0
  %448 = vmatpush2.bf16.msra.mxu0 0
  %449 = vmatprep.subr.bf16.mxu0 0
  %450 = vmatpush2.bf16.msra.mxu0 0
  %451 = vmatprep.subr.bf16.mxu0 0
  %452 = vmatpush2.bf16.msra.mxu0 0
  %453 = vmatprep.mubr.bf16.mxu0 0
  %454 = vmatmul.mubr.bf16.gmra.mxu0 %v334
  %v455 = vpop.f32.mrf.mxu0
  %v456 = vadd.f32 0.0, %v455
  %v457 = vpop.f32.mrf.mxu0
  %v458 = vpop.f32.mrf.mxu0
  %v459 = vadd.f32 0.0, %v458
  %v460 = vpop.f32.mrf.mxu0
  %461 = vmatprep.mubr.bf16.mxu0 0
  %462 = vmatmul.mubr.bf16.gmra.mxu0 %v337
  %v463 = vpop.f32.mrf.mxu0
  %v464 = vadd.f32 0.0, %v463
  %v465 = vpop.f32.mrf.mxu0
  %v466 = vpop.f32.mrf.mxu0
  %v467 = vadd.f32 0.0, %v466
  %v468 = vpop.f32.mrf.mxu0
  %469 = vmatprep.mubr.bf16.mxu0 0
  %470 = vmatmul.mubr.bf16.gmra.mxu0 %v340
  %v471 = vpop.f32.mrf.mxu0
  %v472 = vadd.f32 0.0, %v471
  %v473 = vpop.f32.mrf.mxu0
  %v474 = vpop.f32.mrf.mxu0
  %v475 = vadd.f32 0.0, %v474
  %v476 = vpop.f32.mrf.mxu0
  %477 = vmatprep.mubr.bf16.mxu0 0
  %478 = vmatmul.mubr.bf16.gmra.mxu0 %v343
  %v479 = vpop.f32.mrf.mxu0
  %v480 = vadd.f32 0.0, %v479
  %v481 = vpop.f32.mrf.mxu0
  %v482 = vpop.f32.mrf.mxu0
  %v483 = vadd.f32 0.0, %v482
  %v484 = vpop.f32.mrf.mxu0
  %485 = vmatprep.mubr.bf16.mxu0 0
  %486 = vmatmul.mubr.bf16.gmra.mxu0 %v346
  %v487 = vpop.f32.mrf.mxu0
  %v488 = vadd.f32 0.0, %v487
  %v489 = vpop.f32.mrf.mxu0
  %v490 = vpop.f32.mrf.mxu0
  %v491 = vadd.f32 0.0, %v490
  %v492 = vpop.f32.mrf.mxu0
  %493 = vmatprep.mubr.bf16.mxu0 0
  %494 = vmatmul.mubr.bf16.gmra.mxu0 %v349
  %v495 = vpop.f32.mrf.mxu0
  %v496 = vadd.f32 0.0, %v495
  %v497 = vpop.f32.mrf.mxu0
  %v498 = vpop.f32.mrf.mxu0
  %v499 = vadd.f32 0.0, %v498
  %v500 = vpop.f32.mrf.mxu0
  %501 = vmatprep.mubr.bf16.mxu0 0
  %502 = vmatmul.mubr.bf16.gmra.mxu0 %v352
  %v503 = vpop.f32.mrf.mxu0
  %v504 = vadd.f32 0.0, %v503
  %v505 = vpop.f32.mrf.mxu0
  %v506 = vpop.f32.mrf.mxu0
  %v507 = vadd.f32 0.0, %v506
  %v508 = vpop.f32.mrf.mxu0
  %509 = vmatprep.mubr.bf16.mxu0 0
  %510 = vmatmul.mubr.bf16.gmra.mxu0 %v355
  %v511 = vpop.f32.mrf.mxu0
  %v512 = vadd.f32 0.0, %v511
  %v513 = vpop.f32.mrf.mxu0
  %v514 = vpop.f32.mrf.mxu0
  %v515 = vadd.f32 0.0, %v514
  %v516 = vpop.f32.mrf.mxu0
  %517 = vmatprep.mubr.bf16.mxu0 0
  %518 = vmatmul.mubr.bf16.gmra.mxu0 %v358
  %v519 = vpop.f32.mrf.mxu0
  %v520 = vadd.f32 0.0, %v519
  %v521 = vpop.f32.mrf.mxu0
  %v522 = vpop.f32.mrf.mxu0
  %v523 = vadd.f32 0.0, %v522
  %v524 = vpop.f32.mrf.mxu0
  %525 = vmatprep.mubr.bf16.mxu0 0
  %526 = vmatmul.mubr.bf16.gmra.mxu0 %v361
  %v527 = vpop.f32.mrf.mxu0
  %v528 = vadd.f32 0.0, %v527
  %v529 = vpop.f32.mrf.mxu0
  %v530 = vpop.f32.mrf.mxu0
  %v531 = vadd.f32 0.0, %v530
  %v532 = vpop.f32.mrf.mxu0
  %533 = vmatprep.mubr.bf16.mxu0 0
  %534 = vmatmul.mubr.bf16.gmra.mxu0 %v364
  %v535 = vpop.f32.mrf.mxu0
  %v536 = vadd.f32 0.0, %v535
  %v537 = vpop.f32.mrf.mxu0
  %v538 = vpop.f32.mrf.mxu0
  %v539 = vadd.f32 0.0, %v538
  %v540 = vpop.f32.mrf.mxu0
  %541 = vmatprep.mubr.bf16.mxu0 0
  %542 = vmatmul.mubr.bf16.gmra.mxu0 %v367
  %v543 = vpop.f32.mrf.mxu0
  %v544 = vadd.f32 0.0, %v543
  %v545 = vpop.f32.mrf.mxu0
  %v546 = vpop.f32.mrf.mxu0
  %v547 = vadd.f32 0.0, %v546
  %v548 = vpop.f32.mrf.mxu0
  %549 = vmatprep.mubr.bf16.mxu0 0
  %550 = vmatmul.mubr.bf16.gmra.mxu0 %v370
  %v551 = vpop.f32.mrf.mxu0
  %v552 = vadd.f32 0.0, %v551
  %v553 = vpop.f32.mrf.mxu0
  %v554 = vpop.f32.mrf.mxu0
  %v555 = vadd.f32 0.0, %v554
  %v556 = vpop.f32.mrf.mxu0
  %557 = vmatprep.mubr.bf16.mxu0 0
  %558 = vmatmul.mubr.bf16.gmra.mxu0 %v373
  %v559 = vpop.f32.mrf.mxu0
  %v560 = vadd.f32 0.0, %v559
  %v561 = vpop.f32.mrf.mxu0
  %v562 = vpop.f32.mrf.mxu0
  %v563 = vadd.f32 0.0, %v562
  %v564 = vpop.f32.mrf.mxu0
  %565 = vmatprep.mubr.bf16.mxu0 0
  %566 = vmatmul.mubr.bf16.gmra.mxu0 %v376
  %v567 = vpop.f32.mrf.mxu0
  %v568 = vadd.f32 0.0, %v567
  %v569 = vpop.f32.mrf.mxu0
  %v570 = vpop.f32.mrf.mxu0
  %v571 = vadd.f32 0.0, %v570
  %v572 = vpop.f32.mrf.mxu0
  %573 = vmatprep.mubr.bf16.mxu0 0
  %574 = vmatmul.mubr.bf16.gmra.mxu0 %v379
  %v575 = vpop.f32.mrf.mxu0
  %v576 = vadd.f32 0.0, %v575
  %v577 = vpop.f32.mrf.mxu0
  %v578 = vpop.f32.mrf.mxu0
  %v579 = vadd.f32 0.0, %v578
  %v580 = vpop.f32.mrf.mxu0
  %581 = vmatprep.mubr.bf16.mxu0 0
  %582 = vmatmul.mubr.bf16.gmra.mxu0 %v382
  %v583 = vpop.f32.mrf.mxu0
  %v584 = vadd.f32 0.0, %v583
  %v585 = vpop.f32.mrf.mxu0
  %v586 = vpop.f32.mrf.mxu0
  %v587 = vadd.f32 0.0, %v586
  %v588 = vpop.f32.mrf.mxu0
  %589 = vmatprep.mubr.bf16.mxu0 0
  %590 = vmatmul.mubr.bf16.gmra.mxu0 %v385
  %v591 = vpop.f32.mrf.mxu0
  %v592 = vadd.f32 0.0, %v591
  %v593 = vpop.f32.mrf.mxu0
  %v594 = vpop.f32.mrf.mxu0
  %v595 = vadd.f32 0.0, %v594
  %v596 = vpop.f32.mrf.mxu0
  %597 = vmatprep.mubr.bf16.mxu0 0
  %598 = vmatmul.mubr.bf16.gmra.mxu0 %v388
  %v599 = vpop.f32.mrf.mxu0
  %v600 = vadd.f32 0.0, %v599
  %v601 = vpop.f32.mrf.mxu0
  %v602 = vpop.f32.mrf.mxu0
  %v603 = vadd.f32 0.0, %v602
  %v604 = vpop.f32.mrf.mxu0
  %605 = vmatprep.mubr.bf16.mxu0 0
  %606 = vmatmul.mubr.bf16.gmra.mxu0 %v391
  %v607 = vpop.f32.mrf.mxu0
  %v608 = vadd.f32 0.0, %v607
  %v609 = vpop.f32.mrf.mxu0
  %v610 = vpop.f32.mrf.mxu0
  %v611 = vadd.f32 0.0, %v610
  %v612 = vpop.f32.mrf.mxu0
  %613 = vmatprep.mubr.bf16.mxu0 0
  %614 = vmatmul.mubr.bf16.gmra.mxu0 %v394
  %v615 = vpop.f32.mrf.mxu0
  %v616 = vadd.f32 0.0, %v615
  %v617 = vpop.f32.mrf.mxu0
  %v618 = vpop.f32.mrf.mxu0
  %v619 = vadd.f32 0.0, %v618
  %v620 = vpop.f32.mrf.mxu0
  %621 = vmatprep.mubr.bf16.mxu0 0
  %622 = vmatmul.mubr.bf16.gmra.mxu0 %v397
  %v623 = vpop.f32.mrf.mxu0
  %v624 = vadd.f32 0.0, %v623
  %v625 = vpop.f32.mrf.mxu0
  %v626 = vpop.f32.mrf.mxu0
  %v627 = vadd.f32 0.0, %v626
  %v628 = vpop.f32.mrf.mxu0
  %629 = vmatprep.mubr.bf16.mxu0 0
  %630 = vmatmul.mubr.bf16.gmra.mxu0 %v400
  %v631 = vpop.f32.mrf.mxu0
  %v632 = vadd.f32 0.0, %v631
  %v633 = vpop.f32.mrf.mxu0
  %v634 = vpop.f32.mrf.mxu0
  %v635 = vadd.f32 0.0, %v634
  %v636 = vpop.f32.mrf.mxu0
  %637 = vmatprep.mubr.bf16.mxu0 0
  %638 = vmatmul.mubr.bf16.gmra.mxu0 %v403
  %v639 = vpop.f32.mrf.mxu0
  %v640 = vadd.f32 0.0, %v639
  %v641 = vpop.f32.mrf.mxu0
  %v642 = vpop.f32.mrf.mxu0
  %v643 = vadd.f32 0.0, %v642
  %v644 = vpop.f32.mrf.mxu0
  %645 = vmatprep.mubr.bf16.mxu0 0
  %646 = vmatmul.mubr.bf16.gmra.mxu0 %v406
  %v647 = vpop.f32.mrf.mxu0
  %v648 = vadd.f32 0.0, %v647
  %v649 = vpop.f32.mrf.mxu0
  %v650 = vpop.f32.mrf.mxu0
  %v651 = vadd.f32 0.0, %v650
  %v652 = vpop.f32.mrf.mxu0
  %653 = vmatprep.mubr.bf16.mxu0 0
  %654 = vmatmul.mubr.bf16.gmra.mxu0 %v409
  %v655 = vpop.f32.mrf.mxu0
  %v656 = vadd.f32 0.0, %v655
  %v657 = vpop.f32.mrf.mxu0
  %v658 = vpop.f32.mrf.mxu0
  %v659 = vadd.f32 0.0, %v658
  %v660 = vpop.f32.mrf.mxu0
  %661 = vmatprep.mubr.bf16.mxu0 0
  %662 = vmatmul.mubr.bf16.gmra.mxu0 %v412
  %v663 = vpop.f32.mrf.mxu0
  %v664 = vadd.f32 0.0, %v663
  %v665 = vpop.f32.mrf.mxu0
  %v666 = vpop.f32.mrf.mxu0
  %v667 = vadd.f32 0.0, %v666
  %v668 = vpop.f32.mrf.mxu0
  %669 = vdwg.mxu0
  %v670 = vadd.f32 %v74, %v456
  %v671 = vadd.f32 %v75, %v459
  %v672 = vadd.f32 %v76, %v464
  %v673 = vadd.f32 %v77, %v467
  %v674 = vadd.f32 %v78, %v472
  %v675 = vadd.f32 %v79, %v475
  %v676 = vadd.f32 %v80, %v480
  %v677 = vadd.f32 %v81, %v483
  %v678 = vadd.f32 %v82, %v488
  %v679 = vadd.f32 %v83, %v491
  %v680 = vadd.f32 %v84, %v496
  %v681 = vadd.f32 %v85, %v499
  %v682 = vadd.f32 %v86, %v504
  %v683 = vadd.f32 %v87, %v507
  %v684 = vadd.f32 %v88, %v512
  %v685 = vadd.f32 %v89, %v515
  %v686 = vadd.f32 %v90, %v520
  %v687 = vadd.f32 %v91, %v523
  %v688 = vadd.f32 %v92, %v528
  %v689 = vadd.f32 %v93, %v531
  %v690 = vadd.f32 %v94, %v536
  %v691 = vadd.f32 %v95, %v539
  %v692 = vadd.f32 %v96, %v544
  %v693 = vadd.f32 %v97, %v547
  %v694 = vadd.f32 %v98, %v552
  %v695 = vadd.f32 %v99, %v555
  %v696 = vadd.f32 %v100, %v560
  %v697 = vadd.f32 %v101, %v563
  %v698 = vadd.f32 %v102, %v568
  %v699 = vadd.f32 %v103, %v571
  %v700 = vadd.f32 %v104, %v576
  %v701 = vadd.f32 %v105, %v579
  %v702 = vadd.f32 %v106, %v584
  %v703 = vadd.f32 %v107, %v587
  %v704 = vadd.f32 %v108, %v592
  %v705 = vadd.f32 %v109, %v595
  %v706 = vadd.f32 %v110, %v600
  %v707 = vadd.f32 %v111, %v603
  %v708 = vadd.f32 %v112, %v608
  %v709 = vadd.f32 %v113, %v611
  %v710 = vadd.f32 %v114, %v616
  %v711 = vadd.f32 %v115, %v619
  %v712 = vadd.f32 %v116, %v624
  %v713 = vadd.f32 %v117, %v627
  %v714 = vadd.f32 %v118, %v632
  %v715 = vadd.f32 %v119, %v635
  %v716 = vadd.f32 %v120, %v640
  %v717 = vadd.f32 %v121, %v643
  %v718 = vadd.f32 %v122, %v648
  %v719 = vadd.f32 %v123, %v651
  %v720 = vadd.f32 %v124, %v656
  %v721 = vadd.f32 %v125, %v659
  %v722 = vadd.f32 %v126, %v664
  %v723 = vadd.f32 %v127, %v667
  %vm724 = vcmask 64512
  %725 = vst.msk [vmem:[#allocation2] sm:$0xff] %vm724, %v670
  %726 = vst.msk [vmem:[#allocation2 + $0x8] sm:$0xff] %vm724, %v671
  %727 = vst.msk [vmem:[#allocation2 + $0x10] sm:$0xff] %vm724, %v672
  %728 = vst.msk [vmem:[#allocation2 + $0x18] sm:$0xff] %vm724, %v673
  %729 = vst.msk [vmem:[#allocation2 + $0x20] sm:$0xff] %vm724, %v674
  %730 = vst.msk [vmem:[#allocation2 + $0x28] sm:$0xff] %vm724, %v675
  %731 = vst.msk [vmem:[#allocation2 + $0x30] sm:$0xff] %vm724, %v676
  %732 = vst.msk [vmem:[#allocation2 + $0x38] sm:$0xff] %vm724, %v677
  %733 = vst.msk [vmem:[#allocation2 + $0x40] sm:$0xff] %vm724, %v678
  %734 = vst.msk [vmem:[#allocation2 + $0x48] sm:$0xff] %vm724, %v679
  %735 = vst.msk [vmem:[#allocation2 + $0x50] sm:$0xff] %vm724, %v680
  %736 = vst.msk [vmem:[#allocation2 + $0x58] sm:$0xff] %vm724, %v681
  %737 = vst.msk [vmem:[#allocation2 + $0x60] sm:$0xff] %vm724, %v682
  %738 = vst.msk [vmem:[#allocation2 + $0x68] sm:$0xff] %vm724, %v683
  %739 = vst.msk [vmem:[#allocation2 + $0x70] sm:$0xff] %vm724, %v684
  %740 = vst.msk [vmem:[#allocation2 + $0x78] sm:$0xff] %vm724, %v685
  %741 = vst.msk [vmem:[#allocation2 + $0x80] sm:$0xff] %vm724, %v686
  %742 = vst.msk [vmem:[#allocation2 + $0x88] sm:$0xff] %vm724, %v687
  %743 = vst.msk [vmem:[#allocation2 + $0x90] sm:$0xff] %vm724, %v688
  %744 = vst.msk [vmem:[#allocation2 + $0x98] sm:$0xff] %vm724, %v689
  %745 = vst.msk [vmem:[#allocation2 + $0xa0] sm:$0xff] %vm724, %v690
  %746 = vst.msk [vmem:[#allocation2 + $0xa8] sm:$0xff] %vm724, %v691
  %747 = vst.msk [vmem:[#allocation2 + $0xb0] sm:$0xff] %vm724, %v692
  %748 = vst.msk [vmem:[#allocation2 + $0xb8] sm:$0xff] %vm724, %v693
  %749 = vst.msk [vmem:[#allocation2 + $0xc0] sm:$0xff] %vm724, %v694
  %750 = vst.msk [vmem:[#allocation2 + $0xc8] sm:$0xff] %vm724, %v695
  %751 = vst.msk [vmem:[#allocation2 + $0xd0] sm:$0xff] %vm724, %v696
  %752 = vst.msk [vmem:[#allocation2 + $0xd8] sm:$0xff] %vm724, %v697
  %753 = vst.msk [vmem:[#allocation2 + $0xe0] sm:$0xff] %vm724, %v698
  %754 = vst.msk [vmem:[#allocation2 + $0xe8] sm:$0xff] %vm724, %v699
  %755 = vst.msk [vmem:[#allocation2 + $0xf0] sm:$0xff] %vm724, %v700
  %756 = vst.msk [vmem:[#allocation2 + $0xf8] sm:$0xff] %vm724, %v701
  %757 = vst.msk [vmem:[#allocation2 + $0x100] sm:$0xff] %vm724, %v702
  %758 = vst.msk [vmem:[#allocation2 + $0x108] sm:$0xff] %vm724, %v703
  %759 = vst.msk [vmem:[#allocation2 + $0x110] sm:$0xff] %vm724, %v704
  %760 = vst.msk [vmem:[#allocation2 + $0x118] sm:$0xff] %vm724, %v705
  %761 = vst.msk [vmem:[#allocation2 + $0x120] sm:$0xff] %vm724, %v706
  %762 = vst.msk [vmem:[#allocation2 + $0x128] sm:$0xff] %vm724, %v707
  %763 = vst.msk [vmem:[#allocation2 + $0x130] sm:$0xff] %vm724, %v708
  %764 = vst.msk [vmem:[#allocation2 + $0x138] sm:$0xff] %vm724, %v709
  %765 = vst.msk [vmem:[#allocation2 + $0x140] sm:$0xff] %vm724, %v710
  %766 = vst.msk [vmem:[#allocation2 + $0x148] sm:$0xff] %vm724, %v711
  %767 = vst.msk [vmem:[#allocation2 + $0x150] sm:$0xff] %vm724, %v712
  %768 = vst.msk [vmem:[#allocation2 + $0x158] sm:$0xff] %vm724, %v713
  %769 = vst.msk [vmem:[#allocation2 + $0x160] sm:$0xff] %vm724, %v714
  %770 = vst.msk [vmem:[#allocation2 + $0x168] sm:$0xff] %vm724, %v715
  %771 = vst.msk [vmem:[#allocation2 + $0x170] sm:$0xff] %vm724, %v716
  %772 = vst.msk [vmem:[#allocation2 + $0x178] sm:$0xff] %vm724, %v717
  %773 = vst.msk [vmem:[#allocation2 + $0x180] sm:$0xff] %vm724, %v718
  %774 = vst.msk [vmem:[#allocation2 + $0x188] sm:$0xff] %vm724, %v719
  %775 = vst.msk [vmem:[#allocation2 + $0x190] sm:$0xff] %vm724, %v720
  %776 = vst.msk [vmem:[#allocation2 + $0x198] sm:$0xff] %vm724, %v721
  %777 = vst.msk [vmem:[#allocation2 + $0x1a0] sm:$0xff] %vm724, %v722
  %778 = vst.msk [vmem:[#allocation2 + $0x1a8] sm:$0xff] %vm724, %v723
  // Predicated region
  $region18: #{joint_model_apply.38} parent=0 // pred_check
    %p779 = pneg %p15
  $region19: #{joint_model_apply.38} parent=0 // pred_check_branch
    %781 = sbr.rel (%p779) target = $region21
  $region20: #{joint_model_apply.38} parent=0 // pred_region
    %v782 = vld [vmem:[#allocation2] sm:$0xff]
    %v783 = vld [vmem:[#allocation2 + $0x8] sm:$0xff]
    %v784 = vld [vmem:[#allocation2 + $0x10] sm:$0xff]
    %v785 = vld [vmem:[#allocation2 + $0x18] sm:$0xff]
    %v786 = vld [vmem:[#allocation2 + $0x20] sm:$0xff]
    %v787 = vld [vmem:[#allocation2 + $0x28] sm:$0xff]
    %v788 = vld [vmem:[#allocation2 + $0x30] sm:$0xff]
    %v789 = vld [vmem:[#allocation2 + $0x38] sm:$0xff]
    %v790 = vld [vmem:[#allocation2 + $0x40] sm:$0xff]
    %v791 = vld [vmem:[#allocation2 + $0x48] sm:$0xff]
    %v792 = vld [vmem:[#allocation2 + $0x50] sm:$0xff]
    %v793 = vld [vmem:[#allocation2 + $0x58] sm:$0xff]
    %v794 = vld [vmem:[#allocation2 + $0x60] sm:$0xff]
    %v795 = vld [vmem:[#allocation2 + $0x68] sm:$0xff]
    %v796 = vld [vmem:[#allocation2 + $0x70] sm:$0xff]
    %v797 = vld [vmem:[#allocation2 + $0x78] sm:$0xff]
    %v798 = vld [vmem:[#allocation2 + $0x80] sm:$0xff]
    %v799 = vld [vmem:[#allocation2 + $0x88] sm:$0xff]
    %v800 = vld [vmem:[#allocation2 + $0x90] sm:$0xff]
    %v801 = vld [vmem:[#allocation2 + $0x98] sm:$0xff]
    %v802 = vld [vmem:[#allocation2 + $0xa0] sm:$0xff]
    %v803 = vld [vmem:[#allocation2 + $0xa8] sm:$0xff]
    %v804 = vld [vmem:[#allocation2 + $0xb0] sm:$0xff]
    %v805 = vld [vmem:[#allocation2 + $0xb8] sm:$0xff]
    %v806 = vld [vmem:[#allocation2 + $0xc0] sm:$0xff]
    %v807 = vld [vmem:[#allocation2 + $0xc8] sm:$0xff]
    %v808 = vld [vmem:[#allocation2 + $0xd0] sm:$0xff]
    %v809 = vld [vmem:[#allocation2 + $0xd8] sm:$0xff]
    %v810 = vld [vmem:[#allocation2 + $0xe0] sm:$0xff]
    %v811 = vld [vmem:[#allocation2 + $0xe8] sm:$0xff]
    %v812 = vld [vmem:[#allocation2 + $0xf0] sm:$0xff]
    %v813 = vld [vmem:[#allocation2 + $0xf8] sm:$0xff]
    %v814 = vld [vmem:[#allocation2 + $0x100] sm:$0xff]
    %v815 = vld [vmem:[#allocation2 + $0x108] sm:$0xff]
    %v816 = vld [vmem:[#allocation2 + $0x110] sm:$0xff]
    %v817 = vld [vmem:[#allocation2 + $0x118] sm:$0xff]
    %v818 = vld [vmem:[#allocation2 + $0x120] sm:$0xff]
    %v819 = vld [vmem:[#allocation2 + $0x128] sm:$0xff]
    %v820 = vld [vmem:[#allocation2 + $0x130] sm:$0xff]
    %v821 = vld [vmem:[#allocation2 + $0x138] sm:$0xff]
    %v822 = vld [vmem:[#allocation2 + $0x140] sm:$0xff]
    %v823 = vld [vmem:[#allocation2 + $0x148] sm:$0xff]
    %v824 = vld [vmem:[#allocation2 + $0x150] sm:$0xff]
    %v825 = vld [vmem:[#allocation2 + $0x158] sm:$0xff]
    %v826 = vld [vmem:[#allocation2 + $0x160] sm:$0xff]
    %v827 = vld [vmem:[#allocation2 + $0x168] sm:$0xff]
    %v828 = vld [vmem:[#allocation2 + $0x170] sm:$0xff]
    %v829 = vld [vmem:[#allocation2 + $0x178] sm:$0xff]
    %v830 = vld [vmem:[#allocation2 + $0x180] sm:$0xff]
    %v831 = vld [vmem:[#allocation2 + $0x188] sm:$0xff]
    %v832 = vld [vmem:[#allocation2 + $0x190] sm:$0xff]
    %v833 = vld [vmem:[#allocation2 + $0x198] sm:$0xff]
    %v834 = vld [vmem:[#allocation2 + $0x1a0] sm:$0xff]
    %v835 = vld [vmem:[#allocation2 + $0x1a8] sm:$0xff]
    %v836 = vld [vmem:[%s2] sm:$0x1]
    %v838 = vlaneseq
    %v839 = vshrl.u32 %v838, 7
    %v840 = vsub.s32 0, %v839
    %v841 = vrot.slane %v836, %v840
    %v843 = vadd.f32 %v782, %v841
    %v844 = vadd.f32 %v783, %v841
    %v845 = vadd.f32 %v784, %v841
    %v846 = vadd.f32 %v785, %v841
    %v847 = vadd.f32 %v786, %v841
    %v848 = vadd.f32 %v787, %v841
    %v849 = vadd.f32 %v788, %v841
    %v850 = vadd.f32 %v789, %v841
    %v851 = vadd.f32 %v790, %v841
    %v852 = vadd.f32 %v791, %v841
    %v853 = vadd.f32 %v792, %v841
    %v854 = vadd.f32 %v793, %v841
    %v855 = vadd.f32 %v794, %v841
    %v856 = vadd.f32 %v795, %v841
    %v857 = vadd.f32 %v796, %v841
    %v858 = vadd.f32 %v797, %v841
    %v859 = vadd.f32 %v798, %v841
    %v860 = vadd.f32 %v799, %v841
    %v861 = vadd.f32 %v800, %v841
    %v862 = vadd.f32 %v801, %v841
    %v863 = vadd.f32 %v802, %v841
    %v864 = vadd.f32 %v803, %v841
    %v865 = vadd.f32 %v804, %v841
    %v866 = vadd.f32 %v805, %v841
    %v867 = vadd.f32 %v806, %v841
    %v868 = vadd.f32 %v807, %v841
    %v869 = vadd.f32 %v808, %v841
    %v870 = vadd.f32 %v809, %v841
    %v871 = vadd.f32 %v810, %v841
    %v872 = vadd.f32 %v811, %v841
    %v873 = vadd.f32 %v812, %v841
    %v874 = vadd.f32 %v813, %v841
    %v875 = vadd.f32 %v814, %v841
    %v876 = vadd.f32 %v815, %v841
    %v877 = vadd.f32 %v816, %v841
    %v878 = vadd.f32 %v817, %v841
    %v879 = vadd.f32 %v818, %v841
    %v880 = vadd.f32 %v819, %v841
    %v881 = vadd.f32 %v820, %v841
    %v882 = vadd.f32 %v821, %v841
    %v883 = vadd.f32 %v822, %v841
    %v884 = vadd.f32 %v823, %v841
    %v885 = vadd.f32 %v824, %v841
    %v886 = vadd.f32 %v825, %v841
    %v887 = vadd.f32 %v826, %v841
    %v888 = vadd.f32 %v827, %v841
    %v889 = vadd.f32 %v828, %v841
    %v890 = vadd.f32 %v829, %v841
    %v891 = vadd.f32 %v830, %v841
    %v892 = vadd.f32 %v831, %v841
    %v893 = vadd.f32 %v832, %v841
    %v894 = vadd.f32 %v833, %v841
    %v895 = vadd.f32 %v834, %v841
    %v896 = vadd.f32 %v835, %v841
    %vm897 = vcmp.ge.f32.partialorder %v843, 0.0
    %vm898 = vcmp.ge.f32.partialorder %v844, 0.0
    %vm899 = vcmp.ge.f32.partialorder %v845, 0.0
    %vm900 = vcmp.ge.f32.partialorder %v846, 0.0
    %vm901 = vcmp.ge.f32.partialorder %v847, 0.0
    %vm902 = vcmp.ge.f32.partialorder %v848, 0.0
    %vm903 = vcmp.ge.f32.partialorder %v849, 0.0
    %vm904 = vcmp.ge.f32.partialorder %v850, 0.0
    %vm905 = vcmp.ge.f32.partialorder %v851, 0.0
    %vm906 = vcmp.ge.f32.partialorder %v852, 0.0
    %vm907 = vcmp.ge.f32.partialorder %v853, 0.0
    %vm908 = vcmp.ge.f32.partialorder %v854, 0.0
    %vm909 = vcmp.ge.f32.partialorder %v855, 0.0
    %vm910 = vcmp.ge.f32.partialorder %v856, 0.0
    %vm911 = vcmp.ge.f32.partialorder %v857, 0.0
    %vm912 = vcmp.ge.f32.partialorder %v858, 0.0
    %vm913 = vcmp.ge.f32.partialorder %v859, 0.0
    %vm914 = vcmp.ge.f32.partialorder %v860, 0.0
    %vm915 = vcmp.ge.f32.partialorder %v861, 0.0
    %vm916 = vcmp.ge.f32.partialorder %v862, 0.0
    %vm917 = vcmp.ge.f32.partialorder %v863, 0.0
    %vm918 = vcmp.ge.f32.partialorder %v864, 0.0
    %vm919 = vcmp.ge.f32.partialorder %v865, 0.0
    %vm920 = vcmp.ge.f32.partialorder %v866, 0.0
    %vm921 = vcmp.ge.f32.partialorder %v867, 0.0
    %vm922 = vcmp.ge.f32.partialorder %v868, 0.0
    %vm923 = vcmp.ge.f32.partialorder %v869, 0.0
    %vm924 = vcmp.ge.f32.partialorder %v870, 0.0
    %vm925 = vcmp.ge.f32.partialorder %v871, 0.0
    %vm926 = vcmp.ge.f32.partialorder %v872, 0.0
    %vm927 = vcmp.ge.f32.partialorder %v873, 0.0
    %vm928 = vcmp.ge.f32.partialorder %v874, 0.0
    %vm929 = vcmp.ge.f32.partialorder %v875, 0.0
    %vm930 = vcmp.ge.f32.partialorder %v876, 0.0
    %vm931 = vcmp.ge.f32.partialorder %v877, 0.0
    %vm932 = vcmp.ge.f32.partialorder %v878, 0.0
    %vm933 = vcmp.ge.f32.partialorder %v879, 0.0
    %vm934 = vcmp.ge.f32.partialorder %v880, 0.0
    %vm935 = vcmp.ge.f32.partialorder %v881, 0.0
    %vm936 = vcmp.ge.f32.partialorder %v882, 0.0
    %vm937 = vcmp.ge.f32.partialorder %v883, 0.0
    %vm938 = vcmp.ge.f32.partialorder %v884, 0.0
    %vm939 = vcmp.ge.f32.partialorder %v885, 0.0
    %vm940 = vcmp.ge.f32.partialorder %v886, 0.0
    %vm941 = vcmp.ge.f32.partialorder %v887, 0.0
    %vm942 = vcmp.ge.f32.partialorder %v888, 0.0
    %vm943 = vcmp.ge.f32.partialorder %v889, 0.0
    %vm944 = vcmp.ge.f32.partialorder %v890, 0.0
    %vm945 = vcmp.ge.f32.partialorder %v891, 0.0
    %vm946 = vcmp.ge.f32.partialorder %v892, 0.0
    %vm947 = vcmp.ge.f32.partialorder %v893, 0.0
    %vm948 = vcmp.ge.f32.partialorder %v894, 0.0
    %vm949 = vcmp.ge.f32.partialorder %v895, 0.0
    %vm950 = vcmp.ge.f32.partialorder %v896, 0.0
    %v951 = vmul.f32 %v843, 0.2
    %v952 = vmul.f32 %v844, 0.2
    %v953 = vmul.f32 %v845, 0.2
    %v954 = vmul.f32 %v846, 0.2
    %v955 = vmul.f32 %v847, 0.2
    %v956 = vmul.f32 %v848, 0.2
    %v957 = vmul.f32 %v849, 0.2
    %v958 = vmul.f32 %v850, 0.2
    %v959 = vmul.f32 %v851, 0.2
    %v960 = vmul.f32 %v852, 0.2
    %v961 = vmul.f32 %v853, 0.2
    %v962 = vmul.f32 %v854, 0.2
    %v963 = vmul.f32 %v855, 0.2
    %v964 = vmul.f32 %v856, 0.2
    %v965 = vmul.f32 %v857, 0.2
    %v966 = vmul.f32 %v858, 0.2
    %v967 = vmul.f32 %v859, 0.2
    %v968 = vmul.f32 %v860, 0.2
    %v969 = vmul.f32 %v861, 0.2
    %v970 = vmul.f32 %v862, 0.2
    %v971 = vmul.f32 %v863, 0.2
    %v972 = vmul.f32 %v864, 0.2
    %v973 = vmul.f32 %v865, 0.2
    %v974 = vmul.f32 %v866, 0.2
    %v975 = vmul.f32 %v867, 0.2
    %v976 = vmul.f32 %v868, 0.2
    %v977 = vmul.f32 %v869, 0.2
    %v978 = vmul.f32 %v870, 0.2
    %v979 = vmul.f32 %v871, 0.2
    %v980 = vmul.f32 %v872, 0.2
    %v981 = vmul.f32 %v873, 0.2
    %v982 = vmul.f32 %v874, 0.2
    %v983 = vmul.f32 %v875, 0.2
    %v984 = vmul.f32 %v876, 0.2
    %v985 = vmul.f32 %v877, 0.2
    %v986 = vmul.f32 %v878, 0.2
    %v987 = vmul.f32 %v879, 0.2
    %v988 = vmul.f32 %v880, 0.2
    %v989 = vmul.f32 %v881, 0.2
    %v990 = vmul.f32 %v882, 0.2
    %v991 = vmul.f32 %v883, 0.2
    %v992 = vmul.f32 %v884, 0.2
    %v993 = vmul.f32 %v885, 0.2
    %v994 = vmul.f32 %v886, 0.2
    %v995 = vmul.f32 %v887, 0.2
    %v996 = vmul.f32 %v888, 0.2
    %v997 = vmul.f32 %v889, 0.2
    %v998 = vmul.f32 %v890, 0.2
    %v999 = vmul.f32 %v891, 0.2
    %v1000 = vmul.f32 %v892, 0.2
    %v1001 = vmul.f32 %v893, 0.2
    %v1002 = vmul.f32 %v894, 0.2
    %v1003 = vmul.f32 %v895, 0.2
    %v1004 = vmul.f32 %v896, 0.2
    %v1005 = vsel %vm897, %v843, %v951
    %v1006 = vsel %vm898, %v844, %v952
    %v1007 = vsel %vm899, %v845, %v953
    %v1008 = vsel %vm900, %v846, %v954
    %v1009 = vsel %vm901, %v847, %v955
    %v1010 = vsel %vm902, %v848, %v956
    %v1011 = vsel %vm903, %v849, %v957
    %v1012 = vsel %vm904, %v850, %v958
    %v1013 = vsel %vm905, %v851, %v959
    %v1014 = vsel %vm906, %v852, %v960
    %v1015 = vsel %vm907, %v853, %v961
    %v1016 = vsel %vm908, %v854, %v962
    %v1017 = vsel %vm909, %v855, %v963
    %v1018 = vsel %vm910, %v856, %v964
    %v1019 = vsel %vm911, %v857, %v965
    %v1020 = vsel %vm912, %v858, %v966
    %v1021 = vsel %vm913, %v859, %v967
    %v1022 = vsel %vm914, %v860, %v968
    %v1023 = vsel %vm915, %v861, %v969
    %v1024 = vsel %vm916, %v862, %v970
    %v1025 = vsel %vm917, %v863, %v971
    %v1026 = vsel %vm918, %v864, %v972
    %v1027 = vsel %vm919, %v865, %v973
    %v1028 = vsel %vm920, %v866, %v974
    %v1029 = vsel %vm921, %v867, %v975
    %v1030 = vsel %vm922, %v868, %v976
    %v1031 = vsel %vm923, %v869, %v977
    %v1032 = vsel %vm924, %v870, %v978
    %v1033 = vsel %vm925, %v871, %v979
    %v1034 = vsel %vm926, %v872, %v980
    %v1035 = vsel %vm927, %v873, %v981
    %v1036 = vsel %vm928, %v874, %v982
    %v1037 = vsel %vm929, %v875, %v983
    %v1038 = vsel %vm930, %v876, %v984
    %v1039 = vsel %vm931, %v877, %v985
    %v1040 = vsel %vm932, %v878, %v986
    %v1041 = vsel %vm933, %v879, %v987
    %v1042 = vsel %vm934, %v880, %v988
    %v1043 = vsel %vm935, %v881, %v989
    %v1044 = vsel %vm936, %v882, %v990
    %v1045 = vsel %vm937, %v883, %v991
    %v1046 = vsel %vm938, %v884, %v992
    %v1047 = vsel %vm939, %v885, %v993
    %v1048 = vsel %vm940, %v886, %v994
    %v1049 = vsel %vm941, %v887, %v995
    %v1050 = vsel %vm942, %v888, %v996
    %v1051 = vsel %vm943, %v889, %v997
    %v1052 = vsel %vm944, %v890, %v998
    %v1053 = vsel %vm945, %v891, %v999
    %v1054 = vsel %vm946, %v892, %v1000
    %v1055 = vsel %vm947, %v893, %v1001
    %v1056 = vsel %vm948, %v894, %v1002
    %v1057 = vsel %vm949, %v895, %v1003
    %v1058 = vsel %vm950, %v896, %v1004
    %1059 = vst.msk [vmem:[%s3] sm:$0xff] %vm724, %v1005
    %1060 = vst.msk [vmem:[%s3 + $0x8] sm:$0xff] %vm724, %v1006
    %1061 = vst.msk [vmem:[%s3 + $0x10] sm:$0xff] %vm724, %v1007
    %1062 = vst.msk [vmem:[%s3 + $0x18] sm:$0xff] %vm724, %v1008
    %1063 = vst.msk [vmem:[%s3 + $0x20] sm:$0xff] %vm724, %v1009
    %1064 = vst.msk [vmem:[%s3 + $0x28] sm:$0xff] %vm724, %v1010
    %1065 = vst.msk [vmem:[%s3 + $0x30] sm:$0xff] %vm724, %v1011
    %1066 = vst.msk [vmem:[%s3 + $0x38] sm:$0xff] %vm724, %v1012
    %1067 = vst.msk [vmem:[%s3 + $0x40] sm:$0xff] %vm724, %v1013
    %1068 = vst.msk [vmem:[%s3 + $0x48] sm:$0xff] %vm724, %v1014
    %1069 = vst.msk [vmem:[%s3 + $0x50] sm:$0xff] %vm724, %v1015
    %1070 = vst.msk [vmem:[%s3 + $0x58] sm:$0xff] %vm724, %v1016
    %1071 = vst.msk [vmem:[%s3 + $0x60] sm:$0xff] %vm724, %v1017
    %1072 = vst.msk [vmem:[%s3 + $0x68] sm:$0xff] %vm724, %v1018
    %1073 = vst.msk [vmem:[%s3 + $0x70] sm:$0xff] %vm724, %v1019
    %1074 = vst.msk [vmem:[%s3 + $0x78] sm:$0xff] %vm724, %v1020
    %1075 = vst.msk [vmem:[%s3 + $0x80] sm:$0xff] %vm724, %v1021
    %1076 = vst.msk [vmem:[%s3 + $0x88] sm:$0xff] %vm724, %v1022
    %1077 = vst.msk [vmem:[%s3 + $0x90] sm:$0xff] %vm724, %v1023
    %1078 = vst.msk [vmem:[%s3 + $0x98] sm:$0xff] %vm724, %v1024
    %1079 = vst.msk [vmem:[%s3 + $0xa0] sm:$0xff] %vm724, %v1025
    %1080 = vst.msk [vmem:[%s3 + $0xa8] sm:$0xff] %vm724, %v1026
    %1081 = vst.msk [vmem:[%s3 + $0xb0] sm:$0xff] %vm724, %v1027
    %1082 = vst.msk [vmem:[%s3 + $0xb8] sm:$0xff] %vm724, %v1028
    %1083 = vst.msk [vmem:[%s3 + $0xc0] sm:$0xff] %vm724, %v1029
    %1084 = vst.msk [vmem:[%s3 + $0xc8] sm:$0xff] %vm724, %v1030
    %1085 = vst.msk [vmem:[%s3 + $0xd0] sm:$0xff] %vm724, %v1031
    %1086 = vst.msk [vmem:[%s3 + $0xd8] sm:$0xff] %vm724, %v1032
    %1087 = vst.msk [vmem:[%s3 + $0xe0] sm:$0xff] %vm724, %v1033
    %1088 = vst.msk [vmem:[%s3 + $0xe8] sm:$0xff] %vm724, %v1034
    %1089 = vst.msk [vmem:[%s3 + $0xf0] sm:$0xff] %vm724, %v1035
    %1090 = vst.msk [vmem:[%s3 + $0xf8] sm:$0xff] %vm724, %v1036
    %1091 = vst.msk [vmem:[%s3 + $0x100] sm:$0xff] %vm724, %v1037
    %1092 = vst.msk [vmem:[%s3 + $0x108] sm:$0xff] %vm724, %v1038
    %1093 = vst.msk [vmem:[%s3 + $0x110] sm:$0xff] %vm724, %v1039
    %1094 = vst.msk [vmem:[%s3 + $0x118] sm:$0xff] %vm724, %v1040
    %1095 = vst.msk [vmem:[%s3 + $0x120] sm:$0xff] %vm724, %v1041
    %1096 = vst.msk [vmem:[%s3 + $0x128] sm:$0xff] %vm724, %v1042
    %1097 = vst.msk [vmem:[%s3 + $0x130] sm:$0xff] %vm724, %v1043
    %1098 = vst.msk [vmem:[%s3 + $0x138] sm:$0xff] %vm724, %v1044
    %1099 = vst.msk [vmem:[%s3 + $0x140] sm:$0xff] %vm724, %v1045
    %1100 = vst.msk [vmem:[%s3 + $0x148] sm:$0xff] %vm724, %v1046
    %1101 = vst.msk [vmem:[%s3 + $0x150] sm:$0xff] %vm724, %v1047
    %1102 = vst.msk [vmem:[%s3 + $0x158] sm:$0xff] %vm724, %v1048
    %1103 = vst.msk [vmem:[%s3 + $0x160] sm:$0xff] %vm724, %v1049
    %1104 = vst.msk [vmem:[%s3 + $0x168] sm:$0xff] %vm724, %v1050
    %1105 = vst.msk [vmem:[%s3 + $0x170] sm:$0xff] %vm724, %v1051
    %1106 = vst.msk [vmem:[%s3 + $0x178] sm:$0xff] %vm724, %v1052
    %1107 = vst.msk [vmem:[%s3 + $0x180] sm:$0xff] %vm724, %v1053
    %1108 = vst.msk [vmem:[%s3 + $0x188] sm:$0xff] %vm724, %v1054
    %1109 = vst.msk [vmem:[%s3 + $0x190] sm:$0xff] %vm724, %v1055
    %1110 = vst.msk [vmem:[%s3 + $0x198] sm:$0xff] %vm724, %v1056
    %1111 = vst.msk [vmem:[%s3 + $0x1a0] sm:$0xff] %vm724, %v1057
    %1112 = vst.msk [vmem:[%s3 + $0x1a8] sm:$0xff] %vm724, %v1058
  $region21: #{joint_model_apply.38} parent=0 // pred_fallthru
    _
  // Predicated region
  $region22: #{joint_model_apply.38} parent=0 // pred_check
    _
  $region23: #{joint_model_apply.38} parent=0 // pred_check_branch
    %1114 = sbr.rel (0) target = $region25
  $region24: #{joint_model_apply.38} parent=0 // pred_region
    _
  $region25: #{joint_model_apply.38} parent=0 // pred_fallthru
    _
  // Predicated region
  $region26: #{joint_model_apply.38} parent=0 // pred_check
    _
  $region27: #{joint_model_apply.38} parent=0 // pred_check_branch
    %1116 = sbr.rel (0) target = $region29
  $region28: #{joint_model_apply.38} parent=0 // pred_region
    _
  $region29: #{joint_model_apply.38} parent=0 // pred_fallthru
    _

// kernel: joint_model_apply.39
$region0: #{joint_model_apply.39}
  #allocation0 [shape = 'u32[]', space=smem, size = 0x4, offset = 0x4, fixed_abs, tag = 'smem constant byte address 0x4 - core index']
  #allocation1 [shape = 'u32[144,128]{1,0:T(1,128)}', space=vmem, size = 0x12000, scoped, tag = 'internal scratch']
  #allocation2 [shape = 'f32[512,1]{1,0:T(8,128)}', space=vmem, size = 0x40000, scoped, tag = 'scratch operand']
  #allocation3 [shape = 'f32[1,1]{1,0:T(1,128)S(1)}', space=vmem, size = 0x200, scoped, tag = 'scoped memory for joint_model_apply.39']
  %s0 = inlined_call_operand.vmem [shape: bf16[1024,216], index: 0, kind: input, shape index: {}]
  %s1 = inlined_call_operand.vmem [shape: bf16[216,1], index: 1, kind: input, shape index: {}]
  %s2 = inlined_call_operand.<no memory space> [shape: f32[1,1], index: 2, kind: input, shape index: {}]
  %s3 = inlined_call_operand.vmem [shape: f32[1024,1], index: 3, kind: output, shape index: {}]
  %s4 = sld [smem:[#allocation0]]
  $region53: #{joint_model_apply.39} parent=0
    _
  %s6 = ssub.s32 1, %s4
  %s7 = scalar_select 0, %s6, %s4
  %v8 = vstv %s2
  %9 = vst [vmem:[#allocation3] sm:$0x1] %v8
  loop: start=0, step=1, limit=4
  $region2: #{joint_model_apply.39} parent=0 // loop_pre_header
    _
  $region3: #{joint_model_apply.39} parent=0 // loop_header
    %s11 = sphi 0, %s15
    %p12 = scmp.ge.s32.totalorder %s11, 4
    %s18 = sphi 0, %s30
    %s19 = sphi 0, %s26
    %s20 = sphi 0, %s18
    %s21 = sphi 0, %s19
    %s22 = sphi 0, %s20
    %s23 = sphi 0, %s21
    %s35 = sphi 0, %s37
    %s38 = sphi 0, %s35
    %s39 = sphi 0, %s38
    %s55 = sphi 0, %s39
    %s61 = sphi 0, %s63
    %s64 = sphi 0, %s61
    %s65 = sphi 0, %s64
    %s81 = sphi 0, %s65
    %s85 = sphi 0, %s85
    %s87 = sphi 0, %s85
    %s88 = sphi 0, %s87
    %s102 = sphi 0, %s88
    %s108 = sphi 0, %s110
    %s111 = sphi 0, %s108
    %s112 = sphi 0, %s111
    %s128 = sphi 0, %s112
  $region4: #{joint_model_apply.39} parent=0 // loop_header_branch
    %14 = sbr.rel (%p12) target = $region8
  $region5: #{joint_model_apply.39} parent=0 // loop_body
    %s16 = ssub.s32 %s11, 1
    %s17 = ssub.s32 %s11, 2
    %s24 = sadd.s32 1, %s19
    %p25 = scmp.ge.s32.totalorder %s24, 1
    %s26 = scalar_select %p25, 0, %s24
    %s27 = sadd.s32 1, %s18
    %s28 = scalar_select %p25, %s27, %s18
    %p29 = scmp.ge.s32.totalorder %s28, 2
    %s30 = scalar_select %p29, 0, %s28
    %s31 = ssub.s32 %s18, %s30
    %s32 = ssub.s32 %s19, %s26
    %s33 = sor.u32 %s31, %s32
    %p34 = scmp.eq.s32.totalorder %s33, 0
    %s36 = sadd.s32 %s35, 1
    %s37 = scalar_select %p34, %s35, %s36
    %p40 = pneg %p34
    %p41 = scmp.eq.s32.totalorder %s11, 1
    %p42 = por %p40, %p41
    %p43 = scmp.ne.s32.totalorder %s35, %s38
    %p44 = scmp.eq.s32.totalorder %s11, 0
    %p45 = por %p43, %p44
    %p46 = scmp.ne.s32.totalorder %s35, %s38
    %p47 = scmp.eq.s32.totalorder %s16, 1
    %p48 = por %p46, %p47
    %p49 = scmp.ne.s32.totalorder %s38, %s39
    %p50 = scmp.eq.s32.totalorder %s16, 0
    %p51 = por %p49, %p50
    %p52 = scmp.ne.s32.totalorder %s38, %s39
    %p53 = scmp.eq.s32.totalorder %s17, 1
    %p54 = por %p52, %p53
    %p56 = scmp.ne.s32.totalorder %s39, %s55
    %p57 = scmp.eq.s32.totalorder %s17, 0
    %p58 = por %p56, %p57
    %s59 = ssub.s32 %s19, %s26
    %p60 = scmp.eq.s32.totalorder %s59, 0
    %s62 = sadd.s32 %s61, 1
    %s63 = scalar_select %p60, %s61, %s62
    %p66 = pneg %p60
    %p67 = scmp.eq.s32.totalorder %s11, 1
    %p68 = por %p66, %p67
    %p69 = scmp.ne.s32.totalorder %s61, %s64
    %p70 = scmp.eq.s32.totalorder %s11, 0
    %p71 = por %p69, %p70
    %p72 = scmp.ne.s32.totalorder %s61, %s64
    %p73 = scmp.eq.s32.totalorder %s16, 1
    %p74 = por %p72, %p73
    %p75 = scmp.ne.s32.totalorder %s64, %s65
    %p76 = scmp.eq.s32.totalorder %s16, 0
    %p77 = por %p75, %p76
    %p78 = scmp.ne.s32.totalorder %s64, %s65
    %p79 = scmp.eq.s32.totalorder %s17, 1
    %p80 = por %p78, %p79
    %p82 = scmp.ne.s32.totalorder %s65, %s81
    %p83 = scmp.eq.s32.totalorder %s17, 0
    %p84 = por %p82, %p83
    %s86 = sadd.s32 %s85, 1
    %p89 = scmp.eq.s32.totalorder %s11, 1
    %p90 = scmp.ne.s32.totalorder %s85, %s87
    %p91 = scmp.eq.s32.totalorder %s11, 0
    %p92 = por %p90, %p91
    %p93 = scmp.ne.s32.totalorder %s85, %s87
    %p94 = scmp.eq.s32.totalorder %s16, 1
    %p95 = por %p93, %p94
    %p96 = scmp.ne.s32.totalorder %s87, %s88
    %p97 = scmp.eq.s32.totalorder %s16, 0
    %p98 = por %p96, %p97
    %p99 = scmp.ne.s32.totalorder %s87, %s88
    %p100 = scmp.eq.s32.totalorder %s17, 1
    %p101 = por %p99, %p100
    %p103 = scmp.ne.s32.totalorder %s88, %s102
    %p104 = scmp.eq.s32.totalorder %s17, 0
    %p105 = por %p103, %p104
    %s106 = ssub.s32 %s18, %s30
    %p107 = scmp.eq.s32.totalorder %s106, 0
    %s109 = sadd.s32 %s108, 1
    %s110 = scalar_select %p107, %s108, %s109
    %p113 = pneg %p107
    %p114 = scmp.eq.s32.totalorder %s11, 1
    %p115 = por %p113, %p114
    %p116 = scmp.ne.s32.totalorder %s108, %s111
    %p117 = scmp.eq.s32.totalorder %s11, 0
    %p118 = por %p116, %p117
    %p119 = scmp.ne.s32.totalorder %s108, %s111
    %p120 = scmp.eq.s32.totalorder %s16, 1
    %p121 = por %p119, %p120
    %p122 = scmp.ne.s32.totalorder %s111, %s112
    %p123 = scmp.eq.s32.totalorder %s16, 0
    %p124 = por %p122, %p123
    %p125 = scmp.ne.s32.totalorder %s111, %s112
    %p126 = scmp.eq.s32.totalorder %s17, 1
    %p127 = por %p125, %p126
    %p129 = scmp.ne.s32.totalorder %s112, %s128
    %p130 = scmp.eq.s32.totalorder %s17, 0
    %p131 = por %p129, %p130
    %p132 = scmp.le.s32.totalorder 1, %s11
    %p133 = scmp.lt.s32.totalorder %s11, 3
    %p134 = pnand %p132, %p133
    %p135 = pneg %p134
    // Predicated region
    $region9: #{joint_model_apply.39} parent=5 // pred_check
      _
    $region10: #{joint_model_apply.39} parent=5 // pred_check_branch
      %137 = sbr.rel (%p134) target = $region12
    $region11: #{joint_model_apply.39} parent=5 // pred_region
      %s138 = ssub.s32 %s11, 1
      // Predicated region
      $region13: #{joint_model_apply.39} parent=11 // pred_check
        %p139 = pneg %p77
      $region14: #{joint_model_apply.39} parent=11 // pred_check_branch
        %141 = sbr.rel (%p139) target = $region16
      $region15: #{joint_model_apply.39} parent=11 // pred_region
        %s142 = smul.u32 27, %s21
        %p143 = scmp.lt.s32.totalorder %s142, 26
        %s144 = scalar_select %p143, %s142, 26
        %s145 = smul.addr %s144, 4
        %s146 = scalar_lea.vmem %s1, %s145
        %s147 = smul.u32 27, %s21
      $region16: #{joint_model_apply.39} parent=11 // pred_fallthru
        _
      // Predicated region
      $region17: #{joint_model_apply.39} parent=11 // pred_check
        %p148 = pneg %p98
      $region18: #{joint_model_apply.39} parent=11 // pred_check_branch
        %150 = sbr.rel (%p148) target = $region20
      $region19: #{joint_model_apply.39} parent=11 // pred_region
        _
      $region20: #{joint_model_apply.39} parent=11 // pred_fallthru
        _
    $region12: #{joint_model_apply.39} parent=5 // pred_fallthru
      _
    %p151 = scmp.lt.s32.totalorder %s11, 2
    // Predicated region
    $region21: #{joint_model_apply.39} parent=5 // pred_check
      %p152 = pneg %p151
    $region22: #{joint_model_apply.39} parent=5 // pred_check_branch
      %154 = sbr.rel (%p152) target = $region24
    $region23: #{joint_model_apply.39} parent=5 // pred_region
      // Predicated region
      $region25: #{joint_model_apply.39} parent=23 // pred_check
        %p155 = pneg %p45
      $region26: #{joint_model_apply.39} parent=23 // pred_check_branch
        %157 = sbr.rel (%p155) target = $region28
      $region27: #{joint_model_apply.39} parent=23 // pred_region
        %s158 = smul.u32 64, %s18
        %s159 = smul.u32 2, %s19
        %p160 = scmp.lt.s32.totalorder %s158, 127
        %s161 = scalar_select %p160, %s158, 127
        %p162 = scmp.lt.s32.totalorder %s159, 1
        %s163 = scalar_select %p162, %s159, 1
        %s164 = smul.addr %s161, 2
        %s165 = sadd.s32 %s163, %s164
        %s166 = smul.addr %s165, 4
        %s167 = scalar_lea.vmem %s0, %s166
        %s168 = smul.u32 64, %s18
        %s169 = smul.u32 2, %s19
      $region28: #{joint_model_apply.39} parent=23 // pred_fallthru
        _
    $region24: #{joint_model_apply.39} parent=5 // pred_fallthru
      _
    %p170 = scmp.le.s32.totalorder 1, %s11
    %p171 = scmp.lt.s32.totalorder %s11, 3
    %p172 = pnand %p170, %p171
    %p173 = pneg %p172
    // Predicated region
    $region29: #{joint_model_apply.39} parent=5 // pred_check
      _
    $region30: #{joint_model_apply.39} parent=5 // pred_check_branch
      %175 = sbr.rel (%p172) target = $region32
    $region31: #{joint_model_apply.39} parent=5 // pred_region
      %s176 = ssub.s32 %s11, 1
      %s177 = smul.u32 64, %s20
      %s178 = smul.u32 2, %s21
      %p179 = scmp.lt.s32.totalorder %s177, 127
      %s180 = scalar_select %p179, %s177, 127
      %p181 = scmp.lt.s32.totalorder %s178, 1
      %s182 = scalar_select %p181, %s178, 1
      %s183 = smul.addr %s180, 2
      %s184 = sadd.s32 %s182, %s183
      %s185 = smul.addr %s184, 4
      %s186 = scalar_lea.vmem %s0, %s185
      %p187 = pneg %p51
      %p188 = pneg %p48
      %s189 = smul.u32 27, %s21
      %p190 = scmp.lt.s32.totalorder %s189, 26
      %s191 = scalar_select %p190, %s189, 26
      %s192 = smul.addr %s191, 4
      %s193 = scalar_lea.vmem %s1, %s192
      %p194 = pneg %p77
      %p195 = pneg %p74
      %p196 = pneg %p98
      %p197 = pneg %p95
      %p198 = pneg %p124
      %p199 = pneg %p121
      %s200 = smul.u32 64, %s20
      %p201 = scmp.lt.s32.totalorder %s200, 127
      %s202 = scalar_select %p201, %s200, 127
      %s203 = smul.addr %s202, 8
      %s204 = scalar_lea.vmem %s3, %s203
      %s205 = smul.u32 64, %s20
      %s206 = smul.u32 2, %s21
      %p207 = scmp.lt.s32.totalorder %s205, 127
      %s208 = scalar_select %p207, %s205, 127
      %p209 = scmp.lt.s32.totalorder %s206, 1
      %s210 = scalar_select %p209, %s206, 1
      %s211 = smul.addr %s208, 2
      %s212 = sadd.s32 %s210, %s211
      %s213 = smul.addr %s212, 4
      %s214 = scalar_lea.vmem %s0, %s213
      %s215 = smul.u32 64, %s20
      %s216 = smul.u32 2, %s21
      %s217 = smul.u32 27, %s21
      %p218 = scmp.lt.s32.totalorder %s217, 26
      %s219 = scalar_select %p218, %s217, 26
      %s220 = smul.addr %s219, 4
      %s221 = scalar_lea.vmem %s1, %s220
      %s222 = smul.u32 27, %s21
      %s223 = smul.u32 64, %s20
      %p224 = scmp.lt.s32.totalorder %s223, 127
      %s225 = scalar_select %p224, %s223, 127
      %s226 = smul.addr %s225, 8
      %s227 = scalar_lea.vmem %s3, %s226
      %s228 = smul.u32 64, %s20
      %p230 = scmp.eq.s32.totalorder %s21, 0
      // Predicated region
      $region33: #{joint_model_apply.39} parent=31 // pred_check
        %p231 = pneg %p230
      $region34: #{joint_model_apply.39} parent=31 // pred_check_branch
        %233 = sbr.rel (%p231) target = $region36
      $region35: #{joint_model_apply.39} parent=31 // pred_region
        %vm234 = vcmask 7168
        %235 = vst.msk [vmem:[#allocation2] sm:$0xff] %vm234, 0.0
        %236 = vst.msk [vmem:[#allocation2 + $0x8] sm:$0xff] %vm234, 0.0
        %237 = vst.msk [vmem:[#allocation2 + $0x10] sm:$0xff] %vm234, 0.0
        %238 = vst.msk [vmem:[#allocation2 + $0x18] sm:$0xff] %vm234, 0.0
        %239 = vst.msk [vmem:[#allocation2 + $0x20] sm:$0xff] %vm234, 0.0
        %240 = vst.msk [vmem:[#allocation2 + $0x28] sm:$0xff] %vm234, 0.0
        %241 = vst.msk [vmem:[#allocation2 + $0x30] sm:$0xff] %vm234, 0.0
        %242 = vst.msk [vmem:[#allocation2 + $0x38] sm:$0xff] %vm234, 0.0
        %243 = vst.msk [vmem:[#allocation2 + $0x40] sm:$0xff] %vm234, 0.0
        %244 = vst.msk [vmem:[#allocation2 + $0x48] sm:$0xff] %vm234, 0.0
        %245 = vst.msk [vmem:[#allocation2 + $0x50] sm:$0xff] %vm234, 0.0
        %246 = vst.msk [vmem:[#allocation2 + $0x58] sm:$0xff] %vm234, 0.0
        %247 = vst.msk [vmem:[#allocation2 + $0x60] sm:$0xff] %vm234, 0.0
        %248 = vst.msk [vmem:[#allocation2 + $0x68] sm:$0xff] %vm234, 0.0
        %249 = vst.msk [vmem:[#allocation2 + $0x70] sm:$0xff] %vm234, 0.0
        %250 = vst.msk [vmem:[#allocation2 + $0x78] sm:$0xff] %vm234, 0.0
        %251 = vst.msk [vmem:[#allocation2 + $0x80] sm:$0xff] %vm234, 0.0
        %252 = vst.msk [vmem:[#allocation2 + $0x88] sm:$0xff] %vm234, 0.0
        %253 = vst.msk [vmem:[#allocation2 + $0x90] sm:$0xff] %vm234, 0.0
        %254 = vst.msk [vmem:[#allocation2 + $0x98] sm:$0xff] %vm234, 0.0
        %255 = vst.msk [vmem:[#allocation2 + $0xa0] sm:$0xff] %vm234, 0.0
        %256 = vst.msk [vmem:[#allocation2 + $0xa8] sm:$0xff] %vm234, 0.0
        %257 = vst.msk [vmem:[#allocation2 + $0xb0] sm:$0xff] %vm234, 0.0
        %258 = vst.msk [vmem:[#allocation2 + $0xb8] sm:$0xff] %vm234, 0.0
        %259 = vst.msk [vmem:[#allocation2 + $0xc0] sm:$0xff] %vm234, 0.0
        %260 = vst.msk [vmem:[#allocation2 + $0xc8] sm:$0xff] %vm234, 0.0
        %261 = vst.msk [vmem:[#allocation2 + $0xd0] sm:$0xff] %vm234, 0.0
        %262 = vst.msk [vmem:[#allocation2 + $0xd8] sm:$0xff] %vm234, 0.0
        %263 = vst.msk [vmem:[#allocation2 + $0xe0] sm:$0xff] %vm234, 0.0
        %264 = vst.msk [vmem:[#allocation2 + $0xe8] sm:$0xff] %vm234, 0.0
        %265 = vst.msk [vmem:[#allocation2 + $0xf0] sm:$0xff] %vm234, 0.0
        %266 = vst.msk [vmem:[#allocation2 + $0xf8] sm:$0xff] %vm234, 0.0
        %267 = vst.msk [vmem:[#allocation2 + $0x100] sm:$0xff] %vm234, 0.0
        %268 = vst.msk [vmem:[#allocation2 + $0x108] sm:$0xff] %vm234, 0.0
        %269 = vst.msk [vmem:[#allocation2 + $0x110] sm:$0xff] %vm234, 0.0
        %270 = vst.msk [vmem:[#allocation2 + $0x118] sm:$0xff] %vm234, 0.0
        %271 = vst.msk [vmem:[#allocation2 + $0x120] sm:$0xff] %vm234, 0.0
        %272 = vst.msk [vmem:[#allocation2 + $0x128] sm:$0xff] %vm234, 0.0
        %273 = vst.msk [vmem:[#allocation2 + $0x130] sm:$0xff] %vm234, 0.0
        %274 = vst.msk [vmem:[#allocation2 + $0x138] sm:$0xff] %vm234, 0.0
        %275 = vst.msk [vmem:[#allocation2 + $0x140] sm:$0xff] %vm234, 0.0
        %276 = vst.msk [vmem:[#allocation2 + $0x148] sm:$0xff] %vm234, 0.0
        %277 = vst.msk [vmem:[#allocation2 + $0x150] sm:$0xff] %vm234, 0.0
        %278 = vst.msk [vmem:[#allocation2 + $0x158] sm:$0xff] %vm234, 0.0
        %279 = vst.msk [vmem:[#allocation2 + $0x160] sm:$0xff] %vm234, 0.0
        %280 = vst.msk [vmem:[#allocation2 + $0x168] sm:$0xff] %vm234, 0.0
        %281 = vst.msk [vmem:[#allocation2 + $0x170] sm:$0xff] %vm234, 0.0
        %282 = vst.msk [vmem:[#allocation2 + $0x178] sm:$0xff] %vm234, 0.0
        %283 = vst.msk [vmem:[#allocation2 + $0x180] sm:$0xff] %vm234, 0.0
        %284 = vst.msk [vmem:[#allocation2 + $0x188] sm:$0xff] %vm234, 0.0
        %285 = vst.msk [vmem:[#allocation2 + $0x190] sm:$0xff] %vm234, 0.0
        %286 = vst.msk [vmem:[#allocation2 + $0x198] sm:$0xff] %vm234, 0.0
        %287 = vst.msk [vmem:[#allocation2 + $0x1a0] sm:$0xff] %vm234, 0.0
        %288 = vst.msk [vmem:[#allocation2 + $0x1a8] sm:$0xff] %vm234, 0.0
        %289 = vst.msk [vmem:[#allocation2 + $0x1b0] sm:$0xff] %vm234, 0.0
        %290 = vst.msk [vmem:[#allocation2 + $0x1b8] sm:$0xff] %vm234, 0.0
        %291 = vst.msk [vmem:[#allocation2 + $0x1c0] sm:$0xff] %vm234, 0.0
        %292 = vst.msk [vmem:[#allocation2 + $0x1c8] sm:$0xff] %vm234, 0.0
        %293 = vst.msk [vmem:[#allocation2 + $0x1d0] sm:$0xff] %vm234, 0.0
        %294 = vst.msk [vmem:[#allocation2 + $0x1d8] sm:$0xff] %vm234, 0.0
        %295 = vst.msk [vmem:[#allocation2 + $0x1e0] sm:$0xff] %vm234, 0.0
        %296 = vst.msk [vmem:[#allocation2 + $0x1e8] sm:$0xff] %vm234, 0.0
        %297 = vst.msk [vmem:[#allocation2 + $0x1f0] sm:$0xff] %vm234, 0.0
        %298 = vst.msk [vmem:[#allocation2 + $0x1f8] sm:$0xff] %vm234, 0.0
      $region36: #{joint_model_apply.39} parent=31 // pred_fallthru
        _
      %v299 = vld [vmem:[#allocation2] sm:$0xff]
      %v300 = vld [vmem:[#allocation2 + $0x8] sm:$0xff]
      %v301 = vld [vmem:[#allocation2 + $0x10] sm:$0xff]
      %v302 = vld [vmem:[#allocation2 + $0x18] sm:$0xff]
      %v303 = vld [vmem:[#allocation2 + $0x20] sm:$0xff]
      %v304 = vld [vmem:[#allocation2 + $0x28] sm:$0xff]
      %v305 = vld [vmem:[#allocation2 + $0x30] sm:$0xff]
      %v306 = vld [vmem:[#allocation2 + $0x38] sm:$0xff]
      %v307 = vld [vmem:[#allocation2 + $0x40] sm:$0xff]
      %v308 = vld [vmem:[#allocation2 + $0x48] sm:$0xff]
      %v309 = vld [vmem:[#allocation2 + $0x50] sm:$0xff]
      %v310 = vld [vmem:[#allocation2 + $0x58] sm:$0xff]
      %v311 = vld [vmem:[#allocation2 + $0x60] sm:$0xff]
      %v312 = vld [vmem:[#allocation2 + $0x68] sm:$0xff]
      %v313 = vld [vmem:[#allocation2 + $0x70] sm:$0xff]
      %v314 = vld [vmem:[#allocation2 + $0x78] sm:$0xff]
      %v315 = vld [vmem:[#allocation2 + $0x80] sm:$0xff]
      %v316 = vld [vmem:[#allocation2 + $0x88] sm:$0xff]
      %v317 = vld [vmem:[#allocation2 + $0x90] sm:$0xff]
      %v318 = vld [vmem:[#allocation2 + $0x98] sm:$0xff]
      %v319 = vld [vmem:[#allocation2 + $0xa0] sm:$0xff]
      %v320 = vld [vmem:[#allocation2 + $0xa8] sm:$0xff]
      %v321 = vld [vmem:[#allocation2 + $0xb0] sm:$0xff]
      %v322 = vld [vmem:[#allocation2 + $0xb8] sm:$0xff]
      %v323 = vld [vmem:[#allocation2 + $0xc0] sm:$0xff]
      %v324 = vld [vmem:[#allocation2 + $0xc8] sm:$0xff]
      %v325 = vld [vmem:[#allocation2 + $0xd0] sm:$0xff]
      %v326 = vld [vmem:[#allocation2 + $0xd8] sm:$0xff]
      %v327 = vld [vmem:[#allocation2 + $0xe0] sm:$0xff]
      %v328 = vld [vmem:[#allocation2 + $0xe8] sm:$0xff]
      %v329 = vld [vmem:[#allocation2 + $0xf0] sm:$0xff]
      %v330 = vld [vmem:[#allocation2 + $0xf8] sm:$0xff]
      %v331 = vld [vmem:[#allocation2 + $0x100] sm:$0xff]
      %v332 = vld [vmem:[#allocation2 + $0x108] sm:$0xff]
      %v333 = vld [vmem:[#allocation2 + $0x110] sm:$0xff]
      %v334 = vld [vmem:[#allocation2 + $0x118] sm:$0xff]
      %v335 = vld [vmem:[#allocation2 + $0x120] sm:$0xff]
      %v336 = vld [vmem:[#allocation2 + $0x128] sm:$0xff]
      %v337 = vld [vmem:[#allocation2 + $0x130] sm:$0xff]
      %v338 = vld [vmem:[#allocation2 + $0x138] sm:$0xff]
      %v339 = vld [vmem:[#allocation2 + $0x140] sm:$0xff]
      %v340 = vld [vmem:[#allocation2 + $0x148] sm:$0xff]
      %v341 = vld [vmem:[#allocation2 + $0x150] sm:$0xff]
      %v342 = vld [vmem:[#allocation2 + $0x158] sm:$0xff]
      %v343 = vld [vmem:[#allocation2 + $0x160] sm:$0xff]
      %v344 = vld [vmem:[#allocation2 + $0x168] sm:$0xff]
      %v345 = vld [vmem:[#allocation2 + $0x170] sm:$0xff]
      %v346 = vld [vmem:[#allocation2 + $0x178] sm:$0xff]
      %v347 = vld [vmem:[#allocation2 + $0x180] sm:$0xff]
      %v348 = vld [vmem:[#allocation2 + $0x188] sm:$0xff]
      %v349 = vld [vmem:[#allocation2 + $0x190] sm:$0xff]
      %v350 = vld [vmem:[#allocation2 + $0x198] sm:$0xff]
      %v351 = vld [vmem:[#allocation2 + $0x1a0] sm:$0xff]
      %v352 = vld [vmem:[#allocation2 + $0x1a8] sm:$0xff]
      %v353 = vld [vmem:[#allocation2 + $0x1b0] sm:$0xff]
      %v354 = vld [vmem:[#allocation2 + $0x1b8] sm:$0xff]
      %v355 = vld [vmem:[#allocation2 + $0x1c0] sm:$0xff]
      %v356 = vld [vmem:[#allocation2 + $0x1c8] sm:$0xff]
      %v357 = vld [vmem:[#allocation2 + $0x1d0] sm:$0xff]
      %v358 = vld [vmem:[#allocation2 + $0x1d8] sm:$0xff]
      %v359 = vld [vmem:[#allocation2 + $0x1e0] sm:$0xff]
      %v360 = vld [vmem:[#allocation2 + $0x1e8] sm:$0xff]
      %v361 = vld [vmem:[#allocation2 + $0x1f0] sm:$0xff]
      %v362 = vld [vmem:[#allocation2 + $0x1f8] sm:$0xff]
      %v363 = vld [vmem:[%s214] sm:$0xff]
      %v364 = vld [vmem:[%s214 + $0x8] sm:$0xff]
      %v365 = vld [vmem:[%s214 + $0x10] sm:$0xff]
      %v366 = vld [vmem:[%s214 + $0x18] sm:$0xff]
      %v367 = vld [vmem:[%s214 + $0x20] sm:$0xff]
      %v368 = vld [vmem:[%s214 + $0x28] sm:$0xff]
      %v369 = vld [vmem:[%s214 + $0x30] sm:$0xff]
      %v370 = vld [vmem:[%s214 + $0x38] sm:$0xff]
      %v371 = vld [vmem:[%s214 + $0x40] sm:$0xff]
      %v372 = vld [vmem:[%s214 + $0x48] sm:$0xff]
      %v373 = vld [vmem:[%s214 + $0x50] sm:$0xff]
      %v374 = vld [vmem:[%s214 + $0x58] sm:$0xff]
      %v375 = vld [vmem:[%s214 + $0x60] sm:$0xff]
      %v376 = vld [vmem:[%s214 + $0x68] sm:$0xff]
      %v377 = vld [vmem:[%s214 + $0x70] sm:$0xff]
      %v378 = vld [vmem:[%s214 + $0x78] sm:$0xff]
      %v379 = vld [vmem:[%s214 + $0x80] sm:$0xff]
      %v380 = vld [vmem:[%s214 + $0x88] sm:$0xff]
      %v381 = vld [vmem:[%s214 + $0x90] sm:$0xff]
      %v382 = vld [vmem:[%s214 + $0x98] sm:$0xff]
      %v383 = vld [vmem:[%s214 + $0xa0] sm:$0xff]
      %v384 = vld [vmem:[%s214 + $0xa8] sm:$0xff]
      %v385 = vld [vmem:[%s214 + $0xb0] sm:$0xff]
      %v386 = vld [vmem:[%s214 + $0xb8] sm:$0xff]
      %v387 = vld [vmem:[%s214 + $0xc0] sm:$0xff]
      %v388 = vld [vmem:[%s214 + $0xc8] sm:$0xff]
      %v389 = vld [vmem:[%s214 + $0xd0] sm:$0xff]
      %v390 = vld [vmem:[%s214 + $0xd8] sm:$0xff]
      %v391 = vld [vmem:[%s214 + $0xe0] sm:$0xff]
      %v392 = vld [vmem:[%s214 + $0xe8] sm:$0xff]
      %v393 = vld [vmem:[%s214 + $0xf0] sm:$0xff]
      %v394 = vld [vmem:[%s214 + $0xf8] sm:$0xff]
      %v395 = vld [vmem:[%s214 + $0x100] sm:$0xff]
      %v396 = vld [vmem:[%s214 + $0x108] sm:$0xff]
      %v397 = vld [vmem:[%s214 + $0x110] sm:$0xff]
      %v398 = vld [vmem:[%s214 + $0x118] sm:$0xff]
      %v399 = vld [vmem:[%s214 + $0x120] sm:$0xff]
      %v400 = vld [vmem:[%s214 + $0x128] sm:$0xff]
      %v401 = vld [vmem:[%s214 + $0x130] sm:$0xff]
      %v402 = vld [vmem:[%s214 + $0x138] sm:$0xff]
      %v403 = vld [vmem:[%s214 + $0x140] sm:$0xff]
      %v404 = vld [vmem:[%s214 + $0x148] sm:$0xff]
      %v405 = vld [vmem:[%s214 + $0x150] sm:$0xff]
      %v406 = vld [vmem:[%s214 + $0x158] sm:$0xff]
      %v407 = vld [vmem:[%s214 + $0x160] sm:$0xff]
      %v408 = vld [vmem:[%s214 + $0x168] sm:$0xff]
      %v409 = vld [vmem:[%s214 + $0x170] sm:$0xff]
      %v410 = vld [vmem:[%s214 + $0x178] sm:$0xff]
      %v411 = vld [vmem:[%s214 + $0x180] sm:$0xff]
      %v412 = vld [vmem:[%s214 + $0x188] sm:$0xff]
      %v413 = vld [vmem:[%s214 + $0x190] sm:$0xff]
      %v414 = vld [vmem:[%s214 + $0x198] sm:$0xff]
      %v415 = vld [vmem:[%s214 + $0x1a0] sm:$0xff]
      %v416 = vld [vmem:[%s214 + $0x1a8] sm:$0xff]
      %v417 = vld [vmem:[%s214 + $0x1b0] sm:$0xff]
      %v418 = vld [vmem:[%s214 + $0x1b8] sm:$0xff]
      %v419 = vld [vmem:[%s214 + $0x1c0] sm:$0xff]
      %v420 = vld [vmem:[%s214 + $0x1c8] sm:$0xff]
      %v421 = vld [vmem:[%s214 + $0x1d0] sm:$0xff]
      %v422 = vld [vmem:[%s214 + $0x1d8] sm:$0xff]
      %v423 = vld [vmem:[%s214 + $0x1e0] sm:$0xff]
      %v424 = vld [vmem:[%s214 + $0x1e8] sm:$0xff]
      %v425 = vld [vmem:[%s214 + $0x1f0] sm:$0xff]
      %v426 = vld [vmem:[%s214 + $0x1f8] sm:$0xff]
      %v427 = vld [vmem:[%s221] sm:$0xf]
      %v428 = vld [vmem:[%s221 + $0x4] sm:$0xf]
      %v429 = vld [vmem:[%s221 + $0x8] sm:$0xf]
      %v430 = vld [vmem:[%s221 + $0xc] sm:$0xf]
      %v431 = vld [vmem:[%s221 + $0x10] sm:$0xf]
      %v432 = vld [vmem:[%s221 + $0x14] sm:$0xf]
      %v433 = vld [vmem:[%s221 + $0x18] sm:$0xf]
      %v434 = vld [vmem:[%s221 + $0x1c] sm:$0xf]
      %v435 = vld [vmem:[%s221 + $0x20] sm:$0xf]
      %v436 = vld [vmem:[%s221 + $0x24] sm:$0xf]
      %v437 = vld [vmem:[%s221 + $0x28] sm:$0xf]
      %v438 = vld [vmem:[%s221 + $0x2c] sm:$0xf]
      %v439 = vld [vmem:[%s221 + $0x30] sm:$0xf]
      %v440 = vld [vmem:[%s221 + $0x34] sm:$0xf]
      %v441 = vld [vmem:[%s221 + $0x38] sm:$0xf]
      %v442 = vld [vmem:[%s221 + $0x3c] sm:$0xf]
      %v443 = vld [vmem:[%s221 + $0x40] sm:$0xf]
      %v444 = vld [vmem:[%s221 + $0x44] sm:$0xf]
      %v445 = vld [vmem:[%s221 + $0x48] sm:$0xf]
      %v446 = vld [vmem:[%s221 + $0x4c] sm:$0xf]
      %v447 = vld [vmem:[%s221 + $0x50] sm:$0xf]
      %v448 = vld [vmem:[%s221 + $0x54] sm:$0xf]
      %v449 = vld [vmem:[%s221 + $0x58] sm:$0xf]
      %v450 = vld [vmem:[%s221 + $0x5c] sm:$0xf]
      %v451 = vld [vmem:[%s221 + $0x60] sm:$0xf]
      %v452 = vld [vmem:[%s221 + $0x64] sm:$0xf]
      %v453 = vld [vmem:[%s221 + $0x68] sm:$0xf]
      %v518 = vunpack.c.l.b16 %v363
      %v519 = vunpack.c.h.b16 %v363
      %v520 = vunpack.c.l.b16 %v364
      %v521 = vunpack.c.h.b16 %v364
      %v522 = vunpack.c.l.b16 %v365
      %v523 = vunpack.c.h.b16 %v365
      %v524 = vunpack.c.l.b16 %v366
      %v525 = vunpack.c.h.b16 %v366
      %v526 = vunpack.c.l.b16 %v367
      %v527 = vunpack.c.h.b16 %v367
      %v528 = vunpack.c.l.b16 %v368
      %v529 = vunpack.c.h.b16 %v368
      %v530 = vunpack.c.l.b16 %v369
      %v531 = vunpack.c.h.b16 %v369
      %v532 = vunpack.c.l.b16 %v370
      %v533 = vunpack.c.h.b16 %v370
      %v534 = vunpack.c.l.b16 %v371
      %v535 = vunpack.c.h.b16 %v371
      %v536 = vunpack.c.l.b16 %v372
      %v537 = vunpack.c.h.b16 %v372
      %v538 = vunpack.c.l.b16 %v373
      %v539 = vunpack.c.h.b16 %v373
      %v540 = vunpack.c.l.b16 %v374
      %v541 = vunpack.c.h.b16 %v374
      %v542 = vunpack.c.l.b16 %v375
      %v543 = vunpack.c.h.b16 %v375
      %v544 = vunpack.c.l.b16 %v376
      %v545 = vunpack.c.h.b16 %v376
      %v546 = vunpack.c.l.b16 %v377
      %v547 = vunpack.c.h.b16 %v377
      %v548 = vunpack.c.l.b16 %v378
      %v549 = vunpack.c.h.b16 %v378
      %v550 = vunpack.c.l.b16 %v379
      %v551 = vunpack.c.h.b16 %v379
      %v552 = vunpack.c.l.b16 %v380
      %v553 = vunpack.c.h.b16 %v380
      %v554 = vunpack.c.l.b16 %v381
      %v555 = vunpack.c.h.b16 %v381
      %v556 = vunpack.c.l.b16 %v382
      %v557 = vunpack.c.h.b16 %v382
      %v558 = vunpack.c.l.b16 %v383
      %v559 = vunpack.c.h.b16 %v383
      %v560 = vunpack.c.l.b16 %v384
      %v561 = vunpack.c.h.b16 %v384
      %v562 = vunpack.c.l.b16 %v385
      %v563 = vunpack.c.h.b16 %v385
      %v564 = vunpack.c.l.b16 %v386
      %v565 = vunpack.c.h.b16 %v386
      %v566 = vunpack.c.l.b16 %v387
      %v567 = vunpack.c.h.b16 %v387
      %v568 = vunpack.c.l.b16 %v388
      %v569 = vunpack.c.h.b16 %v388
      %v570 = vunpack.c.l.b16 %v389
      %v571 = vunpack.c.h.b16 %v389
      %v572 = vunpack.c.l.b16 %v390
      %v573 = vunpack.c.h.b16 %v390
      %v574 = vunpack.c.l.b16 %v391
      %v575 = vunpack.c.h.b16 %v391
      %v576 = vunpack.c.l.b16 %v392
      %v577 = vunpack.c.h.b16 %v392
      %v578 = vunpack.c.l.b16 %v393
      %v579 = vunpack.c.h.b16 %v393
      %v580 = vunpack.c.l.b16 %v394
      %v581 = vunpack.c.h.b16 %v394
      %v582 = vunpack.c.l.b16 %v395
      %v583 = vunpack.c.h.b16 %v395
      %v584 = vunpack.c.l.b16 %v396
      %v585 = vunpack.c.h.b16 %v396
      %v586 = vunpack.c.l.b16 %v397
      %v587 = vunpack.c.h.b16 %v397
      %v588 = vunpack.c.l.b16 %v398
      %v589 = vunpack.c.h.b16 %v398
      %v590 = vunpack.c.l.b16 %v399
      %v591 = vunpack.c.h.b16 %v399
      %v592 = vunpack.c.l.b16 %v400
      %v593 = vunpack.c.h.b16 %v400
      %v594 = vunpack.c.l.b16 %v401
      %v595 = vunpack.c.h.b16 %v401
      %v596 = vunpack.c.l.b16 %v402
      %v597 = vunpack.c.h.b16 %v402
      %v598 = vunpack.c.l.b16 %v403
      %v599 = vunpack.c.h.b16 %v403
      %v600 = vunpack.c.l.b16 %v404
      %v601 = vunpack.c.h.b16 %v404
      %v602 = vunpack.c.l.b16 %v405
      %v603 = vunpack.c.h.b16 %v405
      %v604 = vunpack.c.l.b16 %v406
      %v605 = vunpack.c.h.b16 %v406
      %v606 = vunpack.c.l.b16 %v407
      %v607 = vunpack.c.h.b16 %v407
      %v608 = vunpack.c.l.b16 %v408
      %v609 = vunpack.c.h.b16 %v408
      %v610 = vunpack.c.l.b16 %v409
      %v611 = vunpack.c.h.b16 %v409
      %v612 = vunpack.c.l.b16 %v410
      %v613 = vunpack.c.h.b16 %v410
      %v614 = vunpack.c.l.b16 %v411
      %v615 = vunpack.c.h.b16 %v411
      %v616 = vunpack.c.l.b16 %v412
      %v617 = vunpack.c.h.b16 %v412
      %v618 = vunpack.c.l.b16 %v413
      %v619 = vunpack.c.h.b16 %v413
      %v620 = vunpack.c.l.b16 %v414
      %v621 = vunpack.c.h.b16 %v414
      %v622 = vunpack.c.l.b16 %v415
      %v623 = vunpack.c.h.b16 %v415
      %v624 = vunpack.c.l.b16 %v416
      %v625 = vunpack.c.h.b16 %v416
      %v626 = vunpack.c.l.b16 %v417
      %v627 = vunpack.c.h.b16 %v417
      %v628 = vunpack.c.l.b16 %v418
      %v629 = vunpack.c.h.b16 %v418
      %v630 = vunpack.c.l.b16 %v419
      %v631 = vunpack.c.h.b16 %v419
      %v632 = vunpack.c.l.b16 %v420
      %v633 = vunpack.c.h.b16 %v420
      %v634 = vunpack.c.l.b16 %v421
      %v635 = vunpack.c.h.b16 %v421
      %v636 = vunpack.c.l.b16 %v422
      %v637 = vunpack.c.h.b16 %v422
      %v638 = vunpack.c.l.b16 %v423
      %v639 = vunpack.c.h.b16 %v423
      %v640 = vunpack.c.l.b16 %v424
      %v641 = vunpack.c.h.b16 %v424
      %v642 = vunpack.c.l.b16 %v425
      %v643 = vunpack.c.h.b16 %v425
      %v644 = vunpack.c.l.b16 %v426
      %v645 = vunpack.c.h.b16 %v426
      %v646 = vpack.c.b16 %v520, %v518
      %v647 = vpack.c.b16 %v521, %v519
      %v648 = vpack.c.b16 %v524, %v522
      %v649 = vpack.c.b16 %v525, %v523
      %v650 = vpack.c.b16 %v528, %v526
      %v651 = vpack.c.b16 %v529, %v527
      %v652 = vpack.c.b16 %v532, %v530
      %v653 = vpack.c.b16 %v533, %v531
      %v654 = vpack.c.b16 %v536, %v534
      %v655 = vpack.c.b16 %v537, %v535
      %v656 = vpack.c.b16 %v540, %v538
      %v657 = vpack.c.b16 %v541, %v539
      %v658 = vpack.c.b16 %v544, %v542
      %v659 = vpack.c.b16 %v545, %v543
      %v660 = vpack.c.b16 %v548, %v546
      %v661 = vpack.c.b16 %v549, %v547
      %v662 = vpack.c.b16 %v552, %v550
      %v663 = vpack.c.b16 %v553, %v551
      %v664 = vpack.c.b16 %v556, %v554
      %v665 = vpack.c.b16 %v557, %v555
      %v666 = vpack.c.b16 %v560, %v558
      %v667 = vpack.c.b16 %v561, %v559
      %v668 = vpack.c.b16 %v564, %v562
      %v669 = vpack.c.b16 %v565, %v563
      %v670 = vpack.c.b16 %v568, %v566
      %v671 = vpack.c.b16 %v569, %v567
      %v672 = vpack.c.b16 %v572, %v570
      %v673 = vpack.c.b16 %v573, %v571
      %v674 = vpack.c.b16 %v576, %v574
      %v675 = vpack.c.b16 %v577, %v575
      %v676 = vpack.c.b16 %v580, %v578
      %v677 = vpack.c.b16 %v581, %v579
      %v678 = vpack.c.b16 %v584, %v582
      %v679 = vpack.c.b16 %v585, %v583
      %v680 = vpack.c.b16 %v588, %v586
      %v681 = vpack.c.b16 %v589, %v587
      %v682 = vpack.c.b16 %v592, %v590
      %v683 = vpack.c.b16 %v593, %v591
      %v684 = vpack.c.b16 %v596, %v594
      %v685 = vpack.c.b16 %v597, %v595
      %v686 = vpack.c.b16 %v600, %v598
      %v687 = vpack.c.b16 %v601, %v599
      %v688 = vpack.c.b16 %v604, %v602
      %v689 = vpack.c.b16 %v605, %v603
      %v690 = vpack.c.b16 %v608, %v606
      %v691 = vpack.c.b16 %v609, %v607
      %v692 = vpack.c.b16 %v612, %v610
      %v693 = vpack.c.b16 %v613, %v611
      %v694 = vpack.c.b16 %v616, %v614
      %v695 = vpack.c.b16 %v617, %v615
      %v696 = vpack.c.b16 %v620, %v618
      %v697 = vpack.c.b16 %v621, %v619
      %v698 = vpack.c.b16 %v624, %v622
      %v699 = vpack.c.b16 %v625, %v623
      %v700 = vpack.c.b16 %v628, %v626
      %v701 = vpack.c.b16 %v629, %v627
      %v702 = vpack.c.b16 %v632, %v630
      %v703 = vpack.c.b16 %v633, %v631
      %v704 = vpack.c.b16 %v636, %v634
      %v705 = vpack.c.b16 %v637, %v635
      %v706 = vpack.c.b16 %v640, %v638
      %v707 = vpack.c.b16 %v641, %v639
      %v708 = vpack.c.b16 %v644, %v642
      %v709 = vpack.c.b16 %v645, %v643
      %v769 = vunpack.c.l.b16 %v427
      %v770 = vunpack.c.l.b16 %v428
      %v771 = vunpack.c.l.b16 %v429
      %v772 = vunpack.c.l.b16 %v430
      %v773 = vunpack.c.l.b16 %v431
      %v774 = vunpack.c.l.b16 %v432
      %v775 = vunpack.c.l.b16 %v433
      %v776 = vunpack.c.l.b16 %v434
      %v777 = vunpack.c.l.b16 %v435
      %v778 = vunpack.c.l.b16 %v436
      %v779 = vunpack.c.l.b16 %v437
      %v780 = vunpack.c.l.b16 %v438
      %v781 = vunpack.c.l.b16 %v439
      %v782 = vunpack.c.l.b16 %v440
      %v783 = vunpack.c.l.b16 %v441
      %v784 = vunpack.c.l.b16 %v442
      %v785 = vunpack.c.l.b16 %v443
      %v786 = vunpack.c.l.b16 %v444
      %v787 = vunpack.c.l.b16 %v445
      %v788 = vunpack.c.l.b16 %v446
      %v789 = vunpack.c.l.b16 %v447
      %v790 = vunpack.c.l.b16 %v448
      %v791 = vunpack.c.l.b16 %v449
      %v792 = vunpack.c.l.b16 %v450
      %v793 = vunpack.c.l.b16 %v451
      %v794 = vunpack.c.l.b16 %v452
      %v795 = vunpack.c.l.b16 %v453
      %v796 = vpack.c.b16 %v770, %v769
      %v797 = vpack.c.b16 %v772, %v771
      %v798 = vpack.c.b16 %v774, %v773
      %v799 = vpack.c.b16 %v776, %v775
      %v800 = vpack.c.b16 %v778, %v777
      %v801 = vpack.c.b16 %v780, %v779
      %v802 = vpack.c.b16 %v782, %v781
      %v803 = vpack.c.b16 %v784, %v783
      %v804 = vpack.c.b16 %v786, %v785
      %v805 = vpack.c.b16 %v788, %v787
      %v806 = vpack.c.b16 %v790, %v789
      %v807 = vpack.c.b16 %v792, %v791
      %v808 = vpack.c.b16 %v794, %v793
      %v809 = vpack.c.b16 %v795, %v795
      %vm823 = vcmask 719872
      %v825 = vsel %vm823, %v647, 0
      %v828 = vsel %vm823, %v649, 0
      %v831 = vsel %vm823, %v651, 0
      %v834 = vsel %vm823, %v653, 0
      %v837 = vsel %vm823, %v655, 0
      %v840 = vsel %vm823, %v657, 0
      %v843 = vsel %vm823, %v659, 0
      %v846 = vsel %vm823, %v661, 0
      %v849 = vsel %vm823, %v663, 0
      %v852 = vsel %vm823, %v665, 0
      %v855 = vsel %vm823, %v667, 0
      %v858 = vsel %vm823, %v669, 0
      %v861 = vsel %vm823, %v671, 0
      %v864 = vsel %vm823, %v673, 0
      %v867 = vsel %vm823, %v675, 0
      %v870 = vsel %vm823, %v677, 0
      %v873 = vsel %vm823, %v679, 0
      %v876 = vsel %vm823, %v681, 0
      %v879 = vsel %vm823, %v683, 0
      %v882 = vsel %vm823, %v685, 0
      %v885 = vsel %vm823, %v687, 0
      %v888 = vsel %vm823, %v689, 0
      %v891 = vsel %vm823, %v691, 0
      %v894 = vsel %vm823, %v693, 0
      %v897 = vsel %vm823, %v695, 0
      %v900 = vsel %vm823, %v697, 0
      %v903 = vsel %vm823, %v699, 0
      %v906 = vsel %vm823, %v701, 0
      %v909 = vsel %vm823, %v703, 0
      %v912 = vsel %vm823, %v705, 0
      %v915 = vsel %vm823, %v707, 0
      %v918 = vsel %vm823, %v709, 0
      %vm920 = vcmask 1043456
      %v922 = vsel %vm920, %v809, 0
      %924 = vmatprep.subr.bf16.mxu0 0
      %925 = vmatpush1.bf16.msra.mxu0 %v803
      %926 = vmatprep.subr.bf16.mxu0 0
      %927 = vmatpush1.bf16.msra.mxu0 %v802
      %928 = vmatprep.subr.bf16.mxu0 0
      %929 = vmatpush1.bf16.msra.mxu0 %v801
      %930 = vmatprep.subr.bf16.mxu0 0
      %931 = vmatpush1.bf16.msra.mxu0 %v800
      %932 = vmatprep.subr.bf16.mxu0 0
      %933 = vmatpush1.bf16.msra.mxu0 %v799
      %934 = vmatprep.subr.bf16.mxu0 0
      %935 = vmatpush1.bf16.msra.mxu0 %v798
      %936 = vmatprep.subr.bf16.mxu0 0
      %937 = vmatpush1.bf16.msra.mxu0 %v797
      %938 = vmatprep.subr.bf16.mxu0 0
      %939 = vmatpush1.bf16.msra.mxu0 %v796
      %940 = vmatprep.subr.bf16.mxu0 0
      %941 = vmatpush2.bf16.msra.mxu0 0
      %942 = vmatprep.subr.bf16.mxu0 0
      %943 = vmatpush2.bf16.msra.mxu0 0
      %944 = vmatprep.subr.bf16.mxu0 0
      %945 = vmatpush2.bf16.msra.mxu0 %v922
      %946 = vmatprep.subr.bf16.mxu0 0
      %947 = vmatpush2.bf16.msra.mxu0 %v808
      %948 = vmatprep.subr.bf16.mxu0 0
      %949 = vmatpush2.bf16.msra.mxu0 %v807
      %950 = vmatprep.subr.bf16.mxu0 0
      %951 = vmatpush2.bf16.msra.mxu0 %v806
      %952 = vmatprep.subr.bf16.mxu0 0
      %953 = vmatpush2.bf16.msra.mxu0 %v805
      %954 = vmatprep.subr.bf16.mxu0 0
      %955 = vmatpush2.bf16.msra.mxu0 %v804
      %956 = vmatprep.mubr.bf16.mxu0 %v825
      %957 = vmatmul.mubr.bf16.gmra.mxu0 %v646
      %v958 = vpop.f32.mrf.mxu0
      %v959 = vadd.f32 0.0, %v958
      %v960 = vpop.f32.mrf.mxu0
      %v961 = vpop.f32.mrf.mxu0
      %v962 = vadd.f32 0.0, %v961
      %v963 = vpop.f32.mrf.mxu0
      %964 = vmatprep.mubr.bf16.mxu0 %v828
      %965 = vmatmul.mubr.bf16.gmra.mxu0 %v648
      %v966 = vpop.f32.mrf.mxu0
      %v967 = vadd.f32 0.0, %v966
      %v968 = vpop.f32.mrf.mxu0
      %v969 = vpop.f32.mrf.mxu0
      %v970 = vadd.f32 0.0, %v969
      %v971 = vpop.f32.mrf.mxu0
      %972 = vmatprep.mubr.bf16.mxu0 %v831
      %973 = vmatmul.mubr.bf16.gmra.mxu0 %v650
      %v974 = vpop.f32.mrf.mxu0
      %v975 = vadd.f32 0.0, %v974
      %v976 = vpop.f32.mrf.mxu0
      %v977 = vpop.f32.mrf.mxu0
      %v978 = vadd.f32 0.0, %v977
      %v979 = vpop.f32.mrf.mxu0
      %980 = vmatprep.mubr.bf16.mxu0 %v834
      %981 = vmatmul.mubr.bf16.gmra.mxu0 %v652
      %v982 = vpop.f32.mrf.mxu0
      %v983 = vadd.f32 0.0, %v982
      %v984 = vpop.f32.mrf.mxu0
      %v985 = vpop.f32.mrf.mxu0
      %v986 = vadd.f32 0.0, %v985
      %v987 = vpop.f32.mrf.mxu0
      %988 = vmatprep.mubr.bf16.mxu0 %v837
      %989 = vmatmul.mubr.bf16.gmra.mxu0 %v654
      %v990 = vpop.f32.mrf.mxu0
      %v991 = vadd.f32 0.0, %v990
      %v992 = vpop.f32.mrf.mxu0
      %v993 = vpop.f32.mrf.mxu0
      %v994 = vadd.f32 0.0, %v993
      %v995 = vpop.f32.mrf.mxu0
      %996 = vmatprep.mubr.bf16.mxu0 %v840
      %997 = vmatmul.mubr.bf16.gmra.mxu0 %v656
      %v998 = vpop.f32.mrf.mxu0
      %v999 = vadd.f32 0.0, %v998
      %v1000 = vpop.f32.mrf.mxu0
      %v1001 = vpop.f32.mrf.mxu0
      %v1002 = vadd.f32 0.0, %v1001
      %v1003 = vpop.f32.mrf.mxu0
      %1004 = vmatprep.mubr.bf16.mxu0 %v843
      %1005 = vmatmul.mubr.bf16.gmra.mxu0 %v658
      %v1006 = vpop.f32.mrf.mxu0
      %v1007 = vadd.f32 0.0, %v1006
      %v1008 = vpop.f32.mrf.mxu0
      %v1009 = vpop.f32.mrf.mxu0
      %v1010 = vadd.f32 0.0, %v1009
      %v1011 = vpop.f32.mrf.mxu0
      %1012 = vmatprep.mubr.bf16.mxu0 %v846
      %1013 = vmatmul.mubr.bf16.gmra.mxu0 %v660
      %v1014 = vpop.f32.mrf.mxu0
      %v1015 = vadd.f32 0.0, %v1014
      %v1016 = vpop.f32.mrf.mxu0
      %v1017 = vpop.f32.mrf.mxu0
      %v1018 = vadd.f32 0.0, %v1017
      %v1019 = vpop.f32.mrf.mxu0
      %1020 = vmatprep.mubr.bf16.mxu0 %v849
      %1021 = vmatmul.mubr.bf16.gmra.mxu0 %v662
      %v1022 = vpop.f32.mrf.mxu0
      %v1023 = vadd.f32 0.0, %v1022
      %v1024 = vpop.f32.mrf.mxu0
      %v1025 = vpop.f32.mrf.mxu0
      %v1026 = vadd.f32 0.0, %v1025
      %v1027 = vpop.f32.mrf.mxu0
      %1028 = vmatprep.mubr.bf16.mxu0 %v852
      %1029 = vmatmul.mubr.bf16.gmra.mxu0 %v664
      %v1030 = vpop.f32.mrf.mxu0
      %v1031 = vadd.f32 0.0, %v1030
      %v1032 = vpop.f32.mrf.mxu0
      %v1033 = vpop.f32.mrf.mxu0
      %v1034 = vadd.f32 0.0, %v1033
      %v1035 = vpop.f32.mrf.mxu0
      %1036 = vmatprep.mubr.bf16.mxu0 %v855
      %1037 = vmatmul.mubr.bf16.gmra.mxu0 %v666
      %v1038 = vpop.f32.mrf.mxu0
      %v1039 = vadd.f32 0.0, %v1038
      %v1040 = vpop.f32.mrf.mxu0
      %v1041 = vpop.f32.mrf.mxu0
      %v1042 = vadd.f32 0.0, %v1041
      %v1043 = vpop.f32.mrf.mxu0
      %1044 = vmatprep.mubr.bf16.mxu0 %v858
      %1045 = vmatmul.mubr.bf16.gmra.mxu0 %v668
      %v1046 = vpop.f32.mrf.mxu0
      %v1047 = vadd.f32 0.0, %v1046
      %v1048 = vpop.f32.mrf.mxu0
      %v1049 = vpop.f32.mrf.mxu0
      %v1050 = vadd.f32 0.0, %v1049
      %v1051 = vpop.f32.mrf.mxu0
      %1052 = vmatprep.mubr.bf16.mxu0 %v861
      %1053 = vmatmul.mubr.bf16.gmra.mxu0 %v670
      %v1054 = vpop.f32.mrf.mxu0
      %v1055 = vadd.f32 0.0, %v1054
      %v1056 = vpop.f32.mrf.mxu0
      %v1057 = vpop.f32.mrf.mxu0
      %v1058 = vadd.f32 0.0, %v1057
      %v1059 = vpop.f32.mrf.mxu0
      %1060 = vmatprep.mubr.bf16.mxu0 %v864
      %1061 = vmatmul.mubr.bf16.gmra.mxu0 %v672
      %v1062 = vpop.f32.mrf.mxu0
      %v1063 = vadd.f32 0.0, %v1062
      %v1064 = vpop.f32.mrf.mxu0
      %v1065 = vpop.f32.mrf.mxu0
      %v1066 = vadd.f32 0.0, %v1065
      %v1067 = vpop.f32.mrf.mxu0
      %1068 = vmatprep.mubr.bf16.mxu0 %v867
      %1069 = vmatmul.mubr.bf16.gmra.mxu0 %v674
      %v1070 = vpop.f32.mrf.mxu0
      %v1071 = vadd.f32 0.0, %v1070
      %v1072 = vpop.f32.mrf.mxu0
      %v1073 = vpop.f32.mrf.mxu0
      %v1074 = vadd.f32 0.0, %v1073
      %v1075 = vpop.f32.mrf.mxu0
      %1076 = vmatprep.mubr.bf16.mxu0 %v870
      %1077 = vmatmul.mubr.bf16.gmra.mxu0 %v676
      %v1078 = vpop.f32.mrf.mxu0
      %v1079 = vadd.f32 0.0, %v1078
      %v1080 = vpop.f32.mrf.mxu0
      %v1081 = vpop.f32.mrf.mxu0
      %v1082 = vadd.f32 0.0, %v1081
      %v1083 = vpop.f32.mrf.mxu0
      %1084 = vmatprep.mubr.bf16.mxu0 %v873
      %1085 = vmatmul.mubr.bf16.gmra.mxu0 %v678
      %v1086 = vpop.f32.mrf.mxu0
      %v1087 = vadd.f32 0.0, %v1086
      %v1088 = vpop.f32.mrf.mxu0
      %v1089 = vpop.f32.mrf.mxu0
      %v1090 = vadd.f32 0.0, %v1089
      %v1091 = vpop.f32.mrf.mxu0
      %1092 = vmatprep.mubr.bf16.mxu0 %v876
      %1093 = vmatmul.mubr.bf16.gmra.mxu0 %v680
      %v1094 = vpop.f32.mrf.mxu0
      %v1095 = vadd.f32 0.0, %v1094
      %v1096 = vpop.f32.mrf.mxu0
      %v1097 = vpop.f32.mrf.mxu0
      %v1098 = vadd.f32 0.0, %v1097
      %v1099 = vpop.f32.mrf.mxu0
      %1100 = vmatprep.mubr.bf16.mxu0 %v879
      %1101 = vmatmul.mubr.bf16.gmra.mxu0 %v682
      %v1102 = vpop.f32.mrf.mxu0
      %v1103 = vadd.f32 0.0, %v1102
      %v1104 = vpop.f32.mrf.mxu0
      %v1105 = vpop.f32.mrf.mxu0
      %v1106 = vadd.f32 0.0, %v1105
      %v1107 = vpop.f32.mrf.mxu0
      %1108 = vmatprep.mubr.bf16.mxu0 %v882
      %1109 = vmatmul.mubr.bf16.gmra.mxu0 %v684
      %v1110 = vpop.f32.mrf.mxu0
      %v1111 = vadd.f32 0.0, %v1110
      %v1112 = vpop.f32.mrf.mxu0
      %v1113 = vpop.f32.mrf.mxu0
      %v1114 = vadd.f32 0.0, %v1113
      %v1115 = vpop.f32.mrf.mxu0
      %1116 = vmatprep.mubr.bf16.mxu0 %v885
      %1117 = vmatmul.mubr.bf16.gmra.mxu0 %v686
      %v1118 = vpop.f32.mrf.mxu0
      %v1119 = vadd.f32 0.0, %v1118
      %v1120 = vpop.f32.mrf.mxu0
      %v1121 = vpop.f32.mrf.mxu0
      %v1122 = vadd.f32 0.0, %v1121
      %v1123 = vpop.f32.mrf.mxu0
      %1124 = vmatprep.mubr.bf16.mxu0 %v888
      %1125 = vmatmul.mubr.bf16.gmra.mxu0 %v688
      %v1126 = vpop.f32.mrf.mxu0
      %v1127 = vadd.f32 0.0, %v1126
      %v1128 = vpop.f32.mrf.mxu0
      %v1129 = vpop.f32.mrf.mxu0
      %v1130 = vadd.f32 0.0, %v1129
      %v1131 = vpop.f32.mrf.mxu0
      %1132 = vmatprep.mubr.bf16.mxu0 %v891
      %1133 = vmatmul.mubr.bf16.gmra.mxu0 %v690
      %v1134 = vpop.f32.mrf.mxu0
      %v1135 = vadd.f32 0.0, %v1134
      %v1136 = vpop.f32.mrf.mxu0
      %v1137 = vpop.f32.mrf.mxu0
      %v1138 = vadd.f32 0.0, %v1137
      %v1139 = vpop.f32.mrf.mxu0
      %1140 = vmatprep.mubr.bf16.mxu0 %v894
      %1141 = vmatmul.mubr.bf16.gmra.mxu0 %v692
      %v1142 = vpop.f32.mrf.mxu0
      %v1143 = vadd.f32 0.0, %v1142
      %v1144 = vpop.f32.mrf.mxu0
      %v1145 = vpop.f32.mrf.mxu0
      %v1146 = vadd.f32 0.0, %v1145
      %v1147 = vpop.f32.mrf.mxu0
      %1148 = vmatprep.mubr.bf16.mxu0 %v897
      %1149 = vmatmul.mubr.bf16.gmra.mxu0 %v694
      %v1150 = vpop.f32.mrf.mxu0
      %v1151 = vadd.f32 0.0, %v1150
      %v1152 = vpop.f32.mrf.mxu0
      %v1153 = vpop.f32.mrf.mxu0
      %v1154 = vadd.f32 0.0, %v1153
      %v1155 = vpop.f32.mrf.mxu0
      %1156 = vmatprep.mubr.bf16.mxu0 %v900
      %1157 = vmatmul.mubr.bf16.gmra.mxu0 %v696
      %v1158 = vpop.f32.mrf.mxu0
      %v1159 = vadd.f32 0.0, %v1158
      %v1160 = vpop.f32.mrf.mxu0
      %v1161 = vpop.f32.mrf.mxu0
      %v1162 = vadd.f32 0.0, %v1161
      %v1163 = vpop.f32.mrf.mxu0
      %1164 = vmatprep.mubr.bf16.mxu0 %v903
      %1165 = vmatmul.mubr.bf16.gmra.mxu0 %v698
      %v1166 = vpop.f32.mrf.mxu0
      %v1167 = vadd.f32 0.0, %v1166
      %v1168 = vpop.f32.mrf.mxu0
      %v1169 = vpop.f32.mrf.mxu0
      %v1170 = vadd.f32 0.0, %v1169
      %v1171 = vpop.f32.mrf.mxu0
      %1172 = vmatprep.mubr.bf16.mxu0 %v906
      %1173 = vmatmul.mubr.bf16.gmra.mxu0 %v700
      %v1174 = vpop.f32.mrf.mxu0
      %v1175 = vadd.f32 0.0, %v1174
      %v1176 = vpop.f32.mrf.mxu0
      %v1177 = vpop.f32.mrf.mxu0
      %v1178 = vadd.f32 0.0, %v1177
      %v1179 = vpop.f32.mrf.mxu0
      %1180 = vmatprep.mubr.bf16.mxu0 %v909
      %1181 = vmatmul.mubr.bf16.gmra.mxu0 %v702
      %v1182 = vpop.f32.mrf.mxu0
      %v1183 = vadd.f32 0.0, %v1182
      %v1184 = vpop.f32.mrf.mxu0
      %v1185 = vpop.f32.mrf.mxu0
      %v1186 = vadd.f32 0.0, %v1185
      %v1187 = vpop.f32.mrf.mxu0
      %1188 = vmatprep.mubr.bf16.mxu0 %v912
      %1189 = vmatmul.mubr.bf16.gmra.mxu0 %v704
      %v1190 = vpop.f32.mrf.mxu0
      %v1191 = vadd.f32 0.0, %v1190
      %v1192 = vpop.f32.mrf.mxu0
      %v1193 = vpop.f32.mrf.mxu0
      %v1194 = vadd.f32 0.0, %v1193
      %v1195 = vpop.f32.mrf.mxu0
      %1196 = vmatprep.mubr.bf16.mxu0 %v915
      %1197 = vmatmul.mubr.bf16.gmra.mxu0 %v706
      %v1198 = vpop.f32.mrf.mxu0
      %v1199 = vadd.f32 0.0, %v1198
      %v1200 = vpop.f32.mrf.mxu0
      %v1201 = vpop.f32.mrf.mxu0
      %v1202 = vadd.f32 0.0, %v1201
      %v1203 = vpop.f32.mrf.mxu0
      %1204 = vmatprep.mubr.bf16.mxu0 %v918
      %1205 = vmatmul.mubr.bf16.gmra.mxu0 %v708
      %v1206 = vpop.f32.mrf.mxu0
      %v1207 = vadd.f32 0.0, %v1206
      %v1208 = vpop.f32.mrf.mxu0
      %v1209 = vpop.f32.mrf.mxu0
      %v1210 = vadd.f32 0.0, %v1209
      %v1211 = vpop.f32.mrf.mxu0
      %1212 = vdwg.mxu0
      %v1213 = vadd.f32 %v299, %v959
      %v1214 = vadd.f32 %v300, %v962
      %v1215 = vadd.f32 %v301, %v967
      %v1216 = vadd.f32 %v302, %v970
      %v1217 = vadd.f32 %v303, %v975
      %v1218 = vadd.f32 %v304, %v978
      %v1219 = vadd.f32 %v305, %v983
      %v1220 = vadd.f32 %v306, %v986
      %v1221 = vadd.f32 %v307, %v991
      %v1222 = vadd.f32 %v308, %v994
      %v1223 = vadd.f32 %v309, %v999
      %v1224 = vadd.f32 %v310, %v1002
      %v1225 = vadd.f32 %v311, %v1007
      %v1226 = vadd.f32 %v312, %v1010
      %v1227 = vadd.f32 %v313, %v1015
      %v1228 = vadd.f32 %v314, %v1018
      %v1229 = vadd.f32 %v315, %v1023
      %v1230 = vadd.f32 %v316, %v1026
      %v1231 = vadd.f32 %v317, %v1031
      %v1232 = vadd.f32 %v318, %v1034
      %v1233 = vadd.f32 %v319, %v1039
      %v1234 = vadd.f32 %v320, %v1042
      %v1235 = vadd.f32 %v321, %v1047
      %v1236 = vadd.f32 %v322, %v1050
      %v1237 = vadd.f32 %v323, %v1055
      %v1238 = vadd.f32 %v324, %v1058
      %v1239 = vadd.f32 %v325, %v1063
      %v1240 = vadd.f32 %v326, %v1066
      %v1241 = vadd.f32 %v327, %v1071
      %v1242 = vadd.f32 %v328, %v1074
      %v1243 = vadd.f32 %v329, %v1079
      %v1244 = vadd.f32 %v330, %v1082
      %v1245 = vadd.f32 %v331, %v1087
      %v1246 = vadd.f32 %v332, %v1090
      %v1247 = vadd.f32 %v333, %v1095
      %v1248 = vadd.f32 %v334, %v1098
      %v1249 = vadd.f32 %v335, %v1103
      %v1250 = vadd.f32 %v336, %v1106
      %v1251 = vadd.f32 %v337, %v1111
      %v1252 = vadd.f32 %v338, %v1114
      %v1253 = vadd.f32 %v339, %v1119
      %v1254 = vadd.f32 %v340, %v1122
      %v1255 = vadd.f32 %v341, %v1127
      %v1256 = vadd.f32 %v342, %v1130
      %v1257 = vadd.f32 %v343, %v1135
      %v1258 = vadd.f32 %v344, %v1138
      %v1259 = vadd.f32 %v345, %v1143
      %v1260 = vadd.f32 %v346, %v1146
      %v1261 = vadd.f32 %v347, %v1151
      %v1262 = vadd.f32 %v348, %v1154
      %v1263 = vadd.f32 %v349, %v1159
      %v1264 = vadd.f32 %v350, %v1162
      %v1265 = vadd.f32 %v351, %v1167
      %v1266 = vadd.f32 %v352, %v1170
      %v1267 = vadd.f32 %v353, %v1175
      %v1268 = vadd.f32 %v354, %v1178
      %v1269 = vadd.f32 %v355, %v1183
      %v1270 = vadd.f32 %v356, %v1186
      %v1271 = vadd.f32 %v357, %v1191
      %v1272 = vadd.f32 %v358, %v1194
      %v1273 = vadd.f32 %v359, %v1199
      %v1274 = vadd.f32 %v360, %v1202
      %v1275 = vadd.f32 %v361, %v1207
      %v1276 = vadd.f32 %v362, %v1210
      %vm1277 = vcmask 7168
      %1278 = vst.msk [vmem:[#allocation2] sm:$0xff] %vm1277, %v1213
      %1279 = vst.msk [vmem:[#allocation2 + $0x8] sm:$0xff] %vm1277, %v1214
      %1280 = vst.msk [vmem:[#allocation2 + $0x10] sm:$0xff] %vm1277, %v1215
      %1281 = vst.msk [vmem:[#allocation2 + $0x18] sm:$0xff] %vm1277, %v1216
      %1282 = vst.msk [vmem:[#allocation2 + $0x20] sm:$0xff] %vm1277, %v1217
      %1283 = vst.msk [vmem:[#allocation2 + $0x28] sm:$0xff] %vm1277, %v1218
      %1284 = vst.msk [vmem:[#allocation2 + $0x30] sm:$0xff] %vm1277, %v1219
      %1285 = vst.msk [vmem:[#allocation2 + $0x38] sm:$0xff] %vm1277, %v1220
      %1286 = vst.msk [vmem:[#allocation2 + $0x40] sm:$0xff] %vm1277, %v1221
      %1287 = vst.msk [vmem:[#allocation2 + $0x48] sm:$0xff] %vm1277, %v1222
      %1288 = vst.msk [vmem:[#allocation2 + $0x50] sm:$0xff] %vm1277, %v1223
      %1289 = vst.msk [vmem:[#allocation2 + $0x58] sm:$0xff] %vm1277, %v1224
      %1290 = vst.msk [vmem:[#allocation2 + $0x60] sm:$0xff] %vm1277, %v1225
      %1291 = vst.msk [vmem:[#allocation2 + $0x68] sm:$0xff] %vm1277, %v1226
      %1292 = vst.msk [vmem:[#allocation2 + $0x70] sm:$0xff] %vm1277, %v1227
      %1293 = vst.msk [vmem:[#allocation2 + $0x78] sm:$0xff] %vm1277, %v1228
      %1294 = vst.msk [vmem:[#allocation2 + $0x80] sm:$0xff] %vm1277, %v1229
      %1295 = vst.msk [vmem:[#allocation2 + $0x88] sm:$0xff] %vm1277, %v1230
      %1296 = vst.msk [vmem:[#allocation2 + $0x90] sm:$0xff] %vm1277, %v1231
      %1297 = vst.msk [vmem:[#allocation2 + $0x98] sm:$0xff] %vm1277, %v1232
      %1298 = vst.msk [vmem:[#allocation2 + $0xa0] sm:$0xff] %vm1277, %v1233
      %1299 = vst.msk [vmem:[#allocation2 + $0xa8] sm:$0xff] %vm1277, %v1234
      %1300 = vst.msk [vmem:[#allocation2 + $0xb0] sm:$0xff] %vm1277, %v1235
      %1301 = vst.msk [vmem:[#allocation2 + $0xb8] sm:$0xff] %vm1277, %v1236
      %1302 = vst.msk [vmem:[#allocation2 + $0xc0] sm:$0xff] %vm1277, %v1237
      %1303 = vst.msk [vmem:[#allocation2 + $0xc8] sm:$0xff] %vm1277, %v1238
      %1304 = vst.msk [vmem:[#allocation2 + $0xd0] sm:$0xff] %vm1277, %v1239
      %1305 = vst.msk [vmem:[#allocation2 + $0xd8] sm:$0xff] %vm1277, %v1240
      %1306 = vst.msk [vmem:[#allocation2 + $0xe0] sm:$0xff] %vm1277, %v1241
      %1307 = vst.msk [vmem:[#allocation2 + $0xe8] sm:$0xff] %vm1277, %v1242
      %1308 = vst.msk [vmem:[#allocation2 + $0xf0] sm:$0xff] %vm1277, %v1243
      %1309 = vst.msk [vmem:[#allocation2 + $0xf8] sm:$0xff] %vm1277, %v1244
      %1310 = vst.msk [vmem:[#allocation2 + $0x100] sm:$0xff] %vm1277, %v1245
      %1311 = vst.msk [vmem:[#allocation2 + $0x108] sm:$0xff] %vm1277, %v1246
      %1312 = vst.msk [vmem:[#allocation2 + $0x110] sm:$0xff] %vm1277, %v1247
      %1313 = vst.msk [vmem:[#allocation2 + $0x118] sm:$0xff] %vm1277, %v1248
      %1314 = vst.msk [vmem:[#allocation2 + $0x120] sm:$0xff] %vm1277, %v1249
      %1315 = vst.msk [vmem:[#allocation2 + $0x128] sm:$0xff] %vm1277, %v1250
      %1316 = vst.msk [vmem:[#allocation2 + $0x130] sm:$0xff] %vm1277, %v1251
      %1317 = vst.msk [vmem:[#allocation2 + $0x138] sm:$0xff] %vm1277, %v1252
      %1318 = vst.msk [vmem:[#allocation2 + $0x140] sm:$0xff] %vm1277, %v1253
      %1319 = vst.msk [vmem:[#allocation2 + $0x148] sm:$0xff] %vm1277, %v1254
      %1320 = vst.msk [vmem:[#allocation2 + $0x150] sm:$0xff] %vm1277, %v1255
      %1321 = vst.msk [vmem:[#allocation2 + $0x158] sm:$0xff] %vm1277, %v1256
      %1322 = vst.msk [vmem:[#allocation2 + $0x160] sm:$0xff] %vm1277, %v1257
      %1323 = vst.msk [vmem:[#allocation2 + $0x168] sm:$0xff] %vm1277, %v1258
      %1324 = vst.msk [vmem:[#allocation2 + $0x170] sm:$0xff] %vm1277, %v1259
      %1325 = vst.msk [vmem:[#allocation2 + $0x178] sm:$0xff] %vm1277, %v1260
      %1326 = vst.msk [vmem:[#allocation2 + $0x180] sm:$0xff] %vm1277, %v1261
      %1327 = vst.msk [vmem:[#allocation2 + $0x188] sm:$0xff] %vm1277, %v1262
      %1328 = vst.msk [vmem:[#allocation2 + $0x190] sm:$0xff] %vm1277, %v1263
      %1329 = vst.msk [vmem:[#allocation2 + $0x198] sm:$0xff] %vm1277, %v1264
      %1330 = vst.msk [vmem:[#allocation2 + $0x1a0] sm:$0xff] %vm1277, %v1265
      %1331 = vst.msk [vmem:[#allocation2 + $0x1a8] sm:$0xff] %vm1277, %v1266
      %1332 = vst.msk [vmem:[#allocation2 + $0x1b0] sm:$0xff] %vm1277, %v1267
      %1333 = vst.msk [vmem:[#allocation2 + $0x1b8] sm:$0xff] %vm1277, %v1268
      %1334 = vst.msk [vmem:[#allocation2 + $0x1c0] sm:$0xff] %vm1277, %v1269
      %1335 = vst.msk [vmem:[#allocation2 + $0x1c8] sm:$0xff] %vm1277, %v1270
      %1336 = vst.msk [vmem:[#allocation2 + $0x1d0] sm:$0xff] %vm1277, %v1271
      %1337 = vst.msk [vmem:[#allocation2 + $0x1d8] sm:$0xff] %vm1277, %v1272
      %1338 = vst.msk [vmem:[#allocation2 + $0x1e0] sm:$0xff] %vm1277, %v1273
      %1339 = vst.msk [vmem:[#allocation2 + $0x1e8] sm:$0xff] %vm1277, %v1274
      %1340 = vst.msk [vmem:[#allocation2 + $0x1f0] sm:$0xff] %vm1277, %v1275
      %1341 = vst.msk [vmem:[#allocation2 + $0x1f8] sm:$0xff] %vm1277, %v1276
      // Predicated region
      $region37: #{joint_model_apply.39} parent=31 // pred_check
        %p1342 = pneg %p230
      $region38: #{joint_model_apply.39} parent=31 // pred_check_branch
        %1344 = sbr.rel (%p1342) target = $region40
      $region39: #{joint_model_apply.39} parent=31 // pred_region
        %v1345 = vld [vmem:[#allocation2] sm:$0xff]
        %v1346 = vld [vmem:[#allocation2 + $0x8] sm:$0xff]
        %v1347 = vld [vmem:[#allocation2 + $0x10] sm:$0xff]
        %v1348 = vld [vmem:[#allocation2 + $0x18] sm:$0xff]
        %v1349 = vld [vmem:[#allocation2 + $0x20] sm:$0xff]
        %v1350 = vld [vmem:[#allocation2 + $0x28] sm:$0xff]
        %v1351 = vld [vmem:[#allocation2 + $0x30] sm:$0xff]
        %v1352 = vld [vmem:[#allocation2 + $0x38] sm:$0xff]
        %v1353 = vld [vmem:[#allocation2 + $0x40] sm:$0xff]
        %v1354 = vld [vmem:[#allocation2 + $0x48] sm:$0xff]
        %v1355 = vld [vmem:[#allocation2 + $0x50] sm:$0xff]
        %v1356 = vld [vmem:[#allocation2 + $0x58] sm:$0xff]
        %v1357 = vld [vmem:[#allocation2 + $0x60] sm:$0xff]
        %v1358 = vld [vmem:[#allocation2 + $0x68] sm:$0xff]
        %v1359 = vld [vmem:[#allocation2 + $0x70] sm:$0xff]
        %v1360 = vld [vmem:[#allocation2 + $0x78] sm:$0xff]
        %v1361 = vld [vmem:[#allocation2 + $0x80] sm:$0xff]
        %v1362 = vld [vmem:[#allocation2 + $0x88] sm:$0xff]
        %v1363 = vld [vmem:[#allocation2 + $0x90] sm:$0xff]
        %v1364 = vld [vmem:[#allocation2 + $0x98] sm:$0xff]
        %v1365 = vld [vmem:[#allocation2 + $0xa0] sm:$0xff]
        %v1366 = vld [vmem:[#allocation2 + $0xa8] sm:$0xff]
        %v1367 = vld [vmem:[#allocation2 + $0xb0] sm:$0xff]
        %v1368 = vld [vmem:[#allocation2 + $0xb8] sm:$0xff]
        %v1369 = vld [vmem:[#allocation2 + $0xc0] sm:$0xff]
        %v1370 = vld [vmem:[#allocation2 + $0xc8] sm:$0xff]
        %v1371 = vld [vmem:[#allocation2 + $0xd0] sm:$0xff]
        %v1372 = vld [vmem:[#allocation2 + $0xd8] sm:$0xff]
        %v1373 = vld [vmem:[#allocation2 + $0xe0] sm:$0xff]
        %v1374 = vld [vmem:[#allocation2 + $0xe8] sm:$0xff]
        %v1375 = vld [vmem:[#allocation2 + $0xf0] sm:$0xff]
        %v1376 = vld [vmem:[#allocation2 + $0xf8] sm:$0xff]
        %v1377 = vld [vmem:[#allocation2 + $0x100] sm:$0xff]
        %v1378 = vld [vmem:[#allocation2 + $0x108] sm:$0xff]
        %v1379 = vld [vmem:[#allocation2 + $0x110] sm:$0xff]
        %v1380 = vld [vmem:[#allocation2 + $0x118] sm:$0xff]
        %v1381 = vld [vmem:[#allocation2 + $0x120] sm:$0xff]
        %v1382 = vld [vmem:[#allocation2 + $0x128] sm:$0xff]
        %v1383 = vld [vmem:[#allocation2 + $0x130] sm:$0xff]
        %v1384 = vld [vmem:[#allocation2 + $0x138] sm:$0xff]
        %v1385 = vld [vmem:[#allocation2 + $0x140] sm:$0xff]
        %v1386 = vld [vmem:[#allocation2 + $0x148] sm:$0xff]
        %v1387 = vld [vmem:[#allocation2 + $0x150] sm:$0xff]
        %v1388 = vld [vmem:[#allocation2 + $0x158] sm:$0xff]
        %v1389 = vld [vmem:[#allocation2 + $0x160] sm:$0xff]
        %v1390 = vld [vmem:[#allocation2 + $0x168] sm:$0xff]
        %v1391 = vld [vmem:[#allocation2 + $0x170] sm:$0xff]
        %v1392 = vld [vmem:[#allocation2 + $0x178] sm:$0xff]
        %v1393 = vld [vmem:[#allocation2 + $0x180] sm:$0xff]
        %v1394 = vld [vmem:[#allocation2 + $0x188] sm:$0xff]
        %v1395 = vld [vmem:[#allocation2 + $0x190] sm:$0xff]
        %v1396 = vld [vmem:[#allocation2 + $0x198] sm:$0xff]
        %v1397 = vld [vmem:[#allocation2 + $0x1a0] sm:$0xff]
        %v1398 = vld [vmem:[#allocation2 + $0x1a8] sm:$0xff]
        %v1399 = vld [vmem:[#allocation2 + $0x1b0] sm:$0xff]
        %v1400 = vld [vmem:[#allocation2 + $0x1b8] sm:$0xff]
        %v1401 = vld [vmem:[#allocation2 + $0x1c0] sm:$0xff]
        %v1402 = vld [vmem:[#allocation2 + $0x1c8] sm:$0xff]
        %v1403 = vld [vmem:[#allocation2 + $0x1d0] sm:$0xff]
        %v1404 = vld [vmem:[#allocation2 + $0x1d8] sm:$0xff]
        %v1405 = vld [vmem:[#allocation2 + $0x1e0] sm:$0xff]
        %v1406 = vld [vmem:[#allocation2 + $0x1e8] sm:$0xff]
        %v1407 = vld [vmem:[#allocation2 + $0x1f0] sm:$0xff]
        %v1408 = vld [vmem:[#allocation2 + $0x1f8] sm:$0xff]
        %v1409 = vld [vmem:[#allocation3] sm:$0x1]
        %v1411 = vlaneseq
        %v1412 = vshrl.u32 %v1411, 7
        %v1413 = vsub.s32 0, %v1412
        %v1414 = vrot.slane %v1409, %v1413
        %v1416 = vadd.f32 %v1345, %v1414
        %v1417 = vadd.f32 %v1346, %v1414
        %v1418 = vadd.f32 %v1347, %v1414
        %v1419 = vadd.f32 %v1348, %v1414
        %v1420 = vadd.f32 %v1349, %v1414
        %v1421 = vadd.f32 %v1350, %v1414
        %v1422 = vadd.f32 %v1351, %v1414
        %v1423 = vadd.f32 %v1352, %v1414
        %v1424 = vadd.f32 %v1353, %v1414
        %v1425 = vadd.f32 %v1354, %v1414
        %v1426 = vadd.f32 %v1355, %v1414
        %v1427 = vadd.f32 %v1356, %v1414
        %v1428 = vadd.f32 %v1357, %v1414
        %v1429 = vadd.f32 %v1358, %v1414
        %v1430 = vadd.f32 %v1359, %v1414
        %v1431 = vadd.f32 %v1360, %v1414
        %v1432 = vadd.f32 %v1361, %v1414
        %v1433 = vadd.f32 %v1362, %v1414
        %v1434 = vadd.f32 %v1363, %v1414
        %v1435 = vadd.f32 %v1364, %v1414
        %v1436 = vadd.f32 %v1365, %v1414
        %v1437 = vadd.f32 %v1366, %v1414
        %v1438 = vadd.f32 %v1367, %v1414
        %v1439 = vadd.f32 %v1368, %v1414
        %v1440 = vadd.f32 %v1369, %v1414
        %v1441 = vadd.f32 %v1370, %v1414
        %v1442 = vadd.f32 %v1371, %v1414
        %v1443 = vadd.f32 %v1372, %v1414
        %v1444 = vadd.f32 %v1373, %v1414
        %v1445 = vadd.f32 %v1374, %v1414
        %v1446 = vadd.f32 %v1375, %v1414
        %v1447 = vadd.f32 %v1376, %v1414
        %v1448 = vadd.f32 %v1377, %v1414
        %v1449 = vadd.f32 %v1378, %v1414
        %v1450 = vadd.f32 %v1379, %v1414
        %v1451 = vadd.f32 %v1380, %v1414
        %v1452 = vadd.f32 %v1381, %v1414
        %v1453 = vadd.f32 %v1382, %v1414
        %v1454 = vadd.f32 %v1383, %v1414
        %v1455 = vadd.f32 %v1384, %v1414
        %v1456 = vadd.f32 %v1385, %v1414
        %v1457 = vadd.f32 %v1386, %v1414
        %v1458 = vadd.f32 %v1387, %v1414
        %v1459 = vadd.f32 %v1388, %v1414
        %v1460 = vadd.f32 %v1389, %v1414
        %v1461 = vadd.f32 %v1390, %v1414
        %v1462 = vadd.f32 %v1391, %v1414
        %v1463 = vadd.f32 %v1392, %v1414
        %v1464 = vadd.f32 %v1393, %v1414
        %v1465 = vadd.f32 %v1394, %v1414
        %v1466 = vadd.f32 %v1395, %v1414
        %v1467 = vadd.f32 %v1396, %v1414
        %v1468 = vadd.f32 %v1397, %v1414
        %v1469 = vadd.f32 %v1398, %v1414
        %v1470 = vadd.f32 %v1399, %v1414
        %v1471 = vadd.f32 %v1400, %v1414
        %v1472 = vadd.f32 %v1401, %v1414
        %v1473 = vadd.f32 %v1402, %v1414
        %v1474 = vadd.f32 %v1403, %v1414
        %v1475 = vadd.f32 %v1404, %v1414
        %v1476 = vadd.f32 %v1405, %v1414
        %v1477 = vadd.f32 %v1406, %v1414
        %v1478 = vadd.f32 %v1407, %v1414
        %v1479 = vadd.f32 %v1408, %v1414
        %vm1480 = vcmp.ge.f32.partialorder %v1416, 0.0
        %vm1481 = vcmp.ge.f32.partialorder %v1417, 0.0
        %vm1482 = vcmp.ge.f32.partialorder %v1418, 0.0
        %vm1483 = vcmp.ge.f32.partialorder %v1419, 0.0
        %vm1484 = vcmp.ge.f32.partialorder %v1420, 0.0
        %vm1485 = vcmp.ge.f32.partialorder %v1421, 0.0
        %vm1486 = vcmp.ge.f32.partialorder %v1422, 0.0
        %vm1487 = vcmp.ge.f32.partialorder %v1423, 0.0
        %vm1488 = vcmp.ge.f32.partialorder %v1424, 0.0
        %vm1489 = vcmp.ge.f32.partialorder %v1425, 0.0
        %vm1490 = vcmp.ge.f32.partialorder %v1426, 0.0
        %vm1491 = vcmp.ge.f32.partialorder %v1427, 0.0
        %vm1492 = vcmp.ge.f32.partialorder %v1428, 0.0
        %vm1493 = vcmp.ge.f32.partialorder %v1429, 0.0
        %vm1494 = vcmp.ge.f32.partialorder %v1430, 0.0
        %vm1495 = vcmp.ge.f32.partialorder %v1431, 0.0
        %vm1496 = vcmp.ge.f32.partialorder %v1432, 0.0
        %vm1497 = vcmp.ge.f32.partialorder %v1433, 0.0
        %vm1498 = vcmp.ge.f32.partialorder %v1434, 0.0
        %vm1499 = vcmp.ge.f32.partialorder %v1435, 0.0
        %vm1500 = vcmp.ge.f32.partialorder %v1436, 0.0
        %vm1501 = vcmp.ge.f32.partialorder %v1437, 0.0
        %vm1502 = vcmp.ge.f32.partialorder %v1438, 0.0
        %vm1503 = vcmp.ge.f32.partialorder %v1439, 0.0
        %vm1504 = vcmp.ge.f32.partialorder %v1440, 0.0
        %vm1505 = vcmp.ge.f32.partialorder %v1441, 0.0
        %vm1506 = vcmp.ge.f32.partialorder %v1442, 0.0
        %vm1507 = vcmp.ge.f32.partialorder %v1443, 0.0
        %vm1508 = vcmp.ge.f32.partialorder %v1444, 0.0
        %vm1509 = vcmp.ge.f32.partialorder %v1445, 0.0
        %vm1510 = vcmp.ge.f32.partialorder %v1446, 0.0
        %vm1511 = vcmp.ge.f32.partialorder %v1447, 0.0
        %vm1512 = vcmp.ge.f32.partialorder %v1448, 0.0
        %vm1513 = vcmp.ge.f32.partialorder %v1449, 0.0
        %vm1514 = vcmp.ge.f32.partialorder %v1450, 0.0
        %vm1515 = vcmp.ge.f32.partialorder %v1451, 0.0
        %vm1516 = vcmp.ge.f32.partialorder %v1452, 0.0
        %vm1517 = vcmp.ge.f32.partialorder %v1453, 0.0
        %vm1518 = vcmp.ge.f32.partialorder %v1454, 0.0
        %vm1519 = vcmp.ge.f32.partialorder %v1455, 0.0
        %vm1520 = vcmp.ge.f32.partialorder %v1456, 0.0
        %vm1521 = vcmp.ge.f32.partialorder %v1457, 0.0
        %vm1522 = vcmp.ge.f32.partialorder %v1458, 0.0
        %vm1523 = vcmp.ge.f32.partialorder %v1459, 0.0
        %vm1524 = vcmp.ge.f32.partialorder %v1460, 0.0
        %vm1525 = vcmp.ge.f32.partialorder %v1461, 0.0
        %vm1526 = vcmp.ge.f32.partialorder %v1462, 0.0
        %vm1527 = vcmp.ge.f32.partialorder %v1463, 0.0
        %vm1528 = vcmp.ge.f32.partialorder %v1464, 0.0
        %vm1529 = vcmp.ge.f32.partialorder %v1465, 0.0
        %vm1530 = vcmp.ge.f32.partialorder %v1466, 0.0
        %vm1531 = vcmp.ge.f32.partialorder %v1467, 0.0
        %vm1532 = vcmp.ge.f32.partialorder %v1468, 0.0
        %vm1533 = vcmp.ge.f32.partialorder %v1469, 0.0
        %vm1534 = vcmp.ge.f32.partialorder %v1470, 0.0
        %vm1535 = vcmp.ge.f32.partialorder %v1471, 0.0
        %vm1536 = vcmp.ge.f32.partialorder %v1472, 0.0
        %vm1537 = vcmp.ge.f32.partialorder %v1473, 0.0
        %vm1538 = vcmp.ge.f32.partialorder %v1474, 0.0
        %vm1539 = vcmp.ge.f32.partialorder %v1475, 0.0
        %vm1540 = vcmp.ge.f32.partialorder %v1476, 0.0
        %vm1541 = vcmp.ge.f32.partialorder %v1477, 0.0
        %vm1542 = vcmp.ge.f32.partialorder %v1478, 0.0
        %vm1543 = vcmp.ge.f32.partialorder %v1479, 0.0
        %v1544 = vmul.f32 %v1416, 0.2
        %v1545 = vmul.f32 %v1417, 0.2
        %v1546 = vmul.f32 %v1418, 0.2
        %v1547 = vmul.f32 %v1419, 0.2
        %v1548 = vmul.f32 %v1420, 0.2
        %v1549 = vmul.f32 %v1421, 0.2
        %v1550 = vmul.f32 %v1422, 0.2
        %v1551 = vmul.f32 %v1423, 0.2
        %v1552 = vmul.f32 %v1424, 0.2
        %v1553 = vmul.f32 %v1425, 0.2
        %v1554 = vmul.f32 %v1426, 0.2
        %v1555 = vmul.f32 %v1427, 0.2
        %v1556 = vmul.f32 %v1428, 0.2
        %v1557 = vmul.f32 %v1429, 0.2
        %v1558 = vmul.f32 %v1430, 0.2
        %v1559 = vmul.f32 %v1431, 0.2
        %v1560 = vmul.f32 %v1432, 0.2
        %v1561 = vmul.f32 %v1433, 0.2
        %v1562 = vmul.f32 %v1434, 0.2
        %v1563 = vmul.f32 %v1435, 0.2
        %v1564 = vmul.f32 %v1436, 0.2
        %v1565 = vmul.f32 %v1437, 0.2
        %v1566 = vmul.f32 %v1438, 0.2
        %v1567 = vmul.f32 %v1439, 0.2
        %v1568 = vmul.f32 %v1440, 0.2
        %v1569 = vmul.f32 %v1441, 0.2
        %v1570 = vmul.f32 %v1442, 0.2
        %v1571 = vmul.f32 %v1443, 0.2
        %v1572 = vmul.f32 %v1444, 0.2
        %v1573 = vmul.f32 %v1445, 0.2
        %v1574 = vmul.f32 %v1446, 0.2
        %v1575 = vmul.f32 %v1447, 0.2
        %v1576 = vmul.f32 %v1448, 0.2
        %v1577 = vmul.f32 %v1449, 0.2
        %v1578 = vmul.f32 %v1450, 0.2
        %v1579 = vmul.f32 %v1451, 0.2
        %v1580 = vmul.f32 %v1452, 0.2
        %v1581 = vmul.f32 %v1453, 0.2
        %v1582 = vmul.f32 %v1454, 0.2
        %v1583 = vmul.f32 %v1455, 0.2
        %v1584 = vmul.f32 %v1456, 0.2
        %v1585 = vmul.f32 %v1457, 0.2
        %v1586 = vmul.f32 %v1458, 0.2
        %v1587 = vmul.f32 %v1459, 0.2
        %v1588 = vmul.f32 %v1460, 0.2
        %v1589 = vmul.f32 %v1461, 0.2
        %v1590 = vmul.f32 %v1462, 0.2
        %v1591 = vmul.f32 %v1463, 0.2
        %v1592 = vmul.f32 %v1464, 0.2
        %v1593 = vmul.f32 %v1465, 0.2
        %v1594 = vmul.f32 %v1466, 0.2
        %v1595 = vmul.f32 %v1467, 0.2
        %v1596 = vmul.f32 %v1468, 0.2
        %v1597 = vmul.f32 %v1469, 0.2
        %v1598 = vmul.f32 %v1470, 0.2
        %v1599 = vmul.f32 %v1471, 0.2
        %v1600 = vmul.f32 %v1472, 0.2
        %v1601 = vmul.f32 %v1473, 0.2
        %v1602 = vmul.f32 %v1474, 0.2
        %v1603 = vmul.f32 %v1475, 0.2
        %v1604 = vmul.f32 %v1476, 0.2
        %v1605 = vmul.f32 %v1477, 0.2
        %v1606 = vmul.f32 %v1478, 0.2
        %v1607 = vmul.f32 %v1479, 0.2
        %v1608 = vsel %vm1480, %v1416, %v1544
        %v1609 = vsel %vm1481, %v1417, %v1545
        %v1610 = vsel %vm1482, %v1418, %v1546
        %v1611 = vsel %vm1483, %v1419, %v1547
        %v1612 = vsel %vm1484, %v1420, %v1548
        %v1613 = vsel %vm1485, %v1421, %v1549
        %v1614 = vsel %vm1486, %v1422, %v1550
        %v1615 = vsel %vm1487, %v1423, %v1551
        %v1616 = vsel %vm1488, %v1424, %v1552
        %v1617 = vsel %vm1489, %v1425, %v1553
        %v1618 = vsel %vm1490, %v1426, %v1554
        %v1619 = vsel %vm1491, %v1427, %v1555
        %v1620 = vsel %vm1492, %v1428, %v1556
        %v1621 = vsel %vm1493, %v1429, %v1557
        %v1622 = vsel %vm1494, %v1430, %v1558
        %v1623 = vsel %vm1495, %v1431, %v1559
        %v1624 = vsel %vm1496, %v1432, %v1560
        %v1625 = vsel %vm1497, %v1433, %v1561
        %v1626 = vsel %vm1498, %v1434, %v1562
        %v1627 = vsel %vm1499, %v1435, %v1563
        %v1628 = vsel %vm1500, %v1436, %v1564
        %v1629 = vsel %vm1501, %v1437, %v1565
        %v1630 = vsel %vm1502, %v1438, %v1566
        %v1631 = vsel %vm1503, %v1439, %v1567
        %v1632 = vsel %vm1504, %v1440, %v1568
        %v1633 = vsel %vm1505, %v1441, %v1569
        %v1634 = vsel %vm1506, %v1442, %v1570
        %v1635 = vsel %vm1507, %v1443, %v1571
        %v1636 = vsel %vm1508, %v1444, %v1572
        %v1637 = vsel %vm1509, %v1445, %v1573
        %v1638 = vsel %vm1510, %v1446, %v1574
        %v1639 = vsel %vm1511, %v1447, %v1575
        %v1640 = vsel %vm1512, %v1448, %v1576
        %v1641 = vsel %vm1513, %v1449, %v1577
        %v1642 = vsel %vm1514, %v1450, %v1578
        %v1643 = vsel %vm1515, %v1451, %v1579
        %v1644 = vsel %vm1516, %v1452, %v1580
        %v1645 = vsel %vm1517, %v1453, %v1581
        %v1646 = vsel %vm1518, %v1454, %v1582
        %v1647 = vsel %vm1519, %v1455, %v1583
        %v1648 = vsel %vm1520, %v1456, %v1584
        %v1649 = vsel %vm1521, %v1457, %v1585
        %v1650 = vsel %vm1522, %v1458, %v1586
        %v1651 = vsel %vm1523, %v1459, %v1587
        %v1652 = vsel %vm1524, %v1460, %v1588
        %v1653 = vsel %vm1525, %v1461, %v1589
        %v1654 = vsel %vm1526, %v1462, %v1590
        %v1655 = vsel %vm1527, %v1463, %v1591
        %v1656 = vsel %vm1528, %v1464, %v1592
        %v1657 = vsel %vm1529, %v1465, %v1593
        %v1658 = vsel %vm1530, %v1466, %v1594
        %v1659 = vsel %vm1531, %v1467, %v1595
        %v1660 = vsel %vm1532, %v1468, %v1596
        %v1661 = vsel %vm1533, %v1469, %v1597
        %v1662 = vsel %vm1534, %v1470, %v1598
        %v1663 = vsel %vm1535, %v1471, %v1599
        %v1664 = vsel %vm1536, %v1472, %v1600
        %v1665 = vsel %vm1537, %v1473, %v1601
        %v1666 = vsel %vm1538, %v1474, %v1602
        %v1667 = vsel %vm1539, %v1475, %v1603
        %v1668 = vsel %vm1540, %v1476, %v1604
        %v1669 = vsel %vm1541, %v1477, %v1605
        %v1670 = vsel %vm1542, %v1478, %v1606
        %v1671 = vsel %vm1543, %v1479, %v1607
        %1672 = vst.msk [vmem:[%s227] sm:$0xff] %vm1277, %v1608
        %1673 = vst.msk [vmem:[%s227 + $0x8] sm:$0xff] %vm1277, %v1609
        %1674 = vst.msk [vmem:[%s227 + $0x10] sm:$0xff] %vm1277, %v1610
        %1675 = vst.msk [vmem:[%s227 + $0x18] sm:$0xff] %vm1277, %v1611
        %1676 = vst.msk [vmem:[%s227 + $0x20] sm:$0xff] %vm1277, %v1612
        %1677 = vst.msk [vmem:[%s227 + $0x28] sm:$0xff] %vm1277, %v1613
        %1678 = vst.msk [vmem:[%s227 + $0x30] sm:$0xff] %vm1277, %v1614
        %1679 = vst.msk [vmem:[%s227 + $0x38] sm:$0xff] %vm1277, %v1615
        %1680 = vst.msk [vmem:[%s227 + $0x40] sm:$0xff] %vm1277, %v1616
        %1681 = vst.msk [vmem:[%s227 + $0x48] sm:$0xff] %vm1277, %v1617
        %1682 = vst.msk [vmem:[%s227 + $0x50] sm:$0xff] %vm1277, %v1618
        %1683 = vst.msk [vmem:[%s227 + $0x58] sm:$0xff] %vm1277, %v1619
        %1684 = vst.msk [vmem:[%s227 + $0x60] sm:$0xff] %vm1277, %v1620
        %1685 = vst.msk [vmem:[%s227 + $0x68] sm:$0xff] %vm1277, %v1621
        %1686 = vst.msk [vmem:[%s227 + $0x70] sm:$0xff] %vm1277, %v1622
        %1687 = vst.msk [vmem:[%s227 + $0x78] sm:$0xff] %vm1277, %v1623
        %1688 = vst.msk [vmem:[%s227 + $0x80] sm:$0xff] %vm1277, %v1624
        %1689 = vst.msk [vmem:[%s227 + $0x88] sm:$0xff] %vm1277, %v1625
        %1690 = vst.msk [vmem:[%s227 + $0x90] sm:$0xff] %vm1277, %v1626
        %1691 = vst.msk [vmem:[%s227 + $0x98] sm:$0xff] %vm1277, %v1627
        %1692 = vst.msk [vmem:[%s227 + $0xa0] sm:$0xff] %vm1277, %v1628
        %1693 = vst.msk [vmem:[%s227 + $0xa8] sm:$0xff] %vm1277, %v1629
        %1694 = vst.msk [vmem:[%s227 + $0xb0] sm:$0xff] %vm1277, %v1630
        %1695 = vst.msk [vmem:[%s227 + $0xb8] sm:$0xff] %vm1277, %v1631
        %1696 = vst.msk [vmem:[%s227 + $0xc0] sm:$0xff] %vm1277, %v1632
        %1697 = vst.msk [vmem:[%s227 + $0xc8] sm:$0xff] %vm1277, %v1633
        %1698 = vst.msk [vmem:[%s227 + $0xd0] sm:$0xff] %vm1277, %v1634
        %1699 = vst.msk [vmem:[%s227 + $0xd8] sm:$0xff] %vm1277, %v1635
        %1700 = vst.msk [vmem:[%s227 + $0xe0] sm:$0xff] %vm1277, %v1636
        %1701 = vst.msk [vmem:[%s227 + $0xe8] sm:$0xff] %vm1277, %v1637
        %1702 = vst.msk [vmem:[%s227 + $0xf0] sm:$0xff] %vm1277, %v1638
        %1703 = vst.msk [vmem:[%s227 + $0xf8] sm:$0xff] %vm1277, %v1639
        %1704 = vst.msk [vmem:[%s227 + $0x100] sm:$0xff] %vm1277, %v1640
        %1705 = vst.msk [vmem:[%s227 + $0x108] sm:$0xff] %vm1277, %v1641
        %1706 = vst.msk [vmem:[%s227 + $0x110] sm:$0xff] %vm1277, %v1642
        %1707 = vst.msk [vmem:[%s227 + $0x118] sm:$0xff] %vm1277, %v1643
        %1708 = vst.msk [vmem:[%s227 + $0x120] sm:$0xff] %vm1277, %v1644
        %1709 = vst.msk [vmem:[%s227 + $0x128] sm:$0xff] %vm1277, %v1645
        %1710 = vst.msk [vmem:[%s227 + $0x130] sm:$0xff] %vm1277, %v1646
        %1711 = vst.msk [vmem:[%s227 + $0x138] sm:$0xff] %vm1277, %v1647
        %1712 = vst.msk [vmem:[%s227 + $0x140] sm:$0xff] %vm1277, %v1648
        %1713 = vst.msk [vmem:[%s227 + $0x148] sm:$0xff] %vm1277, %v1649
        %1714 = vst.msk [vmem:[%s227 + $0x150] sm:$0xff] %vm1277, %v1650
        %1715 = vst.msk [vmem:[%s227 + $0x158] sm:$0xff] %vm1277, %v1651
        %1716 = vst.msk [vmem:[%s227 + $0x160] sm:$0xff] %vm1277, %v1652
        %1717 = vst.msk [vmem:[%s227 + $0x168] sm:$0xff] %vm1277, %v1653
        %1718 = vst.msk [vmem:[%s227 + $0x170] sm:$0xff] %vm1277, %v1654
        %1719 = vst.msk [vmem:[%s227 + $0x178] sm:$0xff] %vm1277, %v1655
        %1720 = vst.msk [vmem:[%s227 + $0x180] sm:$0xff] %vm1277, %v1656
        %1721 = vst.msk [vmem:[%s227 + $0x188] sm:$0xff] %vm1277, %v1657
        %1722 = vst.msk [vmem:[%s227 + $0x190] sm:$0xff] %vm1277, %v1658
        %1723 = vst.msk [vmem:[%s227 + $0x198] sm:$0xff] %vm1277, %v1659
        %1724 = vst.msk [vmem:[%s227 + $0x1a0] sm:$0xff] %vm1277, %v1660
        %1725 = vst.msk [vmem:[%s227 + $0x1a8] sm:$0xff] %vm1277, %v1661
        %1726 = vst.msk [vmem:[%s227 + $0x1b0] sm:$0xff] %vm1277, %v1662
        %1727 = vst.msk [vmem:[%s227 + $0x1b8] sm:$0xff] %vm1277, %v1663
        %1728 = vst.msk [vmem:[%s227 + $0x1c0] sm:$0xff] %vm1277, %v1664
        %1729 = vst.msk [vmem:[%s227 + $0x1c8] sm:$0xff] %vm1277, %v1665
        %1730 = vst.msk [vmem:[%s227 + $0x1d0] sm:$0xff] %vm1277, %v1666
        %1731 = vst.msk [vmem:[%s227 + $0x1d8] sm:$0xff] %vm1277, %v1667
        %1732 = vst.msk [vmem:[%s227 + $0x1e0] sm:$0xff] %vm1277, %v1668
        %1733 = vst.msk [vmem:[%s227 + $0x1e8] sm:$0xff] %vm1277, %v1669
        %1734 = vst.msk [vmem:[%s227 + $0x1f0] sm:$0xff] %vm1277, %v1670
        %1735 = vst.msk [vmem:[%s227 + $0x1f8] sm:$0xff] %vm1277, %v1671
      $region40: #{joint_model_apply.39} parent=31 // pred_fallthru
        _
      %s1736 = smul.u32 64, %s20
      %p1737 = scmp.lt.s32.totalorder %s1736, 127
      %s1738 = scalar_select %p1737, %s1736, 127
      %s1739 = smul.addr %s1738, 8
      %s1740 = scalar_lea.vmem %s3, %s1739
      // Predicated region
      $region41: #{joint_model_apply.39} parent=31 // pred_check
        %p1741 = pneg %p121
      $region42: #{joint_model_apply.39} parent=31 // pred_check_branch
        %1743 = sbr.rel (%p1741) target = $region44
      $region43: #{joint_model_apply.39} parent=31 // pred_region
        %s1744 = smul.u32 64, %s20
      $region44: #{joint_model_apply.39} parent=31 // pred_fallthru
        _
    $region32: #{joint_model_apply.39} parent=5 // pred_fallthru
      _
    %p1745 = scmp.le.s32.totalorder 2, %s11
    // Predicated region
    $region45: #{joint_model_apply.39} parent=5 // pred_check
      %p1746 = pneg %p1745
    $region46: #{joint_model_apply.39} parent=5 // pred_check_branch
      %1748 = sbr.rel (%p1746) target = $region48
    $region47: #{joint_model_apply.39} parent=5 // pred_region
      %s1749 = ssub.s32 %s11, 2
      // Predicated region
      $region49: #{joint_model_apply.39} parent=47 // pred_check
        %p1750 = pneg %p127
      $region50: #{joint_model_apply.39} parent=47 // pred_check_branch
        %1752 = sbr.rel (%p1750) target = $region52
      $region51: #{joint_model_apply.39} parent=47 // pred_region
        %s1753 = smul.u32 64, %s22
        %p1754 = scmp.lt.s32.totalorder %s1753, 127
        %s1755 = scalar_select %p1754, %s1753, 127
        %s1756 = smul.addr %s1755, 8
        %s1757 = scalar_lea.vmem %s3, %s1756
      $region52: #{joint_model_apply.39} parent=47 // pred_fallthru
        _
    $region48: #{joint_model_apply.39} parent=5 // pred_fallthru
      _
  $region6: #{joint_model_apply.39} parent=0 // loop_footer
    %s15 = sadd.s32 1, %s11
  $region7: #{joint_model_apply.39} parent=0 // loop_footer_branch
    %10 = sbr.rel target = $region3
  $region8: #{joint_model_apply.39} parent=0 // loop_exit
    _

// kernel: joint_model_apply.42
$region0: #{joint_model_apply.42}
  #allocation0 [shape = 'u32[]', space=smem, size = 0x4, offset = 0x4, fixed_abs, tag = 'smem constant byte address 0x4 - core index']
  #allocation1 [shape = 'u32[144,128]{1,0:T(1,128)}', space=vmem, size = 0x12000, scoped, tag = 'internal scratch']
  #allocation2 [shape = 'f32[128,16]{1,0:T(8,128)}', space=vmem, size = 0x10000, scoped, tag = 'scratch operand']
  %s0 = inlined_call_operand.vmem [shape: bf16[128,8], index: 0, kind: input, shape index: {}]
  %s1 = inlined_call_operand.vmem [shape: bf16[8,16], index: 1, kind: input, shape index: {}]
  %s2 = inlined_call_operand.vmem [shape: f32[1,16], index: 2, kind: input, shape index: {}]
  %s3 = inlined_call_operand.vmem [shape: f32[128,16], index: 3, kind: output, shape index: {}]
  %s4 = sld [smem:[#allocation0]]
  $region30: #{joint_model_apply.42} parent=0
    _
  %s6 = ssub.s32 1, %s4
  %s7 = scalar_select 0, %s6, %s4
  // Predicated region
  $region2: #{joint_model_apply.42} parent=0 // pred_check
    _
  $region3: #{joint_model_apply.42} parent=0 // pred_check_branch
    %9 = sbr.rel (0) target = $region5
  $region4: #{joint_model_apply.42} parent=0 // pred_region
    _
  $region5: #{joint_model_apply.42} parent=0 // pred_fallthru
    _
  // Predicated region
  $region6: #{joint_model_apply.42} parent=0 // pred_check
    _
  $region7: #{joint_model_apply.42} parent=0 // pred_check_branch
    %11 = sbr.rel (0) target = $region9
  $region8: #{joint_model_apply.42} parent=0 // pred_region
    _
  $region9: #{joint_model_apply.42} parent=0 // pred_fallthru
    _
  // Predicated region
  $region10: #{joint_model_apply.42} parent=0 // pred_check
    _
  $region11: #{joint_model_apply.42} parent=0 // pred_check_branch
    %13 = sbr.rel (0) target = $region13
  $region12: #{joint_model_apply.42} parent=0 // pred_region
    _
  $region13: #{joint_model_apply.42} parent=0 // pred_fallthru
    _
  %p15 = scmp.eq.s32.totalorder 0, 0
  // Predicated region
  $region14: #{joint_model_apply.42} parent=0 // pred_check
    %p16 = pneg %p15
  $region15: #{joint_model_apply.42} parent=0 // pred_check_branch
    %18 = sbr.rel (%p16) target = $region17
  $region16: #{joint_model_apply.42} parent=0 // pred_region
    %vm19 = vcmask 130048
    %20 = vst.msk [vmem:[#allocation2] sm:$0xff] %vm19, 0.0
    %21 = vst.msk [vmem:[#allocation2 + $0x8] sm:$0xff] %vm19, 0.0
    %22 = vst.msk [vmem:[#allocation2 + $0x10] sm:$0xff] %vm19, 0.0
    %23 = vst.msk [vmem:[#allocation2 + $0x18] sm:$0xff] %vm19, 0.0
    %24 = vst.msk [vmem:[#allocation2 + $0x20] sm:$0xff] %vm19, 0.0
    %25 = vst.msk [vmem:[#allocation2 + $0x28] sm:$0xff] %vm19, 0.0
    %26 = vst.msk [vmem:[#allocation2 + $0x30] sm:$0xff] %vm19, 0.0
    %27 = vst.msk [vmem:[#allocation2 + $0x38] sm:$0xff] %vm19, 0.0
    %28 = vst.msk [vmem:[#allocation2 + $0x40] sm:$0xff] %vm19, 0.0
    %29 = vst.msk [vmem:[#allocation2 + $0x48] sm:$0xff] %vm19, 0.0
    %30 = vst.msk [vmem:[#allocation2 + $0x50] sm:$0xff] %vm19, 0.0
    %31 = vst.msk [vmem:[#allocation2 + $0x58] sm:$0xff] %vm19, 0.0
    %32 = vst.msk [vmem:[#allocation2 + $0x60] sm:$0xff] %vm19, 0.0
    %33 = vst.msk [vmem:[#allocation2 + $0x68] sm:$0xff] %vm19, 0.0
    %34 = vst.msk [vmem:[#allocation2 + $0x70] sm:$0xff] %vm19, 0.0
    %35 = vst.msk [vmem:[#allocation2 + $0x78] sm:$0xff] %vm19, 0.0
  $region17: #{joint_model_apply.42} parent=0 // pred_fallthru
    _
  %v36 = vld [vmem:[#allocation2] sm:$0xff]
  %v37 = vld [vmem:[#allocation2 + $0x8] sm:$0xff]
  %v38 = vld [vmem:[#allocation2 + $0x10] sm:$0xff]
  %v39 = vld [vmem:[#allocation2 + $0x18] sm:$0xff]
  %v40 = vld [vmem:[#allocation2 + $0x20] sm:$0xff]
  %v41 = vld [vmem:[#allocation2 + $0x28] sm:$0xff]
  %v42 = vld [vmem:[#allocation2 + $0x30] sm:$0xff]
  %v43 = vld [vmem:[#allocation2 + $0x38] sm:$0xff]
  %v44 = vld [vmem:[#allocation2 + $0x40] sm:$0xff]
  %v45 = vld [vmem:[#allocation2 + $0x48] sm:$0xff]
  %v46 = vld [vmem:[#allocation2 + $0x50] sm:$0xff]
  %v47 = vld [vmem:[#allocation2 + $0x58] sm:$0xff]
  %v48 = vld [vmem:[#allocation2 + $0x60] sm:$0xff]
  %v49 = vld [vmem:[#allocation2 + $0x68] sm:$0xff]
  %v50 = vld [vmem:[#allocation2 + $0x70] sm:$0xff]
  %v51 = vld [vmem:[#allocation2 + $0x78] sm:$0xff]
  %v52 = vld [vmem:[%s0] sm:$0xf]
  %v53 = vld [vmem:[%s0 + $0x4] sm:$0xf]
  %v54 = vld [vmem:[%s0 + $0x8] sm:$0xf]
  %v55 = vld [vmem:[%s0 + $0xc] sm:$0xf]
  %v56 = vld [vmem:[%s0 + $0x10] sm:$0xf]
  %v57 = vld [vmem:[%s0 + $0x14] sm:$0xf]
  %v58 = vld [vmem:[%s0 + $0x18] sm:$0xf]
  %v59 = vld [vmem:[%s0 + $0x1c] sm:$0xf]
  %v60 = vld [vmem:[%s0 + $0x20] sm:$0xf]
  %v61 = vld [vmem:[%s0 + $0x24] sm:$0xf]
  %v62 = vld [vmem:[%s0 + $0x28] sm:$0xf]
  %v63 = vld [vmem:[%s0 + $0x2c] sm:$0xf]
  %v64 = vld [vmem:[%s0 + $0x30] sm:$0xf]
  %v65 = vld [vmem:[%s0 + $0x34] sm:$0xf]
  %v66 = vld [vmem:[%s0 + $0x38] sm:$0xf]
  %v67 = vld [vmem:[%s0 + $0x3c] sm:$0xf]
  %v68 = vld [vmem:[%s1] sm:$0xf]
  %v85 = vunpack.c.l.b16 %v52
  %v86 = vunpack.c.l.b16 %v53
  %v87 = vunpack.c.l.b16 %v54
  %v88 = vunpack.c.l.b16 %v55
  %v89 = vunpack.c.l.b16 %v56
  %v90 = vunpack.c.l.b16 %v57
  %v91 = vunpack.c.l.b16 %v58
  %v92 = vunpack.c.l.b16 %v59
  %v93 = vunpack.c.l.b16 %v60
  %v94 = vunpack.c.l.b16 %v61
  %v95 = vunpack.c.l.b16 %v62
  %v96 = vunpack.c.l.b16 %v63
  %v97 = vunpack.c.l.b16 %v64
  %v98 = vunpack.c.l.b16 %v65
  %v99 = vunpack.c.l.b16 %v66
  %v100 = vunpack.c.l.b16 %v67
  %v101 = vpack.c.b16 %v86, %v85
  %v102 = vpack.c.b16 %v88, %v87
  %v103 = vpack.c.b16 %v90, %v89
  %v104 = vpack.c.b16 %v92, %v91
  %v105 = vpack.c.b16 %v94, %v93
  %v106 = vpack.c.b16 %v96, %v95
  %v107 = vpack.c.b16 %v98, %v97
  %v108 = vpack.c.b16 %v100, %v99
  %vm109 = vcmask 64512
  %v111 = vsel %vm109, %v101, 0
  %v114 = vsel %vm109, %v102, 0
  %v117 = vsel %vm109, %v103, 0
  %v120 = vsel %vm109, %v104, 0
  %v123 = vsel %vm109, %v105, 0
  %v126 = vsel %vm109, %v106, 0
  %v129 = vsel %vm109, %v107, 0
  %v132 = vsel %vm109, %v108, 0
  %vm134 = vcmask 1043456
  %v136 = vsel %vm134, %v68, 0
  %138 = vmatprep.subr.bf16.mxu0 0
  %139 = vmatpush1.bf16.msra.mxu0 0
  %140 = vmatprep.subr.bf16.mxu0 0
  %141 = vmatpush1.bf16.msra.mxu0 0
  %142 = vmatprep.subr.bf16.mxu0 0
  %143 = vmatpush1.bf16.msra.mxu0 0
  %144 = vmatprep.subr.bf16.mxu0 0
  %145 = vmatpush1.bf16.msra.mxu0 0
  %146 = vmatprep.subr.bf16.mxu0 0
  %147 = vmatpush1.bf16.msra.mxu0 0
  %148 = vmatprep.subr.bf16.mxu0 0
  %149 = vmatpush1.bf16.msra.mxu0 0
  %150 = vmatprep.subr.bf16.mxu0 0
  %151 = vmatpush1.bf16.msra.mxu0 0
  %152 = vmatprep.subr.bf16.mxu0 0
  %153 = vmatpush1.bf16.msra.mxu0 %v136
  %154 = vmatprep.subr.bf16.mxu0 0
  %155 = vmatpush2.bf16.msra.mxu0 0
  %156 = vmatprep.subr.bf16.mxu0 0
  %157 = vmatpush2.bf16.msra.mxu0 0
  %158 = vmatprep.subr.bf16.mxu0 0
  %159 = vmatpush2.bf16.msra.mxu0 0
  %160 = vmatprep.subr.bf16.mxu0 0
  %161 = vmatpush2.bf16.msra.mxu0 0
  %162 = vmatprep.subr.bf16.mxu0 0
  %163 = vmatpush2.bf16.msra.mxu0 0
  %164 = vmatprep.subr.bf16.mxu0 0
  %165 = vmatpush2.bf16.msra.mxu0 0
  %166 = vmatprep.subr.bf16.mxu0 0
  %167 = vmatpush2.bf16.msra.mxu0 0
  %168 = vmatprep.subr.bf16.mxu0 0
  %169 = vmatpush2.bf16.msra.mxu0 0
  %170 = vmatprep.mubr.bf16.mxu0 0
  %171 = vmatmul.mubr.bf16.gmra.mxu0 %v111
  %v172 = vpop.f32.mrf.mxu0
  %v173 = vadd.f32 0.0, %v172
  %v174 = vpop.f32.mrf.mxu0
  %v175 = vpop.f32.mrf.mxu0
  %v176 = vadd.f32 0.0, %v175
  %v177 = vpop.f32.mrf.mxu0
  %178 = vmatprep.mubr.bf16.mxu0 0
  %179 = vmatmul.mubr.bf16.gmra.mxu0 %v114
  %v180 = vpop.f32.mrf.mxu0
  %v181 = vadd.f32 0.0, %v180
  %v182 = vpop.f32.mrf.mxu0
  %v183 = vpop.f32.mrf.mxu0
  %v184 = vadd.f32 0.0, %v183
  %v185 = vpop.f32.mrf.mxu0
  %186 = vmatprep.mubr.bf16.mxu0 0
  %187 = vmatmul.mubr.bf16.gmra.mxu0 %v117
  %v188 = vpop.f32.mrf.mxu0
  %v189 = vadd.f32 0.0, %v188
  %v190 = vpop.f32.mrf.mxu0
  %v191 = vpop.f32.mrf.mxu0
  %v192 = vadd.f32 0.0, %v191
  %v193 = vpop.f32.mrf.mxu0
  %194 = vmatprep.mubr.bf16.mxu0 0
  %195 = vmatmul.mubr.bf16.gmra.mxu0 %v120
  %v196 = vpop.f32.mrf.mxu0
  %v197 = vadd.f32 0.0, %v196
  %v198 = vpop.f32.mrf.mxu0
  %v199 = vpop.f32.mrf.mxu0
  %v200 = vadd.f32 0.0, %v199
  %v201 = vpop.f32.mrf.mxu0
  %202 = vmatprep.mubr.bf16.mxu0 0
  %203 = vmatmul.mubr.bf16.gmra.mxu0 %v123
  %v204 = vpop.f32.mrf.mxu0
  %v205 = vadd.f32 0.0, %v204
  %v206 = vpop.f32.mrf.mxu0
  %v207 = vpop.f32.mrf.mxu0
  %v208 = vadd.f32 0.0, %v207
  %v209 = vpop.f32.mrf.mxu0
  %210 = vmatprep.mubr.bf16.mxu0 0
  %211 = vmatmul.mubr.bf16.gmra.mxu0 %v126
  %v212 = vpop.f32.mrf.mxu0
  %v213 = vadd.f32 0.0, %v212
  %v214 = vpop.f32.mrf.mxu0
  %v215 = vpop.f32.mrf.mxu0
  %v216 = vadd.f32 0.0, %v215
  %v217 = vpop.f32.mrf.mxu0
  %218 = vmatprep.mubr.bf16.mxu0 0
  %219 = vmatmul.mubr.bf16.gmra.mxu0 %v129
  %v220 = vpop.f32.mrf.mxu0
  %v221 = vadd.f32 0.0, %v220
  %v222 = vpop.f32.mrf.mxu0
  %v223 = vpop.f32.mrf.mxu0
  %v224 = vadd.f32 0.0, %v223
  %v225 = vpop.f32.mrf.mxu0
  %226 = vmatprep.mubr.bf16.mxu0 0
  %227 = vmatmul.mubr.bf16.gmra.mxu0 %v132
  %v228 = vpop.f32.mrf.mxu0
  %v229 = vadd.f32 0.0, %v228
  %v230 = vpop.f32.mrf.mxu0
  %v231 = vpop.f32.mrf.mxu0
  %v232 = vadd.f32 0.0, %v231
  %v233 = vpop.f32.mrf.mxu0
  %234 = vdwg.mxu0
  %v235 = vadd.f32 %v36, %v173
  %v236 = vadd.f32 %v37, %v176
  %v237 = vadd.f32 %v38, %v181
  %v238 = vadd.f32 %v39, %v184
  %v239 = vadd.f32 %v40, %v189
  %v240 = vadd.f32 %v41, %v192
  %v241 = vadd.f32 %v42, %v197
  %v242 = vadd.f32 %v43, %v200
  %v243 = vadd.f32 %v44, %v205
  %v244 = vadd.f32 %v45, %v208
  %v245 = vadd.f32 %v46, %v213
  %v246 = vadd.f32 %v47, %v216
  %v247 = vadd.f32 %v48, %v221
  %v248 = vadd.f32 %v49, %v224
  %v249 = vadd.f32 %v50, %v229
  %v250 = vadd.f32 %v51, %v232
  %vm251 = vcmask 130048
  %252 = vst.msk [vmem:[#allocation2] sm:$0xff] %vm251, %v235
  %253 = vst.msk [vmem:[#allocation2 + $0x8] sm:$0xff] %vm251, %v236
  %254 = vst.msk [vmem:[#allocation2 + $0x10] sm:$0xff] %vm251, %v237
  %255 = vst.msk [vmem:[#allocation2 + $0x18] sm:$0xff] %vm251, %v238
  %256 = vst.msk [vmem:[#allocation2 + $0x20] sm:$0xff] %vm251, %v239
  %257 = vst.msk [vmem:[#allocation2 + $0x28] sm:$0xff] %vm251, %v240
  %258 = vst.msk [vmem:[#allocation2 + $0x30] sm:$0xff] %vm251, %v241
  %259 = vst.msk [vmem:[#allocation2 + $0x38] sm:$0xff] %vm251, %v242
  %260 = vst.msk [vmem:[#allocation2 + $0x40] sm:$0xff] %vm251, %v243
  %261 = vst.msk [vmem:[#allocation2 + $0x48] sm:$0xff] %vm251, %v244
  %262 = vst.msk [vmem:[#allocation2 + $0x50] sm:$0xff] %vm251, %v245
  %263 = vst.msk [vmem:[#allocation2 + $0x58] sm:$0xff] %vm251, %v246
  %264 = vst.msk [vmem:[#allocation2 + $0x60] sm:$0xff] %vm251, %v247
  %265 = vst.msk [vmem:[#allocation2 + $0x68] sm:$0xff] %vm251, %v248
  %266 = vst.msk [vmem:[#allocation2 + $0x70] sm:$0xff] %vm251, %v249
  %267 = vst.msk [vmem:[#allocation2 + $0x78] sm:$0xff] %vm251, %v250
  // Predicated region
  $region18: #{joint_model_apply.42} parent=0 // pred_check
    %p268 = pneg %p15
  $region19: #{joint_model_apply.42} parent=0 // pred_check_branch
    %270 = sbr.rel (%p268) target = $region21
  $region20: #{joint_model_apply.42} parent=0 // pred_region
    %v271 = vld [vmem:[#allocation2] sm:$0xff]
    %v272 = vld [vmem:[#allocation2 + $0x8] sm:$0xff]
    %v273 = vld [vmem:[#allocation2 + $0x10] sm:$0xff]
    %v274 = vld [vmem:[#allocation2 + $0x18] sm:$0xff]
    %v275 = vld [vmem:[#allocation2 + $0x20] sm:$0xff]
    %v276 = vld [vmem:[#allocation2 + $0x28] sm:$0xff]
    %v277 = vld [vmem:[#allocation2 + $0x30] sm:$0xff]
    %v278 = vld [vmem:[#allocation2 + $0x38] sm:$0xff]
    %v279 = vld [vmem:[#allocation2 + $0x40] sm:$0xff]
    %v280 = vld [vmem:[#allocation2 + $0x48] sm:$0xff]
    %v281 = vld [vmem:[#allocation2 + $0x50] sm:$0xff]
    %v282 = vld [vmem:[#allocation2 + $0x58] sm:$0xff]
    %v283 = vld [vmem:[#allocation2 + $0x60] sm:$0xff]
    %v284 = vld [vmem:[#allocation2 + $0x68] sm:$0xff]
    %v285 = vld [vmem:[#allocation2 + $0x70] sm:$0xff]
    %v286 = vld [vmem:[#allocation2 + $0x78] sm:$0xff]
    %v287 = vld [vmem:[%s2] sm:$0x1]
    %v289 = vlaneseq
    %v290 = vshrl.u32 %v289, 7
    %v291 = vsub.s32 0, %v290
    %v292 = vrot.slane %v287, %v291
    %v294 = vadd.f32 %v271, %v292
    %v295 = vadd.f32 %v272, %v292
    %v296 = vadd.f32 %v273, %v292
    %v297 = vadd.f32 %v274, %v292
    %v298 = vadd.f32 %v275, %v292
    %v299 = vadd.f32 %v276, %v292
    %v300 = vadd.f32 %v277, %v292
    %v301 = vadd.f32 %v278, %v292
    %v302 = vadd.f32 %v279, %v292
    %v303 = vadd.f32 %v280, %v292
    %v304 = vadd.f32 %v281, %v292
    %v305 = vadd.f32 %v282, %v292
    %v306 = vadd.f32 %v283, %v292
    %v307 = vadd.f32 %v284, %v292
    %v308 = vadd.f32 %v285, %v292
    %v309 = vadd.f32 %v286, %v292
    %310 = vst.msk [vmem:[%s3] sm:$0xff] %vm251, %v294
    %311 = vst.msk [vmem:[%s3 + $0x8] sm:$0xff] %vm251, %v295
    %312 = vst.msk [vmem:[%s3 + $0x10] sm:$0xff] %vm251, %v296
    %313 = vst.msk [vmem:[%s3 + $0x18] sm:$0xff] %vm251, %v297
    %314 = vst.msk [vmem:[%s3 + $0x20] sm:$0xff] %vm251, %v298
    %315 = vst.msk [vmem:[%s3 + $0x28] sm:$0xff] %vm251, %v299
    %316 = vst.msk [vmem:[%s3 + $0x30] sm:$0xff] %vm251, %v300
    %317 = vst.msk [vmem:[%s3 + $0x38] sm:$0xff] %vm251, %v301
    %318 = vst.msk [vmem:[%s3 + $0x40] sm:$0xff] %vm251, %v302
    %319 = vst.msk [vmem:[%s3 + $0x48] sm:$0xff] %vm251, %v303
    %320 = vst.msk [vmem:[%s3 + $0x50] sm:$0xff] %vm251, %v304
    %321 = vst.msk [vmem:[%s3 + $0x58] sm:$0xff] %vm251, %v305
    %322 = vst.msk [vmem:[%s3 + $0x60] sm:$0xff] %vm251, %v306
    %323 = vst.msk [vmem:[%s3 + $0x68] sm:$0xff] %vm251, %v307
    %324 = vst.msk [vmem:[%s3 + $0x70] sm:$0xff] %vm251, %v308
    %325 = vst.msk [vmem:[%s3 + $0x78] sm:$0xff] %vm251, %v309
  $region21: #{joint_model_apply.42} parent=0 // pred_fallthru
    _
  // Predicated region
  $region22: #{joint_model_apply.42} parent=0 // pred_check
    _
  $region23: #{joint_model_apply.42} parent=0 // pred_check_branch
    %327 = sbr.rel (0) target = $region25
  $region24: #{joint_model_apply.42} parent=0 // pred_region
    _
  $region25: #{joint_model_apply.42} parent=0 // pred_fallthru
    _
  // Predicated region
  $region26: #{joint_model_apply.42} parent=0 // pred_check
    _
  $region27: #{joint_model_apply.42} parent=0 // pred_check_branch
    %329 = sbr.rel (0) target = $region29
  $region28: #{joint_model_apply.42} parent=0 // pred_region
    _
  $region29: #{joint_model_apply.42} parent=0 // pred_fallthru
    _

// kernel: joint_model_apply.43
$region0: #{joint_model_apply.43}
  #allocation0 [shape = 'u32[]', space=smem, size = 0x4, offset = 0x4, fixed_abs, tag = 'smem constant byte address 0x4 - core index']
  #allocation1 [shape = 'u32[144,128]{1,0:T(1,128)}', space=vmem, size = 0x12000, scoped, tag = 'internal scratch']
  #allocation2 [shape = 'f32[256,16]{1,0:T(8,128)}', space=vmem, size = 0x20000, scoped, tag = 'scratch operand']
  %s0 = inlined_call_operand.vmem [shape: bf16[256,8], index: 0, kind: input, shape index: {}]
  %s1 = inlined_call_operand.vmem [shape: bf16[8,16], index: 1, kind: input, shape index: {}]
  %s2 = inlined_call_operand.vmem [shape: f32[1,16], index: 2, kind: input, shape index: {}]
  %s3 = inlined_call_operand.vmem [shape: f32[256,16], index: 3, kind: output, shape index: {}]
  %s4 = sld [smem:[#allocation0]]
  $region30: #{joint_model_apply.43} parent=0
    _
  %s6 = ssub.s32 1, %s4
  %s7 = scalar_select 0, %s6, %s4
  // Predicated region
  $region2: #{joint_model_apply.43} parent=0 // pred_check
    _
  $region3: #{joint_model_apply.43} parent=0 // pred_check_branch
    %9 = sbr.rel (0) target = $region5
  $region4: #{joint_model_apply.43} parent=0 // pred_region
    _
  $region5: #{joint_model_apply.43} parent=0 // pred_fallthru
    _
  // Predicated region
  $region6: #{joint_model_apply.43} parent=0 // pred_check
    _
  $region7: #{joint_model_apply.43} parent=0 // pred_check_branch
    %11 = sbr.rel (0) target = $region9
  $region8: #{joint_model_apply.43} parent=0 // pred_region
    _
  $region9: #{joint_model_apply.43} parent=0 // pred_fallthru
    _
  // Predicated region
  $region10: #{joint_model_apply.43} parent=0 // pred_check
    _
  $region11: #{joint_model_apply.43} parent=0 // pred_check_branch
    %13 = sbr.rel (0) target = $region13
  $region12: #{joint_model_apply.43} parent=0 // pred_region
    _
  $region13: #{joint_model_apply.43} parent=0 // pred_fallthru
    _
  %p15 = scmp.eq.s32.totalorder 0, 0
  // Predicated region
  $region14: #{joint_model_apply.43} parent=0 // pred_check
    %p16 = pneg %p15
  $region15: #{joint_model_apply.43} parent=0 // pred_check_branch
    %18 = sbr.rel (%p16) target = $region17
  $region16: #{joint_model_apply.43} parent=0 // pred_region
    %vm19 = vcmask 130048
    %20 = vst.msk [vmem:[#allocation2] sm:$0xff] %vm19, 0.0
    %21 = vst.msk [vmem:[#allocation2 + $0x8] sm:$0xff] %vm19, 0.0
    %22 = vst.msk [vmem:[#allocation2 + $0x10] sm:$0xff] %vm19, 0.0
    %23 = vst.msk [vmem:[#allocation2 + $0x18] sm:$0xff] %vm19, 0.0
    %24 = vst.msk [vmem:[#allocation2 + $0x20] sm:$0xff] %vm19, 0.0
    %25 = vst.msk [vmem:[#allocation2 + $0x28] sm:$0xff] %vm19, 0.0
    %26 = vst.msk [vmem:[#allocation2 + $0x30] sm:$0xff] %vm19, 0.0
    %27 = vst.msk [vmem:[#allocation2 + $0x38] sm:$0xff] %vm19, 0.0
    %28 = vst.msk [vmem:[#allocation2 + $0x40] sm:$0xff] %vm19, 0.0
    %29 = vst.msk [vmem:[#allocation2 + $0x48] sm:$0xff] %vm19, 0.0
    %30 = vst.msk [vmem:[#allocation2 + $0x50] sm:$0xff] %vm19, 0.0
    %31 = vst.msk [vmem:[#allocation2 + $0x58] sm:$0xff] %vm19, 0.0
    %32 = vst.msk [vmem:[#allocation2 + $0x60] sm:$0xff] %vm19, 0.0
    %33 = vst.msk [vmem:[#allocation2 + $0x68] sm:$0xff] %vm19, 0.0
    %34 = vst.msk [vmem:[#allocation2 + $0x70] sm:$0xff] %vm19, 0.0
    %35 = vst.msk [vmem:[#allocation2 + $0x78] sm:$0xff] %vm19, 0.0
    %36 = vst.msk [vmem:[#allocation2 + $0x80] sm:$0xff] %vm19, 0.0
    %37 = vst.msk [vmem:[#allocation2 + $0x88] sm:$0xff] %vm19, 0.0
    %38 = vst.msk [vmem:[#allocation2 + $0x90] sm:$0xff] %vm19, 0.0
    %39 = vst.msk [vmem:[#allocation2 + $0x98] sm:$0xff] %vm19, 0.0
    %40 = vst.msk [vmem:[#allocation2 + $0xa0] sm:$0xff] %vm19, 0.0
    %41 = vst.msk [vmem:[#allocation2 + $0xa8] sm:$0xff] %vm19, 0.0
    %42 = vst.msk [vmem:[#allocation2 + $0xb0] sm:$0xff] %vm19, 0.0
    %43 = vst.msk [vmem:[#allocation2 + $0xb8] sm:$0xff] %vm19, 0.0
    %44 = vst.msk [vmem:[#allocation2 + $0xc0] sm:$0xff] %vm19, 0.0
    %45 = vst.msk [vmem:[#allocation2 + $0xc8] sm:$0xff] %vm19, 0.0
    %46 = vst.msk [vmem:[#allocation2 + $0xd0] sm:$0xff] %vm19, 0.0
    %47 = vst.msk [vmem:[#allocation2 + $0xd8] sm:$0xff] %vm19, 0.0
    %48 = vst.msk [vmem:[#allocation2 + $0xe0] sm:$0xff] %vm19, 0.0
    %49 = vst.msk [vmem:[#allocation2 + $0xe8] sm:$0xff] %vm19, 0.0
    %50 = vst.msk [vmem:[#allocation2 + $0xf0] sm:$0xff] %vm19, 0.0
    %51 = vst.msk [vmem:[#allocation2 + $0xf8] sm:$0xff] %vm19, 0.0
  $region17: #{joint_model_apply.43} parent=0 // pred_fallthru
    _
  %v52 = vld [vmem:[#allocation2] sm:$0xff]
  %v53 = vld [vmem:[#allocation2 + $0x8] sm:$0xff]
  %v54 = vld [vmem:[#allocation2 + $0x10] sm:$0xff]
  %v55 = vld [vmem:[#allocation2 + $0x18] sm:$0xff]
  %v56 = vld [vmem:[#allocation2 + $0x20] sm:$0xff]
  %v57 = vld [vmem:[#allocation2 + $0x28] sm:$0xff]
  %v58 = vld [vmem:[#allocation2 + $0x30] sm:$0xff]
  %v59 = vld [vmem:[#allocation2 + $0x38] sm:$0xff]
  %v60 = vld [vmem:[#allocation2 + $0x40] sm:$0xff]
  %v61 = vld [vmem:[#allocation2 + $0x48] sm:$0xff]
  %v62 = vld [vmem:[#allocation2 + $0x50] sm:$0xff]
  %v63 = vld [vmem:[#allocation2 + $0x58] sm:$0xff]
  %v64 = vld [vmem:[#allocation2 + $0x60] sm:$0xff]
  %v65 = vld [vmem:[#allocation2 + $0x68] sm:$0xff]
  %v66 = vld [vmem:[#allocation2 + $0x70] sm:$0xff]
  %v67 = vld [vmem:[#allocation2 + $0x78] sm:$0xff]
  %v68 = vld [vmem:[#allocation2 + $0x80] sm:$0xff]
  %v69 = vld [vmem:[#allocation2 + $0x88] sm:$0xff]
  %v70 = vld [vmem:[#allocation2 + $0x90] sm:$0xff]
  %v71 = vld [vmem:[#allocation2 + $0x98] sm:$0xff]
  %v72 = vld [vmem:[#allocation2 + $0xa0] sm:$0xff]
  %v73 = vld [vmem:[#allocation2 + $0xa8] sm:$0xff]
  %v74 = vld [vmem:[#allocation2 + $0xb0] sm:$0xff]
  %v75 = vld [vmem:[#allocation2 + $0xb8] sm:$0xff]
  %v76 = vld [vmem:[#allocation2 + $0xc0] sm:$0xff]
  %v77 = vld [vmem:[#allocation2 + $0xc8] sm:$0xff]
  %v78 = vld [vmem:[#allocation2 + $0xd0] sm:$0xff]
  %v79 = vld [vmem:[#allocation2 + $0xd8] sm:$0xff]
  %v80 = vld [vmem:[#allocation2 + $0xe0] sm:$0xff]
  %v81 = vld [vmem:[#allocation2 + $0xe8] sm:$0xff]
  %v82 = vld [vmem:[#allocation2 + $0xf0] sm:$0xff]
  %v83 = vld [vmem:[#allocation2 + $0xf8] sm:$0xff]
  %v84 = vld [vmem:[%s0] sm:$0xf]
  %v85 = vld [vmem:[%s0 + $0x4] sm:$0xf]
  %v86 = vld [vmem:[%s0 + $0x8] sm:$0xf]
  %v87 = vld [vmem:[%s0 + $0xc] sm:$0xf]
  %v88 = vld [vmem:[%s0 + $0x10] sm:$0xf]
  %v89 = vld [vmem:[%s0 + $0x14] sm:$0xf]
  %v90 = vld [vmem:[%s0 + $0x18] sm:$0xf]
  %v91 = vld [vmem:[%s0 + $0x1c] sm:$0xf]
  %v92 = vld [vmem:[%s0 + $0x20] sm:$0xf]
  %v93 = vld [vmem:[%s0 + $0x24] sm:$0xf]
  %v94 = vld [vmem:[%s0 + $0x28] sm:$0xf]
  %v95 = vld [vmem:[%s0 + $0x2c] sm:$0xf]
  %v96 = vld [vmem:[%s0 + $0x30] sm:$0xf]
  %v97 = vld [vmem:[%s0 + $0x34] sm:$0xf]
  %v98 = vld [vmem:[%s0 + $0x38] sm:$0xf]
  %v99 = vld [vmem:[%s0 + $0x3c] sm:$0xf]
  %v100 = vld [vmem:[%s0 + $0x40] sm:$0xf]
  %v101 = vld [vmem:[%s0 + $0x44] sm:$0xf]
  %v102 = vld [vmem:[%s0 + $0x48] sm:$0xf]
  %v103 = vld [vmem:[%s0 + $0x4c] sm:$0xf]
  %v104 = vld [vmem:[%s0 + $0x50] sm:$0xf]
  %v105 = vld [vmem:[%s0 + $0x54] sm:$0xf]
  %v106 = vld [vmem:[%s0 + $0x58] sm:$0xf]
  %v107 = vld [vmem:[%s0 + $0x5c] sm:$0xf]
  %v108 = vld [vmem:[%s0 + $0x60] sm:$0xf]
  %v109 = vld [vmem:[%s0 + $0x64] sm:$0xf]
  %v110 = vld [vmem:[%s0 + $0x68] sm:$0xf]
  %v111 = vld [vmem:[%s0 + $0x6c] sm:$0xf]
  %v112 = vld [vmem:[%s0 + $0x70] sm:$0xf]
  %v113 = vld [vmem:[%s0 + $0x74] sm:$0xf]
  %v114 = vld [vmem:[%s0 + $0x78] sm:$0xf]
  %v115 = vld [vmem:[%s0 + $0x7c] sm:$0xf]
  %v116 = vld [vmem:[%s1] sm:$0xf]
  %v149 = vunpack.c.l.b16 %v84
  %v150 = vunpack.c.l.b16 %v85
  %v151 = vunpack.c.l.b16 %v86
  %v152 = vunpack.c.l.b16 %v87
  %v153 = vunpack.c.l.b16 %v88
  %v154 = vunpack.c.l.b16 %v89
  %v155 = vunpack.c.l.b16 %v90
  %v156 = vunpack.c.l.b16 %v91
  %v157 = vunpack.c.l.b16 %v92
  %v158 = vunpack.c.l.b16 %v93
  %v159 = vunpack.c.l.b16 %v94
  %v160 = vunpack.c.l.b16 %v95
  %v161 = vunpack.c.l.b16 %v96
  %v162 = vunpack.c.l.b16 %v97
  %v163 = vunpack.c.l.b16 %v98
  %v164 = vunpack.c.l.b16 %v99
  %v165 = vunpack.c.l.b16 %v100
  %v166 = vunpack.c.l.b16 %v101
  %v167 = vunpack.c.l.b16 %v102
  %v168 = vunpack.c.l.b16 %v103
  %v169 = vunpack.c.l.b16 %v104
  %v170 = vunpack.c.l.b16 %v105
  %v171 = vunpack.c.l.b16 %v106
  %v172 = vunpack.c.l.b16 %v107
  %v173 = vunpack.c.l.b16 %v108
  %v174 = vunpack.c.l.b16 %v109
  %v175 = vunpack.c.l.b16 %v110
  %v176 = vunpack.c.l.b16 %v111
  %v177 = vunpack.c.l.b16 %v112
  %v178 = vunpack.c.l.b16 %v113
  %v179 = vunpack.c.l.b16 %v114
  %v180 = vunpack.c.l.b16 %v115
  %v181 = vpack.c.b16 %v150, %v149
  %v182 = vpack.c.b16 %v152, %v151
  %v183 = vpack.c.b16 %v154, %v153
  %v184 = vpack.c.b16 %v156, %v155
  %v185 = vpack.c.b16 %v158, %v157
  %v186 = vpack.c.b16 %v160, %v159
  %v187 = vpack.c.b16 %v162, %v161
  %v188 = vpack.c.b16 %v164, %v163
  %v189 = vpack.c.b16 %v166, %v165
  %v190 = vpack.c.b16 %v168, %v167
  %v191 = vpack.c.b16 %v170, %v169
  %v192 = vpack.c.b16 %v172, %v171
  %v193 = vpack.c.b16 %v174, %v173
  %v194 = vpack.c.b16 %v176, %v175
  %v195 = vpack.c.b16 %v178, %v177
  %v196 = vpack.c.b16 %v180, %v179
  %vm197 = vcmask 64512
  %v199 = vsel %vm197, %v181, 0
  %v202 = vsel %vm197, %v182, 0
  %v205 = vsel %vm197, %v183, 0
  %v208 = vsel %vm197, %v184, 0
  %v211 = vsel %vm197, %v185, 0
  %v214 = vsel %vm197, %v186, 0
  %v217 = vsel %vm197, %v187, 0
  %v220 = vsel %vm197, %v188, 0
  %v223 = vsel %vm197, %v189, 0
  %v226 = vsel %vm197, %v190, 0
  %v229 = vsel %vm197, %v191, 0
  %v232 = vsel %vm197, %v192, 0
  %v235 = vsel %vm197, %v193, 0
  %v238 = vsel %vm197, %v194, 0
  %v241 = vsel %vm197, %v195, 0
  %v244 = vsel %vm197, %v196, 0
  %vm246 = vcmask 1043456
  %v248 = vsel %vm246, %v116, 0
  %250 = vmatprep.subr.bf16.mxu0 0
  %251 = vmatpush1.bf16.msra.mxu0 0
  %252 = vmatprep.subr.bf16.mxu0 0
  %253 = vmatpush1.bf16.msra.mxu0 0
  %254 = vmatprep.subr.bf16.mxu0 0
  %255 = vmatpush1.bf16.msra.mxu0 0
  %256 = vmatprep.subr.bf16.mxu0 0
  %257 = vmatpush1.bf16.msra.mxu0 0
  %258 = vmatprep.subr.bf16.mxu0 0
  %259 = vmatpush1.bf16.msra.mxu0 0
  %260 = vmatprep.subr.bf16.mxu0 0
  %261 = vmatpush1.bf16.msra.mxu0 0
  %262 = vmatprep.subr.bf16.mxu0 0
  %263 = vmatpush1.bf16.msra.mxu0 0
  %264 = vmatprep.subr.bf16.mxu0 0
  %265 = vmatpush1.bf16.msra.mxu0 %v248
  %266 = vmatprep.subr.bf16.mxu0 0
  %267 = vmatpush2.bf16.msra.mxu0 0
  %268 = vmatprep.subr.bf16.mxu0 0
  %269 = vmatpush2.bf16.msra.mxu0 0
  %270 = vmatprep.subr.bf16.mxu0 0
  %271 = vmatpush2.bf16.msra.mxu0 0
  %272 = vmatprep.subr.bf16.mxu0 0
  %273 = vmatpush2.bf16.msra.mxu0 0
  %274 = vmatprep.subr.bf16.mxu0 0
  %275 = vmatpush2.bf16.msra.mxu0 0
  %276 = vmatprep.subr.bf16.mxu0 0
  %277 = vmatpush2.bf16.msra.mxu0 0
  %278 = vmatprep.subr.bf16.mxu0 0
  %279 = vmatpush2.bf16.msra.mxu0 0
  %280 = vmatprep.subr.bf16.mxu0 0
  %281 = vmatpush2.bf16.msra.mxu0 0
  %282 = vmatprep.mubr.bf16.mxu0 0
  %283 = vmatmul.mubr.bf16.gmra.mxu0 %v199
  %v284 = vpop.f32.mrf.mxu0
  %v285 = vadd.f32 0.0, %v284
  %v286 = vpop.f32.mrf.mxu0
  %v287 = vpop.f32.mrf.mxu0
  %v288 = vadd.f32 0.0, %v287
  %v289 = vpop.f32.mrf.mxu0
  %290 = vmatprep.mubr.bf16.mxu0 0
  %291 = vmatmul.mubr.bf16.gmra.mxu0 %v202
  %v292 = vpop.f32.mrf.mxu0
  %v293 = vadd.f32 0.0, %v292
  %v294 = vpop.f32.mrf.mxu0
  %v295 = vpop.f32.mrf.mxu0
  %v296 = vadd.f32 0.0, %v295
  %v297 = vpop.f32.mrf.mxu0
  %298 = vmatprep.mubr.bf16.mxu0 0
  %299 = vmatmul.mubr.bf16.gmra.mxu0 %v205
  %v300 = vpop.f32.mrf.mxu0
  %v301 = vadd.f32 0.0, %v300
  %v302 = vpop.f32.mrf.mxu0
  %v303 = vpop.f32.mrf.mxu0
  %v304 = vadd.f32 0.0, %v303
  %v305 = vpop.f32.mrf.mxu0
  %306 = vmatprep.mubr.bf16.mxu0 0
  %307 = vmatmul.mubr.bf16.gmra.mxu0 %v208
  %v308 = vpop.f32.mrf.mxu0
  %v309 = vadd.f32 0.0, %v308
  %v310 = vpop.f32.mrf.mxu0
  %v311 = vpop.f32.mrf.mxu0
  %v312 = vadd.f32 0.0, %v311
  %v313 = vpop.f32.mrf.mxu0
  %314 = vmatprep.mubr.bf16.mxu0 0
  %315 = vmatmul.mubr.bf16.gmra.mxu0 %v211
  %v316 = vpop.f32.mrf.mxu0
  %v317 = vadd.f32 0.0, %v316
  %v318 = vpop.f32.mrf.mxu0
  %v319 = vpop.f32.mrf.mxu0
  %v320 = vadd.f32 0.0, %v319
  %v321 = vpop.f32.mrf.mxu0
  %322 = vmatprep.mubr.bf16.mxu0 0
  %323 = vmatmul.mubr.bf16.gmra.mxu0 %v214
  %v324 = vpop.f32.mrf.mxu0
  %v325 = vadd.f32 0.0, %v324
  %v326 = vpop.f32.mrf.mxu0
  %v327 = vpop.f32.mrf.mxu0
  %v328 = vadd.f32 0.0, %v327
  %v329 = vpop.f32.mrf.mxu0
  %330 = vmatprep.mubr.bf16.mxu0 0
  %331 = vmatmul.mubr.bf16.gmra.mxu0 %v217
  %v332 = vpop.f32.mrf.mxu0
  %v333 = vadd.f32 0.0, %v332
  %v334 = vpop.f32.mrf.mxu0
  %v335 = vpop.f32.mrf.mxu0
  %v336 = vadd.f32 0.0, %v335
  %v337 = vpop.f32.mrf.mxu0
  %338 = vmatprep.mubr.bf16.mxu0 0
  %339 = vmatmul.mubr.bf16.gmra.mxu0 %v220
  %v340 = vpop.f32.mrf.mxu0
  %v341 = vadd.f32 0.0, %v340
  %v342 = vpop.f32.mrf.mxu0
  %v343 = vpop.f32.mrf.mxu0
  %v344 = vadd.f32 0.0, %v343
  %v345 = vpop.f32.mrf.mxu0
  %346 = vmatprep.mubr.bf16.mxu0 0
  %347 = vmatmul.mubr.bf16.gmra.mxu0 %v223
  %v348 = vpop.f32.mrf.mxu0
  %v349 = vadd.f32 0.0, %v348
  %v350 = vpop.f32.mrf.mxu0
  %v351 = vpop.f32.mrf.mxu0
  %v352 = vadd.f32 0.0, %v351
  %v353 = vpop.f32.mrf.mxu0
  %354 = vmatprep.mubr.bf16.mxu0 0
  %355 = vmatmul.mubr.bf16.gmra.mxu0 %v226
  %v356 = vpop.f32.mrf.mxu0
  %v357 = vadd.f32 0.0, %v356
  %v358 = vpop.f32.mrf.mxu0
  %v359 = vpop.f32.mrf.mxu0
  %v360 = vadd.f32 0.0, %v359
  %v361 = vpop.f32.mrf.mxu0
  %362 = vmatprep.mubr.bf16.mxu0 0
  %363 = vmatmul.mubr.bf16.gmra.mxu0 %v229
  %v364 = vpop.f32.mrf.mxu0
  %v365 = vadd.f32 0.0, %v364
  %v366 = vpop.f32.mrf.mxu0
  %v367 = vpop.f32.mrf.mxu0
  %v368 = vadd.f32 0.0, %v367
  %v369 = vpop.f32.mrf.mxu0
  %370 = vmatprep.mubr.bf16.mxu0 0
  %371 = vmatmul.mubr.bf16.gmra.mxu0 %v232
  %v372 = vpop.f32.mrf.mxu0
  %v373 = vadd.f32 0.0, %v372
  %v374 = vpop.f32.mrf.mxu0
  %v375 = vpop.f32.mrf.mxu0
  %v376 = vadd.f32 0.0, %v375
  %v377 = vpop.f32.mrf.mxu0
  %378 = vmatprep.mubr.bf16.mxu0 0
  %379 = vmatmul.mubr.bf16.gmra.mxu0 %v235
  %v380 = vpop.f32.mrf.mxu0
  %v381 = vadd.f32 0.0, %v380
  %v382 = vpop.f32.mrf.mxu0
  %v383 = vpop.f32.mrf.mxu0
  %v384 = vadd.f32 0.0, %v383
  %v385 = vpop.f32.mrf.mxu0
  %386 = vmatprep.mubr.bf16.mxu0 0
  %387 = vmatmul.mubr.bf16.gmra.mxu0 %v238
  %v388 = vpop.f32.mrf.mxu0
  %v389 = vadd.f32 0.0, %v388
  %v390 = vpop.f32.mrf.mxu0
  %v391 = vpop.f32.mrf.mxu0
  %v392 = vadd.f32 0.0, %v391
  %v393 = vpop.f32.mrf.mxu0
  %394 = vmatprep.mubr.bf16.mxu0 0
  %395 = vmatmul.mubr.bf16.gmra.mxu0 %v241
  %v396 = vpop.f32.mrf.mxu0
  %v397 = vadd.f32 0.0, %v396
  %v398 = vpop.f32.mrf.mxu0
  %v399 = vpop.f32.mrf.mxu0
  %v400 = vadd.f32 0.0, %v399
  %v401 = vpop.f32.mrf.mxu0
  %402 = vmatprep.mubr.bf16.mxu0 0
  %403 = vmatmul.mubr.bf16.gmra.mxu0 %v244
  %v404 = vpop.f32.mrf.mxu0
  %v405 = vadd.f32 0.0, %v404
  %v406 = vpop.f32.mrf.mxu0
  %v407 = vpop.f32.mrf.mxu0
  %v408 = vadd.f32 0.0, %v407
  %v409 = vpop.f32.mrf.mxu0
  %410 = vdwg.mxu0
  %v411 = vadd.f32 %v52, %v285
  %v412 = vadd.f32 %v53, %v288
  %v413 = vadd.f32 %v54, %v293
  %v414 = vadd.f32 %v55, %v296
  %v415 = vadd.f32 %v56, %v301
  %v416 = vadd.f32 %v57, %v304
  %v417 = vadd.f32 %v58, %v309
  %v418 = vadd.f32 %v59, %v312
  %v419 = vadd.f32 %v60, %v317
  %v420 = vadd.f32 %v61, %v320
  %v421 = vadd.f32 %v62, %v325
  %v422 = vadd.f32 %v63, %v328
  %v423 = vadd.f32 %v64, %v333
  %v424 = vadd.f32 %v65, %v336
  %v425 = vadd.f32 %v66, %v341
  %v426 = vadd.f32 %v67, %v344
  %v427 = vadd.f32 %v68, %v349
  %v428 = vadd.f32 %v69, %v352
  %v429 = vadd.f32 %v70, %v357
  %v430 = vadd.f32 %v71, %v360
  %v431 = vadd.f32 %v72, %v365
  %v432 = vadd.f32 %v73, %v368
  %v433 = vadd.f32 %v74, %v373
  %v434 = vadd.f32 %v75, %v376
  %v435 = vadd.f32 %v76, %v381
  %v436 = vadd.f32 %v77, %v384
  %v437 = vadd.f32 %v78, %v389
  %v438 = vadd.f32 %v79, %v392
  %v439 = vadd.f32 %v80, %v397
  %v440 = vadd.f32 %v81, %v400
  %v441 = vadd.f32 %v82, %v405
  %v442 = vadd.f32 %v83, %v408
  %vm443 = vcmask 130048
  %444 = vst.msk [vmem:[#allocation2] sm:$0xff] %vm443, %v411
  %445 = vst.msk [vmem:[#allocation2 + $0x8] sm:$0xff] %vm443, %v412
  %446 = vst.msk [vmem:[#allocation2 + $0x10] sm:$0xff] %vm443, %v413
  %447 = vst.msk [vmem:[#allocation2 + $0x18] sm:$0xff] %vm443, %v414
  %448 = vst.msk [vmem:[#allocation2 + $0x20] sm:$0xff] %vm443, %v415
  %449 = vst.msk [vmem:[#allocation2 + $0x28] sm:$0xff] %vm443, %v416
  %450 = vst.msk [vmem:[#allocation2 + $0x30] sm:$0xff] %vm443, %v417
  %451 = vst.msk [vmem:[#allocation2 + $0x38] sm:$0xff] %vm443, %v418
  %452 = vst.msk [vmem:[#allocation2 + $0x40] sm:$0xff] %vm443, %v419
  %453 = vst.msk [vmem:[#allocation2 + $0x48] sm:$0xff] %vm443, %v420
  %454 = vst.msk [vmem:[#allocation2 + $0x50] sm:$0xff] %vm443, %v421
  %455 = vst.msk [vmem:[#allocation2 + $0x58] sm:$0xff] %vm443, %v422
  %456 = vst.msk [vmem:[#allocation2 + $0x60] sm:$0xff] %vm443, %v423
  %457 = vst.msk [vmem:[#allocation2 + $0x68] sm:$0xff] %vm443, %v424
  %458 = vst.msk [vmem:[#allocation2 + $0x70] sm:$0xff] %vm443, %v425
  %459 = vst.msk [vmem:[#allocation2 + $0x78] sm:$0xff] %vm443, %v426
  %460 = vst.msk [vmem:[#allocation2 + $0x80] sm:$0xff] %vm443, %v427
  %461 = vst.msk [vmem:[#allocation2 + $0x88] sm:$0xff] %vm443, %v428
  %462 = vst.msk [vmem:[#allocation2 + $0x90] sm:$0xff] %vm443, %v429
  %463 = vst.msk [vmem:[#allocation2 + $0x98] sm:$0xff] %vm443, %v430
  %464 = vst.msk [vmem:[#allocation2 + $0xa0] sm:$0xff] %vm443, %v431
  %465 = vst.msk [vmem:[#allocation2 + $0xa8] sm:$0xff] %vm443, %v432
  %466 = vst.msk [vmem:[#allocation2 + $0xb0] sm:$0xff] %vm443, %v433
  %467 = vst.msk [vmem:[#allocation2 + $0xb8] sm:$0xff] %vm443, %v434
  %468 = vst.msk [vmem:[#allocation2 + $0xc0] sm:$0xff] %vm443, %v435
  %469 = vst.msk [vmem:[#allocation2 + $0xc8] sm:$0xff] %vm443, %v436
  %470 = vst.msk [vmem:[#allocation2 + $0xd0] sm:$0xff] %vm443, %v437
  %471 = vst.msk [vmem:[#allocation2 + $0xd8] sm:$0xff] %vm443, %v438
  %472 = vst.msk [vmem:[#allocation2 + $0xe0] sm:$0xff] %vm443, %v439
  %473 = vst.msk [vmem:[#allocation2 + $0xe8] sm:$0xff] %vm443, %v440
  %474 = vst.msk [vmem:[#allocation2 + $0xf0] sm:$0xff] %vm443, %v441
  %475 = vst.msk [vmem:[#allocation2 + $0xf8] sm:$0xff] %vm443, %v442
  // Predicated region
  $region18: #{joint_model_apply.43} parent=0 // pred_check
    %p476 = pneg %p15
  $region19: #{joint_model_apply.43} parent=0 // pred_check_branch
    %478 = sbr.rel (%p476) target = $region21
  $region20: #{joint_model_apply.43} parent=0 // pred_region
    %v479 = vld [vmem:[#allocation2] sm:$0xff]
    %v480 = vld [vmem:[#allocation2 + $0x8] sm:$0xff]
    %v481 = vld [vmem:[#allocation2 + $0x10] sm:$0xff]
    %v482 = vld [vmem:[#allocation2 + $0x18] sm:$0xff]
    %v483 = vld [vmem:[#allocation2 + $0x20] sm:$0xff]
    %v484 = vld [vmem:[#allocation2 + $0x28] sm:$0xff]
    %v485 = vld [vmem:[#allocation2 + $0x30] sm:$0xff]
    %v486 = vld [vmem:[#allocation2 + $0x38] sm:$0xff]
    %v487 = vld [vmem:[#allocation2 + $0x40] sm:$0xff]
    %v488 = vld [vmem:[#allocation2 + $0x48] sm:$0xff]
    %v489 = vld [vmem:[#allocation2 + $0x50] sm:$0xff]
    %v490 = vld [vmem:[#allocation2 + $0x58] sm:$0xff]
    %v491 = vld [vmem:[#allocation2 + $0x60] sm:$0xff]
    %v492 = vld [vmem:[#allocation2 + $0x68] sm:$0xff]
    %v493 = vld [vmem:[#allocation2 + $0x70] sm:$0xff]
    %v494 = vld [vmem:[#allocation2 + $0x78] sm:$0xff]
    %v495 = vld [vmem:[#allocation2 + $0x80] sm:$0xff]
    %v496 = vld [vmem:[#allocation2 + $0x88] sm:$0xff]
    %v497 = vld [vmem:[#allocation2 + $0x90] sm:$0xff]
    %v498 = vld [vmem:[#allocation2 + $0x98] sm:$0xff]
    %v499 = vld [vmem:[#allocation2 + $0xa0] sm:$0xff]
    %v500 = vld [vmem:[#allocation2 + $0xa8] sm:$0xff]
    %v501 = vld [vmem:[#allocation2 + $0xb0] sm:$0xff]
    %v502 = vld [vmem:[#allocation2 + $0xb8] sm:$0xff]
    %v503 = vld [vmem:[#allocation2 + $0xc0] sm:$0xff]
    %v504 = vld [vmem:[#allocation2 + $0xc8] sm:$0xff]
    %v505 = vld [vmem:[#allocation2 + $0xd0] sm:$0xff]
    %v506 = vld [vmem:[#allocation2 + $0xd8] sm:$0xff]
    %v507 = vld [vmem:[#allocation2 + $0xe0] sm:$0xff]
    %v508 = vld [vmem:[#allocation2 + $0xe8] sm:$0xff]
    %v509 = vld [vmem:[#allocation2 + $0xf0] sm:$0xff]
    %v510 = vld [vmem:[#allocation2 + $0xf8] sm:$0xff]
    %v511 = vld [vmem:[%s2] sm:$0x1]
    %v513 = vlaneseq
    %v514 = vshrl.u32 %v513, 7
    %v515 = vsub.s32 0, %v514
    %v516 = vrot.slane %v511, %v515
    %v518 = vadd.f32 %v479, %v516
    %v519 = vadd.f32 %v480, %v516
    %v520 = vadd.f32 %v481, %v516
    %v521 = vadd.f32 %v482, %v516
    %v522 = vadd.f32 %v483, %v516
    %v523 = vadd.f32 %v484, %v516
    %v524 = vadd.f32 %v485, %v516
    %v525 = vadd.f32 %v486, %v516
    %v526 = vadd.f32 %v487, %v516
    %v527 = vadd.f32 %v488, %v516
    %v528 = vadd.f32 %v489, %v516
    %v529 = vadd.f32 %v490, %v516
    %v530 = vadd.f32 %v491, %v516
    %v531 = vadd.f32 %v492, %v516
    %v532 = vadd.f32 %v493, %v516
    %v533 = vadd.f32 %v494, %v516
    %v534 = vadd.f32 %v495, %v516
    %v535 = vadd.f32 %v496, %v516
    %v536 = vadd.f32 %v497, %v516
    %v537 = vadd.f32 %v498, %v516
    %v538 = vadd.f32 %v499, %v516
    %v539 = vadd.f32 %v500, %v516
    %v540 = vadd.f32 %v501, %v516
    %v541 = vadd.f32 %v502, %v516
    %v542 = vadd.f32 %v503, %v516
    %v543 = vadd.f32 %v504, %v516
    %v544 = vadd.f32 %v505, %v516
    %v545 = vadd.f32 %v506, %v516
    %v546 = vadd.f32 %v507, %v516
    %v547 = vadd.f32 %v508, %v516
    %v548 = vadd.f32 %v509, %v516
    %v549 = vadd.f32 %v510, %v516
    %550 = vst.msk [vmem:[%s3] sm:$0xff] %vm443, %v518
    %551 = vst.msk [vmem:[%s3 + $0x8] sm:$0xff] %vm443, %v519
    %552 = vst.msk [vmem:[%s3 + $0x10] sm:$0xff] %vm443, %v520
    %553 = vst.msk [vmem:[%s3 + $0x18] sm:$0xff] %vm443, %v521
    %554 = vst.msk [vmem:[%s3 + $0x20] sm:$0xff] %vm443, %v522
    %555 = vst.msk [vmem:[%s3 + $0x28] sm:$0xff] %vm443, %v523
    %556 = vst.msk [vmem:[%s3 + $0x30] sm:$0xff] %vm443, %v524
    %557 = vst.msk [vmem:[%s3 + $0x38] sm:$0xff] %vm443, %v525
    %558 = vst.msk [vmem:[%s3 + $0x40] sm:$0xff] %vm443, %v526
    %559 = vst.msk [vmem:[%s3 + $0x48] sm:$0xff] %vm443, %v527
    %560 = vst.msk [vmem:[%s3 + $0x50] sm:$0xff] %vm443, %v528
    %561 = vst.msk [vmem:[%s3 + $0x58] sm:$0xff] %vm443, %v529
    %562 = vst.msk [vmem:[%s3 + $0x60] sm:$0xff] %vm443, %v530
    %563 = vst.msk [vmem:[%s3 + $0x68] sm:$0xff] %vm443, %v531
    %564 = vst.msk [vmem:[%s3 + $0x70] sm:$0xff] %vm443, %v532
    %565 = vst.msk [vmem:[%s3 + $0x78] sm:$0xff] %vm443, %v533
    %566 = vst.msk [vmem:[%s3 + $0x80] sm:$0xff] %vm443, %v534
    %567 = vst.msk [vmem:[%s3 + $0x88] sm:$0xff] %vm443, %v535
    %568 = vst.msk [vmem:[%s3 + $0x90] sm:$0xff] %vm443, %v536
    %569 = vst.msk [vmem:[%s3 + $0x98] sm:$0xff] %vm443, %v537
    %570 = vst.msk [vmem:[%s3 + $0xa0] sm:$0xff] %vm443, %v538
    %571 = vst.msk [vmem:[%s3 + $0xa8] sm:$0xff] %vm443, %v539
    %572 = vst.msk [vmem:[%s3 + $0xb0] sm:$0xff] %vm443, %v540
    %573 = vst.msk [vmem:[%s3 + $0xb8] sm:$0xff] %vm443, %v541
    %574 = vst.msk [vmem:[%s3 + $0xc0] sm:$0xff] %vm443, %v542
    %575 = vst.msk [vmem:[%s3 + $0xc8] sm:$0xff] %vm443, %v543
    %576 = vst.msk [vmem:[%s3 + $0xd0] sm:$0xff] %vm443, %v544
    %577 = vst.msk [vmem:[%s3 + $0xd8] sm:$0xff] %vm443, %v545
    %578 = vst.msk [vmem:[%s3 + $0xe0] sm:$0xff] %vm443, %v546
    %579 = vst.msk [vmem:[%s3 + $0xe8] sm:$0xff] %vm443, %v547
    %580 = vst.msk [vmem:[%s3 + $0xf0] sm:$0xff] %vm443, %v548
    %581 = vst.msk [vmem:[%s3 + $0xf8] sm:$0xff] %vm443, %v549
  $region21: #{joint_model_apply.43} parent=0 // pred_fallthru
    _
  // Predicated region
  $region22: #{joint_model_apply.43} parent=0 // pred_check
    _
  $region23: #{joint_model_apply.43} parent=0 // pred_check_branch
    %583 = sbr.rel (0) target = $region25
  $region24: #{joint_model_apply.43} parent=0 // pred_region
    _
  $region25: #{joint_model_apply.43} parent=0 // pred_fallthru
    _
  // Predicated region
  $region26: #{joint_model_apply.43} parent=0 // pred_check
    _
  $region27: #{joint_model_apply.43} parent=0 // pred_check_branch
    %585 = sbr.rel (0) target = $region29
  $region28: #{joint_model_apply.43} parent=0 // pred_region
    _
  $region29: #{joint_model_apply.43} parent=0 // pred_fallthru
    _

// kernel: joint_model_apply.44
$region0: #{joint_model_apply.44}
  #allocation0 [shape = 'u32[]', space=smem, size = 0x4, offset = 0x4, fixed_abs, tag = 'smem constant byte address 0x4 - core index']
  #allocation1 [shape = 'u32[144,128]{1,0:T(1,128)}', space=vmem, size = 0x12000, scoped, tag = 'internal scratch']
  #allocation2 [shape = 'f32[512,16]{1,0:T(8,128)}', space=vmem, size = 0x40000, scoped, tag = 'scratch operand']
  %s0 = inlined_call_operand.vmem [shape: bf16[512,8], index: 0, kind: input, shape index: {}]
  %s1 = inlined_call_operand.vmem [shape: bf16[8,16], index: 1, kind: input, shape index: {}]
  %s2 = inlined_call_operand.vmem [shape: f32[1,16], index: 2, kind: input, shape index: {}]
  %s3 = inlined_call_operand.vmem [shape: f32[512,16], index: 3, kind: output, shape index: {}]
  %s4 = sld [smem:[#allocation0]]
  $region30: #{joint_model_apply.44} parent=0
    _
  %s6 = ssub.s32 1, %s4
  %s7 = scalar_select 0, %s6, %s4
  // Predicated region
  $region2: #{joint_model_apply.44} parent=0 // pred_check
    _
  $region3: #{joint_model_apply.44} parent=0 // pred_check_branch
    %9 = sbr.rel (0) target = $region5
  $region4: #{joint_model_apply.44} parent=0 // pred_region
    _
  $region5: #{joint_model_apply.44} parent=0 // pred_fallthru
    _
  // Predicated region
  $region6: #{joint_model_apply.44} parent=0 // pred_check
    _
  $region7: #{joint_model_apply.44} parent=0 // pred_check_branch
    %11 = sbr.rel (0) target = $region9
  $region8: #{joint_model_apply.44} parent=0 // pred_region
    _
  $region9: #{joint_model_apply.44} parent=0 // pred_fallthru
    _
  // Predicated region
  $region10: #{joint_model_apply.44} parent=0 // pred_check
    _
  $region11: #{joint_model_apply.44} parent=0 // pred_check_branch
    %13 = sbr.rel (0) target = $region13
  $region12: #{joint_model_apply.44} parent=0 // pred_region
    _
  $region13: #{joint_model_apply.44} parent=0 // pred_fallthru
    _
  %p15 = scmp.eq.s32.totalorder 0, 0
  // Predicated region
  $region14: #{joint_model_apply.44} parent=0 // pred_check
    %p16 = pneg %p15
  $region15: #{joint_model_apply.44} parent=0 // pred_check_branch
    %18 = sbr.rel (%p16) target = $region17
  $region16: #{joint_model_apply.44} parent=0 // pred_region
    %vm19 = vcmask 130048
    %20 = vst.msk [vmem:[#allocation2] sm:$0xff] %vm19, 0.0
    %21 = vst.msk [vmem:[#allocation2 + $0x8] sm:$0xff] %vm19, 0.0
    %22 = vst.msk [vmem:[#allocation2 + $0x10] sm:$0xff] %vm19, 0.0
    %23 = vst.msk [vmem:[#allocation2 + $0x18] sm:$0xff] %vm19, 0.0
    %24 = vst.msk [vmem:[#allocation2 + $0x20] sm:$0xff] %vm19, 0.0
    %25 = vst.msk [vmem:[#allocation2 + $0x28] sm:$0xff] %vm19, 0.0
    %26 = vst.msk [vmem:[#allocation2 + $0x30] sm:$0xff] %vm19, 0.0
    %27 = vst.msk [vmem:[#allocation2 + $0x38] sm:$0xff] %vm19, 0.0
    %28 = vst.msk [vmem:[#allocation2 + $0x40] sm:$0xff] %vm19, 0.0
    %29 = vst.msk [vmem:[#allocation2 + $0x48] sm:$0xff] %vm19, 0.0
    %30 = vst.msk [vmem:[#allocation2 + $0x50] sm:$0xff] %vm19, 0.0
    %31 = vst.msk [vmem:[#allocation2 + $0x58] sm:$0xff] %vm19, 0.0
    %32 = vst.msk [vmem:[#allocation2 + $0x60] sm:$0xff] %vm19, 0.0
    %33 = vst.msk [vmem:[#allocation2 + $0x68] sm:$0xff] %vm19, 0.0
    %34 = vst.msk [vmem:[#allocation2 + $0x70] sm:$0xff] %vm19, 0.0
    %35 = vst.msk [vmem:[#allocation2 + $0x78] sm:$0xff] %vm19, 0.0
    %36 = vst.msk [vmem:[#allocation2 + $0x80] sm:$0xff] %vm19, 0.0
    %37 = vst.msk [vmem:[#allocation2 + $0x88] sm:$0xff] %vm19, 0.0
    %38 = vst.msk [vmem:[#allocation2 + $0x90] sm:$0xff] %vm19, 0.0
    %39 = vst.msk [vmem:[#allocation2 + $0x98] sm:$0xff] %vm19, 0.0
    %40 = vst.msk [vmem:[#allocation2 + $0xa0] sm:$0xff] %vm19, 0.0
    %41 = vst.msk [vmem:[#allocation2 + $0xa8] sm:$0xff] %vm19, 0.0
    %42 = vst.msk [vmem:[#allocation2 + $0xb0] sm:$0xff] %vm19, 0.0
    %43 = vst.msk [vmem:[#allocation2 + $0xb8] sm:$0xff] %vm19, 0.0
    %44 = vst.msk [vmem:[#allocation2 + $0xc0] sm:$0xff] %vm19, 0.0
    %45 = vst.msk [vmem:[#allocation2 + $0xc8] sm:$0xff] %vm19, 0.0
    %46 = vst.msk [vmem:[#allocation2 + $0xd0] sm:$0xff] %vm19, 0.0
    %47 = vst.msk [vmem:[#allocation2 + $0xd8] sm:$0xff] %vm19, 0.0
    %48 = vst.msk [vmem:[#allocation2 + $0xe0] sm:$0xff] %vm19, 0.0
    %49 = vst.msk [vmem:[#allocation2 + $0xe8] sm:$0xff] %vm19, 0.0
    %50 = vst.msk [vmem:[#allocation2 + $0xf0] sm:$0xff] %vm19, 0.0
    %51 = vst.msk [vmem:[#allocation2 + $0xf8] sm:$0xff] %vm19, 0.0
    %52 = vst.msk [vmem:[#allocation2 + $0x100] sm:$0xff] %vm19, 0.0
    %53 = vst.msk [vmem:[#allocation2 + $0x108] sm:$0xff] %vm19, 0.0
    %54 = vst.msk [vmem:[#allocation2 + $0x110] sm:$0xff] %vm19, 0.0
    %55 = vst.msk [vmem:[#allocation2 + $0x118] sm:$0xff] %vm19, 0.0
    %56 = vst.msk [vmem:[#allocation2 + $0x120] sm:$0xff] %vm19, 0.0
    %57 = vst.msk [vmem:[#allocation2 + $0x128] sm:$0xff] %vm19, 0.0
    %58 = vst.msk [vmem:[#allocation2 + $0x130] sm:$0xff] %vm19, 0.0
    %59 = vst.msk [vmem:[#allocation2 + $0x138] sm:$0xff] %vm19, 0.0
    %60 = vst.msk [vmem:[#allocation2 + $0x140] sm:$0xff] %vm19, 0.0
    %61 = vst.msk [vmem:[#allocation2 + $0x148] sm:$0xff] %vm19, 0.0
    %62 = vst.msk [vmem:[#allocation2 + $0x150] sm:$0xff] %vm19, 0.0
    %63 = vst.msk [vmem:[#allocation2 + $0x158] sm:$0xff] %vm19, 0.0
    %64 = vst.msk [vmem:[#allocation2 + $0x160] sm:$0xff] %vm19, 0.0
    %65 = vst.msk [vmem:[#allocation2 + $0x168] sm:$0xff] %vm19, 0.0
    %66 = vst.msk [vmem:[#allocation2 + $0x170] sm:$0xff] %vm19, 0.0
    %67 = vst.msk [vmem:[#allocation2 + $0x178] sm:$0xff] %vm19, 0.0
    %68 = vst.msk [vmem:[#allocation2 + $0x180] sm:$0xff] %vm19, 0.0
    %69 = vst.msk [vmem:[#allocation2 + $0x188] sm:$0xff] %vm19, 0.0
    %70 = vst.msk [vmem:[#allocation2 + $0x190] sm:$0xff] %vm19, 0.0
    %71 = vst.msk [vmem:[#allocation2 + $0x198] sm:$0xff] %vm19, 0.0
    %72 = vst.msk [vmem:[#allocation2 + $0x1a0] sm:$0xff] %vm19, 0.0
    %73 = vst.msk [vmem:[#allocation2 + $0x1a8] sm:$0xff] %vm19, 0.0
    %74 = vst.msk [vmem:[#allocation2 + $0x1b0] sm:$0xff] %vm19, 0.0
    %75 = vst.msk [vmem:[#allocation2 + $0x1b8] sm:$0xff] %vm19, 0.0
    %76 = vst.msk [vmem:[#allocation2 + $0x1c0] sm:$0xff] %vm19, 0.0
    %77 = vst.msk [vmem:[#allocation2 + $0x1c8] sm:$0xff] %vm19, 0.0
    %78 = vst.msk [vmem:[#allocation2 + $0x1d0] sm:$0xff] %vm19, 0.0
    %79 = vst.msk [vmem:[#allocation2 + $0x1d8] sm:$0xff] %vm19, 0.0
    %80 = vst.msk [vmem:[#allocation2 + $0x1e0] sm:$0xff] %vm19, 0.0
    %81 = vst.msk [vmem:[#allocation2 + $0x1e8] sm:$0xff] %vm19, 0.0
    %82 = vst.msk [vmem:[#allocation2 + $0x1f0] sm:$0xff] %vm19, 0.0
    %83 = vst.msk [vmem:[#allocation2 + $0x1f8] sm:$0xff] %vm19, 0.0
  $region17: #{joint_model_apply.44} parent=0 // pred_fallthru
    _
  %v84 = vld [vmem:[#allocation2] sm:$0xff]
  %v85 = vld [vmem:[#allocation2 + $0x8] sm:$0xff]
  %v86 = vld [vmem:[#allocation2 + $0x10] sm:$0xff]
  %v87 = vld [vmem:[#allocation2 + $0x18] sm:$0xff]
  %v88 = vld [vmem:[#allocation2 + $0x20] sm:$0xff]
  %v89 = vld [vmem:[#allocation2 + $0x28] sm:$0xff]
  %v90 = vld [vmem:[#allocation2 + $0x30] sm:$0xff]
  %v91 = vld [vmem:[#allocation2 + $0x38] sm:$0xff]
  %v92 = vld [vmem:[#allocation2 + $0x40] sm:$0xff]
  %v93 = vld [vmem:[#allocation2 + $0x48] sm:$0xff]
  %v94 = vld [vmem:[#allocation2 + $0x50] sm:$0xff]
  %v95 = vld [vmem:[#allocation2 + $0x58] sm:$0xff]
  %v96 = vld [vmem:[#allocation2 + $0x60] sm:$0xff]
  %v97 = vld [vmem:[#allocation2 + $0x68] sm:$0xff]
  %v98 = vld [vmem:[#allocation2 + $0x70] sm:$0xff]
  %v99 = vld [vmem:[#allocation2 + $0x78] sm:$0xff]
  %v100 = vld [vmem:[#allocation2 + $0x80] sm:$0xff]
  %v101 = vld [vmem:[#allocation2 + $0x88] sm:$0xff]
  %v102 = vld [vmem:[#allocation2 + $0x90] sm:$0xff]
  %v103 = vld [vmem:[#allocation2 + $0x98] sm:$0xff]
  %v104 = vld [vmem:[#allocation2 + $0xa0] sm:$0xff]
  %v105 = vld [vmem:[#allocation2 + $0xa8] sm:$0xff]
  %v106 = vld [vmem:[#allocation2 + $0xb0] sm:$0xff]
  %v107 = vld [vmem:[#allocation2 + $0xb8] sm:$0xff]
  %v108 = vld [vmem:[#allocation2 + $0xc0] sm:$0xff]
  %v109 = vld [vmem:[#allocation2 + $0xc8] sm:$0xff]
  %v110 = vld [vmem:[#allocation2 + $0xd0] sm:$0xff]
  %v111 = vld [vmem:[#allocation2 + $0xd8] sm:$0xff]
  %v112 = vld [vmem:[#allocation2 + $0xe0] sm:$0xff]
  %v113 = vld [vmem:[#allocation2 + $0xe8] sm:$0xff]
  %v114 = vld [vmem:[#allocation2 + $0xf0] sm:$0xff]
  %v115 = vld [vmem:[#allocation2 + $0xf8] sm:$0xff]
  %v116 = vld [vmem:[#allocation2 + $0x100] sm:$0xff]
  %v117 = vld [vmem:[#allocation2 + $0x108] sm:$0xff]
  %v118 = vld [vmem:[#allocation2 + $0x110] sm:$0xff]
  %v119 = vld [vmem:[#allocation2 + $0x118] sm:$0xff]
  %v120 = vld [vmem:[#allocation2 + $0x120] sm:$0xff]
  %v121 = vld [vmem:[#allocation2 + $0x128] sm:$0xff]
  %v122 = vld [vmem:[#allocation2 + $0x130] sm:$0xff]
  %v123 = vld [vmem:[#allocation2 + $0x138] sm:$0xff]
  %v124 = vld [vmem:[#allocation2 + $0x140] sm:$0xff]
  %v125 = vld [vmem:[#allocation2 + $0x148] sm:$0xff]
  %v126 = vld [vmem:[#allocation2 + $0x150] sm:$0xff]
  %v127 = vld [vmem:[#allocation2 + $0x158] sm:$0xff]
  %v128 = vld [vmem:[#allocation2 + $0x160] sm:$0xff]
  %v129 = vld [vmem:[#allocation2 + $0x168] sm:$0xff]
  %v130 = vld [vmem:[#allocation2 + $0x170] sm:$0xff]
  %v131 = vld [vmem:[#allocation2 + $0x178] sm:$0xff]
  %v132 = vld [vmem:[#allocation2 + $0x180] sm:$0xff]
  %v133 = vld [vmem:[#allocation2 + $0x188] sm:$0xff]
  %v134 = vld [vmem:[#allocation2 + $0x190] sm:$0xff]
  %v135 = vld [vmem:[#allocation2 + $0x198] sm:$0xff]
  %v136 = vld [vmem:[#allocation2 + $0x1a0] sm:$0xff]
  %v137 = vld [vmem:[#allocation2 + $0x1a8] sm:$0xff]
  %v138 = vld [vmem:[#allocation2 + $0x1b0] sm:$0xff]
  %v139 = vld [vmem:[#allocation2 + $0x1b8] sm:$0xff]
  %v140 = vld [vmem:[#allocation2 + $0x1c0] sm:$0xff]
  %v141 = vld [vmem:[#allocation2 + $0x1c8] sm:$0xff]
  %v142 = vld [vmem:[#allocation2 + $0x1d0] sm:$0xff]
  %v143 = vld [vmem:[#allocation2 + $0x1d8] sm:$0xff]
  %v144 = vld [vmem:[#allocation2 + $0x1e0] sm:$0xff]
  %v145 = vld [vmem:[#allocation2 + $0x1e8] sm:$0xff]
  %v146 = vld [vmem:[#allocation2 + $0x1f0] sm:$0xff]
  %v147 = vld [vmem:[#allocation2 + $0x1f8] sm:$0xff]
  %v148 = vld [vmem:[%s0] sm:$0xf]
  %v149 = vld [vmem:[%s0 + $0x4] sm:$0xf]
  %v150 = vld [vmem:[%s0 + $0x8] sm:$0xf]
  %v151 = vld [vmem:[%s0 + $0xc] sm:$0xf]
  %v152 = vld [vmem:[%s0 + $0x10] sm:$0xf]
  %v153 = vld [vmem:[%s0 + $0x14] sm:$0xf]
  %v154 = vld [vmem:[%s0 + $0x18] sm:$0xf]
  %v155 = vld [vmem:[%s0 + $0x1c] sm:$0xf]
  %v156 = vld [vmem:[%s0 + $0x20] sm:$0xf]
  %v157 = vld [vmem:[%s0 + $0x24] sm:$0xf]
  %v158 = vld [vmem:[%s0 + $0x28] sm:$0xf]
  %v159 = vld [vmem:[%s0 + $0x2c] sm:$0xf]
  %v160 = vld [vmem:[%s0 + $0x30] sm:$0xf]
  %v161 = vld [vmem:[%s0 + $0x34] sm:$0xf]
  %v162 = vld [vmem:[%s0 + $0x38] sm:$0xf]
  %v163 = vld [vmem:[%s0 + $0x3c] sm:$0xf]
  %v164 = vld [vmem:[%s0 + $0x40] sm:$0xf]
  %v165 = vld [vmem:[%s0 + $0x44] sm:$0xf]
  %v166 = vld [vmem:[%s0 + $0x48] sm:$0xf]
  %v167 = vld [vmem:[%s0 + $0x4c] sm:$0xf]
  %v168 = vld [vmem:[%s0 + $0x50] sm:$0xf]
  %v169 = vld [vmem:[%s0 + $0x54] sm:$0xf]
  %v170 = vld [vmem:[%s0 + $0x58] sm:$0xf]
  %v171 = vld [vmem:[%s0 + $0x5c] sm:$0xf]
  %v172 = vld [vmem:[%s0 + $0x60] sm:$0xf]
  %v173 = vld [vmem:[%s0 + $0x64] sm:$0xf]
  %v174 = vld [vmem:[%s0 + $0x68] sm:$0xf]
  %v175 = vld [vmem:[%s0 + $0x6c] sm:$0xf]
  %v176 = vld [vmem:[%s0 + $0x70] sm:$0xf]
  %v177 = vld [vmem:[%s0 + $0x74] sm:$0xf]
  %v178 = vld [vmem:[%s0 + $0x78] sm:$0xf]
  %v179 = vld [vmem:[%s0 + $0x7c] sm:$0xf]
  %v180 = vld [vmem:[%s0 + $0x80] sm:$0xf]
  %v181 = vld [vmem:[%s0 + $0x84] sm:$0xf]
  %v182 = vld [vmem:[%s0 + $0x88] sm:$0xf]
  %v183 = vld [vmem:[%s0 + $0x8c] sm:$0xf]
  %v184 = vld [vmem:[%s0 + $0x90] sm:$0xf]
  %v185 = vld [vmem:[%s0 + $0x94] sm:$0xf]
  %v186 = vld [vmem:[%s0 + $0x98] sm:$0xf]
  %v187 = vld [vmem:[%s0 + $0x9c] sm:$0xf]
  %v188 = vld [vmem:[%s0 + $0xa0] sm:$0xf]
  %v189 = vld [vmem:[%s0 + $0xa4] sm:$0xf]
  %v190 = vld [vmem:[%s0 + $0xa8] sm:$0xf]
  %v191 = vld [vmem:[%s0 + $0xac] sm:$0xf]
  %v192 = vld [vmem:[%s0 + $0xb0] sm:$0xf]
  %v193 = vld [vmem:[%s0 + $0xb4] sm:$0xf]
  %v194 = vld [vmem:[%s0 + $0xb8] sm:$0xf]
  %v195 = vld [vmem:[%s0 + $0xbc] sm:$0xf]
  %v196 = vld [vmem:[%s0 + $0xc0] sm:$0xf]
  %v197 = vld [vmem:[%s0 + $0xc4] sm:$0xf]
  %v198 = vld [vmem:[%s0 + $0xc8] sm:$0xf]
  %v199 = vld [vmem:[%s0 + $0xcc] sm:$0xf]
  %v200 = vld [vmem:[%s0 + $0xd0] sm:$0xf]
  %v201 = vld [vmem:[%s0 + $0xd4] sm:$0xf]
  %v202 = vld [vmem:[%s0 + $0xd8] sm:$0xf]
  %v203 = vld [vmem:[%s0 + $0xdc] sm:$0xf]
  %v204 = vld [vmem:[%s0 + $0xe0] sm:$0xf]
  %v205 = vld [vmem:[%s0 + $0xe4] sm:$0xf]
  %v206 = vld [vmem:[%s0 + $0xe8] sm:$0xf]
  %v207 = vld [vmem:[%s0 + $0xec] sm:$0xf]
  %v208 = vld [vmem:[%s0 + $0xf0] sm:$0xf]
  %v209 = vld [vmem:[%s0 + $0xf4] sm:$0xf]
  %v210 = vld [vmem:[%s0 + $0xf8] sm:$0xf]
  %v211 = vld [vmem:[%s0 + $0xfc] sm:$0xf]
  %v212 = vld [vmem:[%s1] sm:$0xf]
  %v277 = vunpack.c.l.b16 %v148
  %v278 = vunpack.c.l.b16 %v149
  %v279 = vunpack.c.l.b16 %v150
  %v280 = vunpack.c.l.b16 %v151
  %v281 = vunpack.c.l.b16 %v152
  %v282 = vunpack.c.l.b16 %v153
  %v283 = vunpack.c.l.b16 %v154
  %v284 = vunpack.c.l.b16 %v155
  %v285 = vunpack.c.l.b16 %v156
  %v286 = vunpack.c.l.b16 %v157
  %v287 = vunpack.c.l.b16 %v158
  %v288 = vunpack.c.l.b16 %v159
  %v289 = vunpack.c.l.b16 %v160
  %v290 = vunpack.c.l.b16 %v161
  %v291 = vunpack.c.l.b16 %v162
  %v292 = vunpack.c.l.b16 %v163
  %v293 = vunpack.c.l.b16 %v164
  %v294 = vunpack.c.l.b16 %v165
  %v295 = vunpack.c.l.b16 %v166
  %v296 = vunpack.c.l.b16 %v167
  %v297 = vunpack.c.l.b16 %v168
  %v298 = vunpack.c.l.b16 %v169
  %v299 = vunpack.c.l.b16 %v170
  %v300 = vunpack.c.l.b16 %v171
  %v301 = vunpack.c.l.b16 %v172
  %v302 = vunpack.c.l.b16 %v173
  %v303 = vunpack.c.l.b16 %v174
  %v304 = vunpack.c.l.b16 %v175
  %v305 = vunpack.c.l.b16 %v176
  %v306 = vunpack.c.l.b16 %v177
  %v307 = vunpack.c.l.b16 %v178
  %v308 = vunpack.c.l.b16 %v179
  %v309 = vunpack.c.l.b16 %v180
  %v310 = vunpack.c.l.b16 %v181
  %v311 = vunpack.c.l.b16 %v182
  %v312 = vunpack.c.l.b16 %v183
  %v313 = vunpack.c.l.b16 %v184
  %v314 = vunpack.c.l.b16 %v185
  %v315 = vunpack.c.l.b16 %v186
  %v316 = vunpack.c.l.b16 %v187
  %v317 = vunpack.c.l.b16 %v188
  %v318 = vunpack.c.l.b16 %v189
  %v319 = vunpack.c.l.b16 %v190
  %v320 = vunpack.c.l.b16 %v191
  %v321 = vunpack.c.l.b16 %v192
  %v322 = vunpack.c.l.b16 %v193
  %v323 = vunpack.c.l.b16 %v194
  %v324 = vunpack.c.l.b16 %v195
  %v325 = vunpack.c.l.b16 %v196
  %v326 = vunpack.c.l.b16 %v197
  %v327 = vunpack.c.l.b16 %v198
  %v328 = vunpack.c.l.b16 %v199
  %v329 = vunpack.c.l.b16 %v200
  %v330 = vunpack.c.l.b16 %v201
  %v331 = vunpack.c.l.b16 %v202
  %v332 = vunpack.c.l.b16 %v203
  %v333 = vunpack.c.l.b16 %v204
  %v334 = vunpack.c.l.b16 %v205
  %v335 = vunpack.c.l.b16 %v206
  %v336 = vunpack.c.l.b16 %v207
  %v337 = vunpack.c.l.b16 %v208
  %v338 = vunpack.c.l.b16 %v209
  %v339 = vunpack.c.l.b16 %v210
  %v340 = vunpack.c.l.b16 %v211
  %v341 = vpack.c.b16 %v278, %v277
  %v342 = vpack.c.b16 %v280, %v279
  %v343 = vpack.c.b16 %v282, %v281
  %v344 = vpack.c.b16 %v284, %v283
  %v345 = vpack.c.b16 %v286, %v285
  %v346 = vpack.c.b16 %v288, %v287
  %v347 = vpack.c.b16 %v290, %v289
  %v348 = vpack.c.b16 %v292, %v291
  %v349 = vpack.c.b16 %v294, %v293
  %v350 = vpack.c.b16 %v296, %v295
  %v351 = vpack.c.b16 %v298, %v297
  %v352 = vpack.c.b16 %v300, %v299
  %v353 = vpack.c.b16 %v302, %v301
  %v354 = vpack.c.b16 %v304, %v303
  %v355 = vpack.c.b16 %v306, %v305
  %v356 = vpack.c.b16 %v308, %v307
  %v357 = vpack.c.b16 %v310, %v309
  %v358 = vpack.c.b16 %v312, %v311
  %v359 = vpack.c.b16 %v314, %v313
  %v360 = vpack.c.b16 %v316, %v315
  %v361 = vpack.c.b16 %v318, %v317
  %v362 = vpack.c.b16 %v320, %v319
  %v363 = vpack.c.b16 %v322, %v321
  %v364 = vpack.c.b16 %v324, %v323
  %v365 = vpack.c.b16 %v326, %v325
  %v366 = vpack.c.b16 %v328, %v327
  %v367 = vpack.c.b16 %v330, %v329
  %v368 = vpack.c.b16 %v332, %v331
  %v369 = vpack.c.b16 %v334, %v333
  %v370 = vpack.c.b16 %v336, %v335
  %v371 = vpack.c.b16 %v338, %v337
  %v372 = vpack.c.b16 %v340, %v339
  %vm373 = vcmask 64512
  %v375 = vsel %vm373, %v341, 0
  %v378 = vsel %vm373, %v342, 0
  %v381 = vsel %vm373, %v343, 0
  %v384 = vsel %vm373, %v344, 0
  %v387 = vsel %vm373, %v345, 0
  %v390 = vsel %vm373, %v346, 0
  %v393 = vsel %vm373, %v347, 0
  %v396 = vsel %vm373, %v348, 0
  %v399 = vsel %vm373, %v349, 0
  %v402 = vsel %vm373, %v350, 0
  %v405 = vsel %vm373, %v351, 0
  %v408 = vsel %vm373, %v352, 0
  %v411 = vsel %vm373, %v353, 0
  %v414 = vsel %vm373, %v354, 0
  %v417 = vsel %vm373, %v355, 0
  %v420 = vsel %vm373, %v356, 0
  %v423 = vsel %vm373, %v357, 0
  %v426 = vsel %vm373, %v358, 0
  %v429 = vsel %vm373, %v359, 0
  %v432 = vsel %vm373, %v360, 0
  %v435 = vsel %vm373, %v361, 0
  %v438 = vsel %vm373, %v362, 0
  %v441 = vsel %vm373, %v363, 0
  %v444 = vsel %vm373, %v364, 0
  %v447 = vsel %vm373, %v365, 0
  %v450 = vsel %vm373, %v366, 0
  %v453 = vsel %vm373, %v367, 0
  %v456 = vsel %vm373, %v368, 0
  %v459 = vsel %vm373, %v369, 0
  %v462 = vsel %vm373, %v370, 0
  %v465 = vsel %vm373, %v371, 0
  %v468 = vsel %vm373, %v372, 0
  %vm470 = vcmask 1043456
  %v472 = vsel %vm470, %v212, 0
  %474 = vmatprep.subr.bf16.mxu0 0
  %475 = vmatpush1.bf16.msra.mxu0 0
  %476 = vmatprep.subr.bf16.mxu0 0
  %477 = vmatpush1.bf16.msra.mxu0 0
  %478 = vmatprep.subr.bf16.mxu0 0
  %479 = vmatpush1.bf16.msra.mxu0 0
  %480 = vmatprep.subr.bf16.mxu0 0
  %481 = vmatpush1.bf16.msra.mxu0 0
  %482 = vmatprep.subr.bf16.mxu0 0
  %483 = vmatpush1.bf16.msra.mxu0 0
  %484 = vmatprep.subr.bf16.mxu0 0
  %485 = vmatpush1.bf16.msra.mxu0 0
  %486 = vmatprep.subr.bf16.mxu0 0
  %487 = vmatpush1.bf16.msra.mxu0 0
  %488 = vmatprep.subr.bf16.mxu0 0
  %489 = vmatpush1.bf16.msra.mxu0 %v472
  %490 = vmatprep.subr.bf16.mxu0 0
  %491 = vmatpush2.bf16.msra.mxu0 0
  %492 = vmatprep.subr.bf16.mxu0 0
  %493 = vmatpush2.bf16.msra.mxu0 0
  %494 = vmatprep.subr.bf16.mxu0 0
  %495 = vmatpush2.bf16.msra.mxu0 0
  %496 = vmatprep.subr.bf16.mxu0 0
  %497 = vmatpush2.bf16.msra.mxu0 0
  %498 = vmatprep.subr.bf16.mxu0 0
  %499 = vmatpush2.bf16.msra.mxu0 0
  %500 = vmatprep.subr.bf16.mxu0 0
  %501 = vmatpush2.bf16.msra.mxu0 0
  %502 = vmatprep.subr.bf16.mxu0 0
  %503 = vmatpush2.bf16.msra.mxu0 0
  %504 = vmatprep.subr.bf16.mxu0 0
  %505 = vmatpush2.bf16.msra.mxu0 0
  %506 = vmatprep.mubr.bf16.mxu0 0
  %507 = vmatmul.mubr.bf16.gmra.mxu0 %v375
  %v508 = vpop.f32.mrf.mxu0
  %v509 = vadd.f32 0.0, %v508
  %v510 = vpop.f32.mrf.mxu0
  %v511 = vpop.f32.mrf.mxu0
  %v512 = vadd.f32 0.0, %v511
  %v513 = vpop.f32.mrf.mxu0
  %514 = vmatprep.mubr.bf16.mxu0 0
  %515 = vmatmul.mubr.bf16.gmra.mxu0 %v378
  %v516 = vpop.f32.mrf.mxu0
  %v517 = vadd.f32 0.0, %v516
  %v518 = vpop.f32.mrf.mxu0
  %v519 = vpop.f32.mrf.mxu0
  %v520 = vadd.f32 0.0, %v519
  %v521 = vpop.f32.mrf.mxu0
  %522 = vmatprep.mubr.bf16.mxu0 0
  %523 = vmatmul.mubr.bf16.gmra.mxu0 %v381
  %v524 = vpop.f32.mrf.mxu0
  %v525 = vadd.f32 0.0, %v524
  %v526 = vpop.f32.mrf.mxu0
  %v527 = vpop.f32.mrf.mxu0
  %v528 = vadd.f32 0.0, %v527
  %v529 = vpop.f32.mrf.mxu0
  %530 = vmatprep.mubr.bf16.mxu0 0
  %531 = vmatmul.mubr.bf16.gmra.mxu0 %v384
  %v532 = vpop.f32.mrf.mxu0
  %v533 = vadd.f32 0.0, %v532
  %v534 = vpop.f32.mrf.mxu0
  %v535 = vpop.f32.mrf.mxu0
  %v536 = vadd.f32 0.0, %v535
  %v537 = vpop.f32.mrf.mxu0
  %538 = vmatprep.mubr.bf16.mxu0 0
  %539 = vmatmul.mubr.bf16.gmra.mxu0 %v387
  %v540 = vpop.f32.mrf.mxu0
  %v541 = vadd.f32 0.0, %v540
  %v542 = vpop.f32.mrf.mxu0
  %v543 = vpop.f32.mrf.mxu0
  %v544 = vadd.f32 0.0, %v543
  %v545 = vpop.f32.mrf.mxu0
  %546 = vmatprep.mubr.bf16.mxu0 0
  %547 = vmatmul.mubr.bf16.gmra.mxu0 %v390
  %v548 = vpop.f32.mrf.mxu0
  %v549 = vadd.f32 0.0, %v548
  %v550 = vpop.f32.mrf.mxu0
  %v551 = vpop.f32.mrf.mxu0
  %v552 = vadd.f32 0.0, %v551
  %v553 = vpop.f32.mrf.mxu0
  %554 = vmatprep.mubr.bf16.mxu0 0
  %555 = vmatmul.mubr.bf16.gmra.mxu0 %v393
  %v556 = vpop.f32.mrf.mxu0
  %v557 = vadd.f32 0.0, %v556
  %v558 = vpop.f32.mrf.mxu0
  %v559 = vpop.f32.mrf.mxu0
  %v560 = vadd.f32 0.0, %v559
  %v561 = vpop.f32.mrf.mxu0
  %562 = vmatprep.mubr.bf16.mxu0 0
  %563 = vmatmul.mubr.bf16.gmra.mxu0 %v396
  %v564 = vpop.f32.mrf.mxu0
  %v565 = vadd.f32 0.0, %v564
  %v566 = vpop.f32.mrf.mxu0
  %v567 = vpop.f32.mrf.mxu0
  %v568 = vadd.f32 0.0, %v567
  %v569 = vpop.f32.mrf.mxu0
  %570 = vmatprep.mubr.bf16.mxu0 0
  %571 = vmatmul.mubr.bf16.gmra.mxu0 %v399
  %v572 = vpop.f32.mrf.mxu0
  %v573 = vadd.f32 0.0, %v572
  %v574 = vpop.f32.mrf.mxu0
  %v575 = vpop.f32.mrf.mxu0
  %v576 = vadd.f32 0.0, %v575
  %v577 = vpop.f32.mrf.mxu0
  %578 = vmatprep.mubr.bf16.mxu0 0
  %579 = vmatmul.mubr.bf16.gmra.mxu0 %v402
  %v580 = vpop.f32.mrf.mxu0
  %v581 = vadd.f32 0.0, %v580
  %v582 = vpop.f32.mrf.mxu0
  %v583 = vpop.f32.mrf.mxu0
  %v584 = vadd.f32 0.0, %v583
  %v585 = vpop.f32.mrf.mxu0
  %586 = vmatprep.mubr.bf16.mxu0 0
  %587 = vmatmul.mubr.bf16.gmra.mxu0 %v405
  %v588 = vpop.f32.mrf.mxu0
  %v589 = vadd.f32 0.0, %v588
  %v590 = vpop.f32.mrf.mxu0
  %v591 = vpop.f32.mrf.mxu0
  %v592 = vadd.f32 0.0, %v591
  %v593 = vpop.f32.mrf.mxu0
  %594 = vmatprep.mubr.bf16.mxu0 0
  %595 = vmatmul.mubr.bf16.gmra.mxu0 %v408
  %v596 = vpop.f32.mrf.mxu0
  %v597 = vadd.f32 0.0, %v596
  %v598 = vpop.f32.mrf.mxu0
  %v599 = vpop.f32.mrf.mxu0
  %v600 = vadd.f32 0.0, %v599
  %v601 = vpop.f32.mrf.mxu0
  %602 = vmatprep.mubr.bf16.mxu0 0
  %603 = vmatmul.mubr.bf16.gmra.mxu0 %v411
  %v604 = vpop.f32.mrf.mxu0
  %v605 = vadd.f32 0.0, %v604
  %v606 = vpop.f32.mrf.mxu0
  %v607 = vpop.f32.mrf.mxu0
  %v608 = vadd.f32 0.0, %v607
  %v609 = vpop.f32.mrf.mxu0
  %610 = vmatprep.mubr.bf16.mxu0 0
  %611 = vmatmul.mubr.bf16.gmra.mxu0 %v414
  %v612 = vpop.f32.mrf.mxu0
  %v613 = vadd.f32 0.0, %v612
  %v614 = vpop.f32.mrf.mxu0
  %v615 = vpop.f32.mrf.mxu0
  %v616 = vadd.f32 0.0, %v615
  %v617 = vpop.f32.mrf.mxu0
  %618 = vmatprep.mubr.bf16.mxu0 0
  %619 = vmatmul.mubr.bf16.gmra.mxu0 %v417
  %v620 = vpop.f32.mrf.mxu0
  %v621 = vadd.f32 0.0, %v620
  %v622 = vpop.f32.mrf.mxu0
  %v623 = vpop.f32.mrf.mxu0
  %v624 = vadd.f32 0.0, %v623
  %v625 = vpop.f32.mrf.mxu0
  %626 = vmatprep.mubr.bf16.mxu0 0
  %627 = vmatmul.mubr.bf16.gmra.mxu0 %v420
  %v628 = vpop.f32.mrf.mxu0
  %v629 = vadd.f32 0.0, %v628
  %v630 = vpop.f32.mrf.mxu0
  %v631 = vpop.f32.mrf.mxu0
  %v632 = vadd.f32 0.0, %v631
  %v633 = vpop.f32.mrf.mxu0
  %634 = vmatprep.mubr.bf16.mxu0 0
  %635 = vmatmul.mubr.bf16.gmra.mxu0 %v423
  %v636 = vpop.f32.mrf.mxu0
  %v637 = vadd.f32 0.0, %v636
  %v638 = vpop.f32.mrf.mxu0
  %v639 = vpop.f32.mrf.mxu0
  %v640 = vadd.f32 0.0, %v639
  %v641 = vpop.f32.mrf.mxu0
  %642 = vmatprep.mubr.bf16.mxu0 0
  %643 = vmatmul.mubr.bf16.gmra.mxu0 %v426
  %v644 = vpop.f32.mrf.mxu0
  %v645 = vadd.f32 0.0, %v644
  %v646 = vpop.f32.mrf.mxu0
  %v647 = vpop.f32.mrf.mxu0
  %v648 = vadd.f32 0.0, %v647
  %v649 = vpop.f32.mrf.mxu0
  %650 = vmatprep.mubr.bf16.mxu0 0
  %651 = vmatmul.mubr.bf16.gmra.mxu0 %v429
  %v652 = vpop.f32.mrf.mxu0
  %v653 = vadd.f32 0.0, %v652
  %v654 = vpop.f32.mrf.mxu0
  %v655 = vpop.f32.mrf.mxu0
  %v656 = vadd.f32 0.0, %v655
  %v657 = vpop.f32.mrf.mxu0
  %658 = vmatprep.mubr.bf16.mxu0 0
  %659 = vmatmul.mubr.bf16.gmra.mxu0 %v432
  %v660 = vpop.f32.mrf.mxu0
  %v661 = vadd.f32 0.0, %v660
  %v662 = vpop.f32.mrf.mxu0
  %v663 = vpop.f32.mrf.mxu0
  %v664 = vadd.f32 0.0, %v663
  %v665 = vpop.f32.mrf.mxu0
  %666 = vmatprep.mubr.bf16.mxu0 0
  %667 = vmatmul.mubr.bf16.gmra.mxu0 %v435
  %v668 = vpop.f32.mrf.mxu0
  %v669 = vadd.f32 0.0, %v668
  %v670 = vpop.f32.mrf.mxu0
  %v671 = vpop.f32.mrf.mxu0
  %v672 = vadd.f32 0.0, %v671
  %v673 = vpop.f32.mrf.mxu0
  %674 = vmatprep.mubr.bf16.mxu0 0
  %675 = vmatmul.mubr.bf16.gmra.mxu0 %v438
  %v676 = vpop.f32.mrf.mxu0
  %v677 = vadd.f32 0.0, %v676
  %v678 = vpop.f32.mrf.mxu0
  %v679 = vpop.f32.mrf.mxu0
  %v680 = vadd.f32 0.0, %v679
  %v681 = vpop.f32.mrf.mxu0
  %682 = vmatprep.mubr.bf16.mxu0 0
  %683 = vmatmul.mubr.bf16.gmra.mxu0 %v441
  %v684 = vpop.f32.mrf.mxu0
  %v685 = vadd.f32 0.0, %v684
  %v686 = vpop.f32.mrf.mxu0
  %v687 = vpop.f32.mrf.mxu0
  %v688 = vadd.f32 0.0, %v687
  %v689 = vpop.f32.mrf.mxu0
  %690 = vmatprep.mubr.bf16.mxu0 0
  %691 = vmatmul.mubr.bf16.gmra.mxu0 %v444
  %v692 = vpop.f32.mrf.mxu0
  %v693 = vadd.f32 0.0, %v692
  %v694 = vpop.f32.mrf.mxu0
  %v695 = vpop.f32.mrf.mxu0
  %v696 = vadd.f32 0.0, %v695
  %v697 = vpop.f32.mrf.mxu0
  %698 = vmatprep.mubr.bf16.mxu0 0
  %699 = vmatmul.mubr.bf16.gmra.mxu0 %v447
  %v700 = vpop.f32.mrf.mxu0
  %v701 = vadd.f32 0.0, %v700
  %v702 = vpop.f32.mrf.mxu0
  %v703 = vpop.f32.mrf.mxu0
  %v704 = vadd.f32 0.0, %v703
  %v705 = vpop.f32.mrf.mxu0
  %706 = vmatprep.mubr.bf16.mxu0 0
  %707 = vmatmul.mubr.bf16.gmra.mxu0 %v450
  %v708 = vpop.f32.mrf.mxu0
  %v709 = vadd.f32 0.0, %v708
  %v710 = vpop.f32.mrf.mxu0
  %v711 = vpop.f32.mrf.mxu0
  %v712 = vadd.f32 0.0, %v711
  %v713 = vpop.f32.mrf.mxu0
  %714 = vmatprep.mubr.bf16.mxu0 0
  %715 = vmatmul.mubr.bf16.gmra.mxu0 %v453
  %v716 = vpop.f32.mrf.mxu0
  %v717 = vadd.f32 0.0, %v716
  %v718 = vpop.f32.mrf.mxu0
  %v719 = vpop.f32.mrf.mxu0
  %v720 = vadd.f32 0.0, %v719
  %v721 = vpop.f32.mrf.mxu0
  %722 = vmatprep.mubr.bf16.mxu0 0
  %723 = vmatmul.mubr.bf16.gmra.mxu0 %v456
  %v724 = vpop.f32.mrf.mxu0
  %v725 = vadd.f32 0.0, %v724
  %v726 = vpop.f32.mrf.mxu0
  %v727 = vpop.f32.mrf.mxu0
  %v728 = vadd.f32 0.0, %v727
  %v729 = vpop.f32.mrf.mxu0
  %730 = vmatprep.mubr.bf16.mxu0 0
  %731 = vmatmul.mubr.bf16.gmra.mxu0 %v459
  %v732 = vpop.f32.mrf.mxu0
  %v733 = vadd.f32 0.0, %v732
  %v734 = vpop.f32.mrf.mxu0
  %v735 = vpop.f32.mrf.mxu0
  %v736 = vadd.f32 0.0, %v735
  %v737 = vpop.f32.mrf.mxu0
  %738 = vmatprep.mubr.bf16.mxu0 0
  %739 = vmatmul.mubr.bf16.gmra.mxu0 %v462
  %v740 = vpop.f32.mrf.mxu0
  %v741 = vadd.f32 0.0, %v740
  %v742 = vpop.f32.mrf.mxu0
  %v743 = vpop.f32.mrf.mxu0
  %v744 = vadd.f32 0.0, %v743
  %v745 = vpop.f32.mrf.mxu0
  %746 = vmatprep.mubr.bf16.mxu0 0
  %747 = vmatmul.mubr.bf16.gmra.mxu0 %v465
  %v748 = vpop.f32.mrf.mxu0
  %v749 = vadd.f32 0.0, %v748
  %v750 = vpop.f32.mrf.mxu0
  %v751 = vpop.f32.mrf.mxu0
  %v752 = vadd.f32 0.0, %v751
  %v753 = vpop.f32.mrf.mxu0
  %754 = vmatprep.mubr.bf16.mxu0 0
  %755 = vmatmul.mubr.bf16.gmra.mxu0 %v468
  %v756 = vpop.f32.mrf.mxu0
  %v757 = vadd.f32 0.0, %v756
  %v758 = vpop.f32.mrf.mxu0
  %v759 = vpop.f32.mrf.mxu0
  %v760 = vadd.f32 0.0, %v759
  %v761 = vpop.f32.mrf.mxu0
  %762 = vdwg.mxu0
  %v763 = vadd.f32 %v84, %v509
  %v764 = vadd.f32 %v85, %v512
  %v765 = vadd.f32 %v86, %v517
  %v766 = vadd.f32 %v87, %v520
  %v767 = vadd.f32 %v88, %v525
  %v768 = vadd.f32 %v89, %v528
  %v769 = vadd.f32 %v90, %v533
  %v770 = vadd.f32 %v91, %v536
  %v771 = vadd.f32 %v92, %v541
  %v772 = vadd.f32 %v93, %v544
  %v773 = vadd.f32 %v94, %v549
  %v774 = vadd.f32 %v95, %v552
  %v775 = vadd.f32 %v96, %v557
  %v776 = vadd.f32 %v97, %v560
  %v777 = vadd.f32 %v98, %v565
  %v778 = vadd.f32 %v99, %v568
  %v779 = vadd.f32 %v100, %v573
  %v780 = vadd.f32 %v101, %v576
  %v781 = vadd.f32 %v102, %v581
  %v782 = vadd.f32 %v103, %v584
  %v783 = vadd.f32 %v104, %v589
  %v784 = vadd.f32 %v105, %v592
  %v785 = vadd.f32 %v106, %v597
  %v786 = vadd.f32 %v107, %v600
  %v787 = vadd.f32 %v108, %v605
  %v788 = vadd.f32 %v109, %v608
  %v789 = vadd.f32 %v110, %v613
  %v790 = vadd.f32 %v111, %v616
  %v791 = vadd.f32 %v112, %v621
  %v792 = vadd.f32 %v113, %v624
  %v793 = vadd.f32 %v114, %v629
  %v794 = vadd.f32 %v115, %v632
  %v795 = vadd.f32 %v116, %v637
  %v796 = vadd.f32 %v117, %v640
  %v797 = vadd.f32 %v118, %v645
  %v798 = vadd.f32 %v119, %v648
  %v799 = vadd.f32 %v120, %v653
  %v800 = vadd.f32 %v121, %v656
  %v801 = vadd.f32 %v122, %v661
  %v802 = vadd.f32 %v123, %v664
  %v803 = vadd.f32 %v124, %v669
  %v804 = vadd.f32 %v125, %v672
  %v805 = vadd.f32 %v126, %v677
  %v806 = vadd.f32 %v127, %v680
  %v807 = vadd.f32 %v128, %v685
  %v808 = vadd.f32 %v129, %v688
  %v809 = vadd.f32 %v130, %v693
  %v810 = vadd.f32 %v131, %v696
  %v811 = vadd.f32 %v132, %v701
  %v812 = vadd.f32 %v133, %v704
  %v813 = vadd.f32 %v134, %v709
  %v814 = vadd.f32 %v135, %v712
  %v815 = vadd.f32 %v136, %v717
  %v816 = vadd.f32 %v137, %v720
  %v817 = vadd.f32 %v138, %v725
  %v818 = vadd.f32 %v139, %v728
  %v819 = vadd.f32 %v140, %v733
  %v820 = vadd.f32 %v141, %v736
  %v821 = vadd.f32 %v142, %v741
  %v822 = vadd.f32 %v143, %v744
  %v823 = vadd.f32 %v144, %v749
  %v824 = vadd.f32 %v145, %v752
  %v825 = vadd.f32 %v146, %v757
  %v826 = vadd.f32 %v147, %v760
  %vm827 = vcmask 130048
  %828 = vst.msk [vmem:[#allocation2] sm:$0xff] %vm827, %v763
  %829 = vst.msk [vmem:[#allocation2 + $0x8] sm:$0xff] %vm827, %v764
  %830 = vst.msk [vmem:[#allocation2 + $0x10] sm:$0xff] %vm827, %v765
  %831 = vst.msk [vmem:[#allocation2 + $0x18] sm:$0xff] %vm827, %v766
  %832 = vst.msk [vmem:[#allocation2 + $0x20] sm:$0xff] %vm827, %v767
  %833 = vst.msk [vmem:[#allocation2 + $0x28] sm:$0xff] %vm827, %v768
  %834 = vst.msk [vmem:[#allocation2 + $0x30] sm:$0xff] %vm827, %v769
  %835 = vst.msk [vmem:[#allocation2 + $0x38] sm:$0xff] %vm827, %v770
  %836 = vst.msk [vmem:[#allocation2 + $0x40] sm:$0xff] %vm827, %v771
  %837 = vst.msk [vmem:[#allocation2 + $0x48] sm:$0xff] %vm827, %v772
  %838 = vst.msk [vmem:[#allocation2 + $0x50] sm:$0xff] %vm827, %v773
  %839 = vst.msk [vmem:[#allocation2 + $0x58] sm:$0xff] %vm827, %v774
  %840 = vst.msk [vmem:[#allocation2 + $0x60] sm:$0xff] %vm827, %v775
  %841 = vst.msk [vmem:[#allocation2 + $0x68] sm:$0xff] %vm827, %v776
  %842 = vst.msk [vmem:[#allocation2 + $0x70] sm:$0xff] %vm827, %v777
  %843 = vst.msk [vmem:[#allocation2 + $0x78] sm:$0xff] %vm827, %v778
  %844 = vst.msk [vmem:[#allocation2 + $0x80] sm:$0xff] %vm827, %v779
  %845 = vst.msk [vmem:[#allocation2 + $0x88] sm:$0xff] %vm827, %v780
  %846 = vst.msk [vmem:[#allocation2 + $0x90] sm:$0xff] %vm827, %v781
  %847 = vst.msk [vmem:[#allocation2 + $0x98] sm:$0xff] %vm827, %v782
  %848 = vst.msk [vmem:[#allocation2 + $0xa0] sm:$0xff] %vm827, %v783
  %849 = vst.msk [vmem:[#allocation2 + $0xa8] sm:$0xff] %vm827, %v784
  %850 = vst.msk [vmem:[#allocation2 + $0xb0] sm:$0xff] %vm827, %v785
  %851 = vst.msk [vmem:[#allocation2 + $0xb8] sm:$0xff] %vm827, %v786
  %852 = vst.msk [vmem:[#allocation2 + $0xc0] sm:$0xff] %vm827, %v787
  %853 = vst.msk [vmem:[#allocation2 + $0xc8] sm:$0xff] %vm827, %v788
  %854 = vst.msk [vmem:[#allocation2 + $0xd0] sm:$0xff] %vm827, %v789
  %855 = vst.msk [vmem:[#allocation2 + $0xd8] sm:$0xff] %vm827, %v790
  %856 = vst.msk [vmem:[#allocation2 + $0xe0] sm:$0xff] %vm827, %v791
  %857 = vst.msk [vmem:[#allocation2 + $0xe8] sm:$0xff] %vm827, %v792
  %858 = vst.msk [vmem:[#allocation2 + $0xf0] sm:$0xff] %vm827, %v793
  %859 = vst.msk [vmem:[#allocation2 + $0xf8] sm:$0xff] %vm827, %v794
  %860 = vst.msk [vmem:[#allocation2 + $0x100] sm:$0xff] %vm827, %v795
  %861 = vst.msk [vmem:[#allocation2 + $0x108] sm:$0xff] %vm827, %v796
  %862 = vst.msk [vmem:[#allocation2 + $0x110] sm:$0xff] %vm827, %v797
  %863 = vst.msk [vmem:[#allocation2 + $0x118] sm:$0xff] %vm827, %v798
  %864 = vst.msk [vmem:[#allocation2 + $0x120] sm:$0xff] %vm827, %v799
  %865 = vst.msk [vmem:[#allocation2 + $0x128] sm:$0xff] %vm827, %v800
  %866 = vst.msk [vmem:[#allocation2 + $0x130] sm:$0xff] %vm827, %v801
  %867 = vst.msk [vmem:[#allocation2 + $0x138] sm:$0xff] %vm827, %v802
  %868 = vst.msk [vmem:[#allocation2 + $0x140] sm:$0xff] %vm827, %v803
  %869 = vst.msk [vmem:[#allocation2 + $0x148] sm:$0xff] %vm827, %v804
  %870 = vst.msk [vmem:[#allocation2 + $0x150] sm:$0xff] %vm827, %v805
  %871 = vst.msk [vmem:[#allocation2 + $0x158] sm:$0xff] %vm827, %v806
  %872 = vst.msk [vmem:[#allocation2 + $0x160] sm:$0xff] %vm827, %v807
  %873 = vst.msk [vmem:[#allocation2 + $0x168] sm:$0xff] %vm827, %v808
  %874 = vst.msk [vmem:[#allocation2 + $0x170] sm:$0xff] %vm827, %v809
  %875 = vst.msk [vmem:[#allocation2 + $0x178] sm:$0xff] %vm827, %v810
  %876 = vst.msk [vmem:[#allocation2 + $0x180] sm:$0xff] %vm827, %v811
  %877 = vst.msk [vmem:[#allocation2 + $0x188] sm:$0xff] %vm827, %v812
  %878 = vst.msk [vmem:[#allocation2 + $0x190] sm:$0xff] %vm827, %v813
  %879 = vst.msk [vmem:[#allocation2 + $0x198] sm:$0xff] %vm827, %v814
  %880 = vst.msk [vmem:[#allocation2 + $0x1a0] sm:$0xff] %vm827, %v815
  %881 = vst.msk [vmem:[#allocation2 + $0x1a8] sm:$0xff] %vm827, %v816
  %882 = vst.msk [vmem:[#allocation2 + $0x1b0] sm:$0xff] %vm827, %v817
  %883 = vst.msk [vmem:[#allocation2 + $0x1b8] sm:$0xff] %vm827, %v818
  %884 = vst.msk [vmem:[#allocation2 + $0x1c0] sm:$0xff] %vm827, %v819
  %885 = vst.msk [vmem:[#allocation2 + $0x1c8] sm:$0xff] %vm827, %v820
  %886 = vst.msk [vmem:[#allocation2 + $0x1d0] sm:$0xff] %vm827, %v821
  %887 = vst.msk [vmem:[#allocation2 + $0x1d8] sm:$0xff] %vm827, %v822
  %888 = vst.msk [vmem:[#allocation2 + $0x1e0] sm:$0xff] %vm827, %v823
  %889 = vst.msk [vmem:[#allocation2 + $0x1e8] sm:$0xff] %vm827, %v824
  %890 = vst.msk [vmem:[#allocation2 + $0x1f0] sm:$0xff] %vm827, %v825
  %891 = vst.msk [vmem:[#allocation2 + $0x1f8] sm:$0xff] %vm827, %v826
  // Predicated region
  $region18: #{joint_model_apply.44} parent=0 // pred_check
    %p892 = pneg %p15
  $region19: #{joint_model_apply.44} parent=0 // pred_check_branch
    %894 = sbr.rel (%p892) target = $region21
  $region20: #{joint_model_apply.44} parent=0 // pred_region
    %v895 = vld [vmem:[#allocation2] sm:$0xff]
    %v896 = vld [vmem:[#allocation2 + $0x8] sm:$0xff]
    %v897 = vld [vmem:[#allocation2 + $0x10] sm:$0xff]
    %v898 = vld [vmem:[#allocation2 + $0x18] sm:$0xff]
    %v899 = vld [vmem:[#allocation2 + $0x20] sm:$0xff]
    %v900 = vld [vmem:[#allocation2 + $0x28] sm:$0xff]
    %v901 = vld [vmem:[#allocation2 + $0x30] sm:$0xff]
    %v902 = vld [vmem:[#allocation2 + $0x38] sm:$0xff]
    %v903 = vld [vmem:[#allocation2 + $0x40] sm:$0xff]
    %v904 = vld [vmem:[#allocation2 + $0x48] sm:$0xff]
    %v905 = vld [vmem:[#allocation2 + $0x50] sm:$0xff]
    %v906 = vld [vmem:[#allocation2 + $0x58] sm:$0xff]
    %v907 = vld [vmem:[#allocation2 + $0x60] sm:$0xff]
    %v908 = vld [vmem:[#allocation2 + $0x68] sm:$0xff]
    %v909 = vld [vmem:[#allocation2 + $0x70] sm:$0xff]
    %v910 = vld [vmem:[#allocation2 + $0x78] sm:$0xff]
    %v911 = vld [vmem:[#allocation2 + $0x80] sm:$0xff]
    %v912 = vld [vmem:[#allocation2 + $0x88] sm:$0xff]
    %v913 = vld [vmem:[#allocation2 + $0x90] sm:$0xff]
    %v914 = vld [vmem:[#allocation2 + $0x98] sm:$0xff]
    %v915 = vld [vmem:[#allocation2 + $0xa0] sm:$0xff]
    %v916 = vld [vmem:[#allocation2 + $0xa8] sm:$0xff]
    %v917 = vld [vmem:[#allocation2 + $0xb0] sm:$0xff]
    %v918 = vld [vmem:[#allocation2 + $0xb8] sm:$0xff]
    %v919 = vld [vmem:[#allocation2 + $0xc0] sm:$0xff]
    %v920 = vld [vmem:[#allocation2 + $0xc8] sm:$0xff]
    %v921 = vld [vmem:[#allocation2 + $0xd0] sm:$0xff]
    %v922 = vld [vmem:[#allocation2 + $0xd8] sm:$0xff]
    %v923 = vld [vmem:[#allocation2 + $0xe0] sm:$0xff]
    %v924 = vld [vmem:[#allocation2 + $0xe8] sm:$0xff]
    %v925 = vld [vmem:[#allocation2 + $0xf0] sm:$0xff]
    %v926 = vld [vmem:[#allocation2 + $0xf8] sm:$0xff]
    %v927 = vld [vmem:[#allocation2 + $0x100] sm:$0xff]
    %v928 = vld [vmem:[#allocation2 + $0x108] sm:$0xff]
    %v929 = vld [vmem:[#allocation2 + $0x110] sm:$0xff]
    %v930 = vld [vmem:[#allocation2 + $0x118] sm:$0xff]
    %v931 = vld [vmem:[#allocation2 + $0x120] sm:$0xff]
    %v932 = vld [vmem:[#allocation2 + $0x128] sm:$0xff]
    %v933 = vld [vmem:[#allocation2 + $0x130] sm:$0xff]
    %v934 = vld [vmem:[#allocation2 + $0x138] sm:$0xff]
    %v935 = vld [vmem:[#allocation2 + $0x140] sm:$0xff]
    %v936 = vld [vmem:[#allocation2 + $0x148] sm:$0xff]
    %v937 = vld [vmem:[#allocation2 + $0x150] sm:$0xff]
    %v938 = vld [vmem:[#allocation2 + $0x158] sm:$0xff]
    %v939 = vld [vmem:[#allocation2 + $0x160] sm:$0xff]
    %v940 = vld [vmem:[#allocation2 + $0x168] sm:$0xff]
    %v941 = vld [vmem:[#allocation2 + $0x170] sm:$0xff]
    %v942 = vld [vmem:[#allocation2 + $0x178] sm:$0xff]
    %v943 = vld [vmem:[#allocation2 + $0x180] sm:$0xff]
    %v944 = vld [vmem:[#allocation2 + $0x188] sm:$0xff]
    %v945 = vld [vmem:[#allocation2 + $0x190] sm:$0xff]
    %v946 = vld [vmem:[#allocation2 + $0x198] sm:$0xff]
    %v947 = vld [vmem:[#allocation2 + $0x1a0] sm:$0xff]
    %v948 = vld [vmem:[#allocation2 + $0x1a8] sm:$0xff]
    %v949 = vld [vmem:[#allocation2 + $0x1b0] sm:$0xff]
    %v950 = vld [vmem:[#allocation2 + $0x1b8] sm:$0xff]
    %v951 = vld [vmem:[#allocation2 + $0x1c0] sm:$0xff]
    %v952 = vld [vmem:[#allocation2 + $0x1c8] sm:$0xff]
    %v953 = vld [vmem:[#allocation2 + $0x1d0] sm:$0xff]
    %v954 = vld [vmem:[#allocation2 + $0x1d8] sm:$0xff]
    %v955 = vld [vmem:[#allocation2 + $0x1e0] sm:$0xff]
    %v956 = vld [vmem:[#allocation2 + $0x1e8] sm:$0xff]
    %v957 = vld [vmem:[#allocation2 + $0x1f0] sm:$0xff]
    %v958 = vld [vmem:[#allocation2 + $0x1f8] sm:$0xff]
    %v959 = vld [vmem:[%s2] sm:$0x1]
    %v961 = vlaneseq
    %v962 = vshrl.u32 %v961, 7
    %v963 = vsub.s32 0, %v962
    %v964 = vrot.slane %v959, %v963
    %v966 = vadd.f32 %v895, %v964
    %v967 = vadd.f32 %v896, %v964
    %v968 = vadd.f32 %v897, %v964
    %v969 = vadd.f32 %v898, %v964
    %v970 = vadd.f32 %v899, %v964
    %v971 = vadd.f32 %v900, %v964
    %v972 = vadd.f32 %v901, %v964
    %v973 = vadd.f32 %v902, %v964
    %v974 = vadd.f32 %v903, %v964
    %v975 = vadd.f32 %v904, %v964
    %v976 = vadd.f32 %v905, %v964
    %v977 = vadd.f32 %v906, %v964
    %v978 = vadd.f32 %v907, %v964
    %v979 = vadd.f32 %v908, %v964
    %v980 = vadd.f32 %v909, %v964
    %v981 = vadd.f32 %v910, %v964
    %v982 = vadd.f32 %v911, %v964
    %v983 = vadd.f32 %v912, %v964
    %v984 = vadd.f32 %v913, %v964
    %v985 = vadd.f32 %v914, %v964
    %v986 = vadd.f32 %v915, %v964
    %v987 = vadd.f32 %v916, %v964
    %v988 = vadd.f32 %v917, %v964
    %v989 = vadd.f32 %v918, %v964
    %v990 = vadd.f32 %v919, %v964
    %v991 = vadd.f32 %v920, %v964
    %v992 = vadd.f32 %v921, %v964
    %v993 = vadd.f32 %v922, %v964
    %v994 = vadd.f32 %v923, %v964
    %v995 = vadd.f32 %v924, %v964
    %v996 = vadd.f32 %v925, %v964
    %v997 = vadd.f32 %v926, %v964
    %v998 = vadd.f32 %v927, %v964
    %v999 = vadd.f32 %v928, %v964
    %v1000 = vadd.f32 %v929, %v964
    %v1001 = vadd.f32 %v930, %v964
    %v1002 = vadd.f32 %v931, %v964
    %v1003 = vadd.f32 %v932, %v964
    %v1004 = vadd.f32 %v933, %v964
    %v1005 = vadd.f32 %v934, %v964
    %v1006 = vadd.f32 %v935, %v964
    %v1007 = vadd.f32 %v936, %v964
    %v1008 = vadd.f32 %v937, %v964
    %v1009 = vadd.f32 %v938, %v964
    %v1010 = vadd.f32 %v939, %v964
    %v1011 = vadd.f32 %v940, %v964
    %v1012 = vadd.f32 %v941, %v964
    %v1013 = vadd.f32 %v942, %v964
    %v1014 = vadd.f32 %v943, %v964
    %v1015 = vadd.f32 %v944, %v964
    %v1016 = vadd.f32 %v945, %v964
    %v1017 = vadd.f32 %v946, %v964
    %v1018 = vadd.f32 %v947, %v964
    %v1019 = vadd.f32 %v948, %v964
    %v1020 = vadd.f32 %v949, %v964
    %v1021 = vadd.f32 %v950, %v964
    %v1022 = vadd.f32 %v951, %v964
    %v1023 = vadd.f32 %v952, %v964
    %v1024 = vadd.f32 %v953, %v964
    %v1025 = vadd.f32 %v954, %v964
    %v1026 = vadd.f32 %v955, %v964
    %v1027 = vadd.f32 %v956, %v964
    %v1028 = vadd.f32 %v957, %v964
    %v1029 = vadd.f32 %v958, %v964
    %1030 = vst.msk [vmem:[%s3] sm:$0xff] %vm827, %v966
    %1031 = vst.msk [vmem:[%s3 + $0x8] sm:$0xff] %vm827, %v967
    %1032 = vst.msk [vmem:[%s3 + $0x10] sm:$0xff] %vm827, %v968
    %1033 = vst.msk [vmem:[%s3 + $0x18] sm:$0xff] %vm827, %v969
    %1034 = vst.msk [vmem:[%s3 + $0x20] sm:$0xff] %vm827, %v970
    %1035 = vst.msk [vmem:[%s3 + $0x28] sm:$0xff] %vm827, %v971
    %1036 = vst.msk [vmem:[%s3 + $0x30] sm:$0xff] %vm827, %v972
    %1037 = vst.msk [vmem:[%s3 + $0x38] sm:$0xff] %vm827, %v973
    %1038 = vst.msk [vmem:[%s3 + $0x40] sm:$0xff] %vm827, %v974
    %1039 = vst.msk [vmem:[%s3 + $0x48] sm:$0xff] %vm827, %v975
    %1040 = vst.msk [vmem:[%s3 + $0x50] sm:$0xff] %vm827, %v976
    %1041 = vst.msk [vmem:[%s3 + $0x58] sm:$0xff] %vm827, %v977
    %1042 = vst.msk [vmem:[%s3 + $0x60] sm:$0xff] %vm827, %v978
    %1043 = vst.msk [vmem:[%s3 + $0x68] sm:$0xff] %vm827, %v979
    %1044 = vst.msk [vmem:[%s3 + $0x70] sm:$0xff] %vm827, %v980
    %1045 = vst.msk [vmem:[%s3 + $0x78] sm:$0xff] %vm827, %v981
    %1046 = vst.msk [vmem:[%s3 + $0x80] sm:$0xff] %vm827, %v982
    %1047 = vst.msk [vmem:[%s3 + $0x88] sm:$0xff] %vm827, %v983
    %1048 = vst.msk [vmem:[%s3 + $0x90] sm:$0xff] %vm827, %v984
    %1049 = vst.msk [vmem:[%s3 + $0x98] sm:$0xff] %vm827, %v985
    %1050 = vst.msk [vmem:[%s3 + $0xa0] sm:$0xff] %vm827, %v986
    %1051 = vst.msk [vmem:[%s3 + $0xa8] sm:$0xff] %vm827, %v987
    %1052 = vst.msk [vmem:[%s3 + $0xb0] sm:$0xff] %vm827, %v988
    %1053 = vst.msk [vmem:[%s3 + $0xb8] sm:$0xff] %vm827, %v989
    %1054 = vst.msk [vmem:[%s3 + $0xc0] sm:$0xff] %vm827, %v990
    %1055 = vst.msk [vmem:[%s3 + $0xc8] sm:$0xff] %vm827, %v991
    %1056 = vst.msk [vmem:[%s3 + $0xd0] sm:$0xff] %vm827, %v992
    %1057 = vst.msk [vmem:[%s3 + $0xd8] sm:$0xff] %vm827, %v993
    %1058 = vst.msk [vmem:[%s3 + $0xe0] sm:$0xff] %vm827, %v994
    %1059 = vst.msk [vmem:[%s3 + $0xe8] sm:$0xff] %vm827, %v995
    %1060 = vst.msk [vmem:[%s3 + $0xf0] sm:$0xff] %vm827, %v996
    %1061 = vst.msk [vmem:[%s3 + $0xf8] sm:$0xff] %vm827, %v997
    %1062 = vst.msk [vmem:[%s3 + $0x100] sm:$0xff] %vm827, %v998
    %1063 = vst.msk [vmem:[%s3 + $0x108] sm:$0xff] %vm827, %v999
    %1064 = vst.msk [vmem:[%s3 + $0x110] sm:$0xff] %vm827, %v1000
    %1065 = vst.msk [vmem:[%s3 + $0x118] sm:$0xff] %vm827, %v1001
    %1066 = vst.msk [vmem:[%s3 + $0x120] sm:$0xff] %vm827, %v1002
    %1067 = vst.msk [vmem:[%s3 + $0x128] sm:$0xff] %vm827, %v1003
    %1068 = vst.msk [vmem:[%s3 + $0x130] sm:$0xff] %vm827, %v1004
    %1069 = vst.msk [vmem:[%s3 + $0x138] sm:$0xff] %vm827, %v1005
    %1070 = vst.msk [vmem:[%s3 + $0x140] sm:$0xff] %vm827, %v1006
    %1071 = vst.msk [vmem:[%s3 + $0x148] sm:$0xff] %vm827, %v1007
    %1072 = vst.msk [vmem:[%s3 + $0x150] sm:$0xff] %vm827, %v1008
    %1073 = vst.msk [vmem:[%s3 + $0x158] sm:$0xff] %vm827, %v1009
    %1074 = vst.msk [vmem:[%s3 + $0x160] sm:$0xff] %vm827, %v1010
    %1075 = vst.msk [vmem:[%s3 + $0x168] sm:$0xff] %vm827, %v1011
    %1076 = vst.msk [vmem:[%s3 + $0x170] sm:$0xff] %vm827, %v1012
    %1077 = vst.msk [vmem:[%s3 + $0x178] sm:$0xff] %vm827, %v1013
    %1078 = vst.msk [vmem:[%s3 + $0x180] sm:$0xff] %vm827, %v1014
    %1079 = vst.msk [vmem:[%s3 + $0x188] sm:$0xff] %vm827, %v1015
    %1080 = vst.msk [vmem:[%s3 + $0x190] sm:$0xff] %vm827, %v1016
    %1081 = vst.msk [vmem:[%s3 + $0x198] sm:$0xff] %vm827, %v1017
    %1082 = vst.msk [vmem:[%s3 + $0x1a0] sm:$0xff] %vm827, %v1018
    %1083 = vst.msk [vmem:[%s3 + $0x1a8] sm:$0xff] %vm827, %v1019
    %1084 = vst.msk [vmem:[%s3 + $0x1b0] sm:$0xff] %vm827, %v1020
    %1085 = vst.msk [vmem:[%s3 + $0x1b8] sm:$0xff] %vm827, %v1021
    %1086 = vst.msk [vmem:[%s3 + $0x1c0] sm:$0xff] %vm827, %v1022
    %1087 = vst.msk [vmem:[%s3 + $0x1c8] sm:$0xff] %vm827, %v1023
    %1088 = vst.msk [vmem:[%s3 + $0x1d0] sm:$0xff] %vm827, %v1024
    %1089 = vst.msk [vmem:[%s3 + $0x1d8] sm:$0xff] %vm827, %v1025
    %1090 = vst.msk [vmem:[%s3 + $0x1e0] sm:$0xff] %vm827, %v1026
    %1091 = vst.msk [vmem:[%s3 + $0x1e8] sm:$0xff] %vm827, %v1027
    %1092 = vst.msk [vmem:[%s3 + $0x1f0] sm:$0xff] %vm827, %v1028
    %1093 = vst.msk [vmem:[%s3 + $0x1f8] sm:$0xff] %vm827, %v1029
  $region21: #{joint_model_apply.44} parent=0 // pred_fallthru
    _
  // Predicated region
  $region22: #{joint_model_apply.44} parent=0 // pred_check
    _
  $region23: #{joint_model_apply.44} parent=0 // pred_check_branch
    %1095 = sbr.rel (0) target = $region25
  $region24: #{joint_model_apply.44} parent=0 // pred_region
    _
  $region25: #{joint_model_apply.44} parent=0 // pred_fallthru
    _
  // Predicated region
  $region26: #{joint_model_apply.44} parent=0 // pred_check
    _
  $region27: #{joint_model_apply.44} parent=0 // pred_check_branch
    %1097 = sbr.rel (0) target = $region29
  $region28: #{joint_model_apply.44} parent=0 // pred_region
    _
  $region29: #{joint_model_apply.44} parent=0 // pred_fallthru
    _

// kernel: joint_model_apply.34
$region0: #{joint_model_apply.34}
  #allocation0 [shape = 'u32[]', space=smem, size = 0x4, offset = 0x4, fixed_abs, tag = 'smem constant byte address 0x4 - core index']
  #allocation1 [shape = 'u32[144,128]{1,0:T(1,128)}', space=vmem, size = 0x12000, scoped, tag = 'internal scratch']
  #allocation2 [shape = 'f32[512,1]{1,0:T(8,128)}', space=vmem, size = 0x40000, scoped, tag = 'scratch operand']
  #allocation3 [shape = 'f32[1,1]{1,0:T(1,128)S(1)}', space=vmem, size = 0x200, scoped, tag = 'scoped memory for joint_model_apply.34']
  %s0 = inlined_call_operand.vmem [shape: bf16[1024,216], index: 0, kind: input, shape index: {}]
  %s1 = inlined_call_operand.vmem [shape: bf16[216,1], index: 1, kind: input, shape index: {}]
  %s2 = inlined_call_operand.<no memory space> [shape: f32[1,1], index: 2, kind: input, shape index: {}]
  %s3 = inlined_call_operand.vmem [shape: f32[1024,1], index: 3, kind: output, shape index: {}]
  %s4 = sld [smem:[#allocation0]]
  $region53: #{joint_model_apply.34} parent=0
    _
  %s6 = ssub.s32 1, %s4
  %s7 = scalar_select 0, %s6, %s4
  %v8 = vstv %s2
  %9 = vst [vmem:[#allocation3] sm:$0x1] %v8
  loop: start=0, step=1, limit=4
  $region2: #{joint_model_apply.34} parent=0 // loop_pre_header
    _
  $region3: #{joint_model_apply.34} parent=0 // loop_header
    %s11 = sphi 0, %s15
    %p12 = scmp.ge.s32.totalorder %s11, 4
    %s18 = sphi 0, %s30
    %s19 = sphi 0, %s26
    %s20 = sphi 0, %s18
    %s21 = sphi 0, %s19
    %s22 = sphi 0, %s20
    %s23 = sphi 0, %s21
    %s35 = sphi 0, %s37
    %s38 = sphi 0, %s35
    %s39 = sphi 0, %s38
    %s55 = sphi 0, %s39
    %s61 = sphi 0, %s63
    %s64 = sphi 0, %s61
    %s65 = sphi 0, %s64
    %s81 = sphi 0, %s65
    %s85 = sphi 0, %s85
    %s87 = sphi 0, %s85
    %s88 = sphi 0, %s87
    %s102 = sphi 0, %s88
    %s108 = sphi 0, %s110
    %s111 = sphi 0, %s108
    %s112 = sphi 0, %s111
    %s128 = sphi 0, %s112
  $region4: #{joint_model_apply.34} parent=0 // loop_header_branch
    %14 = sbr.rel (%p12) target = $region8
  $region5: #{joint_model_apply.34} parent=0 // loop_body
    %s16 = ssub.s32 %s11, 1
    %s17 = ssub.s32 %s11, 2
    %s24 = sadd.s32 1, %s19
    %p25 = scmp.ge.s32.totalorder %s24, 1
    %s26 = scalar_select %p25, 0, %s24
    %s27 = sadd.s32 1, %s18
    %s28 = scalar_select %p25, %s27, %s18
    %p29 = scmp.ge.s32.totalorder %s28, 2
    %s30 = scalar_select %p29, 0, %s28
    %s31 = ssub.s32 %s18, %s30
    %s32 = ssub.s32 %s19, %s26
    %s33 = sor.u32 %s31, %s32
    %p34 = scmp.eq.s32.totalorder %s33, 0
    %s36 = sadd.s32 %s35, 1
    %s37 = scalar_select %p34, %s35, %s36
    %p40 = pneg %p34
    %p41 = scmp.eq.s32.totalorder %s11, 1
    %p42 = por %p40, %p41
    %p43 = scmp.ne.s32.totalorder %s35, %s38
    %p44 = scmp.eq.s32.totalorder %s11, 0
    %p45 = por %p43, %p44
    %p46 = scmp.ne.s32.totalorder %s35, %s38
    %p47 = scmp.eq.s32.totalorder %s16, 1
    %p48 = por %p46, %p47
    %p49 = scmp.ne.s32.totalorder %s38, %s39
    %p50 = scmp.eq.s32.totalorder %s16, 0
    %p51 = por %p49, %p50
    %p52 = scmp.ne.s32.totalorder %s38, %s39
    %p53 = scmp.eq.s32.totalorder %s17, 1
    %p54 = por %p52, %p53
    %p56 = scmp.ne.s32.totalorder %s39, %s55
    %p57 = scmp.eq.s32.totalorder %s17, 0
    %p58 = por %p56, %p57
    %s59 = ssub.s32 %s19, %s26
    %p60 = scmp.eq.s32.totalorder %s59, 0
    %s62 = sadd.s32 %s61, 1
    %s63 = scalar_select %p60, %s61, %s62
    %p66 = pneg %p60
    %p67 = scmp.eq.s32.totalorder %s11, 1
    %p68 = por %p66, %p67
    %p69 = scmp.ne.s32.totalorder %s61, %s64
    %p70 = scmp.eq.s32.totalorder %s11, 0
    %p71 = por %p69, %p70
    %p72 = scmp.ne.s32.totalorder %s61, %s64
    %p73 = scmp.eq.s32.totalorder %s16, 1
    %p74 = por %p72, %p73
    %p75 = scmp.ne.s32.totalorder %s64, %s65
    %p76 = scmp.eq.s32.totalorder %s16, 0
    %p77 = por %p75, %p76
    %p78 = scmp.ne.s32.totalorder %s64, %s65
    %p79 = scmp.eq.s32.totalorder %s17, 1
    %p80 = por %p78, %p79
    %p82 = scmp.ne.s32.totalorder %s65, %s81
    %p83 = scmp.eq.s32.totalorder %s17, 0
    %p84 = por %p82, %p83
    %s86 = sadd.s32 %s85, 1
    %p89 = scmp.eq.s32.totalorder %s11, 1
    %p90 = scmp.ne.s32.totalorder %s85, %s87
    %p91 = scmp.eq.s32.totalorder %s11, 0
    %p92 = por %p90, %p91
    %p93 = scmp.ne.s32.totalorder %s85, %s87
    %p94 = scmp.eq.s32.totalorder %s16, 1
    %p95 = por %p93, %p94
    %p96 = scmp.ne.s32.totalorder %s87, %s88
    %p97 = scmp.eq.s32.totalorder %s16, 0
    %p98 = por %p96, %p97
    %p99 = scmp.ne.s32.totalorder %s87, %s88
    %p100 = scmp.eq.s32.totalorder %s17, 1
    %p101 = por %p99, %p100
    %p103 = scmp.ne.s32.totalorder %s88, %s102
    %p104 = scmp.eq.s32.totalorder %s17, 0
    %p105 = por %p103, %p104
    %s106 = ssub.s32 %s18, %s30
    %p107 = scmp.eq.s32.totalorder %s106, 0
    %s109 = sadd.s32 %s108, 1
    %s110 = scalar_select %p107, %s108, %s109
    %p113 = pneg %p107
    %p114 = scmp.eq.s32.totalorder %s11, 1
    %p115 = por %p113, %p114
    %p116 = scmp.ne.s32.totalorder %s108, %s111
    %p117 = scmp.eq.s32.totalorder %s11, 0
    %p118 = por %p116, %p117
    %p119 = scmp.ne.s32.totalorder %s108, %s111
    %p120 = scmp.eq.s32.totalorder %s16, 1
    %p121 = por %p119, %p120
    %p122 = scmp.ne.s32.totalorder %s111, %s112
    %p123 = scmp.eq.s32.totalorder %s16, 0
    %p124 = por %p122, %p123
    %p125 = scmp.ne.s32.totalorder %s111, %s112
    %p126 = scmp.eq.s32.totalorder %s17, 1
    %p127 = por %p125, %p126
    %p129 = scmp.ne.s32.totalorder %s112, %s128
    %p130 = scmp.eq.s32.totalorder %s17, 0
    %p131 = por %p129, %p130
    %p132 = scmp.le.s32.totalorder 1, %s11
    %p133 = scmp.lt.s32.totalorder %s11, 3
    %p134 = pnand %p132, %p133
    %p135 = pneg %p134
    // Predicated region
    $region9: #{joint_model_apply.34} parent=5 // pred_check
      _
    $region10: #{joint_model_apply.34} parent=5 // pred_check_branch
      %137 = sbr.rel (%p134) target = $region12
    $region11: #{joint_model_apply.34} parent=5 // pred_region
      %s138 = ssub.s32 %s11, 1
      // Predicated region
      $region13: #{joint_model_apply.34} parent=11 // pred_check
        %p139 = pneg %p77
      $region14: #{joint_model_apply.34} parent=11 // pred_check_branch
        %141 = sbr.rel (%p139) target = $region16
      $region15: #{joint_model_apply.34} parent=11 // pred_region
        %s142 = smul.u32 27, %s21
        %p143 = scmp.lt.s32.totalorder %s142, 26
        %s144 = scalar_select %p143, %s142, 26
        %s145 = smul.addr %s144, 4
        %s146 = scalar_lea.vmem %s1, %s145
        %s147 = smul.u32 27, %s21
      $region16: #{joint_model_apply.34} parent=11 // pred_fallthru
        _
      // Predicated region
      $region17: #{joint_model_apply.34} parent=11 // pred_check
        %p148 = pneg %p98
      $region18: #{joint_model_apply.34} parent=11 // pred_check_branch
        %150 = sbr.rel (%p148) target = $region20
      $region19: #{joint_model_apply.34} parent=11 // pred_region
        _
      $region20: #{joint_model_apply.34} parent=11 // pred_fallthru
        _
    $region12: #{joint_model_apply.34} parent=5 // pred_fallthru
      _
    %p151 = scmp.lt.s32.totalorder %s11, 2
    // Predicated region
    $region21: #{joint_model_apply.34} parent=5 // pred_check
      %p152 = pneg %p151
    $region22: #{joint_model_apply.34} parent=5 // pred_check_branch
      %154 = sbr.rel (%p152) target = $region24
    $region23: #{joint_model_apply.34} parent=5 // pred_region
      // Predicated region
      $region25: #{joint_model_apply.34} parent=23 // pred_check
        %p155 = pneg %p45
      $region26: #{joint_model_apply.34} parent=23 // pred_check_branch
        %157 = sbr.rel (%p155) target = $region28
      $region27: #{joint_model_apply.34} parent=23 // pred_region
        %s158 = smul.u32 64, %s18
        %s159 = smul.u32 2, %s19
        %p160 = scmp.lt.s32.totalorder %s158, 127
        %s161 = scalar_select %p160, %s158, 127
        %p162 = scmp.lt.s32.totalorder %s159, 1
        %s163 = scalar_select %p162, %s159, 1
        %s164 = smul.addr %s161, 2
        %s165 = sadd.s32 %s163, %s164
        %s166 = smul.addr %s165, 4
        %s167 = scalar_lea.vmem %s0, %s166
        %s168 = smul.u32 64, %s18
        %s169 = smul.u32 2, %s19
      $region28: #{joint_model_apply.34} parent=23 // pred_fallthru
        _
    $region24: #{joint_model_apply.34} parent=5 // pred_fallthru
      _
    %p170 = scmp.le.s32.totalorder 1, %s11
    %p171 = scmp.lt.s32.totalorder %s11, 3
    %p172 = pnand %p170, %p171
    %p173 = pneg %p172
    // Predicated region
    $region29: #{joint_model_apply.34} parent=5 // pred_check
      _
    $region30: #{joint_model_apply.34} parent=5 // pred_check_branch
      %175 = sbr.rel (%p172) target = $region32
    $region31: #{joint_model_apply.34} parent=5 // pred_region
      %s176 = ssub.s32 %s11, 1
      %s177 = smul.u32 64, %s20
      %s178 = smul.u32 2, %s21
      %p179 = scmp.lt.s32.totalorder %s177, 127
      %s180 = scalar_select %p179, %s177, 127
      %p181 = scmp.lt.s32.totalorder %s178, 1
      %s182 = scalar_select %p181, %s178, 1
      %s183 = smul.addr %s180, 2
      %s184 = sadd.s32 %s182, %s183
      %s185 = smul.addr %s184, 4
      %s186 = scalar_lea.vmem %s0, %s185
      %p187 = pneg %p51
      %p188 = pneg %p48
      %s189 = smul.u32 27, %s21
      %p190 = scmp.lt.s32.totalorder %s189, 26
      %s191 = scalar_select %p190, %s189, 26
      %s192 = smul.addr %s191, 4
      %s193 = scalar_lea.vmem %s1, %s192
      %p194 = pneg %p77
      %p195 = pneg %p74
      %p196 = pneg %p98
      %p197 = pneg %p95
      %p198 = pneg %p124
      %p199 = pneg %p121
      %s200 = smul.u32 64, %s20
      %p201 = scmp.lt.s32.totalorder %s200, 127
      %s202 = scalar_select %p201, %s200, 127
      %s203 = smul.addr %s202, 8
      %s204 = scalar_lea.vmem %s3, %s203
      %s205 = smul.u32 64, %s20
      %s206 = smul.u32 2, %s21
      %p207 = scmp.lt.s32.totalorder %s205, 127
      %s208 = scalar_select %p207, %s205, 127
      %p209 = scmp.lt.s32.totalorder %s206, 1
      %s210 = scalar_select %p209, %s206, 1
      %s211 = smul.addr %s208, 2
      %s212 = sadd.s32 %s210, %s211
      %s213 = smul.addr %s212, 4
      %s214 = scalar_lea.vmem %s0, %s213
      %s215 = smul.u32 64, %s20
      %s216 = smul.u32 2, %s21
      %s217 = smul.u32 27, %s21
      %p218 = scmp.lt.s32.totalorder %s217, 26
      %s219 = scalar_select %p218, %s217, 26
      %s220 = smul.addr %s219, 4
      %s221 = scalar_lea.vmem %s1, %s220
      %s222 = smul.u32 27, %s21
      %s223 = smul.u32 64, %s20
      %p224 = scmp.lt.s32.totalorder %s223, 127
      %s225 = scalar_select %p224, %s223, 127
      %s226 = smul.addr %s225, 8
      %s227 = scalar_lea.vmem %s3, %s226
      %s228 = smul.u32 64, %s20
      %p230 = scmp.eq.s32.totalorder %s21, 0
      // Predicated region
      $region33: #{joint_model_apply.34} parent=31 // pred_check
        %p231 = pneg %p230
      $region34: #{joint_model_apply.34} parent=31 // pred_check_branch
        %233 = sbr.rel (%p231) target = $region36
      $region35: #{joint_model_apply.34} parent=31 // pred_region
        %vm234 = vcmask 7168
        %235 = vst.msk [vmem:[#allocation2] sm:$0xff] %vm234, 0.0
        %236 = vst.msk [vmem:[#allocation2 + $0x8] sm:$0xff] %vm234, 0.0
        %237 = vst.msk [vmem:[#allocation2 + $0x10] sm:$0xff] %vm234, 0.0
        %238 = vst.msk [vmem:[#allocation2 + $0x18] sm:$0xff] %vm234, 0.0
        %239 = vst.msk [vmem:[#allocation2 + $0x20] sm:$0xff] %vm234, 0.0
        %240 = vst.msk [vmem:[#allocation2 + $0x28] sm:$0xff] %vm234, 0.0
        %241 = vst.msk [vmem:[#allocation2 + $0x30] sm:$0xff] %vm234, 0.0
        %242 = vst.msk [vmem:[#allocation2 + $0x38] sm:$0xff] %vm234, 0.0
        %243 = vst.msk [vmem:[#allocation2 + $0x40] sm:$0xff] %vm234, 0.0
        %244 = vst.msk [vmem:[#allocation2 + $0x48] sm:$0xff] %vm234, 0.0
        %245 = vst.msk [vmem:[#allocation2 + $0x50] sm:$0xff] %vm234, 0.0
        %246 = vst.msk [vmem:[#allocation2 + $0x58] sm:$0xff] %vm234, 0.0
        %247 = vst.msk [vmem:[#allocation2 + $0x60] sm:$0xff] %vm234, 0.0
        %248 = vst.msk [vmem:[#allocation2 + $0x68] sm:$0xff] %vm234, 0.0
        %249 = vst.msk [vmem:[#allocation2 + $0x70] sm:$0xff] %vm234, 0.0
        %250 = vst.msk [vmem:[#allocation2 + $0x78] sm:$0xff] %vm234, 0.0
        %251 = vst.msk [vmem:[#allocation2 + $0x80] sm:$0xff] %vm234, 0.0
        %252 = vst.msk [vmem:[#allocation2 + $0x88] sm:$0xff] %vm234, 0.0
        %253 = vst.msk [vmem:[#allocation2 + $0x90] sm:$0xff] %vm234, 0.0
        %254 = vst.msk [vmem:[#allocation2 + $0x98] sm:$0xff] %vm234, 0.0
        %255 = vst.msk [vmem:[#allocation2 + $0xa0] sm:$0xff] %vm234, 0.0
        %256 = vst.msk [vmem:[#allocation2 + $0xa8] sm:$0xff] %vm234, 0.0
        %257 = vst.msk [vmem:[#allocation2 + $0xb0] sm:$0xff] %vm234, 0.0
        %258 = vst.msk [vmem:[#allocation2 + $0xb8] sm:$0xff] %vm234, 0.0
        %259 = vst.msk [vmem:[#allocation2 + $0xc0] sm:$0xff] %vm234, 0.0
        %260 = vst.msk [vmem:[#allocation2 + $0xc8] sm:$0xff] %vm234, 0.0
        %261 = vst.msk [vmem:[#allocation2 + $0xd0] sm:$0xff] %vm234, 0.0
        %262 = vst.msk [vmem:[#allocation2 + $0xd8] sm:$0xff] %vm234, 0.0
        %263 = vst.msk [vmem:[#allocation2 + $0xe0] sm:$0xff] %vm234, 0.0
        %264 = vst.msk [vmem:[#allocation2 + $0xe8] sm:$0xff] %vm234, 0.0
        %265 = vst.msk [vmem:[#allocation2 + $0xf0] sm:$0xff] %vm234, 0.0
        %266 = vst.msk [vmem:[#allocation2 + $0xf8] sm:$0xff] %vm234, 0.0
        %267 = vst.msk [vmem:[#allocation2 + $0x100] sm:$0xff] %vm234, 0.0
        %268 = vst.msk [vmem:[#allocation2 + $0x108] sm:$0xff] %vm234, 0.0
        %269 = vst.msk [vmem:[#allocation2 + $0x110] sm:$0xff] %vm234, 0.0
        %270 = vst.msk [vmem:[#allocation2 + $0x118] sm:$0xff] %vm234, 0.0
        %271 = vst.msk [vmem:[#allocation2 + $0x120] sm:$0xff] %vm234, 0.0
        %272 = vst.msk [vmem:[#allocation2 + $0x128] sm:$0xff] %vm234, 0.0
        %273 = vst.msk [vmem:[#allocation2 + $0x130] sm:$0xff] %vm234, 0.0
        %274 = vst.msk [vmem:[#allocation2 + $0x138] sm:$0xff] %vm234, 0.0
        %275 = vst.msk [vmem:[#allocation2 + $0x140] sm:$0xff] %vm234, 0.0
        %276 = vst.msk [vmem:[#allocation2 + $0x148] sm:$0xff] %vm234, 0.0
        %277 = vst.msk [vmem:[#allocation2 + $0x150] sm:$0xff] %vm234, 0.0
        %278 = vst.msk [vmem:[#allocation2 + $0x158] sm:$0xff] %vm234, 0.0
        %279 = vst.msk [vmem:[#allocation2 + $0x160] sm:$0xff] %vm234, 0.0
        %280 = vst.msk [vmem:[#allocation2 + $0x168] sm:$0xff] %vm234, 0.0
        %281 = vst.msk [vmem:[#allocation2 + $0x170] sm:$0xff] %vm234, 0.0
        %282 = vst.msk [vmem:[#allocation2 + $0x178] sm:$0xff] %vm234, 0.0
        %283 = vst.msk [vmem:[#allocation2 + $0x180] sm:$0xff] %vm234, 0.0
        %284 = vst.msk [vmem:[#allocation2 + $0x188] sm:$0xff] %vm234, 0.0
        %285 = vst.msk [vmem:[#allocation2 + $0x190] sm:$0xff] %vm234, 0.0
        %286 = vst.msk [vmem:[#allocation2 + $0x198] sm:$0xff] %vm234, 0.0
        %287 = vst.msk [vmem:[#allocation2 + $0x1a0] sm:$0xff] %vm234, 0.0
        %288 = vst.msk [vmem:[#allocation2 + $0x1a8] sm:$0xff] %vm234, 0.0
        %289 = vst.msk [vmem:[#allocation2 + $0x1b0] sm:$0xff] %vm234, 0.0
        %290 = vst.msk [vmem:[#allocation2 + $0x1b8] sm:$0xff] %vm234, 0.0
        %291 = vst.msk [vmem:[#allocation2 + $0x1c0] sm:$0xff] %vm234, 0.0
        %292 = vst.msk [vmem:[#allocation2 + $0x1c8] sm:$0xff] %vm234, 0.0
        %293 = vst.msk [vmem:[#allocation2 + $0x1d0] sm:$0xff] %vm234, 0.0
        %294 = vst.msk [vmem:[#allocation2 + $0x1d8] sm:$0xff] %vm234, 0.0
        %295 = vst.msk [vmem:[#allocation2 + $0x1e0] sm:$0xff] %vm234, 0.0
        %296 = vst.msk [vmem:[#allocation2 + $0x1e8] sm:$0xff] %vm234, 0.0
        %297 = vst.msk [vmem:[#allocation2 + $0x1f0] sm:$0xff] %vm234, 0.0
        %298 = vst.msk [vmem:[#allocation2 + $0x1f8] sm:$0xff] %vm234, 0.0
      $region36: #{joint_model_apply.34} parent=31 // pred_fallthru
        _
      %v299 = vld [vmem:[#allocation2] sm:$0xff]
      %v300 = vld [vmem:[#allocation2 + $0x8] sm:$0xff]
      %v301 = vld [vmem:[#allocation2 + $0x10] sm:$0xff]
      %v302 = vld [vmem:[#allocation2 + $0x18] sm:$0xff]
      %v303 = vld [vmem:[#allocation2 + $0x20] sm:$0xff]
      %v304 = vld [vmem:[#allocation2 + $0x28] sm:$0xff]
      %v305 = vld [vmem:[#allocation2 + $0x30] sm:$0xff]
      %v306 = vld [vmem:[#allocation2 + $0x38] sm:$0xff]
      %v307 = vld [vmem:[#allocation2 + $0x40] sm:$0xff]
      %v308 = vld [vmem:[#allocation2 + $0x48] sm:$0xff]
      %v309 = vld [vmem:[#allocation2 + $0x50] sm:$0xff]
      %v310 = vld [vmem:[#allocation2 + $0x58] sm:$0xff]
      %v311 = vld [vmem:[#allocation2 + $0x60] sm:$0xff]
      %v312 = vld [vmem:[#allocation2 + $0x68] sm:$0xff]
      %v313 = vld [vmem:[#allocation2 + $0x70] sm:$0xff]
      %v314 = vld [vmem:[#allocation2 + $0x78] sm:$0xff]
      %v315 = vld [vmem:[#allocation2 + $0x80] sm:$0xff]
      %v316 = vld [vmem:[#allocation2 + $0x88] sm:$0xff]
      %v317 = vld [vmem:[#allocation2 + $0x90] sm:$0xff]
      %v318 = vld [vmem:[#allocation2 + $0x98] sm:$0xff]
      %v319 = vld [vmem:[#allocation2 + $0xa0] sm:$0xff]
      %v320 = vld [vmem:[#allocation2 + $0xa8] sm:$0xff]
      %v321 = vld [vmem:[#allocation2 + $0xb0] sm:$0xff]
      %v322 = vld [vmem:[#allocation2 + $0xb8] sm:$0xff]
      %v323 = vld [vmem:[#allocation2 + $0xc0] sm:$0xff]
      %v324 = vld [vmem:[#allocation2 + $0xc8] sm:$0xff]
      %v325 = vld [vmem:[#allocation2 + $0xd0] sm:$0xff]
      %v326 = vld [vmem:[#allocation2 + $0xd8] sm:$0xff]
      %v327 = vld [vmem:[#allocation2 + $0xe0] sm:$0xff]
      %v328 = vld [vmem:[#allocation2 + $0xe8] sm:$0xff]
      %v329 = vld [vmem:[#allocation2 + $0xf0] sm:$0xff]
      %v330 = vld [vmem:[#allocation2 + $0xf8] sm:$0xff]
      %v331 = vld [vmem:[#allocation2 + $0x100] sm:$0xff]
      %v332 = vld [vmem:[#allocation2 + $0x108] sm:$0xff]
      %v333 = vld [vmem:[#allocation2 + $0x110] sm:$0xff]
      %v334 = vld [vmem:[#allocation2 + $0x118] sm:$0xff]
      %v335 = vld [vmem:[#allocation2 + $0x120] sm:$0xff]
      %v336 = vld [vmem:[#allocation2 + $0x128] sm:$0xff]
      %v337 = vld [vmem:[#allocation2 + $0x130] sm:$0xff]
      %v338 = vld [vmem:[#allocation2 + $0x138] sm:$0xff]
      %v339 = vld [vmem:[#allocation2 + $0x140] sm:$0xff]
      %v340 = vld [vmem:[#allocation2 + $0x148] sm:$0xff]
      %v341 = vld [vmem:[#allocation2 + $0x150] sm:$0xff]
      %v342 = vld [vmem:[#allocation2 + $0x158] sm:$0xff]
      %v343 = vld [vmem:[#allocation2 + $0x160] sm:$0xff]
      %v344 = vld [vmem:[#allocation2 + $0x168] sm:$0xff]
      %v345 = vld [vmem:[#allocation2 + $0x170] sm:$0xff]
      %v346 = vld [vmem:[#allocation2 + $0x178] sm:$0xff]
      %v347 = vld [vmem:[#allocation2 + $0x180] sm:$0xff]
      %v348 = vld [vmem:[#allocation2 + $0x188] sm:$0xff]
      %v349 = vld [vmem:[#allocation2 + $0x190] sm:$0xff]
      %v350 = vld [vmem:[#allocation2 + $0x198] sm:$0xff]
      %v351 = vld [vmem:[#allocation2 + $0x1a0] sm:$0xff]
      %v352 = vld [vmem:[#allocation2 + $0x1a8] sm:$0xff]
      %v353 = vld [vmem:[#allocation2 + $0x1b0] sm:$0xff]
      %v354 = vld [vmem:[#allocation2 + $0x1b8] sm:$0xff]
      %v355 = vld [vmem:[#allocation2 + $0x1c0] sm:$0xff]
      %v356 = vld [vmem:[#allocation2 + $0x1c8] sm:$0xff]
      %v357 = vld [vmem:[#allocation2 + $0x1d0] sm:$0xff]
      %v358 = vld [vmem:[#allocation2 + $0x1d8] sm:$0xff]
      %v359 = vld [vmem:[#allocation2 + $0x1e0] sm:$0xff]
      %v360 = vld [vmem:[#allocation2 + $0x1e8] sm:$0xff]
      %v361 = vld [vmem:[#allocation2 + $0x1f0] sm:$0xff]
      %v362 = vld [vmem:[#allocation2 + $0x1f8] sm:$0xff]
      %v363 = vld [vmem:[%s214] sm:$0xff]
      %v364 = vld [vmem:[%s214 + $0x8] sm:$0xff]
      %v365 = vld [vmem:[%s214 + $0x10] sm:$0xff]
      %v366 = vld [vmem:[%s214 + $0x18] sm:$0xff]
      %v367 = vld [vmem:[%s214 + $0x20] sm:$0xff]
      %v368 = vld [vmem:[%s214 + $0x28] sm:$0xff]
      %v369 = vld [vmem:[%s214 + $0x30] sm:$0xff]
      %v370 = vld [vmem:[%s214 + $0x38] sm:$0xff]
      %v371 = vld [vmem:[%s214 + $0x40] sm:$0xff]
      %v372 = vld [vmem:[%s214 + $0x48] sm:$0xff]
      %v373 = vld [vmem:[%s214 + $0x50] sm:$0xff]
      %v374 = vld [vmem:[%s214 + $0x58] sm:$0xff]
      %v375 = vld [vmem:[%s214 + $0x60] sm:$0xff]
      %v376 = vld [vmem:[%s214 + $0x68] sm:$0xff]
      %v377 = vld [vmem:[%s214 + $0x70] sm:$0xff]
      %v378 = vld [vmem:[%s214 + $0x78] sm:$0xff]
      %v379 = vld [vmem:[%s214 + $0x80] sm:$0xff]
      %v380 = vld [vmem:[%s214 + $0x88] sm:$0xff]
      %v381 = vld [vmem:[%s214 + $0x90] sm:$0xff]
      %v382 = vld [vmem:[%s214 + $0x98] sm:$0xff]
      %v383 = vld [vmem:[%s214 + $0xa0] sm:$0xff]
      %v384 = vld [vmem:[%s214 + $0xa8] sm:$0xff]
      %v385 = vld [vmem:[%s214 + $0xb0] sm:$0xff]
      %v386 = vld [vmem:[%s214 + $0xb8] sm:$0xff]
      %v387 = vld [vmem:[%s214 + $0xc0] sm:$0xff]
      %v388 = vld [vmem:[%s214 + $0xc8] sm:$0xff]
      %v389 = vld [vmem:[%s214 + $0xd0] sm:$0xff]
      %v390 = vld [vmem:[%s214 + $0xd8] sm:$0xff]
      %v391 = vld [vmem:[%s214 + $0xe0] sm:$0xff]
      %v392 = vld [vmem:[%s214 + $0xe8] sm:$0xff]
      %v393 = vld [vmem:[%s214 + $0xf0] sm:$0xff]
      %v394 = vld [vmem:[%s214 + $0xf8] sm:$0xff]
      %v395 = vld [vmem:[%s214 + $0x100] sm:$0xff]
      %v396 = vld [vmem:[%s214 + $0x108] sm:$0xff]
      %v397 = vld [vmem:[%s214 + $0x110] sm:$0xff]
      %v398 = vld [vmem:[%s214 + $0x118] sm:$0xff]
      %v399 = vld [vmem:[%s214 + $0x120] sm:$0xff]
      %v400 = vld [vmem:[%s214 + $0x128] sm:$0xff]
      %v401 = vld [vmem:[%s214 + $0x130] sm:$0xff]
      %v402 = vld [vmem:[%s214 + $0x138] sm:$0xff]
      %v403 = vld [vmem:[%s214 + $0x140] sm:$0xff]
      %v404 = vld [vmem:[%s214 + $0x148] sm:$0xff]
      %v405 = vld [vmem:[%s214 + $0x150] sm:$0xff]
      %v406 = vld [vmem:[%s214 + $0x158] sm:$0xff]
      %v407 = vld [vmem:[%s214 + $0x160] sm:$0xff]
      %v408 = vld [vmem:[%s214 + $0x168] sm:$0xff]
      %v409 = vld [vmem:[%s214 + $0x170] sm:$0xff]
      %v410 = vld [vmem:[%s214 + $0x178] sm:$0xff]
      %v411 = vld [vmem:[%s214 + $0x180] sm:$0xff]
      %v412 = vld [vmem:[%s214 + $0x188] sm:$0xff]
      %v413 = vld [vmem:[%s214 + $0x190] sm:$0xff]
      %v414 = vld [vmem:[%s214 + $0x198] sm:$0xff]
      %v415 = vld [vmem:[%s214 + $0x1a0] sm:$0xff]
      %v416 = vld [vmem:[%s214 + $0x1a8] sm:$0xff]
      %v417 = vld [vmem:[%s214 + $0x1b0] sm:$0xff]
      %v418 = vld [vmem:[%s214 + $0x1b8] sm:$0xff]
      %v419 = vld [vmem:[%s214 + $0x1c0] sm:$0xff]
      %v420 = vld [vmem:[%s214 + $0x1c8] sm:$0xff]
      %v421 = vld [vmem:[%s214 + $0x1d0] sm:$0xff]
      %v422 = vld [vmem:[%s214 + $0x1d8] sm:$0xff]
      %v423 = vld [vmem:[%s214 + $0x1e0] sm:$0xff]
      %v424 = vld [vmem:[%s214 + $0x1e8] sm:$0xff]
      %v425 = vld [vmem:[%s214 + $0x1f0] sm:$0xff]
      %v426 = vld [vmem:[%s214 + $0x1f8] sm:$0xff]
      %v427 = vld [vmem:[%s221] sm:$0xf]
      %v428 = vld [vmem:[%s221 + $0x4] sm:$0xf]
      %v429 = vld [vmem:[%s221 + $0x8] sm:$0xf]
      %v430 = vld [vmem:[%s221 + $0xc] sm:$0xf]
      %v431 = vld [vmem:[%s221 + $0x10] sm:$0xf]
      %v432 = vld [vmem:[%s221 + $0x14] sm:$0xf]
      %v433 = vld [vmem:[%s221 + $0x18] sm:$0xf]
      %v434 = vld [vmem:[%s221 + $0x1c] sm:$0xf]
      %v435 = vld [vmem:[%s221 + $0x20] sm:$0xf]
      %v436 = vld [vmem:[%s221 + $0x24] sm:$0xf]
      %v437 = vld [vmem:[%s221 + $0x28] sm:$0xf]
      %v438 = vld [vmem:[%s221 + $0x2c] sm:$0xf]
      %v439 = vld [vmem:[%s221 + $0x30] sm:$0xf]
      %v440 = vld [vmem:[%s221 + $0x34] sm:$0xf]
      %v441 = vld [vmem:[%s221 + $0x38] sm:$0xf]
      %v442 = vld [vmem:[%s221 + $0x3c] sm:$0xf]
      %v443 = vld [vmem:[%s221 + $0x40] sm:$0xf]
      %v444 = vld [vmem:[%s221 + $0x44] sm:$0xf]
      %v445 = vld [vmem:[%s221 + $0x48] sm:$0xf]
      %v446 = vld [vmem:[%s221 + $0x4c] sm:$0xf]
      %v447 = vld [vmem:[%s221 + $0x50] sm:$0xf]
      %v448 = vld [vmem:[%s221 + $0x54] sm:$0xf]
      %v449 = vld [vmem:[%s221 + $0x58] sm:$0xf]
      %v450 = vld [vmem:[%s221 + $0x5c] sm:$0xf]
      %v451 = vld [vmem:[%s221 + $0x60] sm:$0xf]
      %v452 = vld [vmem:[%s221 + $0x64] sm:$0xf]
      %v453 = vld [vmem:[%s221 + $0x68] sm:$0xf]
      %v518 = vunpack.c.l.b16 %v363
      %v519 = vunpack.c.h.b16 %v363
      %v520 = vunpack.c.l.b16 %v364
      %v521 = vunpack.c.h.b16 %v364
      %v522 = vunpack.c.l.b16 %v365
      %v523 = vunpack.c.h.b16 %v365
      %v524 = vunpack.c.l.b16 %v366
      %v525 = vunpack.c.h.b16 %v366
      %v526 = vunpack.c.l.b16 %v367
      %v527 = vunpack.c.h.b16 %v367
      %v528 = vunpack.c.l.b16 %v368
      %v529 = vunpack.c.h.b16 %v368
      %v530 = vunpack.c.l.b16 %v369
      %v531 = vunpack.c.h.b16 %v369
      %v532 = vunpack.c.l.b16 %v370
      %v533 = vunpack.c.h.b16 %v370
      %v534 = vunpack.c.l.b16 %v371
      %v535 = vunpack.c.h.b16 %v371
      %v536 = vunpack.c.l.b16 %v372
      %v537 = vunpack.c.h.b16 %v372
      %v538 = vunpack.c.l.b16 %v373
      %v539 = vunpack.c.h.b16 %v373
      %v540 = vunpack.c.l.b16 %v374
      %v541 = vunpack.c.h.b16 %v374
      %v542 = vunpack.c.l.b16 %v375
      %v543 = vunpack.c.h.b16 %v375
      %v544 = vunpack.c.l.b16 %v376
      %v545 = vunpack.c.h.b16 %v376
      %v546 = vunpack.c.l.b16 %v377
      %v547 = vunpack.c.h.b16 %v377
      %v548 = vunpack.c.l.b16 %v378
      %v549 = vunpack.c.h.b16 %v378
      %v550 = vunpack.c.l.b16 %v379
      %v551 = vunpack.c.h.b16 %v379
      %v552 = vunpack.c.l.b16 %v380
      %v553 = vunpack.c.h.b16 %v380
      %v554 = vunpack.c.l.b16 %v381
      %v555 = vunpack.c.h.b16 %v381
      %v556 = vunpack.c.l.b16 %v382
      %v557 = vunpack.c.h.b16 %v382
      %v558 = vunpack.c.l.b16 %v383
      %v559 = vunpack.c.h.b16 %v383
      %v560 = vunpack.c.l.b16 %v384
      %v561 = vunpack.c.h.b16 %v384
      %v562 = vunpack.c.l.b16 %v385
      %v563 = vunpack.c.h.b16 %v385
      %v564 = vunpack.c.l.b16 %v386
      %v565 = vunpack.c.h.b16 %v386
      %v566 = vunpack.c.l.b16 %v387
      %v567 = vunpack.c.h.b16 %v387
      %v568 = vunpack.c.l.b16 %v388
      %v569 = vunpack.c.h.b16 %v388
      %v570 = vunpack.c.l.b16 %v389
      %v571 = vunpack.c.h.b16 %v389
      %v572 = vunpack.c.l.b16 %v390
      %v573 = vunpack.c.h.b16 %v390
      %v574 = vunpack.c.l.b16 %v391
      %v575 = vunpack.c.h.b16 %v391
      %v576 = vunpack.c.l.b16 %v392
      %v577 = vunpack.c.h.b16 %v392
      %v578 = vunpack.c.l.b16 %v393
      %v579 = vunpack.c.h.b16 %v393
      %v580 = vunpack.c.l.b16 %v394
      %v581 = vunpack.c.h.b16 %v394
      %v582 = vunpack.c.l.b16 %v395
      %v583 = vunpack.c.h.b16 %v395
      %v584 = vunpack.c.l.b16 %v396
      %v585 = vunpack.c.h.b16 %v396
      %v586 = vunpack.c.l.b16 %v397
      %v587 = vunpack.c.h.b16 %v397
      %v588 = vunpack.c.l.b16 %v398
      %v589 = vunpack.c.h.b16 %v398
      %v590 = vunpack.c.l.b16 %v399
      %v591 = vunpack.c.h.b16 %v399
      %v592 = vunpack.c.l.b16 %v400
      %v593 = vunpack.c.h.b16 %v400
      %v594 = vunpack.c.l.b16 %v401
      %v595 = vunpack.c.h.b16 %v401
      %v596 = vunpack.c.l.b16 %v402
      %v597 = vunpack.c.h.b16 %v402
      %v598 = vunpack.c.l.b16 %v403
      %v599 = vunpack.c.h.b16 %v403
      %v600 = vunpack.c.l.b16 %v404
      %v601 = vunpack.c.h.b16 %v404
      %v602 = vunpack.c.l.b16 %v405
      %v603 = vunpack.c.h.b16 %v405
      %v604 = vunpack.c.l.b16 %v406
      %v605 = vunpack.c.h.b16 %v406
      %v606 = vunpack.c.l.b16 %v407
      %v607 = vunpack.c.h.b16 %v407
      %v608 = vunpack.c.l.b16 %v408
      %v609 = vunpack.c.h.b16 %v408
      %v610 = vunpack.c.l.b16 %v409
      %v611 = vunpack.c.h.b16 %v409
      %v612 = vunpack.c.l.b16 %v410
      %v613 = vunpack.c.h.b16 %v410
      %v614 = vunpack.c.l.b16 %v411
      %v615 = vunpack.c.h.b16 %v411
      %v616 = vunpack.c.l.b16 %v412
      %v617 = vunpack.c.h.b16 %v412
      %v618 = vunpack.c.l.b16 %v413
      %v619 = vunpack.c.h.b16 %v413
      %v620 = vunpack.c.l.b16 %v414
      %v621 = vunpack.c.h.b16 %v414
      %v622 = vunpack.c.l.b16 %v415
      %v623 = vunpack.c.h.b16 %v415
      %v624 = vunpack.c.l.b16 %v416
      %v625 = vunpack.c.h.b16 %v416
      %v626 = vunpack.c.l.b16 %v417
      %v627 = vunpack.c.h.b16 %v417
      %v628 = vunpack.c.l.b16 %v418
      %v629 = vunpack.c.h.b16 %v418
      %v630 = vunpack.c.l.b16 %v419
      %v631 = vunpack.c.h.b16 %v419
      %v632 = vunpack.c.l.b16 %v420
      %v633 = vunpack.c.h.b16 %v420
      %v634 = vunpack.c.l.b16 %v421
      %v635 = vunpack.c.h.b16 %v421
      %v636 = vunpack.c.l.b16 %v422
      %v637 = vunpack.c.h.b16 %v422
      %v638 = vunpack.c.l.b16 %v423
      %v639 = vunpack.c.h.b16 %v423
      %v640 = vunpack.c.l.b16 %v424
      %v641 = vunpack.c.h.b16 %v424
      %v642 = vunpack.c.l.b16 %v425
      %v643 = vunpack.c.h.b16 %v425
      %v644 = vunpack.c.l.b16 %v426
      %v645 = vunpack.c.h.b16 %v426
      %v646 = vpack.c.b16 %v520, %v518
      %v647 = vpack.c.b16 %v521, %v519
      %v648 = vpack.c.b16 %v524, %v522
      %v649 = vpack.c.b16 %v525, %v523
      %v650 = vpack.c.b16 %v528, %v526
      %v651 = vpack.c.b16 %v529, %v527
      %v652 = vpack.c.b16 %v532, %v530
      %v653 = vpack.c.b16 %v533, %v531
      %v654 = vpack.c.b16 %v536, %v534
      %v655 = vpack.c.b16 %v537, %v535
      %v656 = vpack.c.b16 %v540, %v538
      %v657 = vpack.c.b16 %v541, %v539
      %v658 = vpack.c.b16 %v544, %v542
      %v659 = vpack.c.b16 %v545, %v543
      %v660 = vpack.c.b16 %v548, %v546
      %v661 = vpack.c.b16 %v549, %v547
      %v662 = vpack.c.b16 %v552, %v550
      %v663 = vpack.c.b16 %v553, %v551
      %v664 = vpack.c.b16 %v556, %v554
      %v665 = vpack.c.b16 %v557, %v555
      %v666 = vpack.c.b16 %v560, %v558
      %v667 = vpack.c.b16 %v561, %v559
      %v668 = vpack.c.b16 %v564, %v562
      %v669 = vpack.c.b16 %v565, %v563
      %v670 = vpack.c.b16 %v568, %v566
      %v671 = vpack.c.b16 %v569, %v567
      %v672 = vpack.c.b16 %v572, %v570
      %v673 = vpack.c.b16 %v573, %v571
      %v674 = vpack.c.b16 %v576, %v574
      %v675 = vpack.c.b16 %v577, %v575
      %v676 = vpack.c.b16 %v580, %v578
      %v677 = vpack.c.b16 %v581, %v579
      %v678 = vpack.c.b16 %v584, %v582
      %v679 = vpack.c.b16 %v585, %v583
      %v680 = vpack.c.b16 %v588, %v586
      %v681 = vpack.c.b16 %v589, %v587
      %v682 = vpack.c.b16 %v592, %v590
      %v683 = vpack.c.b16 %v593, %v591
      %v684 = vpack.c.b16 %v596, %v594
      %v685 = vpack.c.b16 %v597, %v595
      %v686 = vpack.c.b16 %v600, %v598
      %v687 = vpack.c.b16 %v601, %v599
      %v688 = vpack.c.b16 %v604, %v602
      %v689 = vpack.c.b16 %v605, %v603
      %v690 = vpack.c.b16 %v608, %v606
      %v691 = vpack.c.b16 %v609, %v607
      %v692 = vpack.c.b16 %v612, %v610
      %v693 = vpack.c.b16 %v613, %v611
      %v694 = vpack.c.b16 %v616, %v614
      %v695 = vpack.c.b16 %v617, %v615
      %v696 = vpack.c.b16 %v620, %v618
      %v697 = vpack.c.b16 %v621, %v619
      %v698 = vpack.c.b16 %v624, %v622
      %v699 = vpack.c.b16 %v625, %v623
      %v700 = vpack.c.b16 %v628, %v626
      %v701 = vpack.c.b16 %v629, %v627
      %v702 = vpack.c.b16 %v632, %v630
      %v703 = vpack.c.b16 %v633, %v631
      %v704 = vpack.c.b16 %v636, %v634
      %v705 = vpack.c.b16 %v637, %v635
      %v706 = vpack.c.b16 %v640, %v638
      %v707 = vpack.c.b16 %v641, %v639
      %v708 = vpack.c.b16 %v644, %v642
      %v709 = vpack.c.b16 %v645, %v643
      %v769 = vunpack.c.l.b16 %v427
      %v770 = vunpack.c.l.b16 %v428
      %v771 = vunpack.c.l.b16 %v429
      %v772 = vunpack.c.l.b16 %v430
      %v773 = vunpack.c.l.b16 %v431
      %v774 = vunpack.c.l.b16 %v432
      %v775 = vunpack.c.l.b16 %v433
      %v776 = vunpack.c.l.b16 %v434
      %v777 = vunpack.c.l.b16 %v435
      %v778 = vunpack.c.l.b16 %v436
      %v779 = vunpack.c.l.b16 %v437
      %v780 = vunpack.c.l.b16 %v438
      %v781 = vunpack.c.l.b16 %v439
      %v782 = vunpack.c.l.b16 %v440
      %v783 = vunpack.c.l.b16 %v441
      %v784 = vunpack.c.l.b16 %v442
      %v785 = vunpack.c.l.b16 %v443
      %v786 = vunpack.c.l.b16 %v444
      %v787 = vunpack.c.l.b16 %v445
      %v788 = vunpack.c.l.b16 %v446
      %v789 = vunpack.c.l.b16 %v447
      %v790 = vunpack.c.l.b16 %v448
      %v791 = vunpack.c.l.b16 %v449
      %v792 = vunpack.c.l.b16 %v450
      %v793 = vunpack.c.l.b16 %v451
      %v794 = vunpack.c.l.b16 %v452
      %v795 = vunpack.c.l.b16 %v453
      %v796 = vpack.c.b16 %v770, %v769
      %v797 = vpack.c.b16 %v772, %v771
      %v798 = vpack.c.b16 %v774, %v773
      %v799 = vpack.c.b16 %v776, %v775
      %v800 = vpack.c.b16 %v778, %v777
      %v801 = vpack.c.b16 %v780, %v779
      %v802 = vpack.c.b16 %v782, %v781
      %v803 = vpack.c.b16 %v784, %v783
      %v804 = vpack.c.b16 %v786, %v785
      %v805 = vpack.c.b16 %v788, %v787
      %v806 = vpack.c.b16 %v790, %v789
      %v807 = vpack.c.b16 %v792, %v791
      %v808 = vpack.c.b16 %v794, %v793
      %v809 = vpack.c.b16 %v795, %v795
      %vm823 = vcmask 719872
      %v825 = vsel %vm823, %v647, 0
      %v828 = vsel %vm823, %v649, 0
      %v831 = vsel %vm823, %v651, 0
      %v834 = vsel %vm823, %v653, 0
      %v837 = vsel %vm823, %v655, 0
      %v840 = vsel %vm823, %v657, 0
      %v843 = vsel %vm823, %v659, 0
      %v846 = vsel %vm823, %v661, 0
      %v849 = vsel %vm823, %v663, 0
      %v852 = vsel %vm823, %v665, 0
      %v855 = vsel %vm823, %v667, 0
      %v858 = vsel %vm823, %v669, 0
      %v861 = vsel %vm823, %v671, 0
      %v864 = vsel %vm823, %v673, 0
      %v867 = vsel %vm823, %v675, 0
      %v870 = vsel %vm823, %v677, 0
      %v873 = vsel %vm823, %v679, 0
      %v876 = vsel %vm823, %v681, 0
      %v879 = vsel %vm823, %v683, 0
      %v882 = vsel %vm823, %v685, 0
      %v885 = vsel %vm823, %v687, 0
      %v888 = vsel %vm823, %v689, 0
      %v891 = vsel %vm823, %v691, 0
      %v894 = vsel %vm823, %v693, 0
      %v897 = vsel %vm823, %v695, 0
      %v900 = vsel %vm823, %v697, 0
      %v903 = vsel %vm823, %v699, 0
      %v906 = vsel %vm823, %v701, 0
      %v909 = vsel %vm823, %v703, 0
      %v912 = vsel %vm823, %v705, 0
      %v915 = vsel %vm823, %v707, 0
      %v918 = vsel %vm823, %v709, 0
      %vm920 = vcmask 1043456
      %v922 = vsel %vm920, %v809, 0
      %924 = vmatprep.subr.bf16.mxu0 0
      %925 = vmatpush1.bf16.msra.mxu0 %v803
      %926 = vmatprep.subr.bf16.mxu0 0
      %927 = vmatpush1.bf16.msra.mxu0 %v802
      %928 = vmatprep.subr.bf16.mxu0 0
      %929 = vmatpush1.bf16.msra.mxu0 %v801
      %930 = vmatprep.subr.bf16.mxu0 0
      %931 = vmatpush1.bf16.msra.mxu0 %v800
      %932 = vmatprep.subr.bf16.mxu0 0
      %933 = vmatpush1.bf16.msra.mxu0 %v799
      %934 = vmatprep.subr.bf16.mxu0 0
      %935 = vmatpush1.bf16.msra.mxu0 %v798
      %936 = vmatprep.subr.bf16.mxu0 0
      %937 = vmatpush1.bf16.msra.mxu0 %v797
      %938 = vmatprep.subr.bf16.mxu0 0
      %939 = vmatpush1.bf16.msra.mxu0 %v796
      %940 = vmatprep.subr.bf16.mxu0 0
      %941 = vmatpush2.bf16.msra.mxu0 0
      %942 = vmatprep.subr.bf16.mxu0 0
      %943 = vmatpush2.bf16.msra.mxu0 0
      %944 = vmatprep.subr.bf16.mxu0 0
      %945 = vmatpush2.bf16.msra.mxu0 %v922
      %946 = vmatprep.subr.bf16.mxu0 0
      %947 = vmatpush2.bf16.msra.mxu0 %v808
      %948 = vmatprep.subr.bf16.mxu0 0
      %949 = vmatpush2.bf16.msra.mxu0 %v807
      %950 = vmatprep.subr.bf16.mxu0 0
      %951 = vmatpush2.bf16.msra.mxu0 %v806
      %952 = vmatprep.subr.bf16.mxu0 0
      %953 = vmatpush2.bf16.msra.mxu0 %v805
      %954 = vmatprep.subr.bf16.mxu0 0
      %955 = vmatpush2.bf16.msra.mxu0 %v804
      %956 = vmatprep.mubr.bf16.mxu0 %v825
      %957 = vmatmul.mubr.bf16.gmra.mxu0 %v646
      %v958 = vpop.f32.mrf.mxu0
      %v959 = vadd.f32 0.0, %v958
      %v960 = vpop.f32.mrf.mxu0
      %v961 = vpop.f32.mrf.mxu0
      %v962 = vadd.f32 0.0, %v961
      %v963 = vpop.f32.mrf.mxu0
      %964 = vmatprep.mubr.bf16.mxu0 %v828
      %965 = vmatmul.mubr.bf16.gmra.mxu0 %v648
      %v966 = vpop.f32.mrf.mxu0
      %v967 = vadd.f32 0.0, %v966
      %v968 = vpop.f32.mrf.mxu0
      %v969 = vpop.f32.mrf.mxu0
      %v970 = vadd.f32 0.0, %v969
      %v971 = vpop.f32.mrf.mxu0
      %972 = vmatprep.mubr.bf16.mxu0 %v831
      %973 = vmatmul.mubr.bf16.gmra.mxu0 %v650
      %v974 = vpop.f32.mrf.mxu0
      %v975 = vadd.f32 0.0, %v974
      %v976 = vpop.f32.mrf.mxu0
      %v977 = vpop.f32.mrf.mxu0
      %v978 = vadd.f32 0.0, %v977
      %v979 = vpop.f32.mrf.mxu0
      %980 = vmatprep.mubr.bf16.mxu0 %v834
      %981 = vmatmul.mubr.bf16.gmra.mxu0 %v652
      %v982 = vpop.f32.mrf.mxu0
      %v983 = vadd.f32 0.0, %v982
      %v984 = vpop.f32.mrf.mxu0
      %v985 = vpop.f32.mrf.mxu0
      %v986 = vadd.f32 0.0, %v985
      %v987 = vpop.f32.mrf.mxu0
      %988 = vmatprep.mubr.bf16.mxu0 %v837
      %989 = vmatmul.mubr.bf16.gmra.mxu0 %v654
      %v990 = vpop.f32.mrf.mxu0
      %v991 = vadd.f32 0.0, %v990
      %v992 = vpop.f32.mrf.mxu0
      %v993 = vpop.f32.mrf.mxu0
      %v994 = vadd.f32 0.0, %v993
      %v995 = vpop.f32.mrf.mxu0
      %996 = vmatprep.mubr.bf16.mxu0 %v840
      %997 = vmatmul.mubr.bf16.gmra.mxu0 %v656
      %v998 = vpop.f32.mrf.mxu0
      %v999 = vadd.f32 0.0, %v998
      %v1000 = vpop.f32.mrf.mxu0
      %v1001 = vpop.f32.mrf.mxu0
      %v1002 = vadd.f32 0.0, %v1001
      %v1003 = vpop.f32.mrf.mxu0
      %1004 = vmatprep.mubr.bf16.mxu0 %v843
      %1005 = vmatmul.mubr.bf16.gmra.mxu0 %v658
      %v1006 = vpop.f32.mrf.mxu0
      %v1007 = vadd.f32 0.0, %v1006
      %v1008 = vpop.f32.mrf.mxu0
      %v1009 = vpop.f32.mrf.mxu0
      %v1010 = vadd.f32 0.0, %v1009
      %v1011 = vpop.f32.mrf.mxu0
      %1012 = vmatprep.mubr.bf16.mxu0 %v846
      %1013 = vmatmul.mubr.bf16.gmra.mxu0 %v660
      %v1014 = vpop.f32.mrf.mxu0
      %v1015 = vadd.f32 0.0, %v1014
      %v1016 = vpop.f32.mrf.mxu0
      %v1017 = vpop.f32.mrf.mxu0
      %v1018 = vadd.f32 0.0, %v1017
      %v1019 = vpop.f32.mrf.mxu0
      %1020 = vmatprep.mubr.bf16.mxu0 %v849
      %1021 = vmatmul.mubr.bf16.gmra.mxu0 %v662
      %v1022 = vpop.f32.mrf.mxu0
      %v1023 = vadd.f32 0.0, %v1022
      %v1024 = vpop.f32.mrf.mxu0
      %v1025 = vpop.f32.mrf.mxu0
      %v1026 = vadd.f32 0.0, %v1025
      %v1027 = vpop.f32.mrf.mxu0
      %1028 = vmatprep.mubr.bf16.mxu0 %v852
      %1029 = vmatmul.mubr.bf16.gmra.mxu0 %v664
      %v1030 = vpop.f32.mrf.mxu0
      %v1031 = vadd.f32 0.0, %v1030
      %v1032 = vpop.f32.mrf.mxu0
      %v1033 = vpop.f32.mrf.mxu0
      %v1034 = vadd.f32 0.0, %v1033
      %v1035 = vpop.f32.mrf.mxu0
      %1036 = vmatprep.mubr.bf16.mxu0 %v855
      %1037 = vmatmul.mubr.bf16.gmra.mxu0 %v666
      %v1038 = vpop.f32.mrf.mxu0
      %v1039 = vadd.f32 0.0, %v1038
      %v1040 = vpop.f32.mrf.mxu0
      %v1041 = vpop.f32.mrf.mxu0
      %v1042 = vadd.f32 0.0, %v1041
      %v1043 = vpop.f32.mrf.mxu0
      %1044 = vmatprep.mubr.bf16.mxu0 %v858
      %1045 = vmatmul.mubr.bf16.gmra.mxu0 %v668
      %v1046 = vpop.f32.mrf.mxu0
      %v1047 = vadd.f32 0.0, %v1046
      %v1048 = vpop.f32.mrf.mxu0
      %v1049 = vpop.f32.mrf.mxu0
      %v1050 = vadd.f32 0.0, %v1049
      %v1051 = vpop.f32.mrf.mxu0
      %1052 = vmatprep.mubr.bf16.mxu0 %v861
      %1053 = vmatmul.mubr.bf16.gmra.mxu0 %v670
      %v1054 = vpop.f32.mrf.mxu0
      %v1055 = vadd.f32 0.0, %v1054
      %v1056 = vpop.f32.mrf.mxu0
      %v1057 = vpop.f32.mrf.mxu0
      %v1058 = vadd.f32 0.0, %v1057
      %v1059 = vpop.f32.mrf.mxu0
      %1060 = vmatprep.mubr.bf16.mxu0 %v864
      %1061 = vmatmul.mubr.bf16.gmra.mxu0 %v672
      %v1062 = vpop.f32.mrf.mxu0
      %v1063 = vadd.f32 0.0, %v1062
      %v1064 = vpop.f32.mrf.mxu0
      %v1065 = vpop.f32.mrf.mxu0
      %v1066 = vadd.f32 0.0, %v1065
      %v1067 = vpop.f32.mrf.mxu0
      %1068 = vmatprep.mubr.bf16.mxu0 %v867
      %1069 = vmatmul.mubr.bf16.gmra.mxu0 %v674
      %v1070 = vpop.f32.mrf.mxu0
      %v1071 = vadd.f32 0.0, %v1070
      %v1072 = vpop.f32.mrf.mxu0
      %v1073 = vpop.f32.mrf.mxu0
      %v1074 = vadd.f32 0.0, %v1073
      %v1075 = vpop.f32.mrf.mxu0
      %1076 = vmatprep.mubr.bf16.mxu0 %v870
      %1077 = vmatmul.mubr.bf16.gmra.mxu0 %v676
      %v1078 = vpop.f32.mrf.mxu0
      %v1079 = vadd.f32 0.0, %v1078
      %v1080 = vpop.f32.mrf.mxu0
      %v1081 = vpop.f32.mrf.mxu0
      %v1082 = vadd.f32 0.0, %v1081
      %v1083 = vpop.f32.mrf.mxu0
      %1084 = vmatprep.mubr.bf16.mxu0 %v873
      %1085 = vmatmul.mubr.bf16.gmra.mxu0 %v678
      %v1086 = vpop.f32.mrf.mxu0
      %v1087 = vadd.f32 0.0, %v1086
      %v1088 = vpop.f32.mrf.mxu0
      %v1089 = vpop.f32.mrf.mxu0
      %v1090 = vadd.f32 0.0, %v1089
      %v1091 = vpop.f32.mrf.mxu0
      %1092 = vmatprep.mubr.bf16.mxu0 %v876
      %1093 = vmatmul.mubr.bf16.gmra.mxu0 %v680
      %v1094 = vpop.f32.mrf.mxu0
      %v1095 = vadd.f32 0.0, %v1094
      %v1096 = vpop.f32.mrf.mxu0
      %v1097 = vpop.f32.mrf.mxu0
      %v1098 = vadd.f32 0.0, %v1097
      %v1099 = vpop.f32.mrf.mxu0
      %1100 = vmatprep.mubr.bf16.mxu0 %v879
      %1101 = vmatmul.mubr.bf16.gmra.mxu0 %v682
      %v1102 = vpop.f32.mrf.mxu0
      %v1103 = vadd.f32 0.0, %v1102
      %v1104 = vpop.f32.mrf.mxu0
      %v1105 = vpop.f32.mrf.mxu0
      %v1106 = vadd.f32 0.0, %v1105
      %v1107 = vpop.f32.mrf.mxu0
      %1108 = vmatprep.mubr.bf16.mxu0 %v882
      %1109 = vmatmul.mubr.bf16.gmra.mxu0 %v684
      %v1110 = vpop.f32.mrf.mxu0
      %v1111 = vadd.f32 0.0, %v1110
      %v1112 = vpop.f32.mrf.mxu0
      %v1113 = vpop.f32.mrf.mxu0
      %v1114 = vadd.f32 0.0, %v1113
      %v1115 = vpop.f32.mrf.mxu0
      %1116 = vmatprep.mubr.bf16.mxu0 %v885
      %1117 = vmatmul.mubr.bf16.gmra.mxu0 %v686
      %v1118 = vpop.f32.mrf.mxu0
      %v1119 = vadd.f32 0.0, %v1118
      %v1120 = vpop.f32.mrf.mxu0
      %v1121 = vpop.f32.mrf.mxu0
      %v1122 = vadd.f32 0.0, %v1121
      %v1123 = vpop.f32.mrf.mxu0
      %1124 = vmatprep.mubr.bf16.mxu0 %v888
      %1125 = vmatmul.mubr.bf16.gmra.mxu0 %v688
      %v1126 = vpop.f32.mrf.mxu0
      %v1127 = vadd.f32 0.0, %v1126
      %v1128 = vpop.f32.mrf.mxu0
      %v1129 = vpop.f32.mrf.mxu0
      %v1130 = vadd.f32 0.0, %v1129
      %v1131 = vpop.f32.mrf.mxu0
      %1132 = vmatprep.mubr.bf16.mxu0 %v891
      %1133 = vmatmul.mubr.bf16.gmra.mxu0 %v690
      %v1134 = vpop.f32.mrf.mxu0
      %v1135 = vadd.f32 0.0, %v1134
      %v1136 = vpop.f32.mrf.mxu0
      %v1137 = vpop.f32.mrf.mxu0
      %v1138 = vadd.f32 0.0, %v1137
      %v1139 = vpop.f32.mrf.mxu0
      %1140 = vmatprep.mubr.bf16.mxu0 %v894
      %1141 = vmatmul.mubr.bf16.gmra.mxu0 %v692
      %v1142 = vpop.f32.mrf.mxu0
      %v1143 = vadd.f32 0.0, %v1142
      %v1144 = vpop.f32.mrf.mxu0
      %v1145 = vpop.f32.mrf.mxu0
      %v1146 = vadd.f32 0.0, %v1145
      %v1147 = vpop.f32.mrf.mxu0
      %1148 = vmatprep.mubr.bf16.mxu0 %v897
      %1149 = vmatmul.mubr.bf16.gmra.mxu0 %v694
      %v1150 = vpop.f32.mrf.mxu0
      %v1151 = vadd.f32 0.0, %v1150
      %v1152 = vpop.f32.mrf.mxu0
      %v1153 = vpop.f32.mrf.mxu0
      %v1154 = vadd.f32 0.0, %v1153
      %v1155 = vpop.f32.mrf.mxu0
      %1156 = vmatprep.mubr.bf16.mxu0 %v900
      %1157 = vmatmul.mubr.bf16.gmra.mxu0 %v696
      %v1158 = vpop.f32.mrf.mxu0
      %v1159 = vadd.f32 0.0, %v1158
      %v1160 = vpop.f32.mrf.mxu0
      %v1161 = vpop.f32.mrf.mxu0
      %v1162 = vadd.f32 0.0, %v1161
      %v1163 = vpop.f32.mrf.mxu0
      %1164 = vmatprep.mubr.bf16.mxu0 %v903
      %1165 = vmatmul.mubr.bf16.gmra.mxu0 %v698
      %v1166 = vpop.f32.mrf.mxu0
      %v1167 = vadd.f32 0.0, %v1166
      %v1168 = vpop.f32.mrf.mxu0
      %v1169 = vpop.f32.mrf.mxu0
      %v1170 = vadd.f32 0.0, %v1169
      %v1171 = vpop.f32.mrf.mxu0
      %1172 = vmatprep.mubr.bf16.mxu0 %v906
      %1173 = vmatmul.mubr.bf16.gmra.mxu0 %v700
      %v1174 = vpop.f32.mrf.mxu0
      %v1175 = vadd.f32 0.0, %v1174
      %v1176 = vpop.f32.mrf.mxu0
      %v1177 = vpop.f32.mrf.mxu0
      %v1178 = vadd.f32 0.0, %v1177
      %v1179 = vpop.f32.mrf.mxu0
      %1180 = vmatprep.mubr.bf16.mxu0 %v909
      %1181 = vmatmul.mubr.bf16.gmra.mxu0 %v702
      %v1182 = vpop.f32.mrf.mxu0
      %v1183 = vadd.f32 0.0, %v1182
      %v1184 = vpop.f32.mrf.mxu0
      %v1185 = vpop.f32.mrf.mxu0
      %v1186 = vadd.f32 0.0, %v1185
      %v1187 = vpop.f32.mrf.mxu0
      %1188 = vmatprep.mubr.bf16.mxu0 %v912
      %1189 = vmatmul.mubr.bf16.gmra.mxu0 %v704
      %v1190 = vpop.f32.mrf.mxu0
      %v1191 = vadd.f32 0.0, %v1190
      %v1192 = vpop.f32.mrf.mxu0
      %v1193 = vpop.f32.mrf.mxu0
      %v1194 = vadd.f32 0.0, %v1193
      %v1195 = vpop.f32.mrf.mxu0
      %1196 = vmatprep.mubr.bf16.mxu0 %v915
      %1197 = vmatmul.mubr.bf16.gmra.mxu0 %v706
      %v1198 = vpop.f32.mrf.mxu0
      %v1199 = vadd.f32 0.0, %v1198
      %v1200 = vpop.f32.mrf.mxu0
      %v1201 = vpop.f32.mrf.mxu0
      %v1202 = vadd.f32 0.0, %v1201
      %v1203 = vpop.f32.mrf.mxu0
      %1204 = vmatprep.mubr.bf16.mxu0 %v918
      %1205 = vmatmul.mubr.bf16.gmra.mxu0 %v708
      %v1206 = vpop.f32.mrf.mxu0
      %v1207 = vadd.f32 0.0, %v1206
      %v1208 = vpop.f32.mrf.mxu0
      %v1209 = vpop.f32.mrf.mxu0
      %v1210 = vadd.f32 0.0, %v1209
      %v1211 = vpop.f32.mrf.mxu0
      %1212 = vdwg.mxu0
      %v1213 = vadd.f32 %v299, %v959
      %v1214 = vadd.f32 %v300, %v962
      %v1215 = vadd.f32 %v301, %v967
      %v1216 = vadd.f32 %v302, %v970
      %v1217 = vadd.f32 %v303, %v975
      %v1218 = vadd.f32 %v304, %v978
      %v1219 = vadd.f32 %v305, %v983
      %v1220 = vadd.f32 %v306, %v986
      %v1221 = vadd.f32 %v307, %v991
      %v1222 = vadd.f32 %v308, %v994
      %v1223 = vadd.f32 %v309, %v999
      %v1224 = vadd.f32 %v310, %v1002
      %v1225 = vadd.f32 %v311, %v1007
      %v1226 = vadd.f32 %v312, %v1010
      %v1227 = vadd.f32 %v313, %v1015
      %v1228 = vadd.f32 %v314, %v1018
      %v1229 = vadd.f32 %v315, %v1023
      %v1230 = vadd.f32 %v316, %v1026
      %v1231 = vadd.f32 %v317, %v1031
      %v1232 = vadd.f32 %v318, %v1034
      %v1233 = vadd.f32 %v319, %v1039
      %v1234 = vadd.f32 %v320, %v1042
      %v1235 = vadd.f32 %v321, %v1047
      %v1236 = vadd.f32 %v322, %v1050
      %v1237 = vadd.f32 %v323, %v1055
      %v1238 = vadd.f32 %v324, %v1058
      %v1239 = vadd.f32 %v325, %v1063
      %v1240 = vadd.f32 %v326, %v1066
      %v1241 = vadd.f32 %v327, %v1071
      %v1242 = vadd.f32 %v328, %v1074
      %v1243 = vadd.f32 %v329, %v1079
      %v1244 = vadd.f32 %v330, %v1082
      %v1245 = vadd.f32 %v331, %v1087
      %v1246 = vadd.f32 %v332, %v1090
      %v1247 = vadd.f32 %v333, %v1095
      %v1248 = vadd.f32 %v334, %v1098
      %v1249 = vadd.f32 %v335, %v1103
      %v1250 = vadd.f32 %v336, %v1106
      %v1251 = vadd.f32 %v337, %v1111
      %v1252 = vadd.f32 %v338, %v1114
      %v1253 = vadd.f32 %v339, %v1119
      %v1254 = vadd.f32 %v340, %v1122
      %v1255 = vadd.f32 %v341, %v1127
      %v1256 = vadd.f32 %v342, %v1130
      %v1257 = vadd.f32 %v343, %v1135
      %v1258 = vadd.f32 %v344, %v1138
      %v1259 = vadd.f32 %v345, %v1143
      %v1260 = vadd.f32 %v346, %v1146
      %v1261 = vadd.f32 %v347, %v1151
      %v1262 = vadd.f32 %v348, %v1154
      %v1263 = vadd.f32 %v349, %v1159
      %v1264 = vadd.f32 %v350, %v1162
      %v1265 = vadd.f32 %v351, %v1167
      %v1266 = vadd.f32 %v352, %v1170
      %v1267 = vadd.f32 %v353, %v1175
      %v1268 = vadd.f32 %v354, %v1178
      %v1269 = vadd.f32 %v355, %v1183
      %v1270 = vadd.f32 %v356, %v1186
      %v1271 = vadd.f32 %v357, %v1191
      %v1272 = vadd.f32 %v358, %v1194
      %v1273 = vadd.f32 %v359, %v1199
      %v1274 = vadd.f32 %v360, %v1202
      %v1275 = vadd.f32 %v361, %v1207
      %v1276 = vadd.f32 %v362, %v1210
      %vm1277 = vcmask 7168
      %1278 = vst.msk [vmem:[#allocation2] sm:$0xff] %vm1277, %v1213
      %1279 = vst.msk [vmem:[#allocation2 + $0x8] sm:$0xff] %vm1277, %v1214
      %1280 = vst.msk [vmem:[#allocation2 + $0x10] sm:$0xff] %vm1277, %v1215
      %1281 = vst.msk [vmem:[#allocation2 + $0x18] sm:$0xff] %vm1277, %v1216
      %1282 = vst.msk [vmem:[#allocation2 + $0x20] sm:$0xff] %vm1277, %v1217
      %1283 = vst.msk [vmem:[#allocation2 + $0x28] sm:$0xff] %vm1277, %v1218
      %1284 = vst.msk [vmem:[#allocation2 + $0x30] sm:$0xff] %vm1277, %v1219
      %1285 = vst.msk [vmem:[#allocation2 + $0x38] sm:$0xff] %vm1277, %v1220
      %1286 = vst.msk [vmem:[#allocation2 + $0x40] sm:$0xff] %vm1277, %v1221
      %1287 = vst.msk [vmem:[#allocation2 + $0x48] sm:$0xff] %vm1277, %v1222
      %1288 = vst.msk [vmem:[#allocation2 + $0x50] sm:$0xff] %vm1277, %v1223
      %1289 = vst.msk [vmem:[#allocation2 + $0x58] sm:$0xff] %vm1277, %v1224
      %1290 = vst.msk [vmem:[#allocation2 + $0x60] sm:$0xff] %vm1277, %v1225
      %1291 = vst.msk [vmem:[#allocation2 + $0x68] sm:$0xff] %vm1277, %v1226
      %1292 = vst.msk [vmem:[#allocation2 + $0x70] sm:$0xff] %vm1277, %v1227
      %1293 = vst.msk [vmem:[#allocation2 + $0x78] sm:$0xff] %vm1277, %v1228
      %1294 = vst.msk [vmem:[#allocation2 + $0x80] sm:$0xff] %vm1277, %v1229
      %1295 = vst.msk [vmem:[#allocation2 + $0x88] sm:$0xff] %vm1277, %v1230
      %1296 = vst.msk [vmem:[#allocation2 + $0x90] sm:$0xff] %vm1277, %v1231
      %1297 = vst.msk [vmem:[#allocation2 + $0x98] sm:$0xff] %vm1277, %v1232
      %1298 = vst.msk [vmem:[#allocation2 + $0xa0] sm:$0xff] %vm1277, %v1233
      %1299 = vst.msk [vmem:[#allocation2 + $0xa8] sm:$0xff] %vm1277, %v1234
      %1300 = vst.msk [vmem:[#allocation2 + $0xb0] sm:$0xff] %vm1277, %v1235
      %1301 = vst.msk [vmem:[#allocation2 + $0xb8] sm:$0xff] %vm1277, %v1236
      %1302 = vst.msk [vmem:[#allocation2 + $0xc0] sm:$0xff] %vm1277, %v1237
      %1303 = vst.msk [vmem:[#allocation2 + $0xc8] sm:$0xff] %vm1277, %v1238
      %1304 = vst.msk [vmem:[#allocation2 + $0xd0] sm:$0xff] %vm1277, %v1239
      %1305 = vst.msk [vmem:[#allocation2 + $0xd8] sm:$0xff] %vm1277, %v1240
      %1306 = vst.msk [vmem:[#allocation2 + $0xe0] sm:$0xff] %vm1277, %v1241
      %1307 = vst.msk [vmem:[#allocation2 + $0xe8] sm:$0xff] %vm1277, %v1242
      %1308 = vst.msk [vmem:[#allocation2 + $0xf0] sm:$0xff] %vm1277, %v1243
      %1309 = vst.msk [vmem:[#allocation2 + $0xf8] sm:$0xff] %vm1277, %v1244
      %1310 = vst.msk [vmem:[#allocation2 + $0x100] sm:$0xff] %vm1277, %v1245
      %1311 = vst.msk [vmem:[#allocation2 + $0x108] sm:$0xff] %vm1277, %v1246
      %1312 = vst.msk [vmem:[#allocation2 + $0x110] sm:$0xff] %vm1277, %v1247
      %1313 = vst.msk [vmem:[#allocation2 + $0x118] sm:$0xff] %vm1277, %v1248
      %1314 = vst.msk [vmem:[#allocation2 + $0x120] sm:$0xff] %vm1277, %v1249
      %1315 = vst.msk [vmem:[#allocation2 + $0x128] sm:$0xff] %vm1277, %v1250
      %1316 = vst.msk [vmem:[#allocation2 + $0x130] sm:$0xff] %vm1277, %v1251
      %1317 = vst.msk [vmem:[#allocation2 + $0x138] sm:$0xff] %vm1277, %v1252
      %1318 = vst.msk [vmem:[#allocation2 + $0x140] sm:$0xff] %vm1277, %v1253
      %1319 = vst.msk [vmem:[#allocation2 + $0x148] sm:$0xff] %vm1277, %v1254
      %1320 = vst.msk [vmem:[#allocation2 + $0x150] sm:$0xff] %vm1277, %v1255
      %1321 = vst.msk [vmem:[#allocation2 + $0x158] sm:$0xff] %vm1277, %v1256
      %1322 = vst.msk [vmem:[#allocation2 + $0x160] sm:$0xff] %vm1277, %v1257
      %1323 = vst.msk [vmem:[#allocation2 + $0x168] sm:$0xff] %vm1277, %v1258
      %1324 = vst.msk [vmem:[#allocation2 + $0x170] sm:$0xff] %vm1277, %v1259
      %1325 = vst.msk [vmem:[#allocation2 + $0x178] sm:$0xff] %vm1277, %v1260
      %1326 = vst.msk [vmem:[#allocation2 + $0x180] sm:$0xff] %vm1277, %v1261
      %1327 = vst.msk [vmem:[#allocation2 + $0x188] sm:$0xff] %vm1277, %v1262
      %1328 = vst.msk [vmem:[#allocation2 + $0x190] sm:$0xff] %vm1277, %v1263
      %1329 = vst.msk [vmem:[#allocation2 + $0x198] sm:$0xff] %vm1277, %v1264
      %1330 = vst.msk [vmem:[#allocation2 + $0x1a0] sm:$0xff] %vm1277, %v1265
      %1331 = vst.msk [vmem:[#allocation2 + $0x1a8] sm:$0xff] %vm1277, %v1266
      %1332 = vst.msk [vmem:[#allocation2 + $0x1b0] sm:$0xff] %vm1277, %v1267
      %1333 = vst.msk [vmem:[#allocation2 + $0x1b8] sm:$0xff] %vm1277, %v1268
      %1334 = vst.msk [vmem:[#allocation2 + $0x1c0] sm:$0xff] %vm1277, %v1269
      %1335 = vst.msk [vmem:[#allocation2 + $0x1c8] sm:$0xff] %vm1277, %v1270
      %1336 = vst.msk [vmem:[#allocation2 + $0x1d0] sm:$0xff] %vm1277, %v1271
      %1337 = vst.msk [vmem:[#allocation2 + $0x1d8] sm:$0xff] %vm1277, %v1272
      %1338 = vst.msk [vmem:[#allocation2 + $0x1e0] sm:$0xff] %vm1277, %v1273
      %1339 = vst.msk [vmem:[#allocation2 + $0x1e8] sm:$0xff] %vm1277, %v1274
      %1340 = vst.msk [vmem:[#allocation2 + $0x1f0] sm:$0xff] %vm1277, %v1275
      %1341 = vst.msk [vmem:[#allocation2 + $0x1f8] sm:$0xff] %vm1277, %v1276
      // Predicated region
      $region37: #{joint_model_apply.34} parent=31 // pred_check
        %p1342 = pneg %p230
      $region38: #{joint_model_apply.34} parent=31 // pred_check_branch
        %1344 = sbr.rel (%p1342) target = $region40
      $region39: #{joint_model_apply.34} parent=31 // pred_region
        %v1345 = vld [vmem:[#allocation2] sm:$0xff]
        %v1346 = vld [vmem:[#allocation2 + $0x8] sm:$0xff]
        %v1347 = vld [vmem:[#allocation2 + $0x10] sm:$0xff]
        %v1348 = vld [vmem:[#allocation2 + $0x18] sm:$0xff]
        %v1349 = vld [vmem:[#allocation2 + $0x20] sm:$0xff]
        %v1350 = vld [vmem:[#allocation2 + $0x28] sm:$0xff]
        %v1351 = vld [vmem:[#allocation2 + $0x30] sm:$0xff]
        %v1352 = vld [vmem:[#allocation2 + $0x38] sm:$0xff]
        %v1353 = vld [vmem:[#allocation2 + $0x40] sm:$0xff]
        %v1354 = vld [vmem:[#allocation2 + $0x48] sm:$0xff]
        %v1355 = vld [vmem:[#allocation2 + $0x50] sm:$0xff]
        %v1356 = vld [vmem:[#allocation2 + $0x58] sm:$0xff]
        %v1357 = vld [vmem:[#allocation2 + $0x60] sm:$0xff]
        %v1358 = vld [vmem:[#allocation2 + $0x68] sm:$0xff]
        %v1359 = vld [vmem:[#allocation2 + $0x70] sm:$0xff]
        %v1360 = vld [vmem:[#allocation2 + $0x78] sm:$0xff]
        %v1361 = vld [vmem:[#allocation2 + $0x80] sm:$0xff]
        %v1362 = vld [vmem:[#allocation2 + $0x88] sm:$0xff]
        %v1363 = vld [vmem:[#allocation2 + $0x90] sm:$0xff]
        %v1364 = vld [vmem:[#allocation2 + $0x98] sm:$0xff]
        %v1365 = vld [vmem:[#allocation2 + $0xa0] sm:$0xff]
        %v1366 = vld [vmem:[#allocation2 + $0xa8] sm:$0xff]
        %v1367 = vld [vmem:[#allocation2 + $0xb0] sm:$0xff]
        %v1368 = vld [vmem:[#allocation2 + $0xb8] sm:$0xff]
        %v1369 = vld [vmem:[#allocation2 + $0xc0] sm:$0xff]
        %v1370 = vld [vmem:[#allocation2 + $0xc8] sm:$0xff]
        %v1371 = vld [vmem:[#allocation2 + $0xd0] sm:$0xff]
        %v1372 = vld [vmem:[#allocation2 + $0xd8] sm:$0xff]
        %v1373 = vld [vmem:[#allocation2 + $0xe0] sm:$0xff]
        %v1374 = vld [vmem:[#allocation2 + $0xe8] sm:$0xff]
        %v1375 = vld [vmem:[#allocation2 + $0xf0] sm:$0xff]
        %v1376 = vld [vmem:[#allocation2 + $0xf8] sm:$0xff]
        %v1377 = vld [vmem:[#allocation2 + $0x100] sm:$0xff]
        %v1378 = vld [vmem:[#allocation2 + $0x108] sm:$0xff]
        %v1379 = vld [vmem:[#allocation2 + $0x110] sm:$0xff]
        %v1380 = vld [vmem:[#allocation2 + $0x118] sm:$0xff]
        %v1381 = vld [vmem:[#allocation2 + $0x120] sm:$0xff]
        %v1382 = vld [vmem:[#allocation2 + $0x128] sm:$0xff]
        %v1383 = vld [vmem:[#allocation2 + $0x130] sm:$0xff]
        %v1384 = vld [vmem:[#allocation2 + $0x138] sm:$0xff]
        %v1385 = vld [vmem:[#allocation2 + $0x140] sm:$0xff]
        %v1386 = vld [vmem:[#allocation2 + $0x148] sm:$0xff]
        %v1387 = vld [vmem:[#allocation2 + $0x150] sm:$0xff]
        %v1388 = vld [vmem:[#allocation2 + $0x158] sm:$0xff]
        %v1389 = vld [vmem:[#allocation2 + $0x160] sm:$0xff]
        %v1390 = vld [vmem:[#allocation2 + $0x168] sm:$0xff]
        %v1391 = vld [vmem:[#allocation2 + $0x170] sm:$0xff]
        %v1392 = vld [vmem:[#allocation2 + $0x178] sm:$0xff]
        %v1393 = vld [vmem:[#allocation2 + $0x180] sm:$0xff]
        %v1394 = vld [vmem:[#allocation2 + $0x188] sm:$0xff]
        %v1395 = vld [vmem:[#allocation2 + $0x190] sm:$0xff]
        %v1396 = vld [vmem:[#allocation2 + $0x198] sm:$0xff]
        %v1397 = vld [vmem:[#allocation2 + $0x1a0] sm:$0xff]
        %v1398 = vld [vmem:[#allocation2 + $0x1a8] sm:$0xff]
        %v1399 = vld [vmem:[#allocation2 + $0x1b0] sm:$0xff]
        %v1400 = vld [vmem:[#allocation2 + $0x1b8] sm:$0xff]
        %v1401 = vld [vmem:[#allocation2 + $0x1c0] sm:$0xff]
        %v1402 = vld [vmem:[#allocation2 + $0x1c8] sm:$0xff]
        %v1403 = vld [vmem:[#allocation2 + $0x1d0] sm:$0xff]
        %v1404 = vld [vmem:[#allocation2 + $0x1d8] sm:$0xff]
        %v1405 = vld [vmem:[#allocation2 + $0x1e0] sm:$0xff]
        %v1406 = vld [vmem:[#allocation2 + $0x1e8] sm:$0xff]
        %v1407 = vld [vmem:[#allocation2 + $0x1f0] sm:$0xff]
        %v1408 = vld [vmem:[#allocation2 + $0x1f8] sm:$0xff]
        %v1409 = vld [vmem:[#allocation3] sm:$0x1]
        %v1411 = vlaneseq
        %v1412 = vshrl.u32 %v1411, 7
        %v1413 = vsub.s32 0, %v1412
        %v1414 = vrot.slane %v1409, %v1413
        %v1416 = vadd.f32 %v1345, %v1414
        %v1417 = vadd.f32 %v1346, %v1414
        %v1418 = vadd.f32 %v1347, %v1414
        %v1419 = vadd.f32 %v1348, %v1414
        %v1420 = vadd.f32 %v1349, %v1414
        %v1421 = vadd.f32 %v1350, %v1414
        %v1422 = vadd.f32 %v1351, %v1414
        %v1423 = vadd.f32 %v1352, %v1414
        %v1424 = vadd.f32 %v1353, %v1414
        %v1425 = vadd.f32 %v1354, %v1414
        %v1426 = vadd.f32 %v1355, %v1414
        %v1427 = vadd.f32 %v1356, %v1414
        %v1428 = vadd.f32 %v1357, %v1414
        %v1429 = vadd.f32 %v1358, %v1414
        %v1430 = vadd.f32 %v1359, %v1414
        %v1431 = vadd.f32 %v1360, %v1414
        %v1432 = vadd.f32 %v1361, %v1414
        %v1433 = vadd.f32 %v1362, %v1414
        %v1434 = vadd.f32 %v1363, %v1414
        %v1435 = vadd.f32 %v1364, %v1414
        %v1436 = vadd.f32 %v1365, %v1414
        %v1437 = vadd.f32 %v1366, %v1414
        %v1438 = vadd.f32 %v1367, %v1414
        %v1439 = vadd.f32 %v1368, %v1414
        %v1440 = vadd.f32 %v1369, %v1414
        %v1441 = vadd.f32 %v1370, %v1414
        %v1442 = vadd.f32 %v1371, %v1414
        %v1443 = vadd.f32 %v1372, %v1414
        %v1444 = vadd.f32 %v1373, %v1414
        %v1445 = vadd.f32 %v1374, %v1414
        %v1446 = vadd.f32 %v1375, %v1414
        %v1447 = vadd.f32 %v1376, %v1414
        %v1448 = vadd.f32 %v1377, %v1414
        %v1449 = vadd.f32 %v1378, %v1414
        %v1450 = vadd.f32 %v1379, %v1414
        %v1451 = vadd.f32 %v1380, %v1414
        %v1452 = vadd.f32 %v1381, %v1414
        %v1453 = vadd.f32 %v1382, %v1414
        %v1454 = vadd.f32 %v1383, %v1414
        %v1455 = vadd.f32 %v1384, %v1414
        %v1456 = vadd.f32 %v1385, %v1414
        %v1457 = vadd.f32 %v1386, %v1414
        %v1458 = vadd.f32 %v1387, %v1414
        %v1459 = vadd.f32 %v1388, %v1414
        %v1460 = vadd.f32 %v1389, %v1414
        %v1461 = vadd.f32 %v1390, %v1414
        %v1462 = vadd.f32 %v1391, %v1414
        %v1463 = vadd.f32 %v1392, %v1414
        %v1464 = vadd.f32 %v1393, %v1414
        %v1465 = vadd.f32 %v1394, %v1414
        %v1466 = vadd.f32 %v1395, %v1414
        %v1467 = vadd.f32 %v1396, %v1414
        %v1468 = vadd.f32 %v1397, %v1414
        %v1469 = vadd.f32 %v1398, %v1414
        %v1470 = vadd.f32 %v1399, %v1414
        %v1471 = vadd.f32 %v1400, %v1414
        %v1472 = vadd.f32 %v1401, %v1414
        %v1473 = vadd.f32 %v1402, %v1414
        %v1474 = vadd.f32 %v1403, %v1414
        %v1475 = vadd.f32 %v1404, %v1414
        %v1476 = vadd.f32 %v1405, %v1414
        %v1477 = vadd.f32 %v1406, %v1414
        %v1478 = vadd.f32 %v1407, %v1414
        %v1479 = vadd.f32 %v1408, %v1414
        %vm1480 = vcmp.ge.f32.partialorder %v1416, 0.0
        %vm1481 = vcmp.ge.f32.partialorder %v1417, 0.0
        %vm1482 = vcmp.ge.f32.partialorder %v1418, 0.0
        %vm1483 = vcmp.ge.f32.partialorder %v1419, 0.0
        %vm1484 = vcmp.ge.f32.partialorder %v1420, 0.0
        %vm1485 = vcmp.ge.f32.partialorder %v1421, 0.0
        %vm1486 = vcmp.ge.f32.partialorder %v1422, 0.0
        %vm1487 = vcmp.ge.f32.partialorder %v1423, 0.0
        %vm1488 = vcmp.ge.f32.partialorder %v1424, 0.0
        %vm1489 = vcmp.ge.f32.partialorder %v1425, 0.0
        %vm1490 = vcmp.ge.f32.partialorder %v1426, 0.0
        %vm1491 = vcmp.ge.f32.partialorder %v1427, 0.0
        %vm1492 = vcmp.ge.f32.partialorder %v1428, 0.0
        %vm1493 = vcmp.ge.f32.partialorder %v1429, 0.0
        %vm1494 = vcmp.ge.f32.partialorder %v1430, 0.0
        %vm1495 = vcmp.ge.f32.partialorder %v1431, 0.0
        %vm1496 = vcmp.ge.f32.partialorder %v1432, 0.0
        %vm1497 = vcmp.ge.f32.partialorder %v1433, 0.0
        %vm1498 = vcmp.ge.f32.partialorder %v1434, 0.0
        %vm1499 = vcmp.ge.f32.partialorder %v1435, 0.0
        %vm1500 = vcmp.ge.f32.partialorder %v1436, 0.0
        %vm1501 = vcmp.ge.f32.partialorder %v1437, 0.0
        %vm1502 = vcmp.ge.f32.partialorder %v1438, 0.0
        %vm1503 = vcmp.ge.f32.partialorder %v1439, 0.0
        %vm1504 = vcmp.ge.f32.partialorder %v1440, 0.0
        %vm1505 = vcmp.ge.f32.partialorder %v1441, 0.0
        %vm1506 = vcmp.ge.f32.partialorder %v1442, 0.0
        %vm1507 = vcmp.ge.f32.partialorder %v1443, 0.0
        %vm1508 = vcmp.ge.f32.partialorder %v1444, 0.0
        %vm1509 = vcmp.ge.f32.partialorder %v1445, 0.0
        %vm1510 = vcmp.ge.f32.partialorder %v1446, 0.0
        %vm1511 = vcmp.ge.f32.partialorder %v1447, 0.0
        %vm1512 = vcmp.ge.f32.partialorder %v1448, 0.0
        %vm1513 = vcmp.ge.f32.partialorder %v1449, 0.0
        %vm1514 = vcmp.ge.f32.partialorder %v1450, 0.0
        %vm1515 = vcmp.ge.f32.partialorder %v1451, 0.0
        %vm1516 = vcmp.ge.f32.partialorder %v1452, 0.0
        %vm1517 = vcmp.ge.f32.partialorder %v1453, 0.0
        %vm1518 = vcmp.ge.f32.partialorder %v1454, 0.0
        %vm1519 = vcmp.ge.f32.partialorder %v1455, 0.0
        %vm1520 = vcmp.ge.f32.partialorder %v1456, 0.0
        %vm1521 = vcmp.ge.f32.partialorder %v1457, 0.0
        %vm1522 = vcmp.ge.f32.partialorder %v1458, 0.0
        %vm1523 = vcmp.ge.f32.partialorder %v1459, 0.0
        %vm1524 = vcmp.ge.f32.partialorder %v1460, 0.0
        %vm1525 = vcmp.ge.f32.partialorder %v1461, 0.0
        %vm1526 = vcmp.ge.f32.partialorder %v1462, 0.0
        %vm1527 = vcmp.ge.f32.partialorder %v1463, 0.0
        %vm1528 = vcmp.ge.f32.partialorder %v1464, 0.0
        %vm1529 = vcmp.ge.f32.partialorder %v1465, 0.0
        %vm1530 = vcmp.ge.f32.partialorder %v1466, 0.0
        %vm1531 = vcmp.ge.f32.partialorder %v1467, 0.0
        %vm1532 = vcmp.ge.f32.partialorder %v1468, 0.0
        %vm1533 = vcmp.ge.f32.partialorder %v1469, 0.0
        %vm1534 = vcmp.ge.f32.partialorder %v1470, 0.0
        %vm1535 = vcmp.ge.f32.partialorder %v1471, 0.0
        %vm1536 = vcmp.ge.f32.partialorder %v1472, 0.0
        %vm1537 = vcmp.ge.f32.partialorder %v1473, 0.0
        %vm1538 = vcmp.ge.f32.partialorder %v1474, 0.0
        %vm1539 = vcmp.ge.f32.partialorder %v1475, 0.0
        %vm1540 = vcmp.ge.f32.partialorder %v1476, 0.0
        %vm1541 = vcmp.ge.f32.partialorder %v1477, 0.0
        %vm1542 = vcmp.ge.f32.partialorder %v1478, 0.0
        %vm1543 = vcmp.ge.f32.partialorder %v1479, 0.0
        %v1544 = vmul.f32 %v1416, 0.2
        %v1545 = vmul.f32 %v1417, 0.2
        %v1546 = vmul.f32 %v1418, 0.2
        %v1547 = vmul.f32 %v1419, 0.2
        %v1548 = vmul.f32 %v1420, 0.2
        %v1549 = vmul.f32 %v1421, 0.2
        %v1550 = vmul.f32 %v1422, 0.2
        %v1551 = vmul.f32 %v1423, 0.2
        %v1552 = vmul.f32 %v1424, 0.2
        %v1553 = vmul.f32 %v1425, 0.2
        %v1554 = vmul.f32 %v1426, 0.2
        %v1555 = vmul.f32 %v1427, 0.2
        %v1556 = vmul.f32 %v1428, 0.2
        %v1557 = vmul.f32 %v1429, 0.2
        %v1558 = vmul.f32 %v1430, 0.2
        %v1559 = vmul.f32 %v1431, 0.2
        %v1560 = vmul.f32 %v1432, 0.2
        %v1561 = vmul.f32 %v1433, 0.2
        %v1562 = vmul.f32 %v1434, 0.2
        %v1563 = vmul.f32 %v1435, 0.2
        %v1564 = vmul.f32 %v1436, 0.2
        %v1565 = vmul.f32 %v1437, 0.2
        %v1566 = vmul.f32 %v1438, 0.2
        %v1567 = vmul.f32 %v1439, 0.2
        %v1568 = vmul.f32 %v1440, 0.2
        %v1569 = vmul.f32 %v1441, 0.2
        %v1570 = vmul.f32 %v1442, 0.2
        %v1571 = vmul.f32 %v1443, 0.2
        %v1572 = vmul.f32 %v1444, 0.2
        %v1573 = vmul.f32 %v1445, 0.2
        %v1574 = vmul.f32 %v1446, 0.2
        %v1575 = vmul.f32 %v1447, 0.2
        %v1576 = vmul.f32 %v1448, 0.2
        %v1577 = vmul.f32 %v1449, 0.2
        %v1578 = vmul.f32 %v1450, 0.2
        %v1579 = vmul.f32 %v1451, 0.2
        %v1580 = vmul.f32 %v1452, 0.2
        %v1581 = vmul.f32 %v1453, 0.2
        %v1582 = vmul.f32 %v1454, 0.2
        %v1583 = vmul.f32 %v1455, 0.2
        %v1584 = vmul.f32 %v1456, 0.2
        %v1585 = vmul.f32 %v1457, 0.2
        %v1586 = vmul.f32 %v1458, 0.2
        %v1587 = vmul.f32 %v1459, 0.2
        %v1588 = vmul.f32 %v1460, 0.2
        %v1589 = vmul.f32 %v1461, 0.2
        %v1590 = vmul.f32 %v1462, 0.2
        %v1591 = vmul.f32 %v1463, 0.2
        %v1592 = vmul.f32 %v1464, 0.2
        %v1593 = vmul.f32 %v1465, 0.2
        %v1594 = vmul.f32 %v1466, 0.2
        %v1595 = vmul.f32 %v1467, 0.2
        %v1596 = vmul.f32 %v1468, 0.2
        %v1597 = vmul.f32 %v1469, 0.2
        %v1598 = vmul.f32 %v1470, 0.2
        %v1599 = vmul.f32 %v1471, 0.2
        %v1600 = vmul.f32 %v1472, 0.2
        %v1601 = vmul.f32 %v1473, 0.2
        %v1602 = vmul.f32 %v1474, 0.2
        %v1603 = vmul.f32 %v1475, 0.2
        %v1604 = vmul.f32 %v1476, 0.2
        %v1605 = vmul.f32 %v1477, 0.2
        %v1606 = vmul.f32 %v1478, 0.2
        %v1607 = vmul.f32 %v1479, 0.2
        %v1608 = vsel %vm1480, %v1416, %v1544
        %v1609 = vsel %vm1481, %v1417, %v1545
        %v1610 = vsel %vm1482, %v1418, %v1546
        %v1611 = vsel %vm1483, %v1419, %v1547
        %v1612 = vsel %vm1484, %v1420, %v1548
        %v1613 = vsel %vm1485, %v1421, %v1549
        %v1614 = vsel %vm1486, %v1422, %v1550
        %v1615 = vsel %vm1487, %v1423, %v1551
        %v1616 = vsel %vm1488, %v1424, %v1552
        %v1617 = vsel %vm1489, %v1425, %v1553
        %v1618 = vsel %vm1490, %v1426, %v1554
        %v1619 = vsel %vm1491, %v1427, %v1555
        %v1620 = vsel %vm1492, %v1428, %v1556
        %v1621 = vsel %vm1493, %v1429, %v1557
        %v1622 = vsel %vm1494, %v1430, %v1558
        %v1623 = vsel %vm1495, %v1431, %v1559
        %v1624 = vsel %vm1496, %v1432, %v1560
        %v1625 = vsel %vm1497, %v1433, %v1561
        %v1626 = vsel %vm1498, %v1434, %v1562
        %v1627 = vsel %vm1499, %v1435, %v1563
        %v1628 = vsel %vm1500, %v1436, %v1564
        %v1629 = vsel %vm1501, %v1437, %v1565
        %v1630 = vsel %vm1502, %v1438, %v1566
        %v1631 = vsel %vm1503, %v1439, %v1567
        %v1632 = vsel %vm1504, %v1440, %v1568
        %v1633 = vsel %vm1505, %v1441, %v1569
        %v1634 = vsel %vm1506, %v1442, %v1570
        %v1635 = vsel %vm1507, %v1443, %v1571
        %v1636 = vsel %vm1508, %v1444, %v1572
        %v1637 = vsel %vm1509, %v1445, %v1573
        %v1638 = vsel %vm1510, %v1446, %v1574
        %v1639 = vsel %vm1511, %v1447, %v1575
        %v1640 = vsel %vm1512, %v1448, %v1576
        %v1641 = vsel %vm1513, %v1449, %v1577
        %v1642 = vsel %vm1514, %v1450, %v1578
        %v1643 = vsel %vm1515, %v1451, %v1579
        %v1644 = vsel %vm1516, %v1452, %v1580
        %v1645 = vsel %vm1517, %v1453, %v1581
        %v1646 = vsel %vm1518, %v1454, %v1582
        %v1647 = vsel %vm1519, %v1455, %v1583
        %v1648 = vsel %vm1520, %v1456, %v1584
        %v1649 = vsel %vm1521, %v1457, %v1585
        %v1650 = vsel %vm1522, %v1458, %v1586
        %v1651 = vsel %vm1523, %v1459, %v1587
        %v1652 = vsel %vm1524, %v1460, %v1588
        %v1653 = vsel %vm1525, %v1461, %v1589
        %v1654 = vsel %vm1526, %v1462, %v1590
        %v1655 = vsel %vm1527, %v1463, %v1591
        %v1656 = vsel %vm1528, %v1464, %v1592
        %v1657 = vsel %vm1529, %v1465, %v1593
        %v1658 = vsel %vm1530, %v1466, %v1594
        %v1659 = vsel %vm1531, %v1467, %v1595
        %v1660 = vsel %vm1532, %v1468, %v1596
        %v1661 = vsel %vm1533, %v1469, %v1597
        %v1662 = vsel %vm1534, %v1470, %v1598
        %v1663 = vsel %vm1535, %v1471, %v1599
        %v1664 = vsel %vm1536, %v1472, %v1600
        %v1665 = vsel %vm1537, %v1473, %v1601
        %v1666 = vsel %vm1538, %v1474, %v1602
        %v1667 = vsel %vm1539, %v1475, %v1603
        %v1668 = vsel %vm1540, %v1476, %v1604
        %v1669 = vsel %vm1541, %v1477, %v1605
        %v1670 = vsel %vm1542, %v1478, %v1606
        %v1671 = vsel %vm1543, %v1479, %v1607
        %v1672 = vmul.f32 %v1608, 0.999995
        %v1673 = vmul.f32 %v1609, 0.999995
        %v1674 = vmul.f32 %v1610, 0.999995
        %v1675 = vmul.f32 %v1611, 0.999995
        %v1676 = vmul.f32 %v1612, 0.999995
        %v1677 = vmul.f32 %v1613, 0.999995
        %v1678 = vmul.f32 %v1614, 0.999995
        %v1679 = vmul.f32 %v1615, 0.999995
        %v1680 = vmul.f32 %v1616, 0.999995
        %v1681 = vmul.f32 %v1617, 0.999995
        %v1682 = vmul.f32 %v1618, 0.999995
        %v1683 = vmul.f32 %v1619, 0.999995
        %v1684 = vmul.f32 %v1620, 0.999995
        %v1685 = vmul.f32 %v1621, 0.999995
        %v1686 = vmul.f32 %v1622, 0.999995
        %v1687 = vmul.f32 %v1623, 0.999995
        %v1688 = vmul.f32 %v1624, 0.999995
        %v1689 = vmul.f32 %v1625, 0.999995
        %v1690 = vmul.f32 %v1626, 0.999995
        %v1691 = vmul.f32 %v1627, 0.999995
        %v1692 = vmul.f32 %v1628, 0.999995
        %v1693 = vmul.f32 %v1629, 0.999995
        %v1694 = vmul.f32 %v1630, 0.999995
        %v1695 = vmul.f32 %v1631, 0.999995
        %v1696 = vmul.f32 %v1632, 0.999995
        %v1697 = vmul.f32 %v1633, 0.999995
        %v1698 = vmul.f32 %v1634, 0.999995
        %v1699 = vmul.f32 %v1635, 0.999995
        %v1700 = vmul.f32 %v1636, 0.999995
        %v1701 = vmul.f32 %v1637, 0.999995
        %v1702 = vmul.f32 %v1638, 0.999995
        %v1703 = vmul.f32 %v1639, 0.999995
        %v1704 = vmul.f32 %v1640, 0.999995
        %v1705 = vmul.f32 %v1641, 0.999995
        %v1706 = vmul.f32 %v1642, 0.999995
        %v1707 = vmul.f32 %v1643, 0.999995
        %v1708 = vmul.f32 %v1644, 0.999995
        %v1709 = vmul.f32 %v1645, 0.999995
        %v1710 = vmul.f32 %v1646, 0.999995
        %v1711 = vmul.f32 %v1647, 0.999995
        %v1712 = vmul.f32 %v1648, 0.999995
        %v1713 = vmul.f32 %v1649, 0.999995
        %v1714 = vmul.f32 %v1650, 0.999995
        %v1715 = vmul.f32 %v1651, 0.999995
        %v1716 = vmul.f32 %v1652, 0.999995
        %v1717 = vmul.f32 %v1653, 0.999995
        %v1718 = vmul.f32 %v1654, 0.999995
        %v1719 = vmul.f32 %v1655, 0.999995
        %v1720 = vmul.f32 %v1656, 0.999995
        %v1721 = vmul.f32 %v1657, 0.999995
        %v1722 = vmul.f32 %v1658, 0.999995
        %v1723 = vmul.f32 %v1659, 0.999995
        %v1724 = vmul.f32 %v1660, 0.999995
        %v1725 = vmul.f32 %v1661, 0.999995
        %v1726 = vmul.f32 %v1662, 0.999995
        %v1727 = vmul.f32 %v1663, 0.999995
        %v1728 = vmul.f32 %v1664, 0.999995
        %v1729 = vmul.f32 %v1665, 0.999995
        %v1730 = vmul.f32 %v1666, 0.999995
        %v1731 = vmul.f32 %v1667, 0.999995
        %v1732 = vmul.f32 %v1668, 0.999995
        %v1733 = vmul.f32 %v1669, 0.999995
        %v1734 = vmul.f32 %v1670, 0.999995
        %v1735 = vmul.f32 %v1671, 0.999995
        %1736 = vst.msk [vmem:[%s227] sm:$0xff] %vm1277, %v1672
        %1737 = vst.msk [vmem:[%s227 + $0x8] sm:$0xff] %vm1277, %v1673
        %1738 = vst.msk [vmem:[%s227 + $0x10] sm:$0xff] %vm1277, %v1674
        %1739 = vst.msk [vmem:[%s227 + $0x18] sm:$0xff] %vm1277, %v1675
        %1740 = vst.msk [vmem:[%s227 + $0x20] sm:$0xff] %vm1277, %v1676
        %1741 = vst.msk [vmem:[%s227 + $0x28] sm:$0xff] %vm1277, %v1677
        %1742 = vst.msk [vmem:[%s227 + $0x30] sm:$0xff] %vm1277, %v1678
        %1743 = vst.msk [vmem:[%s227 + $0x38] sm:$0xff] %vm1277, %v1679
        %1744 = vst.msk [vmem:[%s227 + $0x40] sm:$0xff] %vm1277, %v1680
        %1745 = vst.msk [vmem:[%s227 + $0x48] sm:$0xff] %vm1277, %v1681
        %1746 = vst.msk [vmem:[%s227 + $0x50] sm:$0xff] %vm1277, %v1682
        %1747 = vst.msk [vmem:[%s227 + $0x58] sm:$0xff] %vm1277, %v1683
        %1748 = vst.msk [vmem:[%s227 + $0x60] sm:$0xff] %vm1277, %v1684
        %1749 = vst.msk [vmem:[%s227 + $0x68] sm:$0xff] %vm1277, %v1685
        %1750 = vst.msk [vmem:[%s227 + $0x70] sm:$0xff] %vm1277, %v1686
        %1751 = vst.msk [vmem:[%s227 + $0x78] sm:$0xff] %vm1277, %v1687
        %1752 = vst.msk [vmem:[%s227 + $0x80] sm:$0xff] %vm1277, %v1688
        %1753 = vst.msk [vmem:[%s227 + $0x88] sm:$0xff] %vm1277, %v1689
        %1754 = vst.msk [vmem:[%s227 + $0x90] sm:$0xff] %vm1277, %v1690
        %1755 = vst.msk [vmem:[%s227 + $0x98] sm:$0xff] %vm1277, %v1691
        %1756 = vst.msk [vmem:[%s227 + $0xa0] sm:$0xff] %vm1277, %v1692
        %1757 = vst.msk [vmem:[%s227 + $0xa8] sm:$0xff] %vm1277, %v1693
        %1758 = vst.msk [vmem:[%s227 + $0xb0] sm:$0xff] %vm1277, %v1694
        %1759 = vst.msk [vmem:[%s227 + $0xb8] sm:$0xff] %vm1277, %v1695
        %1760 = vst.msk [vmem:[%s227 + $0xc0] sm:$0xff] %vm1277, %v1696
        %1761 = vst.msk [vmem:[%s227 + $0xc8] sm:$0xff] %vm1277, %v1697
        %1762 = vst.msk [vmem:[%s227 + $0xd0] sm:$0xff] %vm1277, %v1698
        %1763 = vst.msk [vmem:[%s227 + $0xd8] sm:$0xff] %vm1277, %v1699
        %1764 = vst.msk [vmem:[%s227 + $0xe0] sm:$0xff] %vm1277, %v1700
        %1765 = vst.msk [vmem:[%s227 + $0xe8] sm:$0xff] %vm1277, %v1701
        %1766 = vst.msk [vmem:[%s227 + $0xf0] sm:$0xff] %vm1277, %v1702
        %1767 = vst.msk [vmem:[%s227 + $0xf8] sm:$0xff] %vm1277, %v1703
        %1768 = vst.msk [vmem:[%s227 + $0x100] sm:$0xff] %vm1277, %v1704
        %1769 = vst.msk [vmem:[%s227 + $0x108] sm:$0xff] %vm1277, %v1705
        %1770 = vst.msk [vmem:[%s227 + $0x110] sm:$0xff] %vm1277, %v1706
        %1771 = vst.msk [vmem:[%s227 + $0x118] sm:$0xff] %vm1277, %v1707
        %1772 = vst.msk [vmem:[%s227 + $0x120] sm:$0xff] %vm1277, %v1708
        %1773 = vst.msk [vmem:[%s227 + $0x128] sm:$0xff] %vm1277, %v1709
        %1774 = vst.msk [vmem:[%s227 + $0x130] sm:$0xff] %vm1277, %v1710
        %1775 = vst.msk [vmem:[%s227 + $0x138] sm:$0xff] %vm1277, %v1711
        %1776 = vst.msk [vmem:[%s227 + $0x140] sm:$0xff] %vm1277, %v1712
        %1777 = vst.msk [vmem:[%s227 + $0x148] sm:$0xff] %vm1277, %v1713
        %1778 = vst.msk [vmem:[%s227 + $0x150] sm:$0xff] %vm1277, %v1714
        %1779 = vst.msk [vmem:[%s227 + $0x158] sm:$0xff] %vm1277, %v1715
        %1780 = vst.msk [vmem:[%s227 + $0x160] sm:$0xff] %vm1277, %v1716
        %1781 = vst.msk [vmem:[%s227 + $0x168] sm:$0xff] %vm1277, %v1717
        %1782 = vst.msk [vmem:[%s227 + $0x170] sm:$0xff] %vm1277, %v1718
        %1783 = vst.msk [vmem:[%s227 + $0x178] sm:$0xff] %vm1277, %v1719
        %1784 = vst.msk [vmem:[%s227 + $0x180] sm:$0xff] %vm1277, %v1720
        %1785 = vst.msk [vmem:[%s227 + $0x188] sm:$0xff] %vm1277, %v1721
        %1786 = vst.msk [vmem:[%s227 + $0x190] sm:$0xff] %vm1277, %v1722
        %1787 = vst.msk [vmem:[%s227 + $0x198] sm:$0xff] %vm1277, %v1723
        %1788 = vst.msk [vmem:[%s227 + $0x1a0] sm:$0xff] %vm1277, %v1724
        %1789 = vst.msk [vmem:[%s227 + $0x1a8] sm:$0xff] %vm1277, %v1725
        %1790 = vst.msk [vmem:[%s227 + $0x1b0] sm:$0xff] %vm1277, %v1726
        %1791 = vst.msk [vmem:[%s227 + $0x1b8] sm:$0xff] %vm1277, %v1727
        %1792 = vst.msk [vmem:[%s227 + $0x1c0] sm:$0xff] %vm1277, %v1728
        %1793 = vst.msk [vmem:[%s227 + $0x1c8] sm:$0xff] %vm1277, %v1729
        %1794 = vst.msk [vmem:[%s227 + $0x1d0] sm:$0xff] %vm1277, %v1730
        %1795 = vst.msk [vmem:[%s227 + $0x1d8] sm:$0xff] %vm1277, %v1731
        %1796 = vst.msk [vmem:[%s227 + $0x1e0] sm:$0xff] %vm1277, %v1732
        %1797 = vst.msk [vmem:[%s227 + $0x1e8] sm:$0xff] %vm1277, %v1733
        %1798 = vst.msk [vmem:[%s227 + $0x1f0] sm:$0xff] %vm1277, %v1734
        %1799 = vst.msk [vmem:[%s227 + $0x1f8] sm:$0xff] %vm1277, %v1735
      $region40: #{joint_model_apply.34} parent=31 // pred_fallthru
        _
      %s1800 = smul.u32 64, %s20
      %p1801 = scmp.lt.s32.totalorder %s1800, 127
      %s1802 = scalar_select %p1801, %s1800, 127
      %s1803 = smul.addr %s1802, 8
      %s1804 = scalar_lea.vmem %s3, %s1803
      // Predicated region
      $region41: #{joint_model_apply.34} parent=31 // pred_check
        %p1805 = pneg %p121
      $region42: #{joint_model_apply.34} parent=31 // pred_check_branch
        %1807 = sbr.rel (%p1805) target = $region44
      $region43: #{joint_model_apply.34} parent=31 // pred_region
        %s1808 = smul.u32 64, %s20
      $region44: #{joint_model_apply.34} parent=31 // pred_fallthru
        _
    $region32: #{joint_model_apply.34} parent=5 // pred_fallthru
      _
    %p1809 = scmp.le.s32.totalorder 2, %s11
    // Predicated region
    $region45: #{joint_model_apply.34} parent=5 // pred_check
      %p1810 = pneg %p1809
    $region46: #{joint_model_apply.34} parent=5 // pred_check_branch
      %1812 = sbr.rel (%p1810) target = $region48
    $region47: #{joint_model_apply.34} parent=5 // pred_region
      %s1813 = ssub.s32 %s11, 2
      // Predicated region
      $region49: #{joint_model_apply.34} parent=47 // pred_check
        %p1814 = pneg %p127
      $region50: #{joint_model_apply.34} parent=47 // pred_check_branch
        %1816 = sbr.rel (%p1814) target = $region52
      $region51: #{joint_model_apply.34} parent=47 // pred_region
        %s1817 = smul.u32 64, %s22
        %p1818 = scmp.lt.s32.totalorder %s1817, 127
        %s1819 = scalar_select %p1818, %s1817, 127
        %s1820 = smul.addr %s1819, 8
        %s1821 = scalar_lea.vmem %s3, %s1820
      $region52: #{joint_model_apply.34} parent=47 // pred_fallthru
        _
    $region48: #{joint_model_apply.34} parent=5 // pred_fallthru
      _
  $region6: #{joint_model_apply.34} parent=0 // loop_footer
    %s15 = sadd.s32 1, %s11
  $region7: #{joint_model_apply.34} parent=0 // loop_footer_branch
    %10 = sbr.rel target = $region3
  $region8: #{joint_model_apply.34} parent=0 // loop_exit
    _

// kernel: joint_model_apply.55
$region0: #{joint_model_apply.55}
  #allocation0 [shape = 'u32[]', space=smem, size = 0x4, offset = 0x4, fixed_abs, tag = 'smem constant byte address 0x4 - core index']
  #allocation1 [shape = 'u32[144,128]{1,0:T(1,128)}', space=vmem, size = 0x12000, scoped, tag = 'internal scratch']
  %s0 = inlined_call_operand.vmem [shape: f32[8,128], index: 0, kind: input, shape index: {}]
  %s1 = inlined_call_operand.vmem [shape: f32[8,128], index: 1, kind: input, shape index: {}]
  %s2 = inlined_call_operand.vmem [shape: f32[8,128], index: 2, kind: output, shape index: {}]
  %s3 = sld [smem:[#allocation0]]
  $region18: #{joint_model_apply.55} parent=0
    _
  %s5 = ssub.s32 1, %s3
  %s6 = scalar_select 0, %s5, %s3
  // Predicated region
  $region2: #{joint_model_apply.55} parent=0 // pred_check
    _
  $region3: #{joint_model_apply.55} parent=0 // pred_check_branch
    %8 = sbr.rel (0) target = $region5
  $region4: #{joint_model_apply.55} parent=0 // pred_region
    _
  $region5: #{joint_model_apply.55} parent=0 // pred_fallthru
    _
  // Predicated region
  $region6: #{joint_model_apply.55} parent=0 // pred_check
    _
  $region7: #{joint_model_apply.55} parent=0 // pred_check_branch
    %10 = sbr.rel (0) target = $region9
  $region8: #{joint_model_apply.55} parent=0 // pred_region
    _
  $region9: #{joint_model_apply.55} parent=0 // pred_fallthru
    _
  %v11 = vld [vmem:[%s0] sm:$0xff]
  %v12 = vld [vmem:[%s1] sm:$0xff]
  %v13 = vmul.f32 %v12, 0.999995
  %v14 = vadd.f32 %v11, %v13
  %15 = vst [vmem:[%s2] sm:$0xff] %v14
  // Predicated region
  $region10: #{joint_model_apply.55} parent=0 // pred_check
    _
  $region11: #{joint_model_apply.55} parent=0 // pred_check_branch
    %17 = sbr.rel (0) target = $region13
  $region12: #{joint_model_apply.55} parent=0 // pred_region
    _
  $region13: #{joint_model_apply.55} parent=0 // pred_fallthru
    _
  // Predicated region
  $region14: #{joint_model_apply.55} parent=0 // pred_check
    _
  $region15: #{joint_model_apply.55} parent=0 // pred_check_branch
    %19 = sbr.rel (0) target = $region17
  $region16: #{joint_model_apply.55} parent=0 // pred_region
    _
  $region17: #{joint_model_apply.55} parent=0 // pred_fallthru
    _

</llo_original>
